<compile_context>
chip_gen: v6e
topology: v6e:2x2x1
jax: 0.10.0
libtpu: 0.0.40
codegen_flags: <defaults>
</compile_context>

<pallas_src>
import functools
import itertools

import jax
import jax.numpy as jnp
from jax.experimental import pallas as pl
from jax.experimental.pallas import tpu as pltpu


# ----------------------------------------------------------------------------
# Pallas kernel: fused  (weight @ patches) * scale + bias  [+ ReLU]
#   weight : [Cout, K]  bf16     patches : [K, tm]  bf16
#   scale  : [Cout, 1]  f32      bias    : [Cout, 1] f32
#   out    : [Cout, tm] f32   (lane-dense: tm = 128/256/512)
# ----------------------------------------------------------------------------
def _mm_scale_bias_kernel(w_ref, p_ref, s_ref, b_ref, o_ref, *, relu):
    acc = jnp.dot(w_ref[...], p_ref[...], preferred_element_type=jnp.float32)
    acc = acc * s_ref[...] + b_ref[...]
    if relu:
        acc = jnp.maximum(acc, 0.0)
    o_ref[...] = acc.astype(o_ref.dtype)


def _matmul_t(w_t, patches_t, scale, bias, relu):
    """w_t: [Cout, K] bf16, patches_t: [K, M] bf16, scale/bias: [Cout,1] f32 -> [Cout, M] f32."""
    Cout, K = w_t.shape
    K2, M = patches_t.shape
    assert K == K2

    # Lane dim must be a multiple of 128; only the tiny deep levels ever need this pad.
    M_pad = ((M + 127) // 128) * 128
    if M_pad != M:
        patches_t = jnp.pad(patches_t, ((0, 0), (0, M_pad - M)))

    # Big M tile (>=256 to fill the v6e/v7x MXU lane dim, 512 for HBM-roofline friendliness);
    # choose a divisor of M_pad so there are no ragged blocks.
    if M_pad % 512 == 0:
        tm = 512
    elif M_pad % 256 == 0:
        tm = 256
    else:
        tm = 128

    out = pl.pallas_call(
        functools.partial(_mm_scale_bias_kernel, relu=relu),
        out_shape=jax.ShapeDtypeStruct((Cout, M_pad), jnp.float32),
        grid_spec=pltpu.PrefetchScalarGridSpec(
            num_scalar_prefetch=0,
            grid=(M_pad // tm,),
            in_specs=[
                pl.BlockSpec((Cout, K), lambda i: (0, 0)),   # weight: resident across grid
                pl.BlockSpec((K, tm), lambda i: (0, i)),     # patch tile: lane-dense M
                pl.BlockSpec((Cout, 1), lambda i: (0, 0)),   # folded BN scale
                pl.BlockSpec((Cout, 1), lambda i: (0, 0)),   # folded BN bias
            ],
            out_specs=pl.BlockSpec((Cout, tm), lambda i: (0, i)),
        ),
        compiler_params=pltpu.CompilerParams(dimension_semantics=("parallel",)),
    )(w_t, patches_t, scale, bias)

    if M_pad != M:
        out = out[:, :M]
    return out


# ----------------------------------------------------------------------------
# Glue: transposed im2col (channels-first), conv / parity-decomposed deconv
# ----------------------------------------------------------------------------
def _im2col_t(xc, stride=1, pad=1):
    """xc: [C, N, D, H, W] -> patches [27*C, N*Do*Ho*Wo] (rows: tap-major, channel-minor)."""
    C, N, D, H, W = xc.shape
    if pad:
        xc = jnp.pad(xc, ((0, 0), (0, 0), (pad, pad), (pad, pad), (pad, pad)))
    Dp, Hp, Wp = D + 2 * pad, H + 2 * pad, W + 2 * pad
    Do = (Dp - 3) // stride + 1
    Ho = (Hp - 3) // stride + 1
    Wo = (Wp - 3) // stride + 1
    cols = []
    for kd in range(3):
        for kh in range(3):
            for kw in range(3):
                cols.append(
                    xc[:, :,
                       kd:kd + (Do - 1) * stride + 1:stride,
                       kh:kh + (Ho - 1) * stride + 1:stride,
                       kw:kw + (Wo - 1) * stride + 1:stride])
    patches = jnp.stack(cols, axis=0)                      # [27, C, N, Do, Ho, Wo]
    return patches.reshape(27 * C, N * Do * Ho * Wo), (N, Do, Ho, Wo)


def _conv3d_cf(xc, wmat, scale, bias, relu, stride=1):
    """3x3x3 conv, channels-first. xc: [Cin, N, D, H, W] f32; wmat: [Cout, 27*Cin] bf16."""
    Cout = wmat.shape[0]
    patches, (N, Do, Ho, Wo) = _im2col_t(xc.astype(jnp.bfloat16), stride=stride, pad=1)
    out = _matmul_t(wmat, patches, scale, bias, relu)
    return out.reshape(Cout, N, Do, Ho, Wo)


_PARITIES = tuple(itertools.product((0, 1), repeat=3))


def _parity_taps(p):
    # (kernel_index, input_shift) pairs contributing to outputs of parity p
    # for ConvTranspose with k=3, stride=2, pad=1:  o = 2*i - 1 + k
    #   even outputs (p=0): k=1, i=m        ; odd outputs (p=1): k=2, i=m  and  k=0, i=m+1
    return ((1, 0),) if p == 0 else ((2, 0), (0, 1))


def _deconv3d_cf(xc, p):
    """ConvTranspose3d(k=3, s=2, p=1, output_padding=1, bias=False) + BN, channels-first.
    Parity decomposition: 8 sub-convs at input resolution (no zero dilation)."""
    Cin, N, D, H, W = xc.shape
    w_list, scale, bias = p['w'], p['scale'], p['bias']
    Cout = w_list[0].shape[0]
    # end-pad by one so the shift-by-one taps at the far boundary read zeros
    xb = jnp.pad(xc.astype(jnp.bfloat16), ((0, 0), (0, 0), (0, 1), (0, 1), (0, 1)))
    up = jnp.zeros((Cout, N, 2 * D, 2 * H, 2 * W), jnp.float32)
    for pi, (pd, ph, pw) in enumerate(_PARITIES):
        cols = []
        for (_, sd) in _parity_taps(pd):
            for (_, sh) in _parity_taps(ph):
                for (_, sw) in _parity_taps(pw):
                    cols.append(xb[:, :, sd:sd + D, sh:sh + H, sw:sw + W])
        patches = jnp.stack(cols, axis=0).reshape(len(cols) * Cin, N * D * H * W)
        out_p = _matmul_t(w_list[pi], patches, scale, bias, relu=False)
        out_p = out_p.reshape(Cout, N, D, H, W)
        up = up.at[:, :, pd::2, ph::2, pw::2].set(out_p)
    return up


# ----------------------------------------------------------------------------
# One-time parameter preparation (outside jit): matmul-ready bf16 weights + folded BN
# ----------------------------------------------------------------------------
def _bn_fold(gamma, beta, mean, var, eps=1e-5):
    scale = gamma / jnp.sqrt(var + eps)
    bias = beta - mean * scale
    return (scale.reshape(-1, 1).astype(jnp.float32),
            bias.reshape(-1, 1).astype(jnp.float32))


def _prep_conv_weight(w_pt):
    """PyTorch Conv3d weight [Cout, Cin, 3,3,3] -> [Cout, 27*Cin] bf16 (tap-major, cin-minor)."""
    Cout, Cin = w_pt.shape[0], w_pt.shape[1]
    return jnp.transpose(w_pt, (0, 2, 3, 4, 1)).reshape(Cout, 27 * Cin).astype(jnp.bfloat16)


def _prep_deconv_weight(w_pt):
    """PyTorch ConvTranspose3d weight [Cin, Cout, 3,3,3] -> 8 parity matrices [Cout, T*Cin] bf16."""
    Cin, Cout = w_pt.shape[0], w_pt.shape[1]
    mats = []
    for (pd, ph, pw) in _PARITIES:
        subs = []
        for (kd, _) in _parity_taps(pd):
            for (kh, _) in _parity_taps(ph):
                for (kw, _) in _parity_taps(pw):
                    subs.append(w_pt[:, :, kd, kh, kw])        # [Cin, Cout]
        wsub = jnp.stack(subs, axis=0)                          # [T, Cin, Cout]
        mats.append(jnp.transpose(wsub, (2, 0, 1)).reshape(Cout, -1).astype(jnp.bfloat16))
    return tuple(mats)


def init_params(key, in_channels):
    keys = iter(jax.random.split(key, 64))

    def conv_w(cout, cin):
        return 0.1 * jax.random.normal(next(keys), (cout, cin, 3, 3, 3), jnp.float32)

    def convt_w(cin, cout):
        return 0.1 * jax.random.normal(next(keys), (cin, cout, 3, 3, 3), jnp.float32)

    def bn(c):
        gamma = 1.0 + 0.1 * jax.random.normal(next(keys), (c,), jnp.float32)
        beta = 0.1 * jax.random.normal(next(keys), (c,), jnp.float32)
        return _bn_fold(gamma, beta, jnp.zeros((c,)), jnp.ones((c,)))

    def cbr(cin, cout):   # ConvBnReLU3D
        s, b = bn(cout)
        return {'w': _prep_conv_weight(conv_w(cout, cin)), 'scale': s, 'bias': b}

    def ctb(cin, cout):   # ConvTranspose3d + BN
        s, b = bn(cout)
        return {'w': _prep_deconv_weight(convt_w(cin, cout)), 'scale': s, 'bias': b}

    # depth_conv (8->1) and feat_conv (8->8), both bias=False, merged into one Cout=9 head
    w_depth = _prep_conv_weight(conv_w(1, 8))
    w_feat = _prep_conv_weight(conv_w(8, 8))
    head = {'w': jnp.concatenate([w_depth, w_feat], axis=0),
            'scale': jnp.ones((9, 1), jnp.float32),
            'bias': jnp.zeros((9, 1), jnp.float32)}

    return {
        'conv0': cbr(in_channels, 8),
        'conv1': cbr(8, 16), 'conv2': cbr(16, 16),
        'conv3': cbr(16, 32), 'conv4': cbr(32, 32),
        'conv5': cbr(32, 64), 'conv6': cbr(64, 64),
        'conv7': ctb(64, 32), 'conv9': ctb(32, 16), 'conv11': ctb(16, 8),
        'head': head,
    }


# ----------------------------------------------------------------------------
# CostRegNet forward
# ----------------------------------------------------------------------------
def cost_reg_net(x_ncdhw, params):
    x = jnp.transpose(x_ncdhw, (1, 0, 2, 3, 4))            # NCDHW -> [C, N, D, H, W]

    def cbr(h, p, stride=1):
        return _conv3d_cf(h, p['w'], p['scale'], p['bias'], relu=True, stride=stride)

    conv0 = cbr(x, params['conv0'])
    conv2 = cbr(cbr(conv0, params['conv1'], stride=2), params['conv2'])
    conv4 = cbr(cbr(conv2, params['conv3'], stride=2), params['conv4'])
    h = cbr(cbr(conv4, params['conv5'], stride=2), params['conv6'])

    # U-Net decoder with skip connections (skip add kept as a plain elementwise op)
    h = conv4 + _deconv3d_cf(h, params['conv7'])
    h = conv2 + _deconv3d_cf(h, params['conv9'])
    h = conv0 + _deconv3d_cf(h, params['conv11'])

    # merged depth + feature head (Cout = 1 + 8 = 9), single pass over h
    p = params['head']
    head = _conv3d_cf(h, p['w'], p['scale'], p['bias'], relu=False)   # [9, N, D, H, W]
    depth = head[0]                                        # squeeze(1) + Identity out_actvn
    feat = jnp.transpose(head[1:9], (1, 0, 2, 3, 4))       # -> [N, 8, D, H, W]
    return feat, depth


# ----------------------------------------------------------------------------
if __name__ == "__main__":
    key = jax.random.PRNGKey(0)
    k_param, k_x = jax.random.split(key)

    N, C_in, D, H, W = 2, 4, 8, 8, 8   # spatial dims divisible by size_pad=8
    x = jax.random.normal(k_x, (N, C_in, D, H, W), jnp.float32)
    params = init_params(k_param, C_in)

    fwd = jax.jit(cost_reg_net)
    feat, depth = fwd(x, params)
    feat = jax.block_until_ready(feat)
    depth = jax.block_until_ready(depth)

    assert feat.shape == (N, 8, D, H, W), feat.shape
    assert depth.shape == (N, D, H, W), depth.shape
    assert bool(jnp.all(jnp.isfinite(feat))) and bool(jnp.all(jnp.isfinite(depth)))
    print("KERNEL_OK")
</pallas_src>

<mosaic_0001>
module attributes {stable_mosaic.version = 11 : i64} {
  func.func @_mm_scale_bias_kernel(%arg0: i32, %arg1: memref<8x108xbf16, #tpu.memory_space<vmem>>, %arg2: memref<108x512xbf16, #tpu.memory_space<vmem>>, %arg3: memref<8x1xf32, #tpu.memory_space<vmem>>, %arg4: memref<8x1xf32, #tpu.memory_space<vmem>>, %arg5: memref<8x512xf32, #tpu.memory_space<vmem>>) attributes {dimension_semantics = [#tpu.dimension_semantics<parallel>], iteration_bounds = array<i64: 2>, scalar_prefetch = 0 : i64, scratch_operands = 0 : i64, tpu.core_type = #tpu.core_type<tc>, window_params = [{pipeline_mode = #tpu.pipeline_mode<synchronous>, transform_indices = @transform_0, window_bounds = array<i64: 8, 108>}, {transform_indices = @transform_1, window_bounds = array<i64: 108, 512>}, {pipeline_mode = #tpu.pipeline_mode<synchronous>, transform_indices = @transform_2, window_bounds = array<i64: 8, 1>}, {pipeline_mode = #tpu.pipeline_mode<synchronous>, transform_indices = @transform_3, window_bounds = array<i64: 8, 1>}, {transform_indices = @transform_4, window_bounds = array<i64: 8, 512>}]} {
    %c0 = arith.constant 0 : index
    %c0_0 = arith.constant 0 : index
    %0 = vector.load %arg1[%c0, %c0_0] : memref<8x108xbf16, #tpu.memory_space<vmem>>, vector<8x108xbf16>
    %c0_1 = arith.constant 0 : index
    %c0_2 = arith.constant 0 : index
    %1 = vector.load %arg2[%c0_1, %c0_2] : memref<108x512xbf16, #tpu.memory_space<vmem>>, vector<108x512xbf16>
    %cst = arith.constant dense<0.000000e+00> : vector<8x512xf32>
    %2 = tpu.matmul %0, %1, %cst {dimension_numbers = #tpu.dot_dimension_numbers<[1], [0], [0], [1], [0, 0, 1, 1], [], []>} : vector<8x108xbf16>, vector<108x512xbf16>, vector<8x512xf32> -> vector<8x512xf32>
    %c0_3 = arith.constant 0 : index
    %c0_4 = arith.constant 0 : index
    %3 = vector.load %arg3[%c0_3, %c0_4] : memref<8x1xf32, #tpu.memory_space<vmem>>, vector<8x1xf32>
    %4 = vector.broadcast %3 : vector<8x1xf32> to vector<8x512xf32>
    %5 = arith.mulf %2, %4 : vector<8x512xf32>
    %c0_5 = arith.constant 0 : index
    %c0_6 = arith.constant 0 : index
    %6 = vector.load %arg4[%c0_5, %c0_6] : memref<8x1xf32, #tpu.memory_space<vmem>>, vector<8x1xf32>
    %7 = vector.broadcast %6 : vector<8x1xf32> to vector<8x512xf32>
    %8 = arith.addf %5, %7 : vector<8x512xf32>
    %cst_7 = arith.constant 0.000000e+00 : f32
    %9 = vector.broadcast %cst_7 : f32 to vector<8x512xf32>
    %10 = arith.maximumf %8, %9 : vector<8x512xf32>
    %c0_8 = arith.constant 0 : index
    %c0_9 = arith.constant 0 : index
    %11 = vector.load %arg5[%c0_8, %c0_9] : memref<8x512xf32, #tpu.memory_space<vmem>>, vector<8x512xf32>
    tpu.vector_store %arg5[%c0_8, %c0_9], %10 {strides = array<i32>} : memref<8x512xf32, #tpu.memory_space<vmem>>, vector<8x512xf32>,
    return
  }
  func.func @transform_0(%arg0: i32) -> (i32, i32) {
    %c0_i32 = arith.constant 0 : i32
    %c0_i32_0 = arith.constant 0 : i32
    %c0_i32_1 = arith.constant 0 : i32
    return %c0_i32, %c0_i32_0 : i32, i32
  }
  func.func @transform_1(%arg0: i32) -> (i32, i32) {
    %c0_i32 = arith.constant 0 : i32
    %c0_i32_0 = arith.constant 0 : i32
    return %c0_i32, %arg0 : i32, i32
  }
  func.func @transform_2(%arg0: i32) -> (i32, i32) {
    %c0_i32 = arith.constant 0 : i32
    %c0_i32_0 = arith.constant 0 : i32
    %c0_i32_1 = arith.constant 0 : i32
    return %c0_i32, %c0_i32_0 : i32, i32
  }
  func.func @transform_3(%arg0: i32) -> (i32, i32) {
    %c0_i32 = arith.constant 0 : i32
    %c0_i32_0 = arith.constant 0 : i32
    %c0_i32_1 = arith.constant 0 : i32
    return %c0_i32, %c0_i32_0 : i32, i32
  }
  func.func @transform_4(%arg0: i32) -> (i32, i32) {
    %c0_i32 = arith.constant 0 : i32
    %c0_i32_0 = arith.constant 0 : i32
    return %c0_i32, %arg0 : i32, i32
  }
}

module attributes {stable_mosaic.version = 11 : i64} {
  func.func @_mm_scale_bias_kernel(%arg0: i32, %arg1: memref<16x216xbf16, #tpu.memory_space<vmem>>, %arg2: memref<216x128xbf16, #tpu.memory_space<vmem>>, %arg3: memref<16x1xf32, #tpu.memory_space<vmem>>, %arg4: memref<16x1xf32, #tpu.memory_space<vmem>>, %arg5: memref<16x128xf32, #tpu.memory_space<vmem>>) attributes {dimension_semantics = [#tpu.dimension_semantics<parallel>], iteration_bounds = array<i64: 1>, scalar_prefetch = 0 : i64, scratch_operands = 0 : i64, tpu.core_type = #tpu.core_type<tc>, window_params = [{pipeline_mode = #tpu.pipeline_mode<synchronous>, transform_indices = @transform_0, window_bounds = array<i64: 16, 216>}, {transform_indices = @transform_1, window_bounds = array<i64: 216, 128>}, {pipeline_mode = #tpu.pipeline_mode<synchronous>, transform_indices = @transform_2, window_bounds = array<i64: 16, 1>}, {pipeline_mode = #tpu.pipeline_mode<synchronous>, transform_indices = @transform_3, window_bounds = array<i64: 16, 1>}, {transform_indices = @transform_4, window_bounds = array<i64: 16, 128>}]} {
    %c0 = arith.constant 0 : index
    %c0_0 = arith.constant 0 : index
    %0 = vector.load %arg1[%c0, %c0_0] : memref<16x216xbf16, #tpu.memory_space<vmem>>, vector<16x216xbf16>
    %c0_1 = arith.constant 0 : index
    %c0_2 = arith.constant 0 : index
    %1 = vector.load %arg2[%c0_1, %c0_2] : memref<216x128xbf16, #tpu.memory_space<vmem>>, vector<216x128xbf16>
    %cst = arith.constant dense<0.000000e+00> : vector<16x128xf32>
    %2 = tpu.matmul %0, %1, %cst {dimension_numbers = #tpu.dot_dimension_numbers<[1], [0], [0], [1], [0, 0, 1, 1], [], []>} : vector<16x216xbf16>, vector<216x128xbf16>, vector<16x128xf32> -> vector<16x128xf32>
    %c0_3 = arith.constant 0 : index
    %c0_4 = arith.constant 0 : index
    %3 = vector.load %arg3[%c0_3, %c0_4] : memref<16x1xf32, #tpu.memory_space<vmem>>, vector<16x1xf32>
    %4 = vector.broadcast %3 : vector<16x1xf32> to vector<16x128xf32>
    %5 = arith.mulf %2, %4 : vector<16x128xf32>
    %c0_5 = arith.constant 0 : index
    %c0_6 = arith.constant 0 : index
    %6 = vector.load %arg4[%c0_5, %c0_6] : memref<16x1xf32, #tpu.memory_space<vmem>>, vector<16x1xf32>
    %7 = vector.broadcast %6 : vector<16x1xf32> to vector<16x128xf32>
    %8 = arith.addf %5, %7 : vector<16x128xf32>
    %cst_7 = arith.constant 0.000000e+00 : f32
    %9 = vector.broadcast %cst_7 : f32 to vector<16x128xf32>
    %10 = arith.maximumf %8, %9 : vector<16x128xf32>
    %c0_8 = arith.constant 0 : index
    %c0_9 = arith.constant 0 : index
    %11 = vector.load %arg5[%c0_8, %c0_9] : memref<16x128xf32, #tpu.memory_space<vmem>>, vector<16x128xf32>
    tpu.vector_store %arg5[%c0_8, %c0_9], %10 {strides = array<i32>} : memref<16x128xf32, #tpu.memory_space<vmem>>, vector<16x128xf32>,
    return
  }
  func.func @transform_0(%arg0: i32) -> (i32, i32) {
    %c0_i32 = arith.constant 0 : i32
    %c0_i32_0 = arith.constant 0 : i32
    %c0_i32_1 = arith.constant 0 : i32
    return %c0_i32, %c0_i32_0 : i32, i32
  }
  func.func @transform_1(%arg0: i32) -> (i32, i32) {
    %c0_i32 = arith.constant 0 : i32
    %c0_i32_0 = arith.constant 0 : i32
    return %c0_i32, %arg0 : i32, i32
  }
  func.func @transform_2(%arg0: i32) -> (i32, i32) {
    %c0_i32 = arith.constant 0 : i32
    %c0_i32_0 = arith.constant 0 : i32
    %c0_i32_1 = arith.constant 0 : i32
    return %c0_i32, %c0_i32_0 : i32, i32
  }
  func.func @transform_3(%arg0: i32) -> (i32, i32) {
    %c0_i32 = arith.constant 0 : i32
    %c0_i32_0 = arith.constant 0 : i32
    %c0_i32_1 = arith.constant 0 : i32
    return %c0_i32, %c0_i32_0 : i32, i32
  }
  func.func @transform_4(%arg0: i32) -> (i32, i32) {
    %c0_i32 = arith.constant 0 : i32
    %c0_i32_0 = arith.constant 0 : i32
    return %c0_i32, %arg0 : i32, i32
  }
}

module attributes {stable_mosaic.version = 11 : i64} {
  func.func @_mm_scale_bias_kernel(%arg0: i32, %arg1: memref<16x432xbf16, #tpu.memory_space<vmem>>, %arg2: memref<432x128xbf16, #tpu.memory_space<vmem>>, %arg3: memref<16x1xf32, #tpu.memory_space<vmem>>, %arg4: memref<16x1xf32, #tpu.memory_space<vmem>>, %arg5: memref<16x128xf32, #tpu.memory_space<vmem>>) attributes {dimension_semantics = [#tpu.dimension_semantics<parallel>], iteration_bounds = array<i64: 1>, scalar_prefetch = 0 : i64, scratch_operands = 0 : i64, tpu.core_type = #tpu.core_type<tc>, window_params = [{pipeline_mode = #tpu.pipeline_mode<synchronous>, transform_indices = @transform_0, window_bounds = array<i64: 16, 432>}, {transform_indices = @transform_1, window_bounds = array<i64: 432, 128>}, {pipeline_mode = #tpu.pipeline_mode<synchronous>, transform_indices = @transform_2, window_bounds = array<i64: 16, 1>}, {pipeline_mode = #tpu.pipeline_mode<synchronous>, transform_indices = @transform_3, window_bounds = array<i64: 16, 1>}, {transform_indices = @transform_4, window_bounds = array<i64: 16, 128>}]} {
    %c0 = arith.constant 0 : index
    %c0_0 = arith.constant 0 : index
    %0 = vector.load %arg1[%c0, %c0_0] : memref<16x432xbf16, #tpu.memory_space<vmem>>, vector<16x432xbf16>
    %c0_1 = arith.constant 0 : index
    %c0_2 = arith.constant 0 : index
    %1 = vector.load %arg2[%c0_1, %c0_2] : memref<432x128xbf16, #tpu.memory_space<vmem>>, vector<432x128xbf16>
    %cst = arith.constant dense<0.000000e+00> : vector<16x128xf32>
    %2 = tpu.matmul %0, %1, %cst {dimension_numbers = #tpu.dot_dimension_numbers<[1], [0], [0], [1], [0, 0, 1, 1], [], []>} : vector<16x432xbf16>, vector<432x128xbf16>, vector<16x128xf32> -> vector<16x128xf32>
    %c0_3 = arith.constant 0 : index
    %c0_4 = arith.constant 0 : index
    %3 = vector.load %arg3[%c0_3, %c0_4] : memref<16x1xf32, #tpu.memory_space<vmem>>, vector<16x1xf32>
    %4 = vector.broadcast %3 : vector<16x1xf32> to vector<16x128xf32>
    %5 = arith.mulf %2, %4 : vector<16x128xf32>
    %c0_5 = arith.constant 0 : index
    %c0_6 = arith.constant 0 : index
    %6 = vector.load %arg4[%c0_5, %c0_6] : memref<16x1xf32, #tpu.memory_space<vmem>>, vector<16x1xf32>
    %7 = vector.broadcast %6 : vector<16x1xf32> to vector<16x128xf32>
    %8 = arith.addf %5, %7 : vector<16x128xf32>
    %cst_7 = arith.constant 0.000000e+00 : f32
    %9 = vector.broadcast %cst_7 : f32 to vector<16x128xf32>
    %10 = arith.maximumf %8, %9 : vector<16x128xf32>
    %c0_8 = arith.constant 0 : index
    %c0_9 = arith.constant 0 : index
    %11 = vector.load %arg5[%c0_8, %c0_9] : memref<16x128xf32, #tpu.memory_space<vmem>>, vector<16x128xf32>
    tpu.vector_store %arg5[%c0_8, %c0_9], %10 {strides = array<i32>} : memref<16x128xf32, #tpu.memory_space<vmem>>, vector<16x128xf32>,
    return
  }
  func.func @transform_0(%arg0: i32) -> (i32, i32) {
    %c0_i32 = arith.constant 0 : i32
    %c0_i32_0 = arith.constant 0 : i32
    %c0_i32_1 = arith.constant 0 : i32
    return %c0_i32, %c0_i32_0 : i32, i32
  }
  func.func @transform_1(%arg0: i32) -> (i32, i32) {
    %c0_i32 = arith.constant 0 : i32
    %c0_i32_0 = arith.constant 0 : i32
    return %c0_i32, %arg0 : i32, i32
  }
  func.func @transform_2(%arg0: i32) -> (i32, i32) {
    %c0_i32 = arith.constant 0 : i32
    %c0_i32_0 = arith.constant 0 : i32
    %c0_i32_1 = arith.constant 0 : i32
    return %c0_i32, %c0_i32_0 : i32, i32
  }
  func.func @transform_3(%arg0: i32) -> (i32, i32) {
    %c0_i32 = arith.constant 0 : i32
    %c0_i32_0 = arith.constant 0 : i32
    %c0_i32_1 = arith.constant 0 : i32
    return %c0_i32, %c0_i32_0 : i32, i32
  }
  func.func @transform_4(%arg0: i32) -> (i32, i32) {
    %c0_i32 = arith.constant 0 : i32
    %c0_i32_0 = arith.constant 0 : i32
    return %c0_i32, %arg0 : i32, i32
  }
}

module attributes {stable_mosaic.version = 11 : i64} {
  func.func @_mm_scale_bias_kernel(%arg0: i32, %arg1: memref<32x432xbf16, #tpu.memory_space<vmem>>, %arg2: memref<432x128xbf16, #tpu.memory_space<vmem>>, %arg3: memref<32x1xf32, #tpu.memory_space<vmem>>, %arg4: memref<32x1xf32, #tpu.memory_space<vmem>>, %arg5: memref<32x128xf32, #tpu.memory_space<vmem>>) attributes {dimension_semantics = [#tpu.dimension_semantics<parallel>], iteration_bounds = array<i64: 1>, scalar_prefetch = 0 : i64, scratch_operands = 0 : i64, tpu.core_type = #tpu.core_type<tc>, window_params = [{pipeline_mode = #tpu.pipeline_mode<synchronous>, transform_indices = @transform_0, window_bounds = array<i64: 32, 432>}, {transform_indices = @transform_1, window_bounds = array<i64: 432, 128>}, {pipeline_mode = #tpu.pipeline_mode<synchronous>, transform_indices = @transform_2, window_bounds = array<i64: 32, 1>}, {pipeline_mode = #tpu.pipeline_mode<synchronous>, transform_indices = @transform_3, window_bounds = array<i64: 32, 1>}, {transform_indices = @transform_4, window_bounds = array<i64: 32, 128>}]} {
    %c0 = arith.constant 0 : index
    %c0_0 = arith.constant 0 : index
    %0 = vector.load %arg1[%c0, %c0_0] : memref<32x432xbf16, #tpu.memory_space<vmem>>, vector<32x432xbf16>
    %c0_1 = arith.constant 0 : index
    %c0_2 = arith.constant 0 : index
    %1 = vector.load %arg2[%c0_1, %c0_2] : memref<432x128xbf16, #tpu.memory_space<vmem>>, vector<432x128xbf16>
    %cst = arith.constant dense<0.000000e+00> : vector<32x128xf32>
    %2 = tpu.matmul %0, %1, %cst {dimension_numbers = #tpu.dot_dimension_numbers<[1], [0], [0], [1], [0, 0, 1, 1], [], []>} : vector<32x432xbf16>, vector<432x128xbf16>, vector<32x128xf32> -> vector<32x128xf32>
    %c0_3 = arith.constant 0 : index
    %c0_4 = arith.constant 0 : index
    %3 = vector.load %arg3[%c0_3, %c0_4] : memref<32x1xf32, #tpu.memory_space<vmem>>, vector<32x1xf32>
    %4 = vector.broadcast %3 : vector<32x1xf32> to vector<32x128xf32>
    %5 = arith.mulf %2, %4 : vector<32x128xf32>
    %c0_5 = arith.constant 0 : index
    %c0_6 = arith.constant 0 : index
    %6 = vector.load %arg4[%c0_5, %c0_6] : memref<32x1xf32, #tpu.memory_space<vmem>>, vector<32x1xf32>
    %7 = vector.broadcast %6 : vector<32x1xf32> to vector<32x128xf32>
    %8 = arith.addf %5, %7 : vector<32x128xf32>
    %cst_7 = arith.constant 0.000000e+00 : f32
    %9 = vector.broadcast %cst_7 : f32 to vector<32x128xf32>
    %10 = arith.maximumf %8, %9 : vector<32x128xf32>
    %c0_8 = arith.constant 0 : index
    %c0_9 = arith.constant 0 : index
    %11 = vector.load %arg5[%c0_8, %c0_9] : memref<32x128xf32, #tpu.memory_space<vmem>>, vector<32x128xf32>
    tpu.vector_store %arg5[%c0_8, %c0_9], %10 {strides = array<i32>} : memref<32x128xf32, #tpu.memory_space<vmem>>, vector<32x128xf32>,
    return
  }
  func.func @transform_0(%arg0: i32) -> (i32, i32) {
    %c0_i32 = arith.constant 0 : i32
    %c0_i32_0 = arith.constant 0 : i32
    %c0_i32_1 = arith.constant 0 : i32
    return %c0_i32, %c0_i32_0 : i32, i32
  }
  func.func @transform_1(%arg0: i32) -> (i32, i32) {
    %c0_i32 = arith.constant 0 : i32
    %c0_i32_0 = arith.constant 0 : i32
    return %c0_i32, %arg0 : i32, i32
  }
  func.func @transform_2(%arg0: i32) -> (i32, i32) {
    %c0_i32 = arith.constant 0 : i32
    %c0_i32_0 = arith.constant 0 : i32
    %c0_i32_1 = arith.constant 0 : i32
    return %c0_i32, %c0_i32_0 : i32, i32
  }
  func.func @transform_3(%arg0: i32) -> (i32, i32) {
    %c0_i32 = arith.constant 0 : i32
    %c0_i32_0 = arith.constant 0 : i32
    %c0_i32_1 = arith.constant 0 : i32
    return %c0_i32, %c0_i32_0 : i32, i32
  }
  func.func @transform_4(%arg0: i32) -> (i32, i32) {
    %c0_i32 = arith.constant 0 : i32
    %c0_i32_0 = arith.constant 0 : i32
    return %c0_i32, %arg0 : i32, i32
  }
}

module attributes {stable_mosaic.version = 11 : i64} {
  func.func @_mm_scale_bias_kernel(%arg0: i32, %arg1: memref<32x864xbf16, #tpu.memory_space<vmem>>, %arg2: memref<864x128xbf16, #tpu.memory_space<vmem>>, %arg3: memref<32x1xf32, #tpu.memory_space<vmem>>, %arg4: memref<32x1xf32, #tpu.memory_space<vmem>>, %arg5: memref<32x128xf32, #tpu.memory_space<vmem>>) attributes {dimension_semantics = [#tpu.dimension_semantics<parallel>], iteration_bounds = array<i64: 1>, scalar_prefetch = 0 : i64, scratch_operands = 0 : i64, tpu.core_type = #tpu.core_type<tc>, window_params = [{pipeline_mode = #tpu.pipeline_mode<synchronous>, transform_indices = @transform_0, window_bounds = array<i64: 32, 864>}, {transform_indices = @transform_1, window_bounds = array<i64: 864, 128>}, {pipeline_mode = #tpu.pipeline_mode<synchronous>, transform_indices = @transform_2, window_bounds = array<i64: 32, 1>}, {pipeline_mode = #tpu.pipeline_mode<synchronous>, transform_indices = @transform_3, window_bounds = array<i64: 32, 1>}, {transform_indices = @transform_4, window_bounds = array<i64: 32, 128>}]} {
    %c0 = arith.constant 0 : index
    %c0_0 = arith.constant 0 : index
    %0 = vector.load %arg1[%c0, %c0_0] : memref<32x864xbf16, #tpu.memory_space<vmem>>, vector<32x864xbf16>
    %c0_1 = arith.constant 0 : index
    %c0_2 = arith.constant 0 : index
    %1 = vector.load %arg2[%c0_1, %c0_2] : memref<864x128xbf16, #tpu.memory_space<vmem>>, vector<864x128xbf16>
    %cst = arith.constant dense<0.000000e+00> : vector<32x128xf32>
    %2 = tpu.matmul %0, %1, %cst {dimension_numbers = #tpu.dot_dimension_numbers<[1], [0], [0], [1], [0, 0, 1, 1], [], []>} : vector<32x864xbf16>, vector<864x128xbf16>, vector<32x128xf32> -> vector<32x128xf32>
    %c0_3 = arith.constant 0 : index
    %c0_4 = arith.constant 0 : index
    %3 = vector.load %arg3[%c0_3, %c0_4] : memref<32x1xf32, #tpu.memory_space<vmem>>, vector<32x1xf32>
    %4 = vector.broadcast %3 : vector<32x1xf32> to vector<32x128xf32>
    %5 = arith.mulf %2, %4 : vector<32x128xf32>
    %c0_5 = arith.constant 0 : index
    %c0_6 = arith.constant 0 : index
    %6 = vector.load %arg4[%c0_5, %c0_6] : memref<32x1xf32, #tpu.memory_space<vmem>>, vector<32x1xf32>
    %7 = vector.broadcast %6 : vector<32x1xf32> to vector<32x128xf32>
    %8 = arith.addf %5, %7 : vector<32x128xf32>
    %cst_7 = arith.constant 0.000000e+00 : f32
    %9 = vector.broadcast %cst_7 : f32 to vector<32x128xf32>
    %10 = arith.maximumf %8, %9 : vector<32x128xf32>
    %c0_8 = arith.constant 0 : index
    %c0_9 = arith.constant 0 : index
    %11 = vector.load %arg5[%c0_8, %c0_9] : memref<32x128xf32, #tpu.memory_space<vmem>>, vector<32x128xf32>
    tpu.vector_store %arg5[%c0_8, %c0_9], %10 {strides = array<i32>} : memref<32x128xf32, #tpu.memory_space<vmem>>, vector<32x128xf32>,
    return
  }
  func.func @transform_0(%arg0: i32) -> (i32, i32) {
    %c0_i32 = arith.constant 0 : i32
    %c0_i32_0 = arith.constant 0 : i32
    %c0_i32_1 = arith.constant 0 : i32
    return %c0_i32, %c0_i32_0 : i32, i32
  }
  func.func @transform_1(%arg0: i32) -> (i32, i32) {
    %c0_i32 = arith.constant 0 : i32
    %c0_i32_0 = arith.constant 0 : i32
    return %c0_i32, %arg0 : i32, i32
  }
  func.func @transform_2(%arg0: i32) -> (i32, i32) {
    %c0_i32 = arith.constant 0 : i32
    %c0_i32_0 = arith.constant 0 : i32
    %c0_i32_1 = arith.constant 0 : i32
    return %c0_i32, %c0_i32_0 : i32, i32
  }
  func.func @transform_3(%arg0: i32) -> (i32, i32) {
    %c0_i32 = arith.constant 0 : i32
    %c0_i32_0 = arith.constant 0 : i32
    %c0_i32_1 = arith.constant 0 : i32
    return %c0_i32, %c0_i32_0 : i32, i32
  }
  func.func @transform_4(%arg0: i32) -> (i32, i32) {
    %c0_i32 = arith.constant 0 : i32
    %c0_i32_0 = arith.constant 0 : i32
    return %c0_i32, %arg0 : i32, i32
  }
}

module attributes {stable_mosaic.version = 11 : i64} {
  func.func @_mm_scale_bias_kernel(%arg0: i32, %arg1: memref<64x864xbf16, #tpu.memory_space<vmem>>, %arg2: memref<864x128xbf16, #tpu.memory_space<vmem>>, %arg3: memref<64x1xf32, #tpu.memory_space<vmem>>, %arg4: memref<64x1xf32, #tpu.memory_space<vmem>>, %arg5: memref<64x128xf32, #tpu.memory_space<vmem>>) attributes {dimension_semantics = [#tpu.dimension_semantics<parallel>], iteration_bounds = array<i64: 1>, scalar_prefetch = 0 : i64, scratch_operands = 0 : i64, tpu.core_type = #tpu.core_type<tc>, window_params = [{pipeline_mode = #tpu.pipeline_mode<synchronous>, transform_indices = @transform_0, window_bounds = array<i64: 64, 864>}, {transform_indices = @transform_1, window_bounds = array<i64: 864, 128>}, {pipeline_mode = #tpu.pipeline_mode<synchronous>, transform_indices = @transform_2, window_bounds = array<i64: 64, 1>}, {pipeline_mode = #tpu.pipeline_mode<synchronous>, transform_indices = @transform_3, window_bounds = array<i64: 64, 1>}, {transform_indices = @transform_4, window_bounds = array<i64: 64, 128>}]} {
    %c0 = arith.constant 0 : index
    %c0_0 = arith.constant 0 : index
    %0 = vector.load %arg1[%c0, %c0_0] : memref<64x864xbf16, #tpu.memory_space<vmem>>, vector<64x864xbf16>
    %c0_1 = arith.constant 0 : index
    %c0_2 = arith.constant 0 : index
    %1 = vector.load %arg2[%c0_1, %c0_2] : memref<864x128xbf16, #tpu.memory_space<vmem>>, vector<864x128xbf16>
    %cst = arith.constant dense<0.000000e+00> : vector<64x128xf32>
    %2 = tpu.matmul %0, %1, %cst {dimension_numbers = #tpu.dot_dimension_numbers<[1], [0], [0], [1], [0, 0, 1, 1], [], []>} : vector<64x864xbf16>, vector<864x128xbf16>, vector<64x128xf32> -> vector<64x128xf32>
    %c0_3 = arith.constant 0 : index
    %c0_4 = arith.constant 0 : index
    %3 = vector.load %arg3[%c0_3, %c0_4] : memref<64x1xf32, #tpu.memory_space<vmem>>, vector<64x1xf32>
    %4 = vector.broadcast %3 : vector<64x1xf32> to vector<64x128xf32>
    %5 = arith.mulf %2, %4 : vector<64x128xf32>
    %c0_5 = arith.constant 0 : index
    %c0_6 = arith.constant 0 : index
    %6 = vector.load %arg4[%c0_5, %c0_6] : memref<64x1xf32, #tpu.memory_space<vmem>>, vector<64x1xf32>
    %7 = vector.broadcast %6 : vector<64x1xf32> to vector<64x128xf32>
    %8 = arith.addf %5, %7 : vector<64x128xf32>
    %cst_7 = arith.constant 0.000000e+00 : f32
    %9 = vector.broadcast %cst_7 : f32 to vector<64x128xf32>
    %10 = arith.maximumf %8, %9 : vector<64x128xf32>
    %c0_8 = arith.constant 0 : index
    %c0_9 = arith.constant 0 : index
    %11 = vector.load %arg5[%c0_8, %c0_9] : memref<64x128xf32, #tpu.memory_space<vmem>>, vector<64x128xf32>
    tpu.vector_store %arg5[%c0_8, %c0_9], %10 {strides = array<i32>} : memref<64x128xf32, #tpu.memory_space<vmem>>, vector<64x128xf32>,
    return
  }
  func.func @transform_0(%arg0: i32) -> (i32, i32) {
    %c0_i32 = arith.constant 0 : i32
    %c0_i32_0 = arith.constant 0 : i32
    %c0_i32_1 = arith.constant 0 : i32
    return %c0_i32, %c0_i32_0 : i32, i32
  }
  func.func @transform_1(%arg0: i32) -> (i32, i32) {
    %c0_i32 = arith.constant 0 : i32
    %c0_i32_0 = arith.constant 0 : i32
    return %c0_i32, %arg0 : i32, i32
  }
  func.func @transform_2(%arg0: i32) -> (i32, i32) {
    %c0_i32 = arith.constant 0 : i32
    %c0_i32_0 = arith.constant 0 : i32
    %c0_i32_1 = arith.constant 0 : i32
    return %c0_i32, %c0_i32_0 : i32, i32
  }
  func.func @transform_3(%arg0: i32) -> (i32, i32) {
    %c0_i32 = arith.constant 0 : i32
    %c0_i32_0 = arith.constant 0 : i32
    %c0_i32_1 = arith.constant 0 : i32
    return %c0_i32, %c0_i32_0 : i32, i32
  }
  func.func @transform_4(%arg0: i32) -> (i32, i32) {
    %c0_i32 = arith.constant 0 : i32
    %c0_i32_0 = arith.constant 0 : i32
    return %c0_i32, %arg0 : i32, i32
  }
}

module attributes {stable_mosaic.version = 11 : i64} {
  func.func @_mm_scale_bias_kernel(%arg0: i32, %arg1: memref<64x1728xbf16, #tpu.memory_space<vmem>>, %arg2: memref<1728x128xbf16, #tpu.memory_space<vmem>>, %arg3: memref<64x1xf32, #tpu.memory_space<vmem>>, %arg4: memref<64x1xf32, #tpu.memory_space<vmem>>, %arg5: memref<64x128xf32, #tpu.memory_space<vmem>>) attributes {dimension_semantics = [#tpu.dimension_semantics<parallel>], iteration_bounds = array<i64: 1>, scalar_prefetch = 0 : i64, scratch_operands = 0 : i64, tpu.core_type = #tpu.core_type<tc>, window_params = [{pipeline_mode = #tpu.pipeline_mode<synchronous>, transform_indices = @transform_0, window_bounds = array<i64: 64, 1728>}, {transform_indices = @transform_1, window_bounds = array<i64: 1728, 128>}, {pipeline_mode = #tpu.pipeline_mode<synchronous>, transform_indices = @transform_2, window_bounds = array<i64: 64, 1>}, {pipeline_mode = #tpu.pipeline_mode<synchronous>, transform_indices = @transform_3, window_bounds = array<i64: 64, 1>}, {transform_indices = @transform_4, window_bounds = array<i64: 64, 128>}]} {
    %c0 = arith.constant 0 : index
    %c0_0 = arith.constant 0 : index
    %0 = vector.load %arg1[%c0, %c0_0] : memref<64x1728xbf16, #tpu.memory_space<vmem>>, vector<64x1728xbf16>
    %c0_1 = arith.constant 0 : index
    %c0_2 = arith.constant 0 : index
    %1 = vector.load %arg2[%c0_1, %c0_2] : memref<1728x128xbf16, #tpu.memory_space<vmem>>, vector<1728x128xbf16>
    %cst = arith.constant dense<0.000000e+00> : vector<64x128xf32>
    %2 = tpu.matmul %0, %1, %cst {dimension_numbers = #tpu.dot_dimension_numbers<[1], [0], [0], [1], [0, 0, 1, 1], [], []>} : vector<64x1728xbf16>, vector<1728x128xbf16>, vector<64x128xf32> -> vector<64x128xf32>
    %c0_3 = arith.constant 0 : index
    %c0_4 = arith.constant 0 : index
    %3 = vector.load %arg3[%c0_3, %c0_4] : memref<64x1xf32, #tpu.memory_space<vmem>>, vector<64x1xf32>
    %4 = vector.broadcast %3 : vector<64x1xf32> to vector<64x128xf32>
    %5 = arith.mulf %2, %4 : vector<64x128xf32>
    %c0_5 = arith.constant 0 : index
    %c0_6 = arith.constant 0 : index
    %6 = vector.load %arg4[%c0_5, %c0_6] : memref<64x1xf32, #tpu.memory_space<vmem>>, vector<64x1xf32>
    %7 = vector.broadcast %6 : vector<64x1xf32> to vector<64x128xf32>
    %8 = arith.addf %5, %7 : vector<64x128xf32>
    %cst_7 = arith.constant 0.000000e+00 : f32
    %9 = vector.broadcast %cst_7 : f32 to vector<64x128xf32>
    %10 = arith.maximumf %8, %9 : vector<64x128xf32>
    %c0_8 = arith.constant 0 : index
    %c0_9 = arith.constant 0 : index
    %11 = vector.load %arg5[%c0_8, %c0_9] : memref<64x128xf32, #tpu.memory_space<vmem>>, vector<64x128xf32>
    tpu.vector_store %arg5[%c0_8, %c0_9], %10 {strides = array<i32>} : memref<64x128xf32, #tpu.memory_space<vmem>>, vector<64x128xf32>,
    return
  }
  func.func @transform_0(%arg0: i32) -> (i32, i32) {
    %c0_i32 = arith.constant 0 : i32
    %c0_i32_0 = arith.constant 0 : i32
    %c0_i32_1 = arith.constant 0 : i32
    return %c0_i32, %c0_i32_0 : i32, i32
  }
  func.func @transform_1(%arg0: i32) -> (i32, i32) {
    %c0_i32 = arith.constant 0 : i32
    %c0_i32_0 = arith.constant 0 : i32
    return %c0_i32, %arg0 : i32, i32
  }
  func.func @transform_2(%arg0: i32) -> (i32, i32) {
    %c0_i32 = arith.constant 0 : i32
    %c0_i32_0 = arith.constant 0 : i32
    %c0_i32_1 = arith.constant 0 : i32
    return %c0_i32, %c0_i32_0 : i32, i32
  }
  func.func @transform_3(%arg0: i32) -> (i32, i32) {
    %c0_i32 = arith.constant 0 : i32
    %c0_i32_0 = arith.constant 0 : i32
    %c0_i32_1 = arith.constant 0 : i32
    return %c0_i32, %c0_i32_0 : i32, i32
  }
  func.func @transform_4(%arg0: i32) -> (i32, i32) {
    %c0_i32 = arith.constant 0 : i32
    %c0_i32_0 = arith.constant 0 : i32
    return %c0_i32, %arg0 : i32, i32
  }
}

module attributes {stable_mosaic.version = 11 : i64} {
  func.func @_mm_scale_bias_kernel(%arg0: i32, %arg1: memref<32x128xbf16, #tpu.memory_space<vmem>>, %arg2: memref<128x128xbf16, #tpu.memory_space<vmem>>, %arg3: memref<32x1xf32, #tpu.memory_space<vmem>>, %arg4: memref<32x1xf32, #tpu.memory_space<vmem>>, %arg5: memref<32x128xf32, #tpu.memory_space<vmem>>) attributes {dimension_semantics = [#tpu.dimension_semantics<parallel>], iteration_bounds = array<i64: 1>, scalar_prefetch = 0 : i64, scratch_operands = 0 : i64, tpu.core_type = #tpu.core_type<tc>, window_params = [{pipeline_mode = #tpu.pipeline_mode<synchronous>, transform_indices = @transform_0, window_bounds = array<i64: 32, 128>}, {transform_indices = @transform_1, window_bounds = array<i64: 128, 128>}, {pipeline_mode = #tpu.pipeline_mode<synchronous>, transform_indices = @transform_2, window_bounds = array<i64: 32, 1>}, {pipeline_mode = #tpu.pipeline_mode<synchronous>, transform_indices = @transform_3, window_bounds = array<i64: 32, 1>}, {transform_indices = @transform_4, window_bounds = array<i64: 32, 128>}]} {
    %c0 = arith.constant 0 : index
    %c0_0 = arith.constant 0 : index
    %0 = vector.load %arg1[%c0, %c0_0] : memref<32x128xbf16, #tpu.memory_space<vmem>>, vector<32x128xbf16>
    %c0_1 = arith.constant 0 : index
    %c0_2 = arith.constant 0 : index
    %1 = vector.load %arg2[%c0_1, %c0_2] : memref<128x128xbf16, #tpu.memory_space<vmem>>, vector<128x128xbf16>
    %cst = arith.constant dense<0.000000e+00> : vector<32x128xf32>
    %2 = tpu.matmul %0, %1, %cst {dimension_numbers = #tpu.dot_dimension_numbers<[1], [0], [0], [1], [0, 0, 1, 1], [], []>} : vector<32x128xbf16>, vector<128x128xbf16>, vector<32x128xf32> -> vector<32x128xf32>
    %c0_3 = arith.constant 0 : index
    %c0_4 = arith.constant 0 : index
    %3 = vector.load %arg3[%c0_3, %c0_4] : memref<32x1xf32, #tpu.memory_space<vmem>>, vector<32x1xf32>
    %4 = vector.broadcast %3 : vector<32x1xf32> to vector<32x128xf32>
    %5 = arith.mulf %2, %4 : vector<32x128xf32>
    %c0_5 = arith.constant 0 : index
    %c0_6 = arith.constant 0 : index
    %6 = vector.load %arg4[%c0_5, %c0_6] : memref<32x1xf32, #tpu.memory_space<vmem>>, vector<32x1xf32>
    %7 = vector.broadcast %6 : vector<32x1xf32> to vector<32x128xf32>
    %8 = arith.addf %5, %7 : vector<32x128xf32>
    %c0_7 = arith.constant 0 : index
    %c0_8 = arith.constant 0 : index
    %9 = vector.load %arg5[%c0_7, %c0_8] : memref<32x128xf32, #tpu.memory_space<vmem>>, vector<32x128xf32>
    tpu.vector_store %arg5[%c0_7, %c0_8], %8 {strides = array<i32>} : memref<32x128xf32, #tpu.memory_space<vmem>>, vector<32x128xf32>,
    return
  }
  func.func @transform_0(%arg0: i32) -> (i32, i32) {
    %c0_i32 = arith.constant 0 : i32
    %c0_i32_0 = arith.constant 0 : i32
    %c0_i32_1 = arith.constant 0 : i32
    return %c0_i32, %c0_i32_0 : i32, i32
  }
  func.func @transform_1(%arg0: i32) -> (i32, i32) {
    %c0_i32 = arith.constant 0 : i32
    %c0_i32_0 = arith.constant 0 : i32
    return %c0_i32, %arg0 : i32, i32
  }
  func.func @transform_2(%arg0: i32) -> (i32, i32) {
    %c0_i32 = arith.constant 0 : i32
    %c0_i32_0 = arith.constant 0 : i32
    %c0_i32_1 = arith.constant 0 : i32
    return %c0_i32, %c0_i32_0 : i32, i32
  }
  func.func @transform_3(%arg0: i32) -> (i32, i32) {
    %c0_i32 = arith.constant 0 : i32
    %c0_i32_0 = arith.constant 0 : i32
    %c0_i32_1 = arith.constant 0 : i32
    return %c0_i32, %c0_i32_0 : i32, i32
  }
  func.func @transform_4(%arg0: i32) -> (i32, i32) {
    %c0_i32 = arith.constant 0 : i32
    %c0_i32_0 = arith.constant 0 : i32
    return %c0_i32, %arg0 : i32, i32
  }
}

module attributes {stable_mosaic.version = 11 : i64} {
  func.func @_mm_scale_bias_kernel(%arg0: i32, %arg1: memref<32x64xbf16, #tpu.memory_space<vmem>>, %arg2: memref<64x128xbf16, #tpu.memory_space<vmem>>, %arg3: memref<32x1xf32, #tpu.memory_space<vmem>>, %arg4: memref<32x1xf32, #tpu.memory_space<vmem>>, %arg5: memref<32x128xf32, #tpu.memory_space<vmem>>) attributes {dimension_semantics = [#tpu.dimension_semantics<parallel>], iteration_bounds = array<i64: 1>, scalar_prefetch = 0 : i64, scratch_operands = 0 : i64, tpu.core_type = #tpu.core_type<tc>, window_params = [{pipeline_mode = #tpu.pipeline_mode<synchronous>, transform_indices = @transform_0, window_bounds = array<i64: 32, 64>}, {transform_indices = @transform_1, window_bounds = array<i64: 64, 128>}, {pipeline_mode = #tpu.pipeline_mode<synchronous>, transform_indices = @transform_2, window_bounds = array<i64: 32, 1>}, {pipeline_mode = #tpu.pipeline_mode<synchronous>, transform_indices = @transform_3, window_bounds = array<i64: 32, 1>}, {transform_indices = @transform_4, window_bounds = array<i64: 32, 128>}]} {
    %c0 = arith.constant 0 : index
    %c0_0 = arith.constant 0 : index
    %0 = vector.load %arg1[%c0, %c0_0] : memref<32x64xbf16, #tpu.memory_space<vmem>>, vector<32x64xbf16>
    %c0_1 = arith.constant 0 : index
    %c0_2 = arith.constant 0 : index
    %1 = vector.load %arg2[%c0_1, %c0_2] : memref<64x128xbf16, #tpu.memory_space<vmem>>, vector<64x128xbf16>
    %cst = arith.constant dense<0.000000e+00> : vector<32x128xf32>
    %2 = tpu.matmul %0, %1, %cst {dimension_numbers = #tpu.dot_dimension_numbers<[1], [0], [0], [1], [0, 0, 1, 1], [], []>} : vector<32x64xbf16>, vector<64x128xbf16>, vector<32x128xf32> -> vector<32x128xf32>
    %c0_3 = arith.constant 0 : index
    %c0_4 = arith.constant 0 : index
    %3 = vector.load %arg3[%c0_3, %c0_4] : memref<32x1xf32, #tpu.memory_space<vmem>>, vector<32x1xf32>
    %4 = vector.broadcast %3 : vector<32x1xf32> to vector<32x128xf32>
    %5 = arith.mulf %2, %4 : vector<32x128xf32>
    %c0_5 = arith.constant 0 : index
    %c0_6 = arith.constant 0 : index
    %6 = vector.load %arg4[%c0_5, %c0_6] : memref<32x1xf32, #tpu.memory_space<vmem>>, vector<32x1xf32>
    %7 = vector.broadcast %6 : vector<32x1xf32> to vector<32x128xf32>
    %8 = arith.addf %5, %7 : vector<32x128xf32>
    %c0_7 = arith.constant 0 : index
    %c0_8 = arith.constant 0 : index
    %9 = vector.load %arg5[%c0_7, %c0_8] : memref<32x128xf32, #tpu.memory_space<vmem>>, vector<32x128xf32>
    tpu.vector_store %arg5[%c0_7, %c0_8], %8 {strides = array<i32>} : memref<32x128xf32, #tpu.memory_space<vmem>>, vector<32x128xf32>,
    return
  }
  func.func @transform_0(%arg0: i32) -> (i32, i32) {
    %c0_i32 = arith.constant 0 : i32
    %c0_i32_0 = arith.constant 0 : i32
    %c0_i32_1 = arith.constant 0 : i32
    return %c0_i32, %c0_i32_0 : i32, i32
  }
  func.func @transform_1(%arg0: i32) -> (i32, i32) {
    %c0_i32 = arith.constant 0 : i32
    %c0_i32_0 = arith.constant 0 : i32
    return %c0_i32, %arg0 : i32, i32
  }
  func.func @transform_2(%arg0: i32) -> (i32, i32) {
    %c0_i32 = arith.constant 0 : i32
    %c0_i32_0 = arith.constant 0 : i32
    %c0_i32_1 = arith.constant 0 : i32
    return %c0_i32, %c0_i32_0 : i32, i32
  }
  func.func @transform_3(%arg0: i32) -> (i32, i32) {
    %c0_i32 = arith.constant 0 : i32
    %c0_i32_0 = arith.constant 0 : i32
    %c0_i32_1 = arith.constant 0 : i32
    return %c0_i32, %c0_i32_0 : i32, i32
  }
  func.func @transform_4(%arg0: i32) -> (i32, i32) {
    %c0_i32 = arith.constant 0 : i32
    %c0_i32_0 = arith.constant 0 : i32
    return %c0_i32, %arg0 : i32, i32
  }
}

module attributes {stable_mosaic.version = 11 : i64} {
  func.func @_mm_scale_bias_kernel(%arg0: i32, %arg1: memref<32x256xbf16, #tpu.memory_space<vmem>>, %arg2: memref<256x128xbf16, #tpu.memory_space<vmem>>, %arg3: memref<32x1xf32, #tpu.memory_space<vmem>>, %arg4: memref<32x1xf32, #tpu.memory_space<vmem>>, %arg5: memref<32x128xf32, #tpu.memory_space<vmem>>) attributes {dimension_semantics = [#tpu.dimension_semantics<parallel>], iteration_bounds = array<i64: 1>, scalar_prefetch = 0 : i64, scratch_operands = 0 : i64, tpu.core_type = #tpu.core_type<tc>, window_params = [{pipeline_mode = #tpu.pipeline_mode<synchronous>, transform_indices = @transform_0, window_bounds = array<i64: 32, 256>}, {transform_indices = @transform_1, window_bounds = array<i64: 256, 128>}, {pipeline_mode = #tpu.pipeline_mode<synchronous>, transform_indices = @transform_2, window_bounds = array<i64: 32, 1>}, {pipeline_mode = #tpu.pipeline_mode<synchronous>, transform_indices = @transform_3, window_bounds = array<i64: 32, 1>}, {transform_indices = @transform_4, window_bounds = array<i64: 32, 128>}]} {
    %c0 = arith.constant 0 : index
    %c0_0 = arith.constant 0 : index
    %0 = vector.load %arg1[%c0, %c0_0] : memref<32x256xbf16, #tpu.memory_space<vmem>>, vector<32x256xbf16>
    %c0_1 = arith.constant 0 : index
    %c0_2 = arith.constant 0 : index
    %1 = vector.load %arg2[%c0_1, %c0_2] : memref<256x128xbf16, #tpu.memory_space<vmem>>, vector<256x128xbf16>
    %cst = arith.constant dense<0.000000e+00> : vector<32x128xf32>
    %2 = tpu.matmul %0, %1, %cst {dimension_numbers = #tpu.dot_dimension_numbers<[1], [0], [0], [1], [0, 0, 1, 1], [], []>} : vector<32x256xbf16>, vector<256x128xbf16>, vector<32x128xf32> -> vector<32x128xf32>
    %c0_3 = arith.constant 0 : index
    %c0_4 = arith.constant 0 : index
    %3 = vector.load %arg3[%c0_3, %c0_4] : memref<32x1xf32, #tpu.memory_space<vmem>>, vector<32x1xf32>
    %4 = vector.broadcast %3 : vector<32x1xf32> to vector<32x128xf32>
    %5 = arith.mulf %2, %4 : vector<32x128xf32>
    %c0_5 = arith.constant 0 : index
    %c0_6 = arith.constant 0 : index
    %6 = vector.load %arg4[%c0_5, %c0_6] : memref<32x1xf32, #tpu.memory_space<vmem>>, vector<32x1xf32>
    %7 = vector.broadcast %6 : vector<32x1xf32> to vector<32x128xf32>
    %8 = arith.addf %5, %7 : vector<32x128xf32>
    %c0_7 = arith.constant 0 : index
    %c0_8 = arith.constant 0 : index
    %9 = vector.load %arg5[%c0_7, %c0_8] : memref<32x128xf32, #tpu.memory_space<vmem>>, vector<32x128xf32>
    tpu.vector_store %arg5[%c0_7, %c0_8], %8 {strides = array<i32>} : memref<32x128xf32, #tpu.memory_space<vmem>>, vector<32x128xf32>,
    return
  }
  func.func @transform_0(%arg0: i32) -> (i32, i32) {
    %c0_i32 = arith.constant 0 : i32
    %c0_i32_0 = arith.constant 0 : i32
    %c0_i32_1 = arith.constant 0 : i32
    return %c0_i32, %c0_i32_0 : i32, i32
  }
  func.func @transform_1(%arg0: i32) -> (i32, i32) {
    %c0_i32 = arith.constant 0 : i32
    %c0_i32_0 = arith.constant 0 : i32
    return %c0_i32, %arg0 : i32, i32
  }
  func.func @transform_2(%arg0: i32) -> (i32, i32) {
    %c0_i32 = arith.constant 0 : i32
    %c0_i32_0 = arith.constant 0 : i32
    %c0_i32_1 = arith.constant 0 : i32
    return %c0_i32, %c0_i32_0 : i32, i32
  }
  func.func @transform_3(%arg0: i32) -> (i32, i32) {
    %c0_i32 = arith.constant 0 : i32
    %c0_i32_0 = arith.constant 0 : i32
    %c0_i32_1 = arith.constant 0 : i32
    return %c0_i32, %c0_i32_0 : i32, i32
  }
  func.func @transform_4(%arg0: i32) -> (i32, i32) {
    %c0_i32 = arith.constant 0 : i32
    %c0_i32_0 = arith.constant 0 : i32
    return %c0_i32, %arg0 : i32, i32
  }
}

module attributes {stable_mosaic.version = 11 : i64} {
  func.func @_mm_scale_bias_kernel(%arg0: i32, %arg1: memref<32x512xbf16, #tpu.memory_space<vmem>>, %arg2: memref<512x128xbf16, #tpu.memory_space<vmem>>, %arg3: memref<32x1xf32, #tpu.memory_space<vmem>>, %arg4: memref<32x1xf32, #tpu.memory_space<vmem>>, %arg5: memref<32x128xf32, #tpu.memory_space<vmem>>) attributes {dimension_semantics = [#tpu.dimension_semantics<parallel>], iteration_bounds = array<i64: 1>, scalar_prefetch = 0 : i64, scratch_operands = 0 : i64, tpu.core_type = #tpu.core_type<tc>, window_params = [{pipeline_mode = #tpu.pipeline_mode<synchronous>, transform_indices = @transform_0, window_bounds = array<i64: 32, 512>}, {transform_indices = @transform_1, window_bounds = array<i64: 512, 128>}, {pipeline_mode = #tpu.pipeline_mode<synchronous>, transform_indices = @transform_2, window_bounds = array<i64: 32, 1>}, {pipeline_mode = #tpu.pipeline_mode<synchronous>, transform_indices = @transform_3, window_bounds = array<i64: 32, 1>}, {transform_indices = @transform_4, window_bounds = array<i64: 32, 128>}]} {
    %c0 = arith.constant 0 : index
    %c0_0 = arith.constant 0 : index
    %0 = vector.load %arg1[%c0, %c0_0] : memref<32x512xbf16, #tpu.memory_space<vmem>>, vector<32x512xbf16>
    %c0_1 = arith.constant 0 : index
    %c0_2 = arith.constant 0 : index
    %1 = vector.load %arg2[%c0_1, %c0_2] : memref<512x128xbf16, #tpu.memory_space<vmem>>, vector<512x128xbf16>
    %cst = arith.constant dense<0.000000e+00> : vector<32x128xf32>
    %2 = tpu.matmul %0, %1, %cst {dimension_numbers = #tpu.dot_dimension_numbers<[1], [0], [0], [1], [0, 0, 1, 1], [], []>} : vector<32x512xbf16>, vector<512x128xbf16>, vector<32x128xf32> -> vector<32x128xf32>
    %c0_3 = arith.constant 0 : index
    %c0_4 = arith.constant 0 : index
    %3 = vector.load %arg3[%c0_3, %c0_4] : memref<32x1xf32, #tpu.memory_space<vmem>>, vector<32x1xf32>
    %4 = vector.broadcast %3 : vector<32x1xf32> to vector<32x128xf32>
    %5 = arith.mulf %2, %4 : vector<32x128xf32>
    %c0_5 = arith.constant 0 : index
    %c0_6 = arith.constant 0 : index
    %6 = vector.load %arg4[%c0_5, %c0_6] : memref<32x1xf32, #tpu.memory_space<vmem>>, vector<32x1xf32>
    %7 = vector.broadcast %6 : vector<32x1xf32> to vector<32x128xf32>
    %8 = arith.addf %5, %7 : vector<32x128xf32>
    %c0_7 = arith.constant 0 : index
    %c0_8 = arith.constant 0 : index
    %9 = vector.load %arg5[%c0_7, %c0_8] : memref<32x128xf32, #tpu.memory_space<vmem>>, vector<32x128xf32>
    tpu.vector_store %arg5[%c0_7, %c0_8], %8 {strides = array<i32>} : memref<32x128xf32, #tpu.memory_space<vmem>>, vector<32x128xf32>,
    return
  }
  func.func @transform_0(%arg0: i32) -> (i32, i32) {
    %c0_i32 = arith.constant 0 : i32
    %c0_i32_0 = arith.constant 0 : i32
    %c0_i32_1 = arith.constant 0 : i32
    return %c0_i32, %c0_i32_0 : i32, i32
  }
  func.func @transform_1(%arg0: i32) -> (i32, i32) {
    %c0_i32 = arith.constant 0 : i32
    %c0_i32_0 = arith.constant 0 : i32
    return %c0_i32, %arg0 : i32, i32
  }
  func.func @transform_2(%arg0: i32) -> (i32, i32) {
    %c0_i32 = arith.constant 0 : i32
    %c0_i32_0 = arith.constant 0 : i32
    %c0_i32_1 = arith.constant 0 : i32
    return %c0_i32, %c0_i32_0 : i32, i32
  }
  func.func @transform_3(%arg0: i32) -> (i32, i32) {
    %c0_i32 = arith.constant 0 : i32
    %c0_i32_0 = arith.constant 0 : i32
    %c0_i32_1 = arith.constant 0 : i32
    return %c0_i32, %c0_i32_0 : i32, i32
  }
  func.func @transform_4(%arg0: i32) -> (i32, i32) {
    %c0_i32 = arith.constant 0 : i32
    %c0_i32_0 = arith.constant 0 : i32
    return %c0_i32, %arg0 : i32, i32
  }
}

module attributes {stable_mosaic.version = 11 : i64} {
  func.func @_mm_scale_bias_kernel(%arg0: i32, %arg1: memref<16x256xbf16, #tpu.memory_space<vmem>>, %arg2: memref<256x128xbf16, #tpu.memory_space<vmem>>, %arg3: memref<16x1xf32, #tpu.memory_space<vmem>>, %arg4: memref<16x1xf32, #tpu.memory_space<vmem>>, %arg5: memref<16x128xf32, #tpu.memory_space<vmem>>) attributes {dimension_semantics = [#tpu.dimension_semantics<parallel>], iteration_bounds = array<i64: 1>, scalar_prefetch = 0 : i64, scratch_operands = 0 : i64, tpu.core_type = #tpu.core_type<tc>, window_params = [{pipeline_mode = #tpu.pipeline_mode<synchronous>, transform_indices = @transform_0, window_bounds = array<i64: 16, 256>}, {transform_indices = @transform_1, window_bounds = array<i64: 256, 128>}, {pipeline_mode = #tpu.pipeline_mode<synchronous>, transform_indices = @transform_2, window_bounds = array<i64: 16, 1>}, {pipeline_mode = #tpu.pipeline_mode<synchronous>, transform_indices = @transform_3, window_bounds = array<i64: 16, 1>}, {transform_indices = @transform_4, window_bounds = array<i64: 16, 128>}]} {
    %c0 = arith.constant 0 : index
    %c0_0 = arith.constant 0 : index
    %0 = vector.load %arg1[%c0, %c0_0] : memref<16x256xbf16, #tpu.memory_space<vmem>>, vector<16x256xbf16>
    %c0_1 = arith.constant 0 : index
    %c0_2 = arith.constant 0 : index
    %1 = vector.load %arg2[%c0_1, %c0_2] : memref<256x128xbf16, #tpu.memory_space<vmem>>, vector<256x128xbf16>
    %cst = arith.constant dense<0.000000e+00> : vector<16x128xf32>
    %2 = tpu.matmul %0, %1, %cst {dimension_numbers = #tpu.dot_dimension_numbers<[1], [0], [0], [1], [0, 0, 1, 1], [], []>} : vector<16x256xbf16>, vector<256x128xbf16>, vector<16x128xf32> -> vector<16x128xf32>
    %c0_3 = arith.constant 0 : index
    %c0_4 = arith.constant 0 : index
    %3 = vector.load %arg3[%c0_3, %c0_4] : memref<16x1xf32, #tpu.memory_space<vmem>>, vector<16x1xf32>
    %4 = vector.broadcast %3 : vector<16x1xf32> to vector<16x128xf32>
    %5 = arith.mulf %2, %4 : vector<16x128xf32>
    %c0_5 = arith.constant 0 : index
    %c0_6 = arith.constant 0 : index
    %6 = vector.load %arg4[%c0_5, %c0_6] : memref<16x1xf32, #tpu.memory_space<vmem>>, vector<16x1xf32>
    %7 = vector.broadcast %6 : vector<16x1xf32> to vector<16x128xf32>
    %8 = arith.addf %5, %7 : vector<16x128xf32>
    %c0_7 = arith.constant 0 : index
    %c0_8 = arith.constant 0 : index
    %9 = vector.load %arg5[%c0_7, %c0_8] : memref<16x128xf32, #tpu.memory_space<vmem>>, vector<16x128xf32>
    tpu.vector_store %arg5[%c0_7, %c0_8], %8 {strides = array<i32>} : memref<16x128xf32, #tpu.memory_space<vmem>>, vector<16x128xf32>,
    return
  }
  func.func @transform_0(%arg0: i32) -> (i32, i32) {
    %c0_i32 = arith.constant 0 : i32
    %c0_i32_0 = arith.constant 0 : i32
    %c0_i32_1 = arith.constant 0 : i32
    return %c0_i32, %c0_i32_0 : i32, i32
  }
  func.func @transform_1(%arg0: i32) -> (i32, i32) {
    %c0_i32 = arith.constant 0 : i32
    %c0_i32_0 = arith.constant 0 : i32
    return %c0_i32, %arg0 : i32, i32
  }
  func.func @transform_2(%arg0: i32) -> (i32, i32) {
    %c0_i32 = arith.constant 0 : i32
    %c0_i32_0 = arith.constant 0 : i32
    %c0_i32_1 = arith.constant 0 : i32
    return %c0_i32, %c0_i32_0 : i32, i32
  }
  func.func @transform_3(%arg0: i32) -> (i32, i32) {
    %c0_i32 = arith.constant 0 : i32
    %c0_i32_0 = arith.constant 0 : i32
    %c0_i32_1 = arith.constant 0 : i32
    return %c0_i32, %c0_i32_0 : i32, i32
  }
  func.func @transform_4(%arg0: i32) -> (i32, i32) {
    %c0_i32 = arith.constant 0 : i32
    %c0_i32_0 = arith.constant 0 : i32
    return %c0_i32, %arg0 : i32, i32
  }
}

module attributes {stable_mosaic.version = 11 : i64} {
  func.func @_mm_scale_bias_kernel(%arg0: i32, %arg1: memref<16x128xbf16, #tpu.memory_space<vmem>>, %arg2: memref<128x128xbf16, #tpu.memory_space<vmem>>, %arg3: memref<16x1xf32, #tpu.memory_space<vmem>>, %arg4: memref<16x1xf32, #tpu.memory_space<vmem>>, %arg5: memref<16x128xf32, #tpu.memory_space<vmem>>) attributes {dimension_semantics = [#tpu.dimension_semantics<parallel>], iteration_bounds = array<i64: 1>, scalar_prefetch = 0 : i64, scratch_operands = 0 : i64, tpu.core_type = #tpu.core_type<tc>, window_params = [{pipeline_mode = #tpu.pipeline_mode<synchronous>, transform_indices = @transform_0, window_bounds = array<i64: 16, 128>}, {transform_indices = @transform_1, window_bounds = array<i64: 128, 128>}, {pipeline_mode = #tpu.pipeline_mode<synchronous>, transform_indices = @transform_2, window_bounds = array<i64: 16, 1>}, {pipeline_mode = #tpu.pipeline_mode<synchronous>, transform_indices = @transform_3, window_bounds = array<i64: 16, 1>}, {transform_indices = @transform_4, window_bounds = array<i64: 16, 128>}]} {
    %c0 = arith.constant 0 : index
    %c0_0 = arith.constant 0 : index
    %0 = vector.load %arg1[%c0, %c0_0] : memref<16x128xbf16, #tpu.memory_space<vmem>>, vector<16x128xbf16>
    %c0_1 = arith.constant 0 : index
    %c0_2 = arith.constant 0 : index
    %1 = vector.load %arg2[%c0_1, %c0_2] : memref<128x128xbf16, #tpu.memory_space<vmem>>, vector<128x128xbf16>
    %cst = arith.constant dense<0.000000e+00> : vector<16x128xf32>
    %2 = tpu.matmul %0, %1, %cst {dimension_numbers = #tpu.dot_dimension_numbers<[1], [0], [0], [1], [0, 0, 1, 1], [], []>} : vector<16x128xbf16>, vector<128x128xbf16>, vector<16x128xf32> -> vector<16x128xf32>
    %c0_3 = arith.constant 0 : index
    %c0_4 = arith.constant 0 : index
    %3 = vector.load %arg3[%c0_3, %c0_4] : memref<16x1xf32, #tpu.memory_space<vmem>>, vector<16x1xf32>
    %4 = vector.broadcast %3 : vector<16x1xf32> to vector<16x128xf32>
    %5 = arith.mulf %2, %4 : vector<16x128xf32>
    %c0_5 = arith.constant 0 : index
    %c0_6 = arith.constant 0 : index
    %6 = vector.load %arg4[%c0_5, %c0_6] : memref<16x1xf32, #tpu.memory_space<vmem>>, vector<16x1xf32>
    %7 = vector.broadcast %6 : vector<16x1xf32> to vector<16x128xf32>
    %8 = arith.addf %5, %7 : vector<16x128xf32>
    %c0_7 = arith.constant 0 : index
    %c0_8 = arith.constant 0 : index
    %9 = vector.load %arg5[%c0_7, %c0_8] : memref<16x128xf32, #tpu.memory_space<vmem>>, vector<16x128xf32>
    tpu.vector_store %arg5[%c0_7, %c0_8], %8 {strides = array<i32>} : memref<16x128xf32, #tpu.memory_space<vmem>>, vector<16x128xf32>,
    return
  }
  func.func @transform_0(%arg0: i32) -> (i32, i32) {
    %c0_i32 = arith.constant 0 : i32
    %c0_i32_0 = arith.constant 0 : i32
    %c0_i32_1 = arith.constant 0 : i32
    return %c0_i32, %c0_i32_0 : i32, i32
  }
  func.func @transform_1(%arg0: i32) -> (i32, i32) {
    %c0_i32 = arith.constant 0 : i32
    %c0_i32_0 = arith.constant 0 : i32
    return %c0_i32, %arg0 : i32, i32
  }
  func.func @transform_2(%arg0: i32) -> (i32, i32) {
    %c0_i32 = arith.constant 0 : i32
    %c0_i32_0 = arith.constant 0 : i32
    %c0_i32_1 = arith.constant 0 : i32
    return %c0_i32, %c0_i32_0 : i32, i32
  }
  func.func @transform_3(%arg0: i32) -> (i32, i32) {
    %c0_i32 = arith.constant 0 : i32
    %c0_i32_0 = arith.constant 0 : i32
    %c0_i32_1 = arith.constant 0 : i32
    return %c0_i32, %c0_i32_0 : i32, i32
  }
  func.func @transform_4(%arg0: i32) -> (i32, i32) {
    %c0_i32 = arith.constant 0 : i32
    %c0_i32_0 = arith.constant 0 : i32
    return %c0_i32, %arg0 : i32, i32
  }
}

module attributes {stable_mosaic.version = 11 : i64} {
  func.func @_mm_scale_bias_kernel(%arg0: i32, %arg1: memref<16x64xbf16, #tpu.memory_space<vmem>>, %arg2: memref<64x128xbf16, #tpu.memory_space<vmem>>, %arg3: memref<16x1xf32, #tpu.memory_space<vmem>>, %arg4: memref<16x1xf32, #tpu.memory_space<vmem>>, %arg5: memref<16x128xf32, #tpu.memory_space<vmem>>) attributes {dimension_semantics = [#tpu.dimension_semantics<parallel>], iteration_bounds = array<i64: 1>, scalar_prefetch = 0 : i64, scratch_operands = 0 : i64, tpu.core_type = #tpu.core_type<tc>, window_params = [{pipeline_mode = #tpu.pipeline_mode<synchronous>, transform_indices = @transform_0, window_bounds = array<i64: 16, 64>}, {transform_indices = @transform_1, window_bounds = array<i64: 64, 128>}, {pipeline_mode = #tpu.pipeline_mode<synchronous>, transform_indices = @transform_2, window_bounds = array<i64: 16, 1>}, {pipeline_mode = #tpu.pipeline_mode<synchronous>, transform_indices = @transform_3, window_bounds = array<i64: 16, 1>}, {transform_indices = @transform_4, window_bounds = array<i64: 16, 128>}]} {
    %c0 = arith.constant 0 : index
    %c0_0 = arith.constant 0 : index
    %0 = vector.load %arg1[%c0, %c0_0] : memref<16x64xbf16, #tpu.memory_space<vmem>>, vector<16x64xbf16>
    %c0_1 = arith.constant 0 : index
    %c0_2 = arith.constant 0 : index
    %1 = vector.load %arg2[%c0_1, %c0_2] : memref<64x128xbf16, #tpu.memory_space<vmem>>, vector<64x128xbf16>
    %cst = arith.constant dense<0.000000e+00> : vector<16x128xf32>
    %2 = tpu.matmul %0, %1, %cst {dimension_numbers = #tpu.dot_dimension_numbers<[1], [0], [0], [1], [0, 0, 1, 1], [], []>} : vector<16x64xbf16>, vector<64x128xbf16>, vector<16x128xf32> -> vector<16x128xf32>
    %c0_3 = arith.constant 0 : index
    %c0_4 = arith.constant 0 : index
    %3 = vector.load %arg3[%c0_3, %c0_4] : memref<16x1xf32, #tpu.memory_space<vmem>>, vector<16x1xf32>
    %4 = vector.broadcast %3 : vector<16x1xf32> to vector<16x128xf32>
    %5 = arith.mulf %2, %4 : vector<16x128xf32>
    %c0_5 = arith.constant 0 : index
    %c0_6 = arith.constant 0 : index
    %6 = vector.load %arg4[%c0_5, %c0_6] : memref<16x1xf32, #tpu.memory_space<vmem>>, vector<16x1xf32>
    %7 = vector.broadcast %6 : vector<16x1xf32> to vector<16x128xf32>
    %8 = arith.addf %5, %7 : vector<16x128xf32>
    %c0_7 = arith.constant 0 : index
    %c0_8 = arith.constant 0 : index
    %9 = vector.load %arg5[%c0_7, %c0_8] : memref<16x128xf32, #tpu.memory_space<vmem>>, vector<16x128xf32>
    tpu.vector_store %arg5[%c0_7, %c0_8], %8 {strides = array<i32>} : memref<16x128xf32, #tpu.memory_space<vmem>>, vector<16x128xf32>,
    return
  }
  func.func @transform_0(%arg0: i32) -> (i32, i32) {
    %c0_i32 = arith.constant 0 : i32
    %c0_i32_0 = arith.constant 0 : i32
    %c0_i32_1 = arith.constant 0 : i32
    return %c0_i32, %c0_i32_0 : i32, i32
  }
  func.func @transform_1(%arg0: i32) -> (i32, i32) {
    %c0_i32 = arith.constant 0 : i32
    %c0_i32_0 = arith.constant 0 : i32
    return %c0_i32, %arg0 : i32, i32
  }
  func.func @transform_2(%arg0: i32) -> (i32, i32) {
    %c0_i32 = arith.constant 0 : i32
    %c0_i32_0 = arith.constant 0 : i32
    %c0_i32_1 = arith.constant 0 : i32
    return %c0_i32, %c0_i32_0 : i32, i32
  }
  func.func @transform_3(%arg0: i32) -> (i32, i32) {
    %c0_i32 = arith.constant 0 : i32
    %c0_i32_0 = arith.constant 0 : i32
    %c0_i32_1 = arith.constant 0 : i32
    return %c0_i32, %c0_i32_0 : i32, i32
  }
  func.func @transform_4(%arg0: i32) -> (i32, i32) {
    %c0_i32 = arith.constant 0 : i32
    %c0_i32_0 = arith.constant 0 : i32
    return %c0_i32, %arg0 : i32, i32
  }
}

module attributes {stable_mosaic.version = 11 : i64} {
  func.func @_mm_scale_bias_kernel(%arg0: i32, %arg1: memref<16x32xbf16, #tpu.memory_space<vmem>>, %arg2: memref<32x128xbf16, #tpu.memory_space<vmem>>, %arg3: memref<16x1xf32, #tpu.memory_space<vmem>>, %arg4: memref<16x1xf32, #tpu.memory_space<vmem>>, %arg5: memref<16x128xf32, #tpu.memory_space<vmem>>) attributes {dimension_semantics = [#tpu.dimension_semantics<parallel>], iteration_bounds = array<i64: 1>, scalar_prefetch = 0 : i64, scratch_operands = 0 : i64, tpu.core_type = #tpu.core_type<tc>, window_params = [{pipeline_mode = #tpu.pipeline_mode<synchronous>, transform_indices = @transform_0, window_bounds = array<i64: 16, 32>}, {transform_indices = @transform_1, window_bounds = array<i64: 32, 128>}, {pipeline_mode = #tpu.pipeline_mode<synchronous>, transform_indices = @transform_2, window_bounds = array<i64: 16, 1>}, {pipeline_mode = #tpu.pipeline_mode<synchronous>, transform_indices = @transform_3, window_bounds = array<i64: 16, 1>}, {transform_indices = @transform_4, window_bounds = array<i64: 16, 128>}]} {
    %c0 = arith.constant 0 : index
    %c0_0 = arith.constant 0 : index
    %0 = vector.load %arg1[%c0, %c0_0] : memref<16x32xbf16, #tpu.memory_space<vmem>>, vector<16x32xbf16>
    %c0_1 = arith.constant 0 : index
    %c0_2 = arith.constant 0 : index
    %1 = vector.load %arg2[%c0_1, %c0_2] : memref<32x128xbf16, #tpu.memory_space<vmem>>, vector<32x128xbf16>
    %cst = arith.constant dense<0.000000e+00> : vector<16x128xf32>
    %2 = tpu.matmul %0, %1, %cst {dimension_numbers = #tpu.dot_dimension_numbers<[1], [0], [0], [1], [0, 0, 1, 1], [], []>} : vector<16x32xbf16>, vector<32x128xbf16>, vector<16x128xf32> -> vector<16x128xf32>
    %c0_3 = arith.constant 0 : index
    %c0_4 = arith.constant 0 : index
    %3 = vector.load %arg3[%c0_3, %c0_4] : memref<16x1xf32, #tpu.memory_space<vmem>>, vector<16x1xf32>
    %4 = vector.broadcast %3 : vector<16x1xf32> to vector<16x128xf32>
    %5 = arith.mulf %2, %4 : vector<16x128xf32>
    %c0_5 = arith.constant 0 : index
    %c0_6 = arith.constant 0 : index
    %6 = vector.load %arg4[%c0_5, %c0_6] : memref<16x1xf32, #tpu.memory_space<vmem>>, vector<16x1xf32>
    %7 = vector.broadcast %6 : vector<16x1xf32> to vector<16x128xf32>
    %8 = arith.addf %5, %7 : vector<16x128xf32>
    %c0_7 = arith.constant 0 : index
    %c0_8 = arith.constant 0 : index
    %9 = vector.load %arg5[%c0_7, %c0_8] : memref<16x128xf32, #tpu.memory_space<vmem>>, vector<16x128xf32>
    tpu.vector_store %arg5[%c0_7, %c0_8], %8 {strides = array<i32>} : memref<16x128xf32, #tpu.memory_space<vmem>>, vector<16x128xf32>,
    return
  }
  func.func @transform_0(%arg0: i32) -> (i32, i32) {
    %c0_i32 = arith.constant 0 : i32
    %c0_i32_0 = arith.constant 0 : i32
    %c0_i32_1 = arith.constant 0 : i32
    return %c0_i32, %c0_i32_0 : i32, i32
  }
  func.func @transform_1(%arg0: i32) -> (i32, i32) {
    %c0_i32 = arith.constant 0 : i32
    %c0_i32_0 = arith.constant 0 : i32
    return %c0_i32, %arg0 : i32, i32
  }
  func.func @transform_2(%arg0: i32) -> (i32, i32) {
    %c0_i32 = arith.constant 0 : i32
    %c0_i32_0 = arith.constant 0 : i32
    %c0_i32_1 = arith.constant 0 : i32
    return %c0_i32, %c0_i32_0 : i32, i32
  }
  func.func @transform_3(%arg0: i32) -> (i32, i32) {
    %c0_i32 = arith.constant 0 : i32
    %c0_i32_0 = arith.constant 0 : i32
    %c0_i32_1 = arith.constant 0 : i32
    return %c0_i32, %c0_i32_0 : i32, i32
  }
  func.func @transform_4(%arg0: i32) -> (i32, i32) {
    %c0_i32 = arith.constant 0 : i32
    %c0_i32_0 = arith.constant 0 : i32
    return %c0_i32, %arg0 : i32, i32
  }
}

module attributes {stable_mosaic.version = 11 : i64} {
  func.func @_mm_scale_bias_kernel(%arg0: i32, %arg1: memref<8x128xbf16, #tpu.memory_space<vmem>>, %arg2: memref<128x128xbf16, #tpu.memory_space<vmem>>, %arg3: memref<8x1xf32, #tpu.memory_space<vmem>>, %arg4: memref<8x1xf32, #tpu.memory_space<vmem>>, %arg5: memref<8x128xf32, #tpu.memory_space<vmem>>) attributes {dimension_semantics = [#tpu.dimension_semantics<parallel>], iteration_bounds = array<i64: 1>, scalar_prefetch = 0 : i64, scratch_operands = 0 : i64, tpu.core_type = #tpu.core_type<tc>, window_params = [{pipeline_mode = #tpu.pipeline_mode<synchronous>, transform_indices = @transform_0, window_bounds = array<i64: 8, 128>}, {transform_indices = @transform_1, window_bounds = array<i64: 128, 128>}, {pipeline_mode = #tpu.pipeline_mode<synchronous>, transform_indices = @transform_2, window_bounds = array<i64: 8, 1>}, {pipeline_mode = #tpu.pipeline_mode<synchronous>, transform_indices = @transform_3, window_bounds = array<i64: 8, 1>}, {transform_indices = @transform_4, window_bounds = array<i64: 8, 128>}]} {
    %c0 = arith.constant 0 : index
    %c0_0 = arith.constant 0 : index
    %0 = vector.load %arg1[%c0, %c0_0] : memref<8x128xbf16, #tpu.memory_space<vmem>>, vector<8x128xbf16>
    %c0_1 = arith.constant 0 : index
    %c0_2 = arith.constant 0 : index
    %1 = vector.load %arg2[%c0_1, %c0_2] : memref<128x128xbf16, #tpu.memory_space<vmem>>, vector<128x128xbf16>
    %cst = arith.constant dense<0.000000e+00> : vector<8x128xf32>
    %2 = tpu.matmul %0, %1, %cst {dimension_numbers = #tpu.dot_dimension_numbers<[1], [0], [0], [1], [0, 0, 1, 1], [], []>} : vector<8x128xbf16>, vector<128x128xbf16>, vector<8x128xf32> -> vector<8x128xf32>
    %c0_3 = arith.constant 0 : index
    %c0_4 = arith.constant 0 : index
    %3 = vector.load %arg3[%c0_3, %c0_4] : memref<8x1xf32, #tpu.memory_space<vmem>>, vector<8x1xf32>
    %4 = vector.broadcast %3 : vector<8x1xf32> to vector<8x128xf32>
    %5 = arith.mulf %2, %4 : vector<8x128xf32>
    %c0_5 = arith.constant 0 : index
    %c0_6 = arith.constant 0 : index
    %6 = vector.load %arg4[%c0_5, %c0_6] : memref<8x1xf32, #tpu.memory_space<vmem>>, vector<8x1xf32>
    %7 = vector.broadcast %6 : vector<8x1xf32> to vector<8x128xf32>
    %8 = arith.addf %5, %7 : vector<8x128xf32>
    %c0_7 = arith.constant 0 : index
    %c0_8 = arith.constant 0 : index
    %9 = vector.load %arg5[%c0_7, %c0_8] : memref<8x128xf32, #tpu.memory_space<vmem>>, vector<8x128xf32>
    tpu.vector_store %arg5[%c0_7, %c0_8], %8 {strides = array<i32>} : memref<8x128xf32, #tpu.memory_space<vmem>>, vector<8x128xf32>,
    return
  }
  func.func @transform_0(%arg0: i32) -> (i32, i32) {
    %c0_i32 = arith.constant 0 : i32
    %c0_i32_0 = arith.constant 0 : i32
    %c0_i32_1 = arith.constant 0 : i32
    return %c0_i32, %c0_i32_0 : i32, i32
  }
  func.func @transform_1(%arg0: i32) -> (i32, i32) {
    %c0_i32 = arith.constant 0 : i32
    %c0_i32_0 = arith.constant 0 : i32
    return %c0_i32, %arg0 : i32, i32
  }
  func.func @transform_2(%arg0: i32) -> (i32, i32) {
    %c0_i32 = arith.constant 0 : i32
    %c0_i32_0 = arith.constant 0 : i32
    %c0_i32_1 = arith.constant 0 : i32
    return %c0_i32, %c0_i32_0 : i32, i32
  }
  func.func @transform_3(%arg0: i32) -> (i32, i32) {
    %c0_i32 = arith.constant 0 : i32
    %c0_i32_0 = arith.constant 0 : i32
    %c0_i32_1 = arith.constant 0 : i32
    return %c0_i32, %c0_i32_0 : i32, i32
  }
  func.func @transform_4(%arg0: i32) -> (i32, i32) {
    %c0_i32 = arith.constant 0 : i32
    %c0_i32_0 = arith.constant 0 : i32
    return %c0_i32, %arg0 : i32, i32
  }
}

module attributes {stable_mosaic.version = 11 : i64} {
  func.func @_mm_scale_bias_kernel(%arg0: i32, %arg1: memref<8x64xbf16, #tpu.memory_space<vmem>>, %arg2: memref<64x128xbf16, #tpu.memory_space<vmem>>, %arg3: memref<8x1xf32, #tpu.memory_space<vmem>>, %arg4: memref<8x1xf32, #tpu.memory_space<vmem>>, %arg5: memref<8x128xf32, #tpu.memory_space<vmem>>) attributes {dimension_semantics = [#tpu.dimension_semantics<parallel>], iteration_bounds = array<i64: 1>, scalar_prefetch = 0 : i64, scratch_operands = 0 : i64, tpu.core_type = #tpu.core_type<tc>, window_params = [{pipeline_mode = #tpu.pipeline_mode<synchronous>, transform_indices = @transform_0, window_bounds = array<i64: 8, 64>}, {transform_indices = @transform_1, window_bounds = array<i64: 64, 128>}, {pipeline_mode = #tpu.pipeline_mode<synchronous>, transform_indices = @transform_2, window_bounds = array<i64: 8, 1>}, {pipeline_mode = #tpu.pipeline_mode<synchronous>, transform_indices = @transform_3, window_bounds = array<i64: 8, 1>}, {transform_indices = @transform_4, window_bounds = array<i64: 8, 128>}]} {
    %c0 = arith.constant 0 : index
    %c0_0 = arith.constant 0 : index
    %0 = vector.load %arg1[%c0, %c0_0] : memref<8x64xbf16, #tpu.memory_space<vmem>>, vector<8x64xbf16>
    %c0_1 = arith.constant 0 : index
    %c0_2 = arith.constant 0 : index
    %1 = vector.load %arg2[%c0_1, %c0_2] : memref<64x128xbf16, #tpu.memory_space<vmem>>, vector<64x128xbf16>
    %cst = arith.constant dense<0.000000e+00> : vector<8x128xf32>
    %2 = tpu.matmul %0, %1, %cst {dimension_numbers = #tpu.dot_dimension_numbers<[1], [0], [0], [1], [0, 0, 1, 1], [], []>} : vector<8x64xbf16>, vector<64x128xbf16>, vector<8x128xf32> -> vector<8x128xf32>
    %c0_3 = arith.constant 0 : index
    %c0_4 = arith.constant 0 : index
    %3 = vector.load %arg3[%c0_3, %c0_4] : memref<8x1xf32, #tpu.memory_space<vmem>>, vector<8x1xf32>
    %4 = vector.broadcast %3 : vector<8x1xf32> to vector<8x128xf32>
    %5 = arith.mulf %2, %4 : vector<8x128xf32>
    %c0_5 = arith.constant 0 : index
    %c0_6 = arith.constant 0 : index
    %6 = vector.load %arg4[%c0_5, %c0_6] : memref<8x1xf32, #tpu.memory_space<vmem>>, vector<8x1xf32>
    %7 = vector.broadcast %6 : vector<8x1xf32> to vector<8x128xf32>
    %8 = arith.addf %5, %7 : vector<8x128xf32>
    %c0_7 = arith.constant 0 : index
    %c0_8 = arith.constant 0 : index
    %9 = vector.load %arg5[%c0_7, %c0_8] : memref<8x128xf32, #tpu.memory_space<vmem>>, vector<8x128xf32>
    tpu.vector_store %arg5[%c0_7, %c0_8], %8 {strides = array<i32>} : memref<8x128xf32, #tpu.memory_space<vmem>>, vector<8x128xf32>,
    return
  }
  func.func @transform_0(%arg0: i32) -> (i32, i32) {
    %c0_i32 = arith.constant 0 : i32
    %c0_i32_0 = arith.constant 0 : i32
    %c0_i32_1 = arith.constant 0 : i32
    return %c0_i32, %c0_i32_0 : i32, i32
  }
  func.func @transform_1(%arg0: i32) -> (i32, i32) {
    %c0_i32 = arith.constant 0 : i32
    %c0_i32_0 = arith.constant 0 : i32
    return %c0_i32, %arg0 : i32, i32
  }
  func.func @transform_2(%arg0: i32) -> (i32, i32) {
    %c0_i32 = arith.constant 0 : i32
    %c0_i32_0 = arith.constant 0 : i32
    %c0_i32_1 = arith.constant 0 : i32
    return %c0_i32, %c0_i32_0 : i32, i32
  }
  func.func @transform_3(%arg0: i32) -> (i32, i32) {
    %c0_i32 = arith.constant 0 : i32
    %c0_i32_0 = arith.constant 0 : i32
    %c0_i32_1 = arith.constant 0 : i32
    return %c0_i32, %c0_i32_0 : i32, i32
  }
  func.func @transform_4(%arg0: i32) -> (i32, i32) {
    %c0_i32 = arith.constant 0 : i32
    %c0_i32_0 = arith.constant 0 : i32
    return %c0_i32, %arg0 : i32, i32
  }
}

module attributes {stable_mosaic.version = 11 : i64} {
  func.func @_mm_scale_bias_kernel(%arg0: i32, %arg1: memref<8x32xbf16, #tpu.memory_space<vmem>>, %arg2: memref<32x128xbf16, #tpu.memory_space<vmem>>, %arg3: memref<8x1xf32, #tpu.memory_space<vmem>>, %arg4: memref<8x1xf32, #tpu.memory_space<vmem>>, %arg5: memref<8x128xf32, #tpu.memory_space<vmem>>) attributes {dimension_semantics = [#tpu.dimension_semantics<parallel>], iteration_bounds = array<i64: 1>, scalar_prefetch = 0 : i64, scratch_operands = 0 : i64, tpu.core_type = #tpu.core_type<tc>, window_params = [{pipeline_mode = #tpu.pipeline_mode<synchronous>, transform_indices = @transform_0, window_bounds = array<i64: 8, 32>}, {transform_indices = @transform_1, window_bounds = array<i64: 32, 128>}, {pipeline_mode = #tpu.pipeline_mode<synchronous>, transform_indices = @transform_2, window_bounds = array<i64: 8, 1>}, {pipeline_mode = #tpu.pipeline_mode<synchronous>, transform_indices = @transform_3, window_bounds = array<i64: 8, 1>}, {transform_indices = @transform_4, window_bounds = array<i64: 8, 128>}]} {
    %c0 = arith.constant 0 : index
    %c0_0 = arith.constant 0 : index
    %0 = vector.load %arg1[%c0, %c0_0] : memref<8x32xbf16, #tpu.memory_space<vmem>>, vector<8x32xbf16>
    %c0_1 = arith.constant 0 : index
    %c0_2 = arith.constant 0 : index
    %1 = vector.load %arg2[%c0_1, %c0_2] : memref<32x128xbf16, #tpu.memory_space<vmem>>, vector<32x128xbf16>
    %cst = arith.constant dense<0.000000e+00> : vector<8x128xf32>
    %2 = tpu.matmul %0, %1, %cst {dimension_numbers = #tpu.dot_dimension_numbers<[1], [0], [0], [1], [0, 0, 1, 1], [], []>} : vector<8x32xbf16>, vector<32x128xbf16>, vector<8x128xf32> -> vector<8x128xf32>
    %c0_3 = arith.constant 0 : index
    %c0_4 = arith.constant 0 : index
    %3 = vector.load %arg3[%c0_3, %c0_4] : memref<8x1xf32, #tpu.memory_space<vmem>>, vector<8x1xf32>
    %4 = vector.broadcast %3 : vector<8x1xf32> to vector<8x128xf32>
    %5 = arith.mulf %2, %4 : vector<8x128xf32>
    %c0_5 = arith.constant 0 : index
    %c0_6 = arith.constant 0 : index
    %6 = vector.load %arg4[%c0_5, %c0_6] : memref<8x1xf32, #tpu.memory_space<vmem>>, vector<8x1xf32>
    %7 = vector.broadcast %6 : vector<8x1xf32> to vector<8x128xf32>
    %8 = arith.addf %5, %7 : vector<8x128xf32>
    %c0_7 = arith.constant 0 : index
    %c0_8 = arith.constant 0 : index
    %9 = vector.load %arg5[%c0_7, %c0_8] : memref<8x128xf32, #tpu.memory_space<vmem>>, vector<8x128xf32>
    tpu.vector_store %arg5[%c0_7, %c0_8], %8 {strides = array<i32>} : memref<8x128xf32, #tpu.memory_space<vmem>>, vector<8x128xf32>,
    return
  }
  func.func @transform_0(%arg0: i32) -> (i32, i32) {
    %c0_i32 = arith.constant 0 : i32
    %c0_i32_0 = arith.constant 0 : i32
    %c0_i32_1 = arith.constant 0 : i32
    return %c0_i32, %c0_i32_0 : i32, i32
  }
  func.func @transform_1(%arg0: i32) -> (i32, i32) {
    %c0_i32 = arith.constant 0 : i32
    %c0_i32_0 = arith.constant 0 : i32
    return %c0_i32, %arg0 : i32, i32
  }
  func.func @transform_2(%arg0: i32) -> (i32, i32) {
    %c0_i32 = arith.constant 0 : i32
    %c0_i32_0 = arith.constant 0 : i32
    %c0_i32_1 = arith.constant 0 : i32
    return %c0_i32, %c0_i32_0 : i32, i32
  }
  func.func @transform_3(%arg0: i32) -> (i32, i32) {
    %c0_i32 = arith.constant 0 : i32
    %c0_i32_0 = arith.constant 0 : i32
    %c0_i32_1 = arith.constant 0 : i32
    return %c0_i32, %c0_i32_0 : i32, i32
  }
  func.func @transform_4(%arg0: i32) -> (i32, i32) {
    %c0_i32 = arith.constant 0 : i32
    %c0_i32_0 = arith.constant 0 : i32
    return %c0_i32, %arg0 : i32, i32
  }
}

module attributes {stable_mosaic.version = 11 : i64} {
  func.func @_mm_scale_bias_kernel(%arg0: i32, %arg1: memref<8x16xbf16, #tpu.memory_space<vmem>>, %arg2: memref<16x128xbf16, #tpu.memory_space<vmem>>, %arg3: memref<8x1xf32, #tpu.memory_space<vmem>>, %arg4: memref<8x1xf32, #tpu.memory_space<vmem>>, %arg5: memref<8x128xf32, #tpu.memory_space<vmem>>) attributes {dimension_semantics = [#tpu.dimension_semantics<parallel>], iteration_bounds = array<i64: 1>, scalar_prefetch = 0 : i64, scratch_operands = 0 : i64, tpu.core_type = #tpu.core_type<tc>, window_params = [{pipeline_mode = #tpu.pipeline_mode<synchronous>, transform_indices = @transform_0, window_bounds = array<i64: 8, 16>}, {transform_indices = @transform_1, window_bounds = array<i64: 16, 128>}, {pipeline_mode = #tpu.pipeline_mode<synchronous>, transform_indices = @transform_2, window_bounds = array<i64: 8, 1>}, {pipeline_mode = #tpu.pipeline_mode<synchronous>, transform_indices = @transform_3, window_bounds = array<i64: 8, 1>}, {transform_indices = @transform_4, window_bounds = array<i64: 8, 128>}]} {
    %c0 = arith.constant 0 : index
    %c0_0 = arith.constant 0 : index
    %0 = vector.load %arg1[%c0, %c0_0] : memref<8x16xbf16, #tpu.memory_space<vmem>>, vector<8x16xbf16>
    %c0_1 = arith.constant 0 : index
    %c0_2 = arith.constant 0 : index
    %1 = vector.load %arg2[%c0_1, %c0_2] : memref<16x128xbf16, #tpu.memory_space<vmem>>, vector<16x128xbf16>
    %cst = arith.constant dense<0.000000e+00> : vector<8x128xf32>
    %2 = tpu.matmul %0, %1, %cst {dimension_numbers = #tpu.dot_dimension_numbers<[1], [0], [0], [1], [0, 0, 1, 1], [], []>} : vector<8x16xbf16>, vector<16x128xbf16>, vector<8x128xf32> -> vector<8x128xf32>
    %c0_3 = arith.constant 0 : index
    %c0_4 = arith.constant 0 : index
    %3 = vector.load %arg3[%c0_3, %c0_4] : memref<8x1xf32, #tpu.memory_space<vmem>>, vector<8x1xf32>
    %4 = vector.broadcast %3 : vector<8x1xf32> to vector<8x128xf32>
    %5 = arith.mulf %2, %4 : vector<8x128xf32>
    %c0_5 = arith.constant 0 : index
    %c0_6 = arith.constant 0 : index
    %6 = vector.load %arg4[%c0_5, %c0_6] : memref<8x1xf32, #tpu.memory_space<vmem>>, vector<8x1xf32>
    %7 = vector.broadcast %6 : vector<8x1xf32> to vector<8x128xf32>
    %8 = arith.addf %5, %7 : vector<8x128xf32>
    %c0_7 = arith.constant 0 : index
    %c0_8 = arith.constant 0 : index
    %9 = vector.load %arg5[%c0_7, %c0_8] : memref<8x128xf32, #tpu.memory_space<vmem>>, vector<8x128xf32>
    tpu.vector_store %arg5[%c0_7, %c0_8], %8 {strides = array<i32>} : memref<8x128xf32, #tpu.memory_space<vmem>>, vector<8x128xf32>,
    return
  }
  func.func @transform_0(%arg0: i32) -> (i32, i32) {
    %c0_i32 = arith.constant 0 : i32
    %c0_i32_0 = arith.constant 0 : i32
    %c0_i32_1 = arith.constant 0 : i32
    return %c0_i32, %c0_i32_0 : i32, i32
  }
  func.func @transform_1(%arg0: i32) -> (i32, i32) {
    %c0_i32 = arith.constant 0 : i32
    %c0_i32_0 = arith.constant 0 : i32
    return %c0_i32, %arg0 : i32, i32
  }
  func.func @transform_2(%arg0: i32) -> (i32, i32) {
    %c0_i32 = arith.constant 0 : i32
    %c0_i32_0 = arith.constant 0 : i32
    %c0_i32_1 = arith.constant 0 : i32
    return %c0_i32, %c0_i32_0 : i32, i32
  }
  func.func @transform_3(%arg0: i32) -> (i32, i32) {
    %c0_i32 = arith.constant 0 : i32
    %c0_i32_0 = arith.constant 0 : i32
    %c0_i32_1 = arith.constant 0 : i32
    return %c0_i32, %c0_i32_0 : i32, i32
  }
  func.func @transform_4(%arg0: i32) -> (i32, i32) {
    %c0_i32 = arith.constant 0 : i32
    %c0_i32_0 = arith.constant 0 : i32
    return %c0_i32, %arg0 : i32, i32
  }
}

module attributes {stable_mosaic.version = 11 : i64} {
  func.func @_mm_scale_bias_kernel(%arg0: i32, %arg1: memref<9x216xbf16, #tpu.memory_space<vmem>>, %arg2: memref<216x512xbf16, #tpu.memory_space<vmem>>, %arg3: memref<9x1xf32, #tpu.memory_space<vmem>>, %arg4: memref<9x1xf32, #tpu.memory_space<vmem>>, %arg5: memref<9x512xf32, #tpu.memory_space<vmem>>) attributes {dimension_semantics = [#tpu.dimension_semantics<parallel>], iteration_bounds = array<i64: 2>, scalar_prefetch = 0 : i64, scratch_operands = 0 : i64, tpu.core_type = #tpu.core_type<tc>, window_params = [{pipeline_mode = #tpu.pipeline_mode<synchronous>, transform_indices = @transform_0, window_bounds = array<i64: 9, 216>}, {transform_indices = @transform_1, window_bounds = array<i64: 216, 512>}, {pipeline_mode = #tpu.pipeline_mode<synchronous>, transform_indices = @transform_2, window_bounds = array<i64: 9, 1>}, {pipeline_mode = #tpu.pipeline_mode<synchronous>, transform_indices = @transform_3, window_bounds = array<i64: 9, 1>}, {transform_indices = @transform_4, window_bounds = array<i64: 9, 512>}]} {
    %c0 = arith.constant 0 : index
    %c0_0 = arith.constant 0 : index
    %0 = vector.load %arg1[%c0, %c0_0] : memref<9x216xbf16, #tpu.memory_space<vmem>>, vector<9x216xbf16>
    %c0_1 = arith.constant 0 : index
    %c0_2 = arith.constant 0 : index
    %1 = vector.load %arg2[%c0_1, %c0_2] : memref<216x512xbf16, #tpu.memory_space<vmem>>, vector<216x512xbf16>
    %cst = arith.constant dense<0.000000e+00> : vector<9x512xf32>
    %2 = tpu.matmul %0, %1, %cst {dimension_numbers = #tpu.dot_dimension_numbers<[1], [0], [0], [1], [0, 0, 1, 1], [], []>} : vector<9x216xbf16>, vector<216x512xbf16>, vector<9x512xf32> -> vector<9x512xf32>
    %c0_3 = arith.constant 0 : index
    %c0_4 = arith.constant 0 : index
    %3 = vector.load %arg3[%c0_3, %c0_4] : memref<9x1xf32, #tpu.memory_space<vmem>>, vector<9x1xf32>
    %4 = vector.broadcast %3 : vector<9x1xf32> to vector<9x512xf32>
    %5 = arith.mulf %2, %4 : vector<9x512xf32>
    %c0_5 = arith.constant 0 : index
    %c0_6 = arith.constant 0 : index
    %6 = vector.load %arg4[%c0_5, %c0_6] : memref<9x1xf32, #tpu.memory_space<vmem>>, vector<9x1xf32>
    %7 = vector.broadcast %6 : vector<9x1xf32> to vector<9x512xf32>
    %8 = arith.addf %5, %7 : vector<9x512xf32>
    %c0_7 = arith.constant 0 : index
    %c0_8 = arith.constant 0 : index
    %9 = vector.load %arg5[%c0_7, %c0_8] : memref<9x512xf32, #tpu.memory_space<vmem>>, vector<9x512xf32>
    tpu.vector_store %arg5[%c0_7, %c0_8], %8 {strides = array<i32>} : memref<9x512xf32, #tpu.memory_space<vmem>>, vector<9x512xf32>,
    return
  }
  func.func @transform_0(%arg0: i32) -> (i32, i32) {
    %c0_i32 = arith.constant 0 : i32
    %c0_i32_0 = arith.constant 0 : i32
    %c0_i32_1 = arith.constant 0 : i32
    return %c0_i32, %c0_i32_0 : i32, i32
  }
  func.func @transform_1(%arg0: i32) -> (i32, i32) {
    %c0_i32 = arith.constant 0 : i32
    %c0_i32_0 = arith.constant 0 : i32
    return %c0_i32, %arg0 : i32, i32
  }
  func.func @transform_2(%arg0: i32) -> (i32, i32) {
    %c0_i32 = arith.constant 0 : i32
    %c0_i32_0 = arith.constant 0 : i32
    %c0_i32_1 = arith.constant 0 : i32
    return %c0_i32, %c0_i32_0 : i32, i32
  }
  func.func @transform_3(%arg0: i32) -> (i32, i32) {
    %c0_i32 = arith.constant 0 : i32
    %c0_i32_0 = arith.constant 0 : i32
    %c0_i32_1 = arith.constant 0 : i32
    return %c0_i32, %c0_i32_0 : i32, i32
  }
  func.func @transform_4(%arg0: i32) -> (i32, i32) {
    %c0_i32 = arith.constant 0 : i32
    %c0_i32_0 = arith.constant 0 : i32
    return %c0_i32, %arg0 : i32, i32
  }
}

</mosaic_0001>

<llo_original>
// kernel: cost_reg_net.32
$region0: #{cost_reg_net.32}
  #allocation0 [shape = 'u32[]', space=smem, size = 0x4, offset = 0x4, fixed_abs, tag = 'smem constant byte address 0x4 - core index']
  #allocation1 [shape = 'u32[144,128]{1,0:T(1,128)}', space=vmem, size = 0x12000, scoped, tag = 'internal scratch']
  %s0 = inlined_call_operand.vmem [shape: bf16[8,108], index: 0, kind: input, shape index: {}]
  %s1 = inlined_call_operand.vmem [shape: bf16[108,1024], index: 1, kind: input, shape index: {}]
  %s2 = inlined_call_operand.vmem [shape: f32[8,1], index: 2, kind: input, shape index: {}]
  %s3 = inlined_call_operand.vmem [shape: f32[8,1], index: 3, kind: input, shape index: {}]
  %s4 = inlined_call_operand.vmem [shape: f32[8,1024], index: 4, kind: output, shape index: {}]
  %s5 = sld [smem:[#allocation0]]
  $region72: #{cost_reg_net.32} parent=0
    _
  %s7 = ssub.s32 1, %s5
  %s8 = scalar_select 0, %s7, %s5
  $region1: #{cost_reg_net.32} parent=0
    #allocation2 [shape = 'u8[229376]{0}', space=vmem, size = 0x38000, scoped, tag = 'input window, operand 1']
    loop: start=0, step=1, limit=4
    $region2: #{cost_reg_net.32} parent=1 // loop_pre_header
      _
    $region3: #{cost_reg_net.32} parent=1 // loop_header
      %s10 = sphi 0, %s14
      %p11 = scmp.ge.s32.totalorder %s10, 4
      %s18 = sphi 0, %s18
      %s20 = sphi 0, %s18
      %s21 = sphi 0, %s20
      %s35 = sphi 0, %s21
      %s41 = sphi 0, %s43
      %s44 = sphi 0, %s41
      %s45 = sphi 0, %s44
      %s61 = sphi 0, %s45
      %s65 = sphi 0, %s65
      %s67 = sphi 0, %s65
      %s68 = sphi 0, %s67
      %s82 = sphi 0, %s68
      %s86 = sphi 0, %s86
      %s88 = sphi 0, %s86
      %s89 = sphi 0, %s88
      %s103 = sphi 0, %s89
      %s109 = sphi 0, %s111
      %s112 = sphi 0, %s109
      %s113 = sphi 0, %s112
      %s129 = sphi 0, %s113
    $region4: #{cost_reg_net.32} parent=1 // loop_header_branch
      %13 = sbr.rel (%p11) target = $region8
    $region5: #{cost_reg_net.32} parent=1 // loop_body
      %s15 = ssub.s32 %s10, 1
      %s16 = ssub.s32 %s10, 2
      %s17 = sadd.s32 %s10, 1
      %s19 = sadd.s32 %s18, 1
      %p22 = scmp.eq.s32.totalorder %s10, 1
      %p23 = scmp.ne.s32.totalorder %s18, %s20
      %p24 = scmp.eq.s32.totalorder %s10, 0
      %p25 = por %p23, %p24
      %p26 = scmp.ne.s32.totalorder %s18, %s20
      %p27 = scmp.eq.s32.totalorder %s15, 1
      %p28 = por %p26, %p27
      %p29 = scmp.ne.s32.totalorder %s20, %s21
      %p30 = scmp.eq.s32.totalorder %s15, 0
      %p31 = por %p29, %p30
      %p32 = scmp.ne.s32.totalorder %s20, %s21
      %p33 = scmp.eq.s32.totalorder %s16, 1
      %p34 = por %p32, %p33
      %p36 = scmp.ne.s32.totalorder %s21, %s35
      %p37 = scmp.eq.s32.totalorder %s16, 0
      %p38 = por %p36, %p37
      %s39 = ssub.s32 %s10, %s17
      %p40 = scmp.eq.s32.totalorder %s39, 0
      %s42 = sadd.s32 %s41, 1
      %s43 = scalar_select %p40, %s41, %s42
      %p46 = pneg %p40
      %p47 = scmp.eq.s32.totalorder %s10, 1
      %p48 = por %p46, %p47
      %p49 = scmp.ne.s32.totalorder %s41, %s44
      %p50 = scmp.eq.s32.totalorder %s10, 0
      %p51 = por %p49, %p50
      %p52 = scmp.ne.s32.totalorder %s41, %s44
      %p53 = scmp.eq.s32.totalorder %s15, 1
      %p54 = por %p52, %p53
      %p55 = scmp.ne.s32.totalorder %s44, %s45
      %p56 = scmp.eq.s32.totalorder %s15, 0
      %p57 = por %p55, %p56
      %p58 = scmp.ne.s32.totalorder %s44, %s45
      %p59 = scmp.eq.s32.totalorder %s16, 1
      %p60 = por %p58, %p59
      %p62 = scmp.ne.s32.totalorder %s45, %s61
      %p63 = scmp.eq.s32.totalorder %s16, 0
      %p64 = por %p62, %p63
      %s66 = sadd.s32 %s65, 1
      %p69 = scmp.eq.s32.totalorder %s10, 1
      %p70 = scmp.ne.s32.totalorder %s65, %s67
      %p71 = scmp.eq.s32.totalorder %s10, 0
      %p72 = por %p70, %p71
      %p73 = scmp.ne.s32.totalorder %s65, %s67
      %p74 = scmp.eq.s32.totalorder %s15, 1
      %p75 = por %p73, %p74
      %p76 = scmp.ne.s32.totalorder %s67, %s68
      %p77 = scmp.eq.s32.totalorder %s15, 0
      %p78 = por %p76, %p77
      %p79 = scmp.ne.s32.totalorder %s67, %s68
      %p80 = scmp.eq.s32.totalorder %s16, 1
      %p81 = por %p79, %p80
      %p83 = scmp.ne.s32.totalorder %s68, %s82
      %p84 = scmp.eq.s32.totalorder %s16, 0
      %p85 = por %p83, %p84
      %s87 = sadd.s32 %s86, 1
      %p90 = scmp.eq.s32.totalorder %s10, 1
      %p91 = scmp.ne.s32.totalorder %s86, %s88
      %p92 = scmp.eq.s32.totalorder %s10, 0
      %p93 = por %p91, %p92
      %p94 = scmp.ne.s32.totalorder %s86, %s88
      %p95 = scmp.eq.s32.totalorder %s15, 1
      %p96 = por %p94, %p95
      %p97 = scmp.ne.s32.totalorder %s88, %s89
      %p98 = scmp.eq.s32.totalorder %s15, 0
      %p99 = por %p97, %p98
      %p100 = scmp.ne.s32.totalorder %s88, %s89
      %p101 = scmp.eq.s32.totalorder %s16, 1
      %p102 = por %p100, %p101
      %p104 = scmp.ne.s32.totalorder %s89, %s103
      %p105 = scmp.eq.s32.totalorder %s16, 0
      %p106 = por %p104, %p105
      %s107 = ssub.s32 %s10, %s17
      %p108 = scmp.eq.s32.totalorder %s107, 0
      %s110 = sadd.s32 %s109, 1
      %s111 = scalar_select %p108, %s109, %s110
      %p114 = pneg %p108
      %p115 = scmp.eq.s32.totalorder %s10, 1
      %p116 = por %p114, %p115
      %p117 = scmp.ne.s32.totalorder %s109, %s112
      %p118 = scmp.eq.s32.totalorder %s10, 0
      %p119 = por %p117, %p118
      %p120 = scmp.ne.s32.totalorder %s109, %s112
      %p121 = scmp.eq.s32.totalorder %s15, 1
      %p122 = por %p120, %p121
      %p123 = scmp.ne.s32.totalorder %s112, %s113
      %p124 = scmp.eq.s32.totalorder %s15, 0
      %p125 = por %p123, %p124
      %p126 = scmp.ne.s32.totalorder %s112, %s113
      %p127 = scmp.eq.s32.totalorder %s16, 1
      %p128 = por %p126, %p127
      %p130 = scmp.ne.s32.totalorder %s113, %s129
      %p131 = scmp.eq.s32.totalorder %s16, 0
      %p132 = por %p130, %p131
      %p133 = scmp.le.s32.totalorder 1, %s10
      %p134 = scmp.lt.s32.totalorder %s10, 3
      %p135 = pnand %p133, %p134
      %p136 = pneg %p135
      // Predicated region
      $region9: #{cost_reg_net.32} parent=5 // pred_check
        _
      $region10: #{cost_reg_net.32} parent=5 // pred_check_branch
        %138 = sbr.rel (%p135) target = $region12
      $region11: #{cost_reg_net.32} parent=5 // pred_region
        %s139 = ssub.s32 %s10, 1
        // Predicated region
        $region13: #{cost_reg_net.32} parent=11 // pred_check
          %p140 = pneg %p31
        $region14: #{cost_reg_net.32} parent=11 // pred_check_branch
          %142 = sbr.rel (%p140) target = $region16
        $region15: #{cost_reg_net.32} parent=11 // pred_region
          _
        $region16: #{cost_reg_net.32} parent=11 // pred_fallthru
          _
        // Predicated region
        $region17: #{cost_reg_net.32} parent=11 // pred_check
          %p143 = pneg %p78
        $region18: #{cost_reg_net.32} parent=11 // pred_check_branch
          %145 = sbr.rel (%p143) target = $region20
        $region19: #{cost_reg_net.32} parent=11 // pred_region
          _
        $region20: #{cost_reg_net.32} parent=11 // pred_fallthru
          _
        // Predicated region
        $region21: #{cost_reg_net.32} parent=11 // pred_check
          %p146 = pneg %p99
        $region22: #{cost_reg_net.32} parent=11 // pred_check_branch
          %148 = sbr.rel (%p146) target = $region24
        $region23: #{cost_reg_net.32} parent=11 // pred_region
          _
        $region24: #{cost_reg_net.32} parent=11 // pred_fallthru
          _
      $region12: #{cost_reg_net.32} parent=5 // pred_fallthru
        _
      %p149 = scmp.lt.s32.totalorder %s10, 2
      // Predicated region
      $region25: #{cost_reg_net.32} parent=5 // pred_check
        %p150 = pneg %p149
      $region26: #{cost_reg_net.32} parent=5 // pred_check_branch
        %152 = sbr.rel (%p150) target = $region28
      $region27: #{cost_reg_net.32} parent=5 // pred_region
        // Predicated region
        $region29: #{cost_reg_net.32} parent=27 // pred_check
          %p153 = pneg %p51
        $region30: #{cost_reg_net.32} parent=27 // pred_check_branch
          %155 = sbr.rel (%p153) target = $region32
        $region31: #{cost_reg_net.32} parent=27 // pred_region
          %s156 = sand.u32 %s41, 1
          %s157 = sand.u32 %s41, 1
          %s158 = smul.addr %s157, 224
          %s159 = scalar_lea.vmem [#allocation2], %s158
          %s160 = smul.u32 4, %s10
          %s161 = smul.addr %s160, 4
          %s162 = scalar_lea.vmem %s1, %s161
          // Predicated region
          $region33: #{cost_reg_net.32} parent=31 // pred_check
            _
          $region34: #{cost_reg_net.32} parent=31 // pred_check_branch
            %164 = sbr.rel (0) target = $region36
          $region35: #{cost_reg_net.32} parent=31 // pred_region
            // Predicated region
            $region37: #{cost_reg_net.32} parent=35 // pred_check
              _
            $region38: #{cost_reg_net.32} parent=35 // pred_check_branch
              %166 = sbr.rel (0) target = $region40
            $region39: #{cost_reg_net.32} parent=35 // pred_region
              loop: start=0, step=1, limit=1
              $region41: #{cost_reg_net.32} parent=39 // loop_pre_header
                _
              $region42: #{cost_reg_net.32} parent=39 // loop_header
                %s168 = sphi 0, %s172
                %p169 = scmp.ge.s32.totalorder %s168, 1
                %s173 = sphi %s162, %s162
                %s174 = sphi %s159, %s159
              $region43: #{cost_reg_net.32} parent=39 // loop_header_branch
                %171 = sbr.rel (%p169) target = $region47
              $region44: #{cost_reg_net.32} parent=39 // loop_body
                %v175 = vld [vmem:[%s173] sm:$0xff]
                %176 = vst [vmem:[%s174] sm:$0xff] %v175
                %v177 = vld [vmem:[%s173 + $0x8] sm:$0xff]
                %178 = vst [vmem:[%s174 + $0x8] sm:$0xff] %v177
                %v179 = vld [vmem:[%s173 + $0x20] sm:$0xff]
                %180 = vst [vmem:[%s174 + $0x10] sm:$0xff] %v179
                %v181 = vld [vmem:[%s173 + $0x28] sm:$0xff]
                %182 = vst [vmem:[%s174 + $0x18] sm:$0xff] %v181
                %v183 = vld [vmem:[%s173 + $0x40] sm:$0xff]
                %184 = vst [vmem:[%s174 + $0x20] sm:$0xff] %v183
                %v185 = vld [vmem:[%s173 + $0x48] sm:$0xff]
                %186 = vst [vmem:[%s174 + $0x28] sm:$0xff] %v185
                %v187 = vld [vmem:[%s173 + $0x60] sm:$0xff]
                %188 = vst [vmem:[%s174 + $0x30] sm:$0xff] %v187
                %v189 = vld [vmem:[%s173 + $0x68] sm:$0xff]
                %190 = vst [vmem:[%s174 + $0x38] sm:$0xff] %v189
                %v191 = vld [vmem:[%s173 + $0x80] sm:$0xff]
                %192 = vst [vmem:[%s174 + $0x40] sm:$0xff] %v191
                %v193 = vld [vmem:[%s173 + $0x88] sm:$0xff]
                %194 = vst [vmem:[%s174 + $0x48] sm:$0xff] %v193
                %v195 = vld [vmem:[%s173 + $0xa0] sm:$0xff]
                %196 = vst [vmem:[%s174 + $0x50] sm:$0xff] %v195
                %v197 = vld [vmem:[%s173 + $0xa8] sm:$0xff]
                %198 = vst [vmem:[%s174 + $0x58] sm:$0xff] %v197
                %v199 = vld [vmem:[%s173 + $0xc0] sm:$0xff]
                %200 = vst [vmem:[%s174 + $0x60] sm:$0xff] %v199
                %v201 = vld [vmem:[%s173 + $0xc8] sm:$0xff]
                %202 = vst [vmem:[%s174 + $0x68] sm:$0xff] %v201
                %v203 = vld [vmem:[%s173 + $0xe0] sm:$0xff]
                %204 = vst [vmem:[%s174 + $0x70] sm:$0xff] %v203
                %v205 = vld [vmem:[%s173 + $0xe8] sm:$0xff]
                %206 = vst [vmem:[%s174 + $0x78] sm:$0xff] %v205
                %v207 = vld [vmem:[%s173 + $0x100] sm:$0xff]
                %208 = vst [vmem:[%s174 + $0x80] sm:$0xff] %v207
                %v209 = vld [vmem:[%s173 + $0x108] sm:$0xff]
                %210 = vst [vmem:[%s174 + $0x88] sm:$0xff] %v209
                %v211 = vld [vmem:[%s173 + $0x120] sm:$0xff]
                %212 = vst [vmem:[%s174 + $0x90] sm:$0xff] %v211
                %v213 = vld [vmem:[%s173 + $0x128] sm:$0xff]
                %214 = vst [vmem:[%s174 + $0x98] sm:$0xff] %v213
                %v215 = vld [vmem:[%s173 + $0x140] sm:$0xff]
                %216 = vst [vmem:[%s174 + $0xa0] sm:$0xff] %v215
                %v217 = vld [vmem:[%s173 + $0x148] sm:$0xff]
                %218 = vst [vmem:[%s174 + $0xa8] sm:$0xff] %v217
                %v219 = vld [vmem:[%s173 + $0x160] sm:$0xff]
                %220 = vst [vmem:[%s174 + $0xb0] sm:$0xff] %v219
                %v221 = vld [vmem:[%s173 + $0x168] sm:$0xff]
                %222 = vst [vmem:[%s174 + $0xb8] sm:$0xff] %v221
                %v223 = vld [vmem:[%s173 + $0x180] sm:$0xff]
                %224 = vst [vmem:[%s174 + $0xc0] sm:$0xff] %v223
                %v225 = vld [vmem:[%s173 + $0x188] sm:$0xff]
                %226 = vst [vmem:[%s174 + $0xc8] sm:$0xff] %v225
                %v227 = vld [vmem:[%s173 + $0x1a0] sm:$0xff]
                %228 = vst [vmem:[%s174 + $0xd0] sm:$0xff] %v227
                %v229 = vld [vmem:[%s173 + $0x1a8] sm:$0xff]
                %230 = vst [vmem:[%s174 + $0xd8] sm:$0xff] %v229
              $region45: #{cost_reg_net.32} parent=39 // loop_footer
                %s172 = sadd.s32 1, %s168
              $region46: #{cost_reg_net.32} parent=39 // loop_footer_branch
                %167 = sbr.rel target = $region42
              $region47: #{cost_reg_net.32} parent=39 // loop_exit
                _
            $region40: #{cost_reg_net.32} parent=35 // pred_fallthru
              _
            // Predicated region
            $region48: #{cost_reg_net.32} parent=35 // pred_check
              _
            $region49: #{cost_reg_net.32} parent=35 // pred_check_branch
              %232 = sbr.rel target = $region51
            $region50: #{cost_reg_net.32} parent=35 // pred_region
              _
            $region51: #{cost_reg_net.32} parent=35 // pred_fallthru
              _
          $region36: #{cost_reg_net.32} parent=31 // pred_fallthru
            _
          %233 = vnop
        $region32: #{cost_reg_net.32} parent=27 // pred_fallthru
          _
      $region28: #{cost_reg_net.32} parent=5 // pred_fallthru
        _
      %p234 = scmp.le.s32.totalorder 1, %s10
      %p235 = scmp.lt.s32.totalorder %s10, 3
      %p236 = pnand %p234, %p235
      %p237 = pneg %p236
      // Predicated region
      $region52: #{cost_reg_net.32} parent=5 // pred_check
        _
      $region53: #{cost_reg_net.32} parent=5 // pred_check_branch
        %239 = sbr.rel (%p236) target = $region55
      $region54: #{cost_reg_net.32} parent=5 // pred_region
        %s240 = ssub.s32 %s10, 1
        %s241 = sand.u32 %s44, 1
        %s242 = sand.u32 %s44, 1
        %s243 = smul.addr %s242, 224
        %s244 = scalar_lea.vmem [#allocation2], %s243
        // Predicated region
        $region56: #{cost_reg_net.32} parent=54 // pred_check
          %p245 = pneg %p57
        $region57: #{cost_reg_net.32} parent=54 // pred_check_branch
          %247 = sbr.rel (%p245) target = $region59
        $region58: #{cost_reg_net.32} parent=54 // pred_region
          _
        $region59: #{cost_reg_net.32} parent=54 // pred_fallthru
          _
        %p248 = pneg %p31
        %p249 = pneg %p28
        %s250 = sand.u32 %s44, 1
        %s251 = sand.u32 %s44, 1
        %s252 = smul.addr %s251, 224
        %s253 = scalar_lea.vmem [#allocation2], %s252
        %p254 = pneg %p57
        %p255 = pneg %p54
        %p256 = pneg %p78
        %p257 = pneg %p75
        %p258 = pneg %p99
        %p259 = pneg %p96
        %p260 = pneg %p125
        %p261 = pneg %p122
        %s262 = smul.u32 4, %s15
        %p263 = scmp.lt.s32.totalorder %s262, 7
        %s264 = scalar_select %p263, %s262, 7
        %s265 = smul.addr %s264, 8
        %s266 = scalar_lea.vmem %s4, %s265
        %s267 = smul.u32 4, %s15
        %s268 = smul.u32 4, %s15
        %p269 = scmp.lt.s32.totalorder %s268, 7
        %s270 = scalar_select %p269, %s268, 7
        %s271 = smul.addr %s270, 8
        %s272 = scalar_lea.vmem %s4, %s271
        %s273 = smul.u32 4, %s15
        %v275 = vld [vmem:[%s0] sm:$0xf]
        %v276 = vld [vmem:[%s244] sm:$0xff]
        %v277 = vld [vmem:[%s244 + $0x8] sm:$0xff]
        %v278 = vld [vmem:[%s244 + $0x10] sm:$0xff]
        %v279 = vld [vmem:[%s244 + $0x18] sm:$0xff]
        %v280 = vld [vmem:[%s244 + $0x20] sm:$0xff]
        %v281 = vld [vmem:[%s244 + $0x28] sm:$0xff]
        %v282 = vld [vmem:[%s244 + $0x30] sm:$0xff]
        %v283 = vld [vmem:[%s244 + $0x38] sm:$0xff]
        %v284 = vld [vmem:[%s244 + $0x40] sm:$0xff]
        %v285 = vld [vmem:[%s244 + $0x48] sm:$0xff]
        %v286 = vld [vmem:[%s244 + $0x50] sm:$0xff]
        %v287 = vld [vmem:[%s244 + $0x58] sm:$0xff]
        %v288 = vld [vmem:[%s244 + $0x60] sm:$0xff]
        %v289 = vld [vmem:[%s244 + $0x68] sm:$0xff]
        %v290 = vld [vmem:[%s244 + $0x70] sm:$0xff]
        %v291 = vld [vmem:[%s244 + $0x78] sm:$0xff]
        %v292 = vld [vmem:[%s244 + $0x80] sm:$0xff]
        %v293 = vld [vmem:[%s244 + $0x88] sm:$0xff]
        %v294 = vld [vmem:[%s244 + $0x90] sm:$0xff]
        %v295 = vld [vmem:[%s244 + $0x98] sm:$0xff]
        %v296 = vld [vmem:[%s244 + $0xa0] sm:$0xff]
        %v297 = vld [vmem:[%s244 + $0xa8] sm:$0xff]
        %v298 = vld [vmem:[%s244 + $0xb0] sm:$0xff]
        %v299 = vld [vmem:[%s244 + $0xb8] sm:$0xff]
        %v300 = vld [vmem:[%s244 + $0xc0] sm:$0xff]
        %v301 = vld [vmem:[%s244 + $0xc8] sm:$0xff]
        %v302 = vld [vmem:[%s244 + $0xd0] sm:$0x33]
        %v303 = vld [vmem:[%s244 + $0xd8] sm:$0x33]
        %v332 = vunpack.c.l.b16 %v276
        %v333 = vunpack.c.h.b16 %v276
        %v334 = vunpack.c.l.b16 %v277
        %v335 = vunpack.c.h.b16 %v277
        %v336 = vunpack.c.l.b16 %v278
        %v337 = vunpack.c.h.b16 %v278
        %v338 = vunpack.c.l.b16 %v279
        %v339 = vunpack.c.h.b16 %v279
        %v340 = vunpack.c.l.b16 %v280
        %v341 = vunpack.c.h.b16 %v280
        %v342 = vunpack.c.l.b16 %v281
        %v343 = vunpack.c.h.b16 %v281
        %v344 = vunpack.c.l.b16 %v282
        %v345 = vunpack.c.h.b16 %v282
        %v346 = vunpack.c.l.b16 %v283
        %v347 = vunpack.c.h.b16 %v283
        %v348 = vunpack.c.l.b16 %v284
        %v349 = vunpack.c.h.b16 %v284
        %v350 = vunpack.c.l.b16 %v285
        %v351 = vunpack.c.h.b16 %v285
        %v352 = vunpack.c.l.b16 %v286
        %v353 = vunpack.c.h.b16 %v286
        %v354 = vunpack.c.l.b16 %v287
        %v355 = vunpack.c.h.b16 %v287
        %v356 = vunpack.c.l.b16 %v288
        %v357 = vunpack.c.h.b16 %v288
        %v358 = vunpack.c.l.b16 %v289
        %v359 = vunpack.c.h.b16 %v289
        %v360 = vunpack.c.l.b16 %v290
        %v361 = vunpack.c.h.b16 %v290
        %v362 = vunpack.c.l.b16 %v291
        %v363 = vunpack.c.h.b16 %v291
        %v364 = vunpack.c.l.b16 %v292
        %v365 = vunpack.c.h.b16 %v292
        %v366 = vunpack.c.l.b16 %v293
        %v367 = vunpack.c.h.b16 %v293
        %v368 = vunpack.c.l.b16 %v294
        %v369 = vunpack.c.h.b16 %v294
        %v370 = vunpack.c.l.b16 %v295
        %v371 = vunpack.c.h.b16 %v295
        %v372 = vunpack.c.l.b16 %v296
        %v373 = vunpack.c.h.b16 %v296
        %v374 = vunpack.c.l.b16 %v297
        %v375 = vunpack.c.h.b16 %v297
        %v376 = vunpack.c.l.b16 %v298
        %v377 = vunpack.c.h.b16 %v298
        %v378 = vunpack.c.l.b16 %v299
        %v379 = vunpack.c.h.b16 %v299
        %v380 = vunpack.c.l.b16 %v300
        %v381 = vunpack.c.h.b16 %v300
        %v382 = vunpack.c.l.b16 %v301
        %v383 = vunpack.c.h.b16 %v301
        %v384 = vunpack.c.l.b16 %v302
        %v385 = vunpack.c.h.b16 %v302
        %v386 = vunpack.c.l.b16 %v303
        %v387 = vunpack.c.h.b16 %v303
        %v388 = vpack.c.b16 %v336, %v332
        %v389 = vpack.c.b16 %v337, %v333
        %v390 = vpack.c.b16 %v338, %v334
        %v391 = vpack.c.b16 %v339, %v335
        %v392 = vpack.c.b16 %v344, %v340
        %v393 = vpack.c.b16 %v345, %v341
        %v394 = vpack.c.b16 %v346, %v342
        %v395 = vpack.c.b16 %v347, %v343
        %v396 = vpack.c.b16 %v352, %v348
        %v397 = vpack.c.b16 %v353, %v349
        %v398 = vpack.c.b16 %v354, %v350
        %v399 = vpack.c.b16 %v355, %v351
        %v400 = vpack.c.b16 %v360, %v356
        %v401 = vpack.c.b16 %v361, %v357
        %v402 = vpack.c.b16 %v362, %v358
        %v403 = vpack.c.b16 %v363, %v359
        %v404 = vpack.c.b16 %v368, %v364
        %v405 = vpack.c.b16 %v369, %v365
        %v406 = vpack.c.b16 %v370, %v366
        %v407 = vpack.c.b16 %v371, %v367
        %v408 = vpack.c.b16 %v376, %v372
        %v409 = vpack.c.b16 %v377, %v373
        %v410 = vpack.c.b16 %v378, %v374
        %v411 = vpack.c.b16 %v379, %v375
        %v412 = vpack.c.b16 %v384, %v380
        %v413 = vpack.c.b16 %v385, %v381
        %v414 = vpack.c.b16 %v386, %v382
        %v415 = vpack.c.b16 %v387, %v383
        %vm440 = vcmask 883712
        %v442 = vsel %vm440, %v275, 0
        %vm444 = vcmask 1045504
        %v446 = vsel %vm444, %v412, 0
        %v449 = vsel %vm444, %v413, 0
        %v452 = vsel %vm444, %v414, 0
        %v455 = vsel %vm444, %v415, 0
        %457 = vmatprep.subr.bf16.mxu0 0
        %458 = vmatpush1.bf16.msra.mxu0 0
        %459 = vmatprep.subr.bf16.mxu0 %v449
        %460 = vmatpush1.bf16.msra.mxu0 %v446
        %461 = vmatprep.subr.bf16.mxu0 %v409
        %462 = vmatpush1.bf16.msra.mxu0 %v408
        %463 = vmatprep.subr.bf16.mxu0 %v405
        %464 = vmatpush1.bf16.msra.mxu0 %v404
        %465 = vmatprep.subr.bf16.mxu0 %v401
        %466 = vmatpush1.bf16.msra.mxu0 %v400
        %467 = vmatprep.subr.bf16.mxu0 %v397
        %468 = vmatpush1.bf16.msra.mxu0 %v396
        %469 = vmatprep.subr.bf16.mxu0 %v393
        %470 = vmatpush1.bf16.msra.mxu0 %v392
        %471 = vmatprep.subr.bf16.mxu0 %v389
        %472 = vmatpush1.bf16.msra.mxu0 %v388
        %473 = vmatprep.subr.bf16.mxu0 0
        %474 = vmatpush2.bf16.msra.mxu0 0
        %475 = vmatprep.subr.bf16.mxu0 0
        %476 = vmatpush2.bf16.msra.mxu0 0
        %477 = vmatprep.subr.bf16.mxu0 0
        %478 = vmatpush2.bf16.msra.mxu0 0
        %479 = vmatprep.subr.bf16.mxu0 0
        %480 = vmatpush2.bf16.msra.mxu0 0
        %481 = vmatprep.subr.bf16.mxu0 0
        %482 = vmatpush2.bf16.msra.mxu0 0
        %483 = vmatprep.subr.bf16.mxu0 0
        %484 = vmatpush2.bf16.msra.mxu0 0
        %485 = vmatprep.subr.bf16.mxu0 0
        %486 = vmatpush2.bf16.msra.mxu0 0
        %487 = vmatprep.subr.bf16.mxu0 0
        %488 = vmatpush2.bf16.msra.mxu0 0
        %489 = vmatprep.mubr.bf16.mxu0 0
        %490 = vmatmul.mubr.bf16.gmra.mxu0 %v442
        %v491 = vpop.f32.mrf.mxu0
        %v492 = vadd.f32 0.0, %v491
        %v493 = vpop.f32.mrf.mxu0
        %v494 = vadd.f32 0.0, %v493
        %v495 = vpop.f32.mrf.mxu0
        %v496 = vpop.f32.mrf.mxu0
        %497 = vdwg.mxu0
        %498 = vmatprep.subr.bf16.mxu0 0
        %499 = vmatpush1.bf16.msra.mxu0 0
        %500 = vmatprep.subr.bf16.mxu0 %v455
        %501 = vmatpush1.bf16.msra.mxu0 %v452
        %502 = vmatprep.subr.bf16.mxu0 %v411
        %503 = vmatpush1.bf16.msra.mxu0 %v410
        %504 = vmatprep.subr.bf16.mxu0 %v407
        %505 = vmatpush1.bf16.msra.mxu0 %v406
        %506 = vmatprep.subr.bf16.mxu0 %v403
        %507 = vmatpush1.bf16.msra.mxu0 %v402
        %508 = vmatprep.subr.bf16.mxu0 %v399
        %509 = vmatpush1.bf16.msra.mxu0 %v398
        %510 = vmatprep.subr.bf16.mxu0 %v395
        %511 = vmatpush1.bf16.msra.mxu0 %v394
        %512 = vmatprep.subr.bf16.mxu0 %v391
        %513 = vmatpush1.bf16.msra.mxu0 %v390
        %514 = vmatprep.subr.bf16.mxu0 0
        %515 = vmatpush2.bf16.msra.mxu0 0
        %516 = vmatprep.subr.bf16.mxu0 0
        %517 = vmatpush2.bf16.msra.mxu0 0
        %518 = vmatprep.subr.bf16.mxu0 0
        %519 = vmatpush2.bf16.msra.mxu0 0
        %520 = vmatprep.subr.bf16.mxu0 0
        %521 = vmatpush2.bf16.msra.mxu0 0
        %522 = vmatprep.subr.bf16.mxu0 0
        %523 = vmatpush2.bf16.msra.mxu0 0
        %524 = vmatprep.subr.bf16.mxu0 0
        %525 = vmatpush2.bf16.msra.mxu0 0
        %526 = vmatprep.subr.bf16.mxu0 0
        %527 = vmatpush2.bf16.msra.mxu0 0
        %528 = vmatprep.subr.bf16.mxu0 0
        %529 = vmatpush2.bf16.msra.mxu0 0
        %530 = vmatprep.mubr.bf16.mxu0 0
        %531 = vmatmul.mubr.bf16.gmra.mxu0 %v442
        %v532 = vpop.f32.mrf.mxu0
        %v533 = vadd.f32 0.0, %v532
        %v534 = vpop.f32.mrf.mxu0
        %v535 = vadd.f32 0.0, %v534
        %v536 = vpop.f32.mrf.mxu0
        %v537 = vpop.f32.mrf.mxu0
        %538 = vdwg.mxu0
        %v539 = vld [vmem:[%s2] sm:$0xff]
        %541 = vset.pattern.permute.xlu0 0
        %542 = vperm.xlu0 %541, %v539
        %v543 = vpop.permute.xlu0 %542
        %v545 = vmul.f32 %v492, %v543
        %v546 = vmul.f32 %v494, %v543
        %v547 = vmul.f32 %v533, %v543
        %v548 = vmul.f32 %v535, %v543
        %v549 = vld [vmem:[%s3] sm:$0xff]
        %551 = vset.pattern.permute.xlu0 0
        %552 = vperm.xlu0 %551, %v549
        %v553 = vpop.permute.xlu0 %552
        %v555 = vadd.f32 %v545, %v553
        %v556 = vadd.f32 %v546, %v553
        %v557 = vadd.f32 %v547, %v553
        %v558 = vadd.f32 %v548, %v553
        %v559 = vmax.f32 %v555, 0.0
        %v560 = vmax.f32 %v556, 0.0
        %v561 = vmax.f32 %v557, 0.0
        %v562 = vmax.f32 %v558, 0.0
        %563 = vst [vmem:[%s272] sm:$0xff] %v559
        %564 = vst [vmem:[%s272 + $0x8] sm:$0xff] %v560
        %565 = vst [vmem:[%s272 + $0x10] sm:$0xff] %v561
        %566 = vst [vmem:[%s272 + $0x18] sm:$0xff] %v562
        %s567 = smul.u32 4, %s15
        %p568 = scmp.lt.s32.totalorder %s567, 7
        %s569 = scalar_select %p568, %s567, 7
        %s570 = smul.addr %s569, 8
        %s571 = scalar_lea.vmem %s4, %s570
        // Predicated region
        $region60: #{cost_reg_net.32} parent=54 // pred_check
          %p572 = pneg %p122
        $region61: #{cost_reg_net.32} parent=54 // pred_check_branch
          %574 = sbr.rel (%p572) target = $region63
        $region62: #{cost_reg_net.32} parent=54 // pred_region
          %s575 = smul.u32 4, %s15
        $region63: #{cost_reg_net.32} parent=54 // pred_fallthru
          _
      $region55: #{cost_reg_net.32} parent=5 // pred_fallthru
        _
      %p576 = scmp.le.s32.totalorder 2, %s10
      // Predicated region
      $region64: #{cost_reg_net.32} parent=5 // pred_check
        %p577 = pneg %p576
      $region65: #{cost_reg_net.32} parent=5 // pred_check_branch
        %579 = sbr.rel (%p577) target = $region67
      $region66: #{cost_reg_net.32} parent=5 // pred_region
        %s580 = ssub.s32 %s10, 2
        // Predicated region
        $region68: #{cost_reg_net.32} parent=66 // pred_check
          %p581 = pneg %p128
        $region69: #{cost_reg_net.32} parent=66 // pred_check_branch
          %583 = sbr.rel (%p581) target = $region71
        $region70: #{cost_reg_net.32} parent=66 // pred_region
          %s584 = smul.u32 4, %s16
          %p585 = scmp.lt.s32.totalorder %s584, 7
          %s586 = scalar_select %p585, %s584, 7
          %s587 = smul.addr %s586, 8
          %s588 = scalar_lea.vmem %s4, %s587
        $region71: #{cost_reg_net.32} parent=66 // pred_fallthru
          _
      $region67: #{cost_reg_net.32} parent=5 // pred_fallthru
        _
    $region6: #{cost_reg_net.32} parent=1 // loop_footer
      %s14 = sadd.s32 1, %s10
    $region7: #{cost_reg_net.32} parent=1 // loop_footer_branch
      %9 = sbr.rel target = $region3
    $region8: #{cost_reg_net.32} parent=1 // loop_exit
      _

// kernel: cost_reg_net.33
$region0: #{cost_reg_net.33}
  #allocation0 [shape = 'u32[]', space=smem, size = 0x4, offset = 0x4, fixed_abs, tag = 'smem constant byte address 0x4 - core index']
  #allocation1 [shape = 'u32[144,128]{1,0:T(1,128)}', space=vmem, size = 0x12000, scoped, tag = 'internal scratch']
  %s0 = inlined_call_operand.vmem [shape: bf16[16,216], index: 0, kind: input, shape index: {}]
  %s1 = inlined_call_operand.vmem [shape: bf16[216,128], index: 1, kind: input, shape index: {}]
  %s2 = inlined_call_operand.vmem [shape: f32[16,1], index: 2, kind: input, shape index: {}]
  %s3 = inlined_call_operand.vmem [shape: f32[16,1], index: 3, kind: input, shape index: {}]
  %s4 = inlined_call_operand.vmem [shape: f32[16,128], index: 4, kind: output, shape index: {}]
  %s5 = sld [smem:[#allocation0]]
  $region26: #{cost_reg_net.33} parent=0
    _
  %s7 = ssub.s32 1, %s5
  %s8 = scalar_select 0, %s7, %s5
  // Predicated region
  $region2: #{cost_reg_net.33} parent=0 // pred_check
    _
  $region3: #{cost_reg_net.33} parent=0 // pred_check_branch
    %10 = sbr.rel (0) target = $region5
  $region4: #{cost_reg_net.33} parent=0 // pred_region
    _
  $region5: #{cost_reg_net.33} parent=0 // pred_fallthru
    _
  // Predicated region
  $region6: #{cost_reg_net.33} parent=0 // pred_check
    _
  $region7: #{cost_reg_net.33} parent=0 // pred_check_branch
    %12 = sbr.rel (0) target = $region9
  $region8: #{cost_reg_net.33} parent=0 // pred_region
    _
  $region9: #{cost_reg_net.33} parent=0 // pred_fallthru
    _
  // Predicated region
  $region10: #{cost_reg_net.33} parent=0 // pred_check
    _
  $region11: #{cost_reg_net.33} parent=0 // pred_check_branch
    %14 = sbr.rel (0) target = $region13
  $region12: #{cost_reg_net.33} parent=0 // pred_region
    _
  $region13: #{cost_reg_net.33} parent=0 // pred_fallthru
    _
  // Predicated region
  $region14: #{cost_reg_net.33} parent=0 // pred_check
    _
  $region15: #{cost_reg_net.33} parent=0 // pred_check_branch
    %16 = sbr.rel (0) target = $region17
  $region16: #{cost_reg_net.33} parent=0 // pred_region
    _
  $region17: #{cost_reg_net.33} parent=0 // pred_fallthru
    _
  %v18 = vld [vmem:[%s0] sm:$0xff]
  %v19 = vld [vmem:[%s0 + $0x8] sm:$0xff]
  %v20 = vld [vmem:[%s1] sm:$0xf]
  %v21 = vld [vmem:[%s1 + $0x4] sm:$0xf]
  %v22 = vld [vmem:[%s1 + $0x8] sm:$0xf]
  %v23 = vld [vmem:[%s1 + $0xc] sm:$0xf]
  %v24 = vld [vmem:[%s1 + $0x10] sm:$0xf]
  %v25 = vld [vmem:[%s1 + $0x14] sm:$0xf]
  %v26 = vld [vmem:[%s1 + $0x18] sm:$0xf]
  %v27 = vld [vmem:[%s1 + $0x1c] sm:$0xf]
  %v28 = vld [vmem:[%s1 + $0x20] sm:$0xf]
  %v29 = vld [vmem:[%s1 + $0x24] sm:$0xf]
  %v30 = vld [vmem:[%s1 + $0x28] sm:$0xf]
  %v31 = vld [vmem:[%s1 + $0x2c] sm:$0xf]
  %v32 = vld [vmem:[%s1 + $0x30] sm:$0xf]
  %v33 = vld [vmem:[%s1 + $0x34] sm:$0xf]
  %v34 = vld [vmem:[%s1 + $0x38] sm:$0xf]
  %v35 = vld [vmem:[%s1 + $0x3c] sm:$0xf]
  %v36 = vld [vmem:[%s1 + $0x40] sm:$0xf]
  %v37 = vld [vmem:[%s1 + $0x44] sm:$0xf]
  %v38 = vld [vmem:[%s1 + $0x48] sm:$0xf]
  %v39 = vld [vmem:[%s1 + $0x4c] sm:$0xf]
  %v40 = vld [vmem:[%s1 + $0x50] sm:$0xf]
  %v41 = vld [vmem:[%s1 + $0x54] sm:$0xf]
  %v42 = vld [vmem:[%s1 + $0x58] sm:$0xf]
  %v43 = vld [vmem:[%s1 + $0x5c] sm:$0xf]
  %v44 = vld [vmem:[%s1 + $0x60] sm:$0xf]
  %v45 = vld [vmem:[%s1 + $0x64] sm:$0xf]
  %v46 = vld [vmem:[%s1 + $0x68] sm:$0xf]
  %v49 = vunpack.c.l.b16 %v18
  %v50 = vunpack.c.h.b16 %v18
  %v51 = vunpack.c.l.b16 %v19
  %v52 = vunpack.c.h.b16 %v19
  %v53 = vpack.c.b16 %v51, %v49
  %v54 = vpack.c.b16 %v52, %v50
  %v83 = vunpack.c.l.b16 %v20
  %v84 = vunpack.c.l.b16 %v21
  %v85 = vunpack.c.l.b16 %v22
  %v86 = vunpack.c.l.b16 %v23
  %v87 = vunpack.c.l.b16 %v24
  %v88 = vunpack.c.l.b16 %v25
  %v89 = vunpack.c.l.b16 %v26
  %v90 = vunpack.c.l.b16 %v27
  %v91 = vunpack.c.l.b16 %v28
  %v92 = vunpack.c.l.b16 %v29
  %v93 = vunpack.c.l.b16 %v30
  %v94 = vunpack.c.l.b16 %v31
  %v95 = vunpack.c.l.b16 %v32
  %v96 = vunpack.c.l.b16 %v33
  %v97 = vunpack.c.l.b16 %v34
  %v98 = vunpack.c.l.b16 %v35
  %v99 = vunpack.c.l.b16 %v36
  %v100 = vunpack.c.l.b16 %v37
  %v101 = vunpack.c.l.b16 %v38
  %v102 = vunpack.c.l.b16 %v39
  %v103 = vunpack.c.l.b16 %v40
  %v104 = vunpack.c.l.b16 %v41
  %v105 = vunpack.c.l.b16 %v42
  %v106 = vunpack.c.l.b16 %v43
  %v107 = vunpack.c.l.b16 %v44
  %v108 = vunpack.c.l.b16 %v45
  %v109 = vunpack.c.l.b16 %v46
  %v110 = vpack.c.b16 %v84, %v83
  %v111 = vpack.c.b16 %v86, %v85
  %v112 = vpack.c.b16 %v88, %v87
  %v113 = vpack.c.b16 %v90, %v89
  %v114 = vpack.c.b16 %v92, %v91
  %v115 = vpack.c.b16 %v94, %v93
  %v116 = vpack.c.b16 %v96, %v95
  %v117 = vpack.c.b16 %v98, %v97
  %v118 = vpack.c.b16 %v100, %v99
  %v119 = vpack.c.b16 %v102, %v101
  %v120 = vpack.c.b16 %v104, %v103
  %v121 = vpack.c.b16 %v106, %v105
  %v122 = vpack.c.b16 %v108, %v107
  %v123 = vpack.c.b16 %v109, %v109
  %vm137 = vcmask 719872
  %v139 = vsel %vm137, %v54, 0
  %vm141 = vcmask 1043456
  %v143 = vsel %vm141, %v123, 0
  %145 = vmatprep.subr.bf16.mxu0 0
  %146 = vmatpush1.bf16.msra.mxu0 %v117
  %147 = vmatprep.subr.bf16.mxu0 0
  %148 = vmatpush1.bf16.msra.mxu0 %v116
  %149 = vmatprep.subr.bf16.mxu0 0
  %150 = vmatpush1.bf16.msra.mxu0 %v115
  %151 = vmatprep.subr.bf16.mxu0 0
  %152 = vmatpush1.bf16.msra.mxu0 %v114
  %153 = vmatprep.subr.bf16.mxu0 0
  %154 = vmatpush1.bf16.msra.mxu0 %v113
  %155 = vmatprep.subr.bf16.mxu0 0
  %156 = vmatpush1.bf16.msra.mxu0 %v112
  %157 = vmatprep.subr.bf16.mxu0 0
  %158 = vmatpush1.bf16.msra.mxu0 %v111
  %159 = vmatprep.subr.bf16.mxu0 0
  %160 = vmatpush1.bf16.msra.mxu0 %v110
  %161 = vmatprep.subr.bf16.mxu0 0
  %162 = vmatpush2.bf16.msra.mxu0 0
  %163 = vmatprep.subr.bf16.mxu0 0
  %164 = vmatpush2.bf16.msra.mxu0 0
  %165 = vmatprep.subr.bf16.mxu0 0
  %166 = vmatpush2.bf16.msra.mxu0 %v143
  %167 = vmatprep.subr.bf16.mxu0 0
  %168 = vmatpush2.bf16.msra.mxu0 %v122
  %169 = vmatprep.subr.bf16.mxu0 0
  %170 = vmatpush2.bf16.msra.mxu0 %v121
  %171 = vmatprep.subr.bf16.mxu0 0
  %172 = vmatpush2.bf16.msra.mxu0 %v120
  %173 = vmatprep.subr.bf16.mxu0 0
  %174 = vmatpush2.bf16.msra.mxu0 %v119
  %175 = vmatprep.subr.bf16.mxu0 0
  %176 = vmatpush2.bf16.msra.mxu0 %v118
  %177 = vmatprep.mubr.bf16.mxu0 %v139
  %178 = vmatmul.mubr.bf16.gmra.mxu0 %v53
  %v179 = vpop.f32.mrf.mxu0
  %v180 = vadd.f32 0.0, %v179
  %v181 = vpop.f32.mrf.mxu0
  %v182 = vpop.f32.mrf.mxu0
  %v183 = vadd.f32 0.0, %v182
  %v184 = vpop.f32.mrf.mxu0
  %185 = vdwg.mxu0
  %v186 = vld [vmem:[%s2] sm:$0xff]
  %v187 = vld [vmem:[%s2 + $0x8] sm:$0xff]
  %189 = vset.pattern.permute.xlu0 0
  %190 = vperm.xlu0 %189, %v186
  %v191 = vpop.permute.xlu0 %190
  %194 = vset.pattern.permute.xlu0 0
  %195 = vperm.xlu0 %194, %v187
  %v196 = vpop.permute.xlu0 %195
  %v198 = vmul.f32 %v180, %v191
  %v199 = vmul.f32 %v183, %v196
  %v200 = vld [vmem:[%s3] sm:$0xff]
  %v201 = vld [vmem:[%s3 + $0x8] sm:$0xff]
  %203 = vset.pattern.permute.xlu0 0
  %204 = vperm.xlu0 %203, %v200
  %v205 = vpop.permute.xlu0 %204
  %208 = vset.pattern.permute.xlu0 0
  %209 = vperm.xlu0 %208, %v201
  %v210 = vpop.permute.xlu0 %209
  %v212 = vadd.f32 %v198, %v205
  %v213 = vadd.f32 %v199, %v210
  %v214 = vmax.f32 %v212, 0.0
  %v215 = vmax.f32 %v213, 0.0
  %216 = vst [vmem:[%s4] sm:$0xff] %v214
  %217 = vst [vmem:[%s4 + $0x8] sm:$0xff] %v215
  // Predicated region
  $region18: #{cost_reg_net.33} parent=0 // pred_check
    _
  $region19: #{cost_reg_net.33} parent=0 // pred_check_branch
    %219 = sbr.rel (0) target = $region21
  $region20: #{cost_reg_net.33} parent=0 // pred_region
    _
  $region21: #{cost_reg_net.33} parent=0 // pred_fallthru
    _
  // Predicated region
  $region22: #{cost_reg_net.33} parent=0 // pred_check
    _
  $region23: #{cost_reg_net.33} parent=0 // pred_check_branch
    %221 = sbr.rel (0) target = $region25
  $region24: #{cost_reg_net.33} parent=0 // pred_region
    _
  $region25: #{cost_reg_net.33} parent=0 // pred_fallthru
    _

// kernel: cost_reg_net.34
$region0: #{cost_reg_net.34}
  #allocation0 [shape = 'u32[]', space=smem, size = 0x4, offset = 0x4, fixed_abs, tag = 'smem constant byte address 0x4 - core index']
  #allocation1 [shape = 'u32[144,128]{1,0:T(1,128)}', space=vmem, size = 0x12000, scoped, tag = 'internal scratch']
  %s0 = inlined_call_operand.vmem [shape: bf16[16,432], index: 0, kind: input, shape index: {}]
  %s1 = inlined_call_operand.vmem [shape: bf16[432,128], index: 1, kind: input, shape index: {}]
  %s2 = inlined_call_operand.vmem [shape: f32[16,1], index: 2, kind: input, shape index: {}]
  %s3 = inlined_call_operand.vmem [shape: f32[16,1], index: 3, kind: input, shape index: {}]
  %s4 = inlined_call_operand.vmem [shape: f32[16,128], index: 4, kind: output, shape index: {}]
  %s5 = sld [smem:[#allocation0]]
  $region26: #{cost_reg_net.34} parent=0
    _
  %s7 = ssub.s32 1, %s5
  %s8 = scalar_select 0, %s7, %s5
  // Predicated region
  $region2: #{cost_reg_net.34} parent=0 // pred_check
    _
  $region3: #{cost_reg_net.34} parent=0 // pred_check_branch
    %10 = sbr.rel (0) target = $region5
  $region4: #{cost_reg_net.34} parent=0 // pred_region
    _
  $region5: #{cost_reg_net.34} parent=0 // pred_fallthru
    _
  // Predicated region
  $region6: #{cost_reg_net.34} parent=0 // pred_check
    _
  $region7: #{cost_reg_net.34} parent=0 // pred_check_branch
    %12 = sbr.rel (0) target = $region9
  $region8: #{cost_reg_net.34} parent=0 // pred_region
    _
  $region9: #{cost_reg_net.34} parent=0 // pred_fallthru
    _
  // Predicated region
  $region10: #{cost_reg_net.34} parent=0 // pred_check
    _
  $region11: #{cost_reg_net.34} parent=0 // pred_check_branch
    %14 = sbr.rel (0) target = $region13
  $region12: #{cost_reg_net.34} parent=0 // pred_region
    _
  $region13: #{cost_reg_net.34} parent=0 // pred_fallthru
    _
  // Predicated region
  $region14: #{cost_reg_net.34} parent=0 // pred_check
    _
  $region15: #{cost_reg_net.34} parent=0 // pred_check_branch
    %16 = sbr.rel (0) target = $region17
  $region16: #{cost_reg_net.34} parent=0 // pred_region
    _
  $region17: #{cost_reg_net.34} parent=0 // pred_fallthru
    _
  %v18 = vld [vmem:[%s0] sm:$0xff]
  %v19 = vld [vmem:[%s0 + $0x8] sm:$0xff]
  %v20 = vld [vmem:[%s0 + $0x10] sm:$0xff]
  %v21 = vld [vmem:[%s0 + $0x18] sm:$0xff]
  %v22 = vld [vmem:[%s1] sm:$0xf]
  %v23 = vld [vmem:[%s1 + $0x4] sm:$0xf]
  %v24 = vld [vmem:[%s1 + $0x8] sm:$0xf]
  %v25 = vld [vmem:[%s1 + $0xc] sm:$0xf]
  %v26 = vld [vmem:[%s1 + $0x10] sm:$0xf]
  %v27 = vld [vmem:[%s1 + $0x14] sm:$0xf]
  %v28 = vld [vmem:[%s1 + $0x18] sm:$0xf]
  %v29 = vld [vmem:[%s1 + $0x1c] sm:$0xf]
  %v30 = vld [vmem:[%s1 + $0x20] sm:$0xf]
  %v31 = vld [vmem:[%s1 + $0x24] sm:$0xf]
  %v32 = vld [vmem:[%s1 + $0x28] sm:$0xf]
  %v33 = vld [vmem:[%s1 + $0x2c] sm:$0xf]
  %v34 = vld [vmem:[%s1 + $0x30] sm:$0xf]
  %v35 = vld [vmem:[%s1 + $0x34] sm:$0xf]
  %v36 = vld [vmem:[%s1 + $0x38] sm:$0xf]
  %v37 = vld [vmem:[%s1 + $0x3c] sm:$0xf]
  %v38 = vld [vmem:[%s1 + $0x40] sm:$0xf]
  %v39 = vld [vmem:[%s1 + $0x44] sm:$0xf]
  %v40 = vld [vmem:[%s1 + $0x48] sm:$0xf]
  %v41 = vld [vmem:[%s1 + $0x4c] sm:$0xf]
  %v42 = vld [vmem:[%s1 + $0x50] sm:$0xf]
  %v43 = vld [vmem:[%s1 + $0x54] sm:$0xf]
  %v44 = vld [vmem:[%s1 + $0x58] sm:$0xf]
  %v45 = vld [vmem:[%s1 + $0x5c] sm:$0xf]
  %v46 = vld [vmem:[%s1 + $0x60] sm:$0xf]
  %v47 = vld [vmem:[%s1 + $0x64] sm:$0xf]
  %v48 = vld [vmem:[%s1 + $0x68] sm:$0xf]
  %v49 = vld [vmem:[%s1 + $0x6c] sm:$0xf]
  %v50 = vld [vmem:[%s1 + $0x70] sm:$0xf]
  %v51 = vld [vmem:[%s1 + $0x74] sm:$0xf]
  %v52 = vld [vmem:[%s1 + $0x78] sm:$0xf]
  %v53 = vld [vmem:[%s1 + $0x7c] sm:$0xf]
  %v54 = vld [vmem:[%s1 + $0x80] sm:$0xf]
  %v55 = vld [vmem:[%s1 + $0x84] sm:$0xf]
  %v56 = vld [vmem:[%s1 + $0x88] sm:$0xf]
  %v57 = vld [vmem:[%s1 + $0x8c] sm:$0xf]
  %v58 = vld [vmem:[%s1 + $0x90] sm:$0xf]
  %v59 = vld [vmem:[%s1 + $0x94] sm:$0xf]
  %v60 = vld [vmem:[%s1 + $0x98] sm:$0xf]
  %v61 = vld [vmem:[%s1 + $0x9c] sm:$0xf]
  %v62 = vld [vmem:[%s1 + $0xa0] sm:$0xf]
  %v63 = vld [vmem:[%s1 + $0xa4] sm:$0xf]
  %v64 = vld [vmem:[%s1 + $0xa8] sm:$0xf]
  %v65 = vld [vmem:[%s1 + $0xac] sm:$0xf]
  %v66 = vld [vmem:[%s1 + $0xb0] sm:$0xf]
  %v67 = vld [vmem:[%s1 + $0xb4] sm:$0xf]
  %v68 = vld [vmem:[%s1 + $0xb8] sm:$0xf]
  %v69 = vld [vmem:[%s1 + $0xbc] sm:$0xf]
  %v70 = vld [vmem:[%s1 + $0xc0] sm:$0xf]
  %v71 = vld [vmem:[%s1 + $0xc4] sm:$0xf]
  %v72 = vld [vmem:[%s1 + $0xc8] sm:$0xf]
  %v73 = vld [vmem:[%s1 + $0xcc] sm:$0xf]
  %v74 = vld [vmem:[%s1 + $0xd0] sm:$0xf]
  %v75 = vld [vmem:[%s1 + $0xd4] sm:$0xf]
  %v80 = vunpack.c.l.b16 %v18
  %v81 = vunpack.c.h.b16 %v18
  %v82 = vunpack.c.l.b16 %v19
  %v83 = vunpack.c.h.b16 %v19
  %v84 = vunpack.c.l.b16 %v20
  %v85 = vunpack.c.h.b16 %v20
  %v86 = vunpack.c.l.b16 %v21
  %v87 = vunpack.c.h.b16 %v21
  %v88 = vpack.c.b16 %v84, %v80
  %v89 = vpack.c.b16 %v85, %v81
  %v90 = vpack.c.b16 %v86, %v82
  %v91 = vpack.c.b16 %v87, %v83
  %v149 = vunpack.c.l.b16 %v22
  %v150 = vunpack.c.l.b16 %v23
  %v151 = vunpack.c.l.b16 %v24
  %v152 = vunpack.c.l.b16 %v25
  %v153 = vunpack.c.l.b16 %v26
  %v154 = vunpack.c.l.b16 %v27
  %v155 = vunpack.c.l.b16 %v28
  %v156 = vunpack.c.l.b16 %v29
  %v157 = vunpack.c.l.b16 %v30
  %v158 = vunpack.c.l.b16 %v31
  %v159 = vunpack.c.l.b16 %v32
  %v160 = vunpack.c.l.b16 %v33
  %v161 = vunpack.c.l.b16 %v34
  %v162 = vunpack.c.l.b16 %v35
  %v163 = vunpack.c.l.b16 %v36
  %v164 = vunpack.c.l.b16 %v37
  %v165 = vunpack.c.l.b16 %v38
  %v166 = vunpack.c.l.b16 %v39
  %v167 = vunpack.c.l.b16 %v40
  %v168 = vunpack.c.l.b16 %v41
  %v169 = vunpack.c.l.b16 %v42
  %v170 = vunpack.c.l.b16 %v43
  %v171 = vunpack.c.l.b16 %v44
  %v172 = vunpack.c.l.b16 %v45
  %v173 = vunpack.c.l.b16 %v46
  %v174 = vunpack.c.l.b16 %v47
  %v175 = vunpack.c.l.b16 %v48
  %v176 = vunpack.c.l.b16 %v49
  %v177 = vunpack.c.l.b16 %v50
  %v178 = vunpack.c.l.b16 %v51
  %v179 = vunpack.c.l.b16 %v52
  %v180 = vunpack.c.l.b16 %v53
  %v181 = vunpack.c.l.b16 %v54
  %v182 = vunpack.c.l.b16 %v55
  %v183 = vunpack.c.l.b16 %v56
  %v184 = vunpack.c.l.b16 %v57
  %v185 = vunpack.c.l.b16 %v58
  %v186 = vunpack.c.l.b16 %v59
  %v187 = vunpack.c.l.b16 %v60
  %v188 = vunpack.c.l.b16 %v61
  %v189 = vunpack.c.l.b16 %v62
  %v190 = vunpack.c.l.b16 %v63
  %v191 = vunpack.c.l.b16 %v64
  %v192 = vunpack.c.l.b16 %v65
  %v193 = vunpack.c.l.b16 %v66
  %v194 = vunpack.c.l.b16 %v67
  %v195 = vunpack.c.l.b16 %v68
  %v196 = vunpack.c.l.b16 %v69
  %v197 = vunpack.c.l.b16 %v70
  %v198 = vunpack.c.l.b16 %v71
  %v199 = vunpack.c.l.b16 %v72
  %v200 = vunpack.c.l.b16 %v73
  %v201 = vunpack.c.l.b16 %v74
  %v202 = vunpack.c.l.b16 %v75
  %v203 = vpack.c.b16 %v150, %v149
  %v204 = vpack.c.b16 %v152, %v151
  %v205 = vpack.c.b16 %v154, %v153
  %v206 = vpack.c.b16 %v156, %v155
  %v207 = vpack.c.b16 %v158, %v157
  %v208 = vpack.c.b16 %v160, %v159
  %v209 = vpack.c.b16 %v162, %v161
  %v210 = vpack.c.b16 %v164, %v163
  %v211 = vpack.c.b16 %v166, %v165
  %v212 = vpack.c.b16 %v168, %v167
  %v213 = vpack.c.b16 %v170, %v169
  %v214 = vpack.c.b16 %v172, %v171
  %v215 = vpack.c.b16 %v174, %v173
  %v216 = vpack.c.b16 %v176, %v175
  %v217 = vpack.c.b16 %v178, %v177
  %v218 = vpack.c.b16 %v180, %v179
  %v219 = vpack.c.b16 %v182, %v181
  %v220 = vpack.c.b16 %v184, %v183
  %v221 = vpack.c.b16 %v186, %v185
  %v222 = vpack.c.b16 %v188, %v187
  %v223 = vpack.c.b16 %v190, %v189
  %v224 = vpack.c.b16 %v192, %v191
  %v225 = vpack.c.b16 %v194, %v193
  %v226 = vpack.c.b16 %v196, %v195
  %v227 = vpack.c.b16 %v198, %v197
  %v228 = vpack.c.b16 %v200, %v199
  %v229 = vpack.c.b16 %v202, %v201
  %vm257 = vcmask 392192
  %v259 = vsel %vm257, %v91, 0
  %261 = vmatprep.subr.bf16.mxu0 0
  %262 = vmatpush1.bf16.msra.mxu0 %v210
  %263 = vmatprep.subr.bf16.mxu0 0
  %264 = vmatpush1.bf16.msra.mxu0 %v209
  %265 = vmatprep.subr.bf16.mxu0 0
  %266 = vmatpush1.bf16.msra.mxu0 %v208
  %267 = vmatprep.subr.bf16.mxu0 0
  %268 = vmatpush1.bf16.msra.mxu0 %v207
  %269 = vmatprep.subr.bf16.mxu0 0
  %270 = vmatpush1.bf16.msra.mxu0 %v206
  %271 = vmatprep.subr.bf16.mxu0 0
  %272 = vmatpush1.bf16.msra.mxu0 %v205
  %273 = vmatprep.subr.bf16.mxu0 0
  %274 = vmatpush1.bf16.msra.mxu0 %v204
  %275 = vmatprep.subr.bf16.mxu0 0
  %276 = vmatpush1.bf16.msra.mxu0 %v203
  %277 = vmatprep.subr.bf16.mxu0 0
  %278 = vmatpush2.bf16.msra.mxu0 %v218
  %279 = vmatprep.subr.bf16.mxu0 0
  %280 = vmatpush2.bf16.msra.mxu0 %v217
  %281 = vmatprep.subr.bf16.mxu0 0
  %282 = vmatpush2.bf16.msra.mxu0 %v216
  %283 = vmatprep.subr.bf16.mxu0 0
  %284 = vmatpush2.bf16.msra.mxu0 %v215
  %285 = vmatprep.subr.bf16.mxu0 0
  %286 = vmatpush2.bf16.msra.mxu0 %v214
  %287 = vmatprep.subr.bf16.mxu0 0
  %288 = vmatpush2.bf16.msra.mxu0 %v213
  %289 = vmatprep.subr.bf16.mxu0 0
  %290 = vmatpush2.bf16.msra.mxu0 %v212
  %291 = vmatprep.subr.bf16.mxu0 0
  %292 = vmatpush2.bf16.msra.mxu0 %v211
  %293 = vmatprep.mubr.bf16.mxu0 %v89
  %294 = vmatmul.mubr.bf16.gmra.mxu0 %v88
  %v295 = vpop.f32.mrf.mxu0
  %v296 = vadd.f32 0.0, %v295
  %v297 = vpop.f32.mrf.mxu0
  %v298 = vpop.f32.mrf.mxu0
  %v299 = vadd.f32 0.0, %v298
  %v300 = vpop.f32.mrf.mxu0
  %301 = vdwg.mxu0
  %302 = vmatprep.subr.bf16.mxu0 0
  %303 = vmatpush1.bf16.msra.mxu0 %v226
  %304 = vmatprep.subr.bf16.mxu0 0
  %305 = vmatpush1.bf16.msra.mxu0 %v225
  %306 = vmatprep.subr.bf16.mxu0 0
  %307 = vmatpush1.bf16.msra.mxu0 %v224
  %308 = vmatprep.subr.bf16.mxu0 0
  %309 = vmatpush1.bf16.msra.mxu0 %v223
  %310 = vmatprep.subr.bf16.mxu0 0
  %311 = vmatpush1.bf16.msra.mxu0 %v222
  %312 = vmatprep.subr.bf16.mxu0 0
  %313 = vmatpush1.bf16.msra.mxu0 %v221
  %314 = vmatprep.subr.bf16.mxu0 0
  %315 = vmatpush1.bf16.msra.mxu0 %v220
  %316 = vmatprep.subr.bf16.mxu0 0
  %317 = vmatpush1.bf16.msra.mxu0 %v219
  %318 = vmatprep.subr.bf16.mxu0 0
  %319 = vmatpush2.bf16.msra.mxu0 0
  %320 = vmatprep.subr.bf16.mxu0 0
  %321 = vmatpush2.bf16.msra.mxu0 0
  %322 = vmatprep.subr.bf16.mxu0 0
  %323 = vmatpush2.bf16.msra.mxu0 0
  %324 = vmatprep.subr.bf16.mxu0 0
  %325 = vmatpush2.bf16.msra.mxu0 0
  %326 = vmatprep.subr.bf16.mxu0 0
  %327 = vmatpush2.bf16.msra.mxu0 0
  %328 = vmatprep.subr.bf16.mxu0 0
  %329 = vmatpush2.bf16.msra.mxu0 %v229
  %330 = vmatprep.subr.bf16.mxu0 0
  %331 = vmatpush2.bf16.msra.mxu0 %v228
  %332 = vmatprep.subr.bf16.mxu0 0
  %333 = vmatpush2.bf16.msra.mxu0 %v227
  %334 = vmatprep.mubr.bf16.mxu0 %v259
  %335 = vmatmul.mubr.bf16.gmra.mxu0 %v90
  %v336 = vpop.f32.mrf.mxu0
  %v337 = vadd.f32 %v296, %v336
  %v338 = vpop.f32.mrf.mxu0
  %v339 = vpop.f32.mrf.mxu0
  %v340 = vadd.f32 %v299, %v339
  %v341 = vpop.f32.mrf.mxu0
  %342 = vdwg.mxu0
  %v343 = vld [vmem:[%s2] sm:$0xff]
  %v344 = vld [vmem:[%s2 + $0x8] sm:$0xff]
  %346 = vset.pattern.permute.xlu0 0
  %347 = vperm.xlu0 %346, %v343
  %v348 = vpop.permute.xlu0 %347
  %351 = vset.pattern.permute.xlu0 0
  %352 = vperm.xlu0 %351, %v344
  %v353 = vpop.permute.xlu0 %352
  %v355 = vmul.f32 %v337, %v348
  %v356 = vmul.f32 %v340, %v353
  %v357 = vld [vmem:[%s3] sm:$0xff]
  %v358 = vld [vmem:[%s3 + $0x8] sm:$0xff]
  %360 = vset.pattern.permute.xlu0 0
  %361 = vperm.xlu0 %360, %v357
  %v362 = vpop.permute.xlu0 %361
  %365 = vset.pattern.permute.xlu0 0
  %366 = vperm.xlu0 %365, %v358
  %v367 = vpop.permute.xlu0 %366
  %v369 = vadd.f32 %v355, %v362
  %v370 = vadd.f32 %v356, %v367
  %v371 = vmax.f32 %v369, 0.0
  %v372 = vmax.f32 %v370, 0.0
  %373 = vst [vmem:[%s4] sm:$0xff] %v371
  %374 = vst [vmem:[%s4 + $0x8] sm:$0xff] %v372
  // Predicated region
  $region18: #{cost_reg_net.34} parent=0 // pred_check
    _
  $region19: #{cost_reg_net.34} parent=0 // pred_check_branch
    %376 = sbr.rel (0) target = $region21
  $region20: #{cost_reg_net.34} parent=0 // pred_region
    _
  $region21: #{cost_reg_net.34} parent=0 // pred_fallthru
    _
  // Predicated region
  $region22: #{cost_reg_net.34} parent=0 // pred_check
    _
  $region23: #{cost_reg_net.34} parent=0 // pred_check_branch
    %378 = sbr.rel (0) target = $region25
  $region24: #{cost_reg_net.34} parent=0 // pred_region
    _
  $region25: #{cost_reg_net.34} parent=0 // pred_fallthru
    _

// kernel: cost_reg_net.35
$region0: #{cost_reg_net.35}
  #allocation0 [shape = 'u32[]', space=smem, size = 0x4, offset = 0x4, fixed_abs, tag = 'smem constant byte address 0x4 - core index']
  #allocation1 [shape = 'u32[144,128]{1,0:T(1,128)}', space=vmem, size = 0x12000, scoped, tag = 'internal scratch']
  %s0 = inlined_call_operand.vmem [shape: bf16[32,432], index: 0, kind: input, shape index: {}]
  %s1 = inlined_call_operand.vmem [shape: bf16[432,128], index: 1, kind: input, shape index: {}]
  %s2 = inlined_call_operand.vmem [shape: f32[32,1], index: 2, kind: input, shape index: {}]
  %s3 = inlined_call_operand.vmem [shape: f32[32,1], index: 3, kind: input, shape index: {}]
  %s4 = inlined_call_operand.vmem [shape: f32[32,128], index: 4, kind: output, shape index: {}]
  %s5 = sld [smem:[#allocation0]]
  $region26: #{cost_reg_net.35} parent=0
    _
  %s7 = ssub.s32 1, %s5
  %s8 = scalar_select 0, %s7, %s5
  // Predicated region
  $region2: #{cost_reg_net.35} parent=0 // pred_check
    _
  $region3: #{cost_reg_net.35} parent=0 // pred_check_branch
    %10 = sbr.rel (0) target = $region5
  $region4: #{cost_reg_net.35} parent=0 // pred_region
    _
  $region5: #{cost_reg_net.35} parent=0 // pred_fallthru
    _
  // Predicated region
  $region6: #{cost_reg_net.35} parent=0 // pred_check
    _
  $region7: #{cost_reg_net.35} parent=0 // pred_check_branch
    %12 = sbr.rel (0) target = $region9
  $region8: #{cost_reg_net.35} parent=0 // pred_region
    _
  $region9: #{cost_reg_net.35} parent=0 // pred_fallthru
    _
  // Predicated region
  $region10: #{cost_reg_net.35} parent=0 // pred_check
    _
  $region11: #{cost_reg_net.35} parent=0 // pred_check_branch
    %14 = sbr.rel (0) target = $region13
  $region12: #{cost_reg_net.35} parent=0 // pred_region
    _
  $region13: #{cost_reg_net.35} parent=0 // pred_fallthru
    _
  // Predicated region
  $region14: #{cost_reg_net.35} parent=0 // pred_check
    _
  $region15: #{cost_reg_net.35} parent=0 // pred_check_branch
    %16 = sbr.rel (0) target = $region17
  $region16: #{cost_reg_net.35} parent=0 // pred_region
    _
  $region17: #{cost_reg_net.35} parent=0 // pred_fallthru
    _
  %v18 = vld [vmem:[%s0] sm:$0xff]
  %v19 = vld [vmem:[%s0 + $0x8] sm:$0xff]
  %v20 = vld [vmem:[%s0 + $0x10] sm:$0xff]
  %v21 = vld [vmem:[%s0 + $0x18] sm:$0xff]
  %v22 = vld [vmem:[%s0 + $0x20] sm:$0xff]
  %v23 = vld [vmem:[%s0 + $0x28] sm:$0xff]
  %v24 = vld [vmem:[%s0 + $0x30] sm:$0xff]
  %v25 = vld [vmem:[%s0 + $0x38] sm:$0xff]
  %v26 = vld [vmem:[%s1] sm:$0xf]
  %v27 = vld [vmem:[%s1 + $0x4] sm:$0xf]
  %v28 = vld [vmem:[%s1 + $0x8] sm:$0xf]
  %v29 = vld [vmem:[%s1 + $0xc] sm:$0xf]
  %v30 = vld [vmem:[%s1 + $0x10] sm:$0xf]
  %v31 = vld [vmem:[%s1 + $0x14] sm:$0xf]
  %v32 = vld [vmem:[%s1 + $0x18] sm:$0xf]
  %v33 = vld [vmem:[%s1 + $0x1c] sm:$0xf]
  %v34 = vld [vmem:[%s1 + $0x20] sm:$0xf]
  %v35 = vld [vmem:[%s1 + $0x24] sm:$0xf]
  %v36 = vld [vmem:[%s1 + $0x28] sm:$0xf]
  %v37 = vld [vmem:[%s1 + $0x2c] sm:$0xf]
  %v38 = vld [vmem:[%s1 + $0x30] sm:$0xf]
  %v39 = vld [vmem:[%s1 + $0x34] sm:$0xf]
  %v40 = vld [vmem:[%s1 + $0x38] sm:$0xf]
  %v41 = vld [vmem:[%s1 + $0x3c] sm:$0xf]
  %v42 = vld [vmem:[%s1 + $0x40] sm:$0xf]
  %v43 = vld [vmem:[%s1 + $0x44] sm:$0xf]
  %v44 = vld [vmem:[%s1 + $0x48] sm:$0xf]
  %v45 = vld [vmem:[%s1 + $0x4c] sm:$0xf]
  %v46 = vld [vmem:[%s1 + $0x50] sm:$0xf]
  %v47 = vld [vmem:[%s1 + $0x54] sm:$0xf]
  %v48 = vld [vmem:[%s1 + $0x58] sm:$0xf]
  %v49 = vld [vmem:[%s1 + $0x5c] sm:$0xf]
  %v50 = vld [vmem:[%s1 + $0x60] sm:$0xf]
  %v51 = vld [vmem:[%s1 + $0x64] sm:$0xf]
  %v52 = vld [vmem:[%s1 + $0x68] sm:$0xf]
  %v53 = vld [vmem:[%s1 + $0x6c] sm:$0xf]
  %v54 = vld [vmem:[%s1 + $0x70] sm:$0xf]
  %v55 = vld [vmem:[%s1 + $0x74] sm:$0xf]
  %v56 = vld [vmem:[%s1 + $0x78] sm:$0xf]
  %v57 = vld [vmem:[%s1 + $0x7c] sm:$0xf]
  %v58 = vld [vmem:[%s1 + $0x80] sm:$0xf]
  %v59 = vld [vmem:[%s1 + $0x84] sm:$0xf]
  %v60 = vld [vmem:[%s1 + $0x88] sm:$0xf]
  %v61 = vld [vmem:[%s1 + $0x8c] sm:$0xf]
  %v62 = vld [vmem:[%s1 + $0x90] sm:$0xf]
  %v63 = vld [vmem:[%s1 + $0x94] sm:$0xf]
  %v64 = vld [vmem:[%s1 + $0x98] sm:$0xf]
  %v65 = vld [vmem:[%s1 + $0x9c] sm:$0xf]
  %v66 = vld [vmem:[%s1 + $0xa0] sm:$0xf]
  %v67 = vld [vmem:[%s1 + $0xa4] sm:$0xf]
  %v68 = vld [vmem:[%s1 + $0xa8] sm:$0xf]
  %v69 = vld [vmem:[%s1 + $0xac] sm:$0xf]
  %v70 = vld [vmem:[%s1 + $0xb0] sm:$0xf]
  %v71 = vld [vmem:[%s1 + $0xb4] sm:$0xf]
  %v72 = vld [vmem:[%s1 + $0xb8] sm:$0xf]
  %v73 = vld [vmem:[%s1 + $0xbc] sm:$0xf]
  %v74 = vld [vmem:[%s1 + $0xc0] sm:$0xf]
  %v75 = vld [vmem:[%s1 + $0xc4] sm:$0xf]
  %v76 = vld [vmem:[%s1 + $0xc8] sm:$0xf]
  %v77 = vld [vmem:[%s1 + $0xcc] sm:$0xf]
  %v78 = vld [vmem:[%s1 + $0xd0] sm:$0xf]
  %v79 = vld [vmem:[%s1 + $0xd4] sm:$0xf]
  %v88 = vunpack.c.l.b16 %v18
  %v89 = vunpack.c.h.b16 %v18
  %v90 = vunpack.c.l.b16 %v19
  %v91 = vunpack.c.h.b16 %v19
  %v92 = vunpack.c.l.b16 %v20
  %v93 = vunpack.c.h.b16 %v20
  %v94 = vunpack.c.l.b16 %v21
  %v95 = vunpack.c.h.b16 %v21
  %v96 = vunpack.c.l.b16 %v22
  %v97 = vunpack.c.h.b16 %v22
  %v98 = vunpack.c.l.b16 %v23
  %v99 = vunpack.c.h.b16 %v23
  %v100 = vunpack.c.l.b16 %v24
  %v101 = vunpack.c.h.b16 %v24
  %v102 = vunpack.c.l.b16 %v25
  %v103 = vunpack.c.h.b16 %v25
  %v104 = vpack.c.b16 %v92, %v88
  %v105 = vpack.c.b16 %v93, %v89
  %v106 = vpack.c.b16 %v94, %v90
  %v107 = vpack.c.b16 %v95, %v91
  %v108 = vpack.c.b16 %v100, %v96
  %v109 = vpack.c.b16 %v101, %v97
  %v110 = vpack.c.b16 %v102, %v98
  %v111 = vpack.c.b16 %v103, %v99
  %v172 = vunpack.c.l.b16 %v26
  %v173 = vunpack.c.l.b16 %v27
  %v174 = vunpack.c.l.b16 %v28
  %v175 = vunpack.c.l.b16 %v29
  %v176 = vunpack.c.l.b16 %v30
  %v177 = vunpack.c.l.b16 %v31
  %v178 = vunpack.c.l.b16 %v32
  %v179 = vunpack.c.l.b16 %v33
  %v180 = vunpack.c.l.b16 %v34
  %v181 = vunpack.c.l.b16 %v35
  %v182 = vunpack.c.l.b16 %v36
  %v183 = vunpack.c.l.b16 %v37
  %v184 = vunpack.c.l.b16 %v38
  %v185 = vunpack.c.l.b16 %v39
  %v186 = vunpack.c.l.b16 %v40
  %v187 = vunpack.c.l.b16 %v41
  %v188 = vunpack.c.l.b16 %v42
  %v189 = vunpack.c.l.b16 %v43
  %v190 = vunpack.c.l.b16 %v44
  %v191 = vunpack.c.l.b16 %v45
  %v192 = vunpack.c.l.b16 %v46
  %v193 = vunpack.c.l.b16 %v47
  %v194 = vunpack.c.l.b16 %v48
  %v195 = vunpack.c.l.b16 %v49
  %v196 = vunpack.c.l.b16 %v50
  %v197 = vunpack.c.l.b16 %v51
  %v198 = vunpack.c.l.b16 %v52
  %v199 = vunpack.c.l.b16 %v53
  %v200 = vunpack.c.l.b16 %v54
  %v201 = vunpack.c.l.b16 %v55
  %v202 = vunpack.c.l.b16 %v56
  %v203 = vunpack.c.l.b16 %v57
  %v204 = vunpack.c.l.b16 %v58
  %v205 = vunpack.c.l.b16 %v59
  %v206 = vunpack.c.l.b16 %v60
  %v207 = vunpack.c.l.b16 %v61
  %v208 = vunpack.c.l.b16 %v62
  %v209 = vunpack.c.l.b16 %v63
  %v210 = vunpack.c.l.b16 %v64
  %v211 = vunpack.c.l.b16 %v65
  %v212 = vunpack.c.l.b16 %v66
  %v213 = vunpack.c.l.b16 %v67
  %v214 = vunpack.c.l.b16 %v68
  %v215 = vunpack.c.l.b16 %v69
  %v216 = vunpack.c.l.b16 %v70
  %v217 = vunpack.c.l.b16 %v71
  %v218 = vunpack.c.l.b16 %v72
  %v219 = vunpack.c.l.b16 %v73
  %v220 = vunpack.c.l.b16 %v74
  %v221 = vunpack.c.l.b16 %v75
  %v222 = vunpack.c.l.b16 %v76
  %v223 = vunpack.c.l.b16 %v77
  %v224 = vunpack.c.l.b16 %v78
  %v225 = vunpack.c.l.b16 %v79
  %v226 = vpack.c.b16 %v173, %v172
  %v227 = vpack.c.b16 %v175, %v174
  %v228 = vpack.c.b16 %v177, %v176
  %v229 = vpack.c.b16 %v179, %v178
  %v230 = vpack.c.b16 %v181, %v180
  %v231 = vpack.c.b16 %v183, %v182
  %v232 = vpack.c.b16 %v185, %v184
  %v233 = vpack.c.b16 %v187, %v186
  %v234 = vpack.c.b16 %v189, %v188
  %v235 = vpack.c.b16 %v191, %v190
  %v236 = vpack.c.b16 %v193, %v192
  %v237 = vpack.c.b16 %v195, %v194
  %v238 = vpack.c.b16 %v197, %v196
  %v239 = vpack.c.b16 %v199, %v198
  %v240 = vpack.c.b16 %v201, %v200
  %v241 = vpack.c.b16 %v203, %v202
  %v242 = vpack.c.b16 %v205, %v204
  %v243 = vpack.c.b16 %v207, %v206
  %v244 = vpack.c.b16 %v209, %v208
  %v245 = vpack.c.b16 %v211, %v210
  %v246 = vpack.c.b16 %v213, %v212
  %v247 = vpack.c.b16 %v215, %v214
  %v248 = vpack.c.b16 %v217, %v216
  %v249 = vpack.c.b16 %v219, %v218
  %v250 = vpack.c.b16 %v221, %v220
  %v251 = vpack.c.b16 %v223, %v222
  %v252 = vpack.c.b16 %v225, %v224
  %vm280 = vcmask 392192
  %v282 = vsel %vm280, %v107, 0
  %v285 = vsel %vm280, %v111, 0
  %287 = vmatprep.subr.bf16.mxu0 0
  %288 = vmatpush1.bf16.msra.mxu0 %v233
  %289 = vmatprep.subr.bf16.mxu0 0
  %290 = vmatpush1.bf16.msra.mxu0 %v232
  %291 = vmatprep.subr.bf16.mxu0 0
  %292 = vmatpush1.bf16.msra.mxu0 %v231
  %293 = vmatprep.subr.bf16.mxu0 0
  %294 = vmatpush1.bf16.msra.mxu0 %v230
  %295 = vmatprep.subr.bf16.mxu0 0
  %296 = vmatpush1.bf16.msra.mxu0 %v229
  %297 = vmatprep.subr.bf16.mxu0 0
  %298 = vmatpush1.bf16.msra.mxu0 %v228
  %299 = vmatprep.subr.bf16.mxu0 0
  %300 = vmatpush1.bf16.msra.mxu0 %v227
  %301 = vmatprep.subr.bf16.mxu0 0
  %302 = vmatpush1.bf16.msra.mxu0 %v226
  %303 = vmatprep.subr.bf16.mxu0 0
  %304 = vmatpush2.bf16.msra.mxu0 %v241
  %305 = vmatprep.subr.bf16.mxu0 0
  %306 = vmatpush2.bf16.msra.mxu0 %v240
  %307 = vmatprep.subr.bf16.mxu0 0
  %308 = vmatpush2.bf16.msra.mxu0 %v239
  %309 = vmatprep.subr.bf16.mxu0 0
  %310 = vmatpush2.bf16.msra.mxu0 %v238
  %311 = vmatprep.subr.bf16.mxu0 0
  %312 = vmatpush2.bf16.msra.mxu0 %v237
  %313 = vmatprep.subr.bf16.mxu0 0
  %314 = vmatpush2.bf16.msra.mxu0 %v236
  %315 = vmatprep.subr.bf16.mxu0 0
  %316 = vmatpush2.bf16.msra.mxu0 %v235
  %317 = vmatprep.subr.bf16.mxu0 0
  %318 = vmatpush2.bf16.msra.mxu0 %v234
  %319 = vmatprep.mubr.bf16.mxu0 %v105
  %320 = vmatmul.mubr.bf16.gmra.mxu0 %v104
  %v321 = vpop.f32.mrf.mxu0
  %v322 = vadd.f32 0.0, %v321
  %v323 = vpop.f32.mrf.mxu0
  %v324 = vpop.f32.mrf.mxu0
  %v325 = vadd.f32 0.0, %v324
  %v326 = vpop.f32.mrf.mxu0
  %327 = vmatprep.mubr.bf16.mxu0 %v109
  %328 = vmatmul.mubr.bf16.gmra.mxu0 %v108
  %v329 = vpop.f32.mrf.mxu0
  %v330 = vadd.f32 0.0, %v329
  %v331 = vpop.f32.mrf.mxu0
  %v332 = vpop.f32.mrf.mxu0
  %v333 = vadd.f32 0.0, %v332
  %v334 = vpop.f32.mrf.mxu0
  %335 = vdwg.mxu0
  %336 = vmatprep.subr.bf16.mxu0 0
  %337 = vmatpush1.bf16.msra.mxu0 %v249
  %338 = vmatprep.subr.bf16.mxu0 0
  %339 = vmatpush1.bf16.msra.mxu0 %v248
  %340 = vmatprep.subr.bf16.mxu0 0
  %341 = vmatpush1.bf16.msra.mxu0 %v247
  %342 = vmatprep.subr.bf16.mxu0 0
  %343 = vmatpush1.bf16.msra.mxu0 %v246
  %344 = vmatprep.subr.bf16.mxu0 0
  %345 = vmatpush1.bf16.msra.mxu0 %v245
  %346 = vmatprep.subr.bf16.mxu0 0
  %347 = vmatpush1.bf16.msra.mxu0 %v244
  %348 = vmatprep.subr.bf16.mxu0 0
  %349 = vmatpush1.bf16.msra.mxu0 %v243
  %350 = vmatprep.subr.bf16.mxu0 0
  %351 = vmatpush1.bf16.msra.mxu0 %v242
  %352 = vmatprep.subr.bf16.mxu0 0
  %353 = vmatpush2.bf16.msra.mxu0 0
  %354 = vmatprep.subr.bf16.mxu0 0
  %355 = vmatpush2.bf16.msra.mxu0 0
  %356 = vmatprep.subr.bf16.mxu0 0
  %357 = vmatpush2.bf16.msra.mxu0 0
  %358 = vmatprep.subr.bf16.mxu0 0
  %359 = vmatpush2.bf16.msra.mxu0 0
  %360 = vmatprep.subr.bf16.mxu0 0
  %361 = vmatpush2.bf16.msra.mxu0 0
  %362 = vmatprep.subr.bf16.mxu0 0
  %363 = vmatpush2.bf16.msra.mxu0 %v252
  %364 = vmatprep.subr.bf16.mxu0 0
  %365 = vmatpush2.bf16.msra.mxu0 %v251
  %366 = vmatprep.subr.bf16.mxu0 0
  %367 = vmatpush2.bf16.msra.mxu0 %v250
  %368 = vmatprep.mubr.bf16.mxu0 %v282
  %369 = vmatmul.mubr.bf16.gmra.mxu0 %v106
  %v370 = vpop.f32.mrf.mxu0
  %v371 = vadd.f32 %v322, %v370
  %v372 = vpop.f32.mrf.mxu0
  %v373 = vpop.f32.mrf.mxu0
  %v374 = vadd.f32 %v325, %v373
  %v375 = vpop.f32.mrf.mxu0
  %376 = vmatprep.mubr.bf16.mxu0 %v285
  %377 = vmatmul.mubr.bf16.gmra.mxu0 %v110
  %v378 = vpop.f32.mrf.mxu0
  %v379 = vadd.f32 %v330, %v378
  %v380 = vpop.f32.mrf.mxu0
  %v381 = vpop.f32.mrf.mxu0
  %v382 = vadd.f32 %v333, %v381
  %v383 = vpop.f32.mrf.mxu0
  %384 = vdwg.mxu0
  %v385 = vld [vmem:[%s2] sm:$0xff]
  %v386 = vld [vmem:[%s2 + $0x8] sm:$0xff]
  %v387 = vld [vmem:[%s2 + $0x10] sm:$0xff]
  %v388 = vld [vmem:[%s2 + $0x18] sm:$0xff]
  %390 = vset.pattern.permute.xlu0 0
  %391 = vperm.xlu0 %390, %v385
  %v392 = vpop.permute.xlu0 %391
  %395 = vset.pattern.permute.xlu0 0
  %396 = vperm.xlu0 %395, %v386
  %v397 = vpop.permute.xlu0 %396
  %400 = vset.pattern.permute.xlu0 0
  %401 = vperm.xlu0 %400, %v387
  %v402 = vpop.permute.xlu0 %401
  %405 = vset.pattern.permute.xlu0 0
  %406 = vperm.xlu0 %405, %v388
  %v407 = vpop.permute.xlu0 %406
  %v409 = vmul.f32 %v371, %v392
  %v410 = vmul.f32 %v374, %v397
  %v411 = vmul.f32 %v379, %v402
  %v412 = vmul.f32 %v382, %v407
  %v413 = vld [vmem:[%s3] sm:$0xff]
  %v414 = vld [vmem:[%s3 + $0x8] sm:$0xff]
  %v415 = vld [vmem:[%s3 + $0x10] sm:$0xff]
  %v416 = vld [vmem:[%s3 + $0x18] sm:$0xff]
  %418 = vset.pattern.permute.xlu0 0
  %419 = vperm.xlu0 %418, %v413
  %v420 = vpop.permute.xlu0 %419
  %423 = vset.pattern.permute.xlu0 0
  %424 = vperm.xlu0 %423, %v414
  %v425 = vpop.permute.xlu0 %424
  %428 = vset.pattern.permute.xlu0 0
  %429 = vperm.xlu0 %428, %v415
  %v430 = vpop.permute.xlu0 %429
  %433 = vset.pattern.permute.xlu0 0
  %434 = vperm.xlu0 %433, %v416
  %v435 = vpop.permute.xlu0 %434
  %v437 = vadd.f32 %v409, %v420
  %v438 = vadd.f32 %v410, %v425
  %v439 = vadd.f32 %v411, %v430
  %v440 = vadd.f32 %v412, %v435
  %v441 = vmax.f32 %v437, 0.0
  %v442 = vmax.f32 %v438, 0.0
  %v443 = vmax.f32 %v439, 0.0
  %v444 = vmax.f32 %v440, 0.0
  %445 = vst [vmem:[%s4] sm:$0xff] %v441
  %446 = vst [vmem:[%s4 + $0x8] sm:$0xff] %v442
  %447 = vst [vmem:[%s4 + $0x10] sm:$0xff] %v443
  %448 = vst [vmem:[%s4 + $0x18] sm:$0xff] %v444
  // Predicated region
  $region18: #{cost_reg_net.35} parent=0 // pred_check
    _
  $region19: #{cost_reg_net.35} parent=0 // pred_check_branch
    %450 = sbr.rel (0) target = $region21
  $region20: #{cost_reg_net.35} parent=0 // pred_region
    _
  $region21: #{cost_reg_net.35} parent=0 // pred_fallthru
    _
  // Predicated region
  $region22: #{cost_reg_net.35} parent=0 // pred_check
    _
  $region23: #{cost_reg_net.35} parent=0 // pred_check_branch
    %452 = sbr.rel (0) target = $region25
  $region24: #{cost_reg_net.35} parent=0 // pred_region
    _
  $region25: #{cost_reg_net.35} parent=0 // pred_fallthru
    _

// kernel: cost_reg_net.36
$region0: #{cost_reg_net.36}
  #allocation0 [shape = 'u32[]', space=smem, size = 0x4, offset = 0x4, fixed_abs, tag = 'smem constant byte address 0x4 - core index']
  #allocation1 [shape = 'u32[144,128]{1,0:T(1,128)}', space=vmem, size = 0x12000, scoped, tag = 'internal scratch']
  %s0 = inlined_call_operand.vmem [shape: bf16[32,864], index: 0, kind: input, shape index: {}]
  %s1 = inlined_call_operand.vmem [shape: bf16[864,128], index: 1, kind: input, shape index: {}]
  %s2 = inlined_call_operand.vmem [shape: f32[32,1], index: 2, kind: input, shape index: {}]
  %s3 = inlined_call_operand.vmem [shape: f32[32,1], index: 3, kind: input, shape index: {}]
  %s4 = inlined_call_operand.vmem [shape: f32[32,128], index: 4, kind: output, shape index: {}]
  %s5 = sld [smem:[#allocation0]]
  $region26: #{cost_reg_net.36} parent=0
    _
  %s7 = ssub.s32 1, %s5
  %s8 = scalar_select 0, %s7, %s5
  // Predicated region
  $region2: #{cost_reg_net.36} parent=0 // pred_check
    _
  $region3: #{cost_reg_net.36} parent=0 // pred_check_branch
    %10 = sbr.rel (0) target = $region5
  $region4: #{cost_reg_net.36} parent=0 // pred_region
    _
  $region5: #{cost_reg_net.36} parent=0 // pred_fallthru
    _
  // Predicated region
  $region6: #{cost_reg_net.36} parent=0 // pred_check
    _
  $region7: #{cost_reg_net.36} parent=0 // pred_check_branch
    %12 = sbr.rel (0) target = $region9
  $region8: #{cost_reg_net.36} parent=0 // pred_region
    _
  $region9: #{cost_reg_net.36} parent=0 // pred_fallthru
    _
  // Predicated region
  $region10: #{cost_reg_net.36} parent=0 // pred_check
    _
  $region11: #{cost_reg_net.36} parent=0 // pred_check_branch
    %14 = sbr.rel (0) target = $region13
  $region12: #{cost_reg_net.36} parent=0 // pred_region
    _
  $region13: #{cost_reg_net.36} parent=0 // pred_fallthru
    _
  // Predicated region
  $region14: #{cost_reg_net.36} parent=0 // pred_check
    _
  $region15: #{cost_reg_net.36} parent=0 // pred_check_branch
    %16 = sbr.rel (0) target = $region17
  $region16: #{cost_reg_net.36} parent=0 // pred_region
    _
  $region17: #{cost_reg_net.36} parent=0 // pred_fallthru
    _
  %v18 = vld [vmem:[%s0] sm:$0xff]
  %v19 = vld [vmem:[%s0 + $0x8] sm:$0xff]
  %v20 = vld [vmem:[%s0 + $0x10] sm:$0xff]
  %v21 = vld [vmem:[%s0 + $0x18] sm:$0xf]
  %v22 = vld [vmem:[%s0 + $0x1c] sm:$0xff]
  %v23 = vld [vmem:[%s0 + $0x24] sm:$0xff]
  %v24 = vld [vmem:[%s0 + $0x2c] sm:$0xff]
  %v25 = vld [vmem:[%s0 + $0x34] sm:$0xf]
  %v26 = vld [vmem:[%s0 + $0x38] sm:$0xff]
  %v27 = vld [vmem:[%s0 + $0x40] sm:$0xff]
  %v28 = vld [vmem:[%s0 + $0x48] sm:$0xff]
  %v29 = vld [vmem:[%s0 + $0x50] sm:$0xf]
  %v30 = vld [vmem:[%s0 + $0x54] sm:$0xff]
  %v31 = vld [vmem:[%s0 + $0x5c] sm:$0xff]
  %v32 = vld [vmem:[%s0 + $0x64] sm:$0xff]
  %v33 = vld [vmem:[%s0 + $0x6c] sm:$0xf]
  %v34 = vld [vmem:[%s1] sm:$0xf]
  %v35 = vld [vmem:[%s1 + $0x4] sm:$0xf]
  %v36 = vld [vmem:[%s1 + $0x8] sm:$0xf]
  %v37 = vld [vmem:[%s1 + $0xc] sm:$0xf]
  %v38 = vld [vmem:[%s1 + $0x10] sm:$0xf]
  %v39 = vld [vmem:[%s1 + $0x14] sm:$0xf]
  %v40 = vld [vmem:[%s1 + $0x18] sm:$0xf]
  %v41 = vld [vmem:[%s1 + $0x1c] sm:$0xf]
  %v42 = vld [vmem:[%s1 + $0x20] sm:$0xf]
  %v43 = vld [vmem:[%s1 + $0x24] sm:$0xf]
  %v44 = vld [vmem:[%s1 + $0x28] sm:$0xf]
  %v45 = vld [vmem:[%s1 + $0x2c] sm:$0xf]
  %v46 = vld [vmem:[%s1 + $0x30] sm:$0xf]
  %v47 = vld [vmem:[%s1 + $0x34] sm:$0xf]
  %v48 = vld [vmem:[%s1 + $0x38] sm:$0xf]
  %v49 = vld [vmem:[%s1 + $0x3c] sm:$0xf]
  %v50 = vld [vmem:[%s1 + $0x40] sm:$0xf]
  %v51 = vld [vmem:[%s1 + $0x44] sm:$0xf]
  %v52 = vld [vmem:[%s1 + $0x48] sm:$0xf]
  %v53 = vld [vmem:[%s1 + $0x4c] sm:$0xf]
  %v54 = vld [vmem:[%s1 + $0x50] sm:$0xf]
  %v55 = vld [vmem:[%s1 + $0x54] sm:$0xf]
  %v56 = vld [vmem:[%s1 + $0x58] sm:$0xf]
  %v57 = vld [vmem:[%s1 + $0x5c] sm:$0xf]
  %v58 = vld [vmem:[%s1 + $0x60] sm:$0xf]
  %v59 = vld [vmem:[%s1 + $0x64] sm:$0xf]
  %v60 = vld [vmem:[%s1 + $0x68] sm:$0xf]
  %v61 = vld [vmem:[%s1 + $0x6c] sm:$0xf]
  %v62 = vld [vmem:[%s1 + $0x70] sm:$0xf]
  %v63 = vld [vmem:[%s1 + $0x74] sm:$0xf]
  %v64 = vld [vmem:[%s1 + $0x78] sm:$0xf]
  %v65 = vld [vmem:[%s1 + $0x7c] sm:$0xf]
  %v66 = vld [vmem:[%s1 + $0x80] sm:$0xf]
  %v67 = vld [vmem:[%s1 + $0x84] sm:$0xf]
  %v68 = vld [vmem:[%s1 + $0x88] sm:$0xf]
  %v69 = vld [vmem:[%s1 + $0x8c] sm:$0xf]
  %v70 = vld [vmem:[%s1 + $0x90] sm:$0xf]
  %v71 = vld [vmem:[%s1 + $0x94] sm:$0xf]
  %v72 = vld [vmem:[%s1 + $0x98] sm:$0xf]
  %v73 = vld [vmem:[%s1 + $0x9c] sm:$0xf]
  %v74 = vld [vmem:[%s1 + $0xa0] sm:$0xf]
  %v75 = vld [vmem:[%s1 + $0xa4] sm:$0xf]
  %v76 = vld [vmem:[%s1 + $0xa8] sm:$0xf]
  %v77 = vld [vmem:[%s1 + $0xac] sm:$0xf]
  %v78 = vld [vmem:[%s1 + $0xb0] sm:$0xf]
  %v79 = vld [vmem:[%s1 + $0xb4] sm:$0xf]
  %v80 = vld [vmem:[%s1 + $0xb8] sm:$0xf]
  %v81 = vld [vmem:[%s1 + $0xbc] sm:$0xf]
  %v82 = vld [vmem:[%s1 + $0xc0] sm:$0xf]
  %v83 = vld [vmem:[%s1 + $0xc4] sm:$0xf]
  %v84 = vld [vmem:[%s1 + $0xc8] sm:$0xf]
  %v85 = vld [vmem:[%s1 + $0xcc] sm:$0xf]
  %v86 = vld [vmem:[%s1 + $0xd0] sm:$0xf]
  %v87 = vld [vmem:[%s1 + $0xd4] sm:$0xf]
  %v88 = vld [vmem:[%s1 + $0xd8] sm:$0xf]
  %v89 = vld [vmem:[%s1 + $0xdc] sm:$0xf]
  %v90 = vld [vmem:[%s1 + $0xe0] sm:$0xf]
  %v91 = vld [vmem:[%s1 + $0xe4] sm:$0xf]
  %v92 = vld [vmem:[%s1 + $0xe8] sm:$0xf]
  %v93 = vld [vmem:[%s1 + $0xec] sm:$0xf]
  %v94 = vld [vmem:[%s1 + $0xf0] sm:$0xf]
  %v95 = vld [vmem:[%s1 + $0xf4] sm:$0xf]
  %v96 = vld [vmem:[%s1 + $0xf8] sm:$0xf]
  %v97 = vld [vmem:[%s1 + $0xfc] sm:$0xf]
  %v98 = vld [vmem:[%s1 + $0x100] sm:$0xf]
  %v99 = vld [vmem:[%s1 + $0x104] sm:$0xf]
  %v100 = vld [vmem:[%s1 + $0x108] sm:$0xf]
  %v101 = vld [vmem:[%s1 + $0x10c] sm:$0xf]
  %v102 = vld [vmem:[%s1 + $0x110] sm:$0xf]
  %v103 = vld [vmem:[%s1 + $0x114] sm:$0xf]
  %v104 = vld [vmem:[%s1 + $0x118] sm:$0xf]
  %v105 = vld [vmem:[%s1 + $0x11c] sm:$0xf]
  %v106 = vld [vmem:[%s1 + $0x120] sm:$0xf]
  %v107 = vld [vmem:[%s1 + $0x124] sm:$0xf]
  %v108 = vld [vmem:[%s1 + $0x128] sm:$0xf]
  %v109 = vld [vmem:[%s1 + $0x12c] sm:$0xf]
  %v110 = vld [vmem:[%s1 + $0x130] sm:$0xf]
  %v111 = vld [vmem:[%s1 + $0x134] sm:$0xf]
  %v112 = vld [vmem:[%s1 + $0x138] sm:$0xf]
  %v113 = vld [vmem:[%s1 + $0x13c] sm:$0xf]
  %v114 = vld [vmem:[%s1 + $0x140] sm:$0xf]
  %v115 = vld [vmem:[%s1 + $0x144] sm:$0xf]
  %v116 = vld [vmem:[%s1 + $0x148] sm:$0xf]
  %v117 = vld [vmem:[%s1 + $0x14c] sm:$0xf]
  %v118 = vld [vmem:[%s1 + $0x150] sm:$0xf]
  %v119 = vld [vmem:[%s1 + $0x154] sm:$0xf]
  %v120 = vld [vmem:[%s1 + $0x158] sm:$0xf]
  %v121 = vld [vmem:[%s1 + $0x15c] sm:$0xf]
  %v122 = vld [vmem:[%s1 + $0x160] sm:$0xf]
  %v123 = vld [vmem:[%s1 + $0x164] sm:$0xf]
  %v124 = vld [vmem:[%s1 + $0x168] sm:$0xf]
  %v125 = vld [vmem:[%s1 + $0x16c] sm:$0xf]
  %v126 = vld [vmem:[%s1 + $0x170] sm:$0xf]
  %v127 = vld [vmem:[%s1 + $0x174] sm:$0xf]
  %v128 = vld [vmem:[%s1 + $0x178] sm:$0xf]
  %v129 = vld [vmem:[%s1 + $0x17c] sm:$0xf]
  %v130 = vld [vmem:[%s1 + $0x180] sm:$0xf]
  %v131 = vld [vmem:[%s1 + $0x184] sm:$0xf]
  %v132 = vld [vmem:[%s1 + $0x188] sm:$0xf]
  %v133 = vld [vmem:[%s1 + $0x18c] sm:$0xf]
  %v134 = vld [vmem:[%s1 + $0x190] sm:$0xf]
  %v135 = vld [vmem:[%s1 + $0x194] sm:$0xf]
  %v136 = vld [vmem:[%s1 + $0x198] sm:$0xf]
  %v137 = vld [vmem:[%s1 + $0x19c] sm:$0xf]
  %v138 = vld [vmem:[%s1 + $0x1a0] sm:$0xf]
  %v139 = vld [vmem:[%s1 + $0x1a4] sm:$0xf]
  %v140 = vld [vmem:[%s1 + $0x1a8] sm:$0xf]
  %v141 = vld [vmem:[%s1 + $0x1ac] sm:$0xf]
  %v158 = vunpack.c.l.b16 %v18
  %v159 = vunpack.c.h.b16 %v18
  %v160 = vunpack.c.l.b16 %v19
  %v161 = vunpack.c.h.b16 %v19
  %v162 = vunpack.c.l.b16 %v20
  %v163 = vunpack.c.h.b16 %v20
  %v164 = vunpack.c.l.b16 %v21
  %v165 = vunpack.c.l.b16 %v22
  %v166 = vunpack.c.h.b16 %v22
  %v167 = vunpack.c.l.b16 %v23
  %v168 = vunpack.c.h.b16 %v23
  %v169 = vunpack.c.l.b16 %v24
  %v170 = vunpack.c.h.b16 %v24
  %v171 = vunpack.c.l.b16 %v25
  %v172 = vunpack.c.l.b16 %v26
  %v173 = vunpack.c.h.b16 %v26
  %v174 = vunpack.c.l.b16 %v27
  %v175 = vunpack.c.h.b16 %v27
  %v176 = vunpack.c.l.b16 %v28
  %v177 = vunpack.c.h.b16 %v28
  %v178 = vunpack.c.l.b16 %v29
  %v179 = vunpack.c.l.b16 %v30
  %v180 = vunpack.c.h.b16 %v30
  %v181 = vunpack.c.l.b16 %v31
  %v182 = vunpack.c.h.b16 %v31
  %v183 = vunpack.c.l.b16 %v32
  %v184 = vunpack.c.h.b16 %v32
  %v185 = vunpack.c.l.b16 %v33
  %v186 = vpack.c.b16 %v165, %v158
  %v187 = vpack.c.b16 %v166, %v159
  %v188 = vpack.c.b16 %v167, %v160
  %v189 = vpack.c.b16 %v168, %v161
  %v190 = vpack.c.b16 %v169, %v162
  %v191 = vpack.c.b16 %v170, %v163
  %v192 = vpack.c.b16 %v171, %v164
  %v193 = vpack.c.b16 %v179, %v172
  %v194 = vpack.c.b16 %v180, %v173
  %v195 = vpack.c.b16 %v181, %v174
  %v196 = vpack.c.b16 %v182, %v175
  %v197 = vpack.c.b16 %v183, %v176
  %v198 = vpack.c.b16 %v184, %v177
  %v199 = vpack.c.b16 %v185, %v178
  %v320 = vunpack.c.l.b16 %v34
  %v321 = vunpack.c.l.b16 %v35
  %v322 = vunpack.c.l.b16 %v36
  %v323 = vunpack.c.l.b16 %v37
  %v324 = vunpack.c.l.b16 %v38
  %v325 = vunpack.c.l.b16 %v39
  %v326 = vunpack.c.l.b16 %v40
  %v327 = vunpack.c.l.b16 %v41
  %v328 = vunpack.c.l.b16 %v42
  %v329 = vunpack.c.l.b16 %v43
  %v330 = vunpack.c.l.b16 %v44
  %v331 = vunpack.c.l.b16 %v45
  %v332 = vunpack.c.l.b16 %v46
  %v333 = vunpack.c.l.b16 %v47
  %v334 = vunpack.c.l.b16 %v48
  %v335 = vunpack.c.l.b16 %v49
  %v336 = vunpack.c.l.b16 %v50
  %v337 = vunpack.c.l.b16 %v51
  %v338 = vunpack.c.l.b16 %v52
  %v339 = vunpack.c.l.b16 %v53
  %v340 = vunpack.c.l.b16 %v54
  %v341 = vunpack.c.l.b16 %v55
  %v342 = vunpack.c.l.b16 %v56
  %v343 = vunpack.c.l.b16 %v57
  %v344 = vunpack.c.l.b16 %v58
  %v345 = vunpack.c.l.b16 %v59
  %v346 = vunpack.c.l.b16 %v60
  %v347 = vunpack.c.l.b16 %v61
  %v348 = vunpack.c.l.b16 %v62
  %v349 = vunpack.c.l.b16 %v63
  %v350 = vunpack.c.l.b16 %v64
  %v351 = vunpack.c.l.b16 %v65
  %v352 = vunpack.c.l.b16 %v66
  %v353 = vunpack.c.l.b16 %v67
  %v354 = vunpack.c.l.b16 %v68
  %v355 = vunpack.c.l.b16 %v69
  %v356 = vunpack.c.l.b16 %v70
  %v357 = vunpack.c.l.b16 %v71
  %v358 = vunpack.c.l.b16 %v72
  %v359 = vunpack.c.l.b16 %v73
  %v360 = vunpack.c.l.b16 %v74
  %v361 = vunpack.c.l.b16 %v75
  %v362 = vunpack.c.l.b16 %v76
  %v363 = vunpack.c.l.b16 %v77
  %v364 = vunpack.c.l.b16 %v78
  %v365 = vunpack.c.l.b16 %v79
  %v366 = vunpack.c.l.b16 %v80
  %v367 = vunpack.c.l.b16 %v81
  %v368 = vunpack.c.l.b16 %v82
  %v369 = vunpack.c.l.b16 %v83
  %v370 = vunpack.c.l.b16 %v84
  %v371 = vunpack.c.l.b16 %v85
  %v372 = vunpack.c.l.b16 %v86
  %v373 = vunpack.c.l.b16 %v87
  %v374 = vunpack.c.l.b16 %v88
  %v375 = vunpack.c.l.b16 %v89
  %v376 = vunpack.c.l.b16 %v90
  %v377 = vunpack.c.l.b16 %v91
  %v378 = vunpack.c.l.b16 %v92
  %v379 = vunpack.c.l.b16 %v93
  %v380 = vunpack.c.l.b16 %v94
  %v381 = vunpack.c.l.b16 %v95
  %v382 = vunpack.c.l.b16 %v96
  %v383 = vunpack.c.l.b16 %v97
  %v384 = vunpack.c.l.b16 %v98
  %v385 = vunpack.c.l.b16 %v99
  %v386 = vunpack.c.l.b16 %v100
  %v387 = vunpack.c.l.b16 %v101
  %v388 = vunpack.c.l.b16 %v102
  %v389 = vunpack.c.l.b16 %v103
  %v390 = vunpack.c.l.b16 %v104
  %v391 = vunpack.c.l.b16 %v105
  %v392 = vunpack.c.l.b16 %v106
  %v393 = vunpack.c.l.b16 %v107
  %v394 = vunpack.c.l.b16 %v108
  %v395 = vunpack.c.l.b16 %v109
  %v396 = vunpack.c.l.b16 %v110
  %v397 = vunpack.c.l.b16 %v111
  %v398 = vunpack.c.l.b16 %v112
  %v399 = vunpack.c.l.b16 %v113
  %v400 = vunpack.c.l.b16 %v114
  %v401 = vunpack.c.l.b16 %v115
  %v402 = vunpack.c.l.b16 %v116
  %v403 = vunpack.c.l.b16 %v117
  %v404 = vunpack.c.l.b16 %v118
  %v405 = vunpack.c.l.b16 %v119
  %v406 = vunpack.c.l.b16 %v120
  %v407 = vunpack.c.l.b16 %v121
  %v408 = vunpack.c.l.b16 %v122
  %v409 = vunpack.c.l.b16 %v123
  %v410 = vunpack.c.l.b16 %v124
  %v411 = vunpack.c.l.b16 %v125
  %v412 = vunpack.c.l.b16 %v126
  %v413 = vunpack.c.l.b16 %v127
  %v414 = vunpack.c.l.b16 %v128
  %v415 = vunpack.c.l.b16 %v129
  %v416 = vunpack.c.l.b16 %v130
  %v417 = vunpack.c.l.b16 %v131
  %v418 = vunpack.c.l.b16 %v132
  %v419 = vunpack.c.l.b16 %v133
  %v420 = vunpack.c.l.b16 %v134
  %v421 = vunpack.c.l.b16 %v135
  %v422 = vunpack.c.l.b16 %v136
  %v423 = vunpack.c.l.b16 %v137
  %v424 = vunpack.c.l.b16 %v138
  %v425 = vunpack.c.l.b16 %v139
  %v426 = vunpack.c.l.b16 %v140
  %v427 = vunpack.c.l.b16 %v141
  %v428 = vpack.c.b16 %v321, %v320
  %v429 = vpack.c.b16 %v323, %v322
  %v430 = vpack.c.b16 %v325, %v324
  %v431 = vpack.c.b16 %v327, %v326
  %v432 = vpack.c.b16 %v329, %v328
  %v433 = vpack.c.b16 %v331, %v330
  %v434 = vpack.c.b16 %v333, %v332
  %v435 = vpack.c.b16 %v335, %v334
  %v436 = vpack.c.b16 %v337, %v336
  %v437 = vpack.c.b16 %v339, %v338
  %v438 = vpack.c.b16 %v341, %v340
  %v439 = vpack.c.b16 %v343, %v342
  %v440 = vpack.c.b16 %v345, %v344
  %v441 = vpack.c.b16 %v347, %v346
  %v442 = vpack.c.b16 %v349, %v348
  %v443 = vpack.c.b16 %v351, %v350
  %v444 = vpack.c.b16 %v353, %v352
  %v445 = vpack.c.b16 %v355, %v354
  %v446 = vpack.c.b16 %v357, %v356
  %v447 = vpack.c.b16 %v359, %v358
  %v448 = vpack.c.b16 %v361, %v360
  %v449 = vpack.c.b16 %v363, %v362
  %v450 = vpack.c.b16 %v365, %v364
  %v451 = vpack.c.b16 %v367, %v366
  %v452 = vpack.c.b16 %v369, %v368
  %v453 = vpack.c.b16 %v371, %v370
  %v454 = vpack.c.b16 %v373, %v372
  %v455 = vpack.c.b16 %v375, %v374
  %v456 = vpack.c.b16 %v377, %v376
  %v457 = vpack.c.b16 %v379, %v378
  %v458 = vpack.c.b16 %v381, %v380
  %v459 = vpack.c.b16 %v383, %v382
  %v460 = vpack.c.b16 %v385, %v384
  %v461 = vpack.c.b16 %v387, %v386
  %v462 = vpack.c.b16 %v389, %v388
  %v463 = vpack.c.b16 %v391, %v390
  %v464 = vpack.c.b16 %v393, %v392
  %v465 = vpack.c.b16 %v395, %v394
  %v466 = vpack.c.b16 %v397, %v396
  %v467 = vpack.c.b16 %v399, %v398
  %v468 = vpack.c.b16 %v401, %v400
  %v469 = vpack.c.b16 %v403, %v402
  %v470 = vpack.c.b16 %v405, %v404
  %v471 = vpack.c.b16 %v407, %v406
  %v472 = vpack.c.b16 %v409, %v408
  %v473 = vpack.c.b16 %v411, %v410
  %v474 = vpack.c.b16 %v413, %v412
  %v475 = vpack.c.b16 %v415, %v414
  %v476 = vpack.c.b16 %v417, %v416
  %v477 = vpack.c.b16 %v419, %v418
  %v478 = vpack.c.b16 %v421, %v420
  %v479 = vpack.c.b16 %v423, %v422
  %v480 = vpack.c.b16 %v425, %v424
  %v481 = vpack.c.b16 %v427, %v426
  %vm536 = vcmask 785408
  %v538 = vsel %vm536, %v192, 0
  %v541 = vsel %vm536, %v199, 0
  %543 = vmatprep.subr.bf16.mxu0 0
  %544 = vmatpush1.bf16.msra.mxu0 %v435
  %545 = vmatprep.subr.bf16.mxu0 0
  %546 = vmatpush1.bf16.msra.mxu0 %v434
  %547 = vmatprep.subr.bf16.mxu0 0
  %548 = vmatpush1.bf16.msra.mxu0 %v433
  %549 = vmatprep.subr.bf16.mxu0 0
  %550 = vmatpush1.bf16.msra.mxu0 %v432
  %551 = vmatprep.subr.bf16.mxu0 0
  %552 = vmatpush1.bf16.msra.mxu0 %v431
  %553 = vmatprep.subr.bf16.mxu0 0
  %554 = vmatpush1.bf16.msra.mxu0 %v430
  %555 = vmatprep.subr.bf16.mxu0 0
  %556 = vmatpush1.bf16.msra.mxu0 %v429
  %557 = vmatprep.subr.bf16.mxu0 0
  %558 = vmatpush1.bf16.msra.mxu0 %v428
  %559 = vmatprep.subr.bf16.mxu0 0
  %560 = vmatpush2.bf16.msra.mxu0 %v443
  %561 = vmatprep.subr.bf16.mxu0 0
  %562 = vmatpush2.bf16.msra.mxu0 %v442
  %563 = vmatprep.subr.bf16.mxu0 0
  %564 = vmatpush2.bf16.msra.mxu0 %v441
  %565 = vmatprep.subr.bf16.mxu0 0
  %566 = vmatpush2.bf16.msra.mxu0 %v440
  %567 = vmatprep.subr.bf16.mxu0 0
  %568 = vmatpush2.bf16.msra.mxu0 %v439
  %569 = vmatprep.subr.bf16.mxu0 0
  %570 = vmatpush2.bf16.msra.mxu0 %v438
  %571 = vmatprep.subr.bf16.mxu0 0
  %572 = vmatpush2.bf16.msra.mxu0 %v437
  %573 = vmatprep.subr.bf16.mxu0 0
  %574 = vmatpush2.bf16.msra.mxu0 %v436
  %575 = vmatprep.mubr.bf16.mxu0 %v187
  %576 = vmatmul.mubr.bf16.gmra.mxu0 %v186
  %v577 = vpop.f32.mrf.mxu0
  %v578 = vadd.f32 0.0, %v577
  %v579 = vpop.f32.mrf.mxu0
  %v580 = vpop.f32.mrf.mxu0
  %v581 = vadd.f32 0.0, %v580
  %v582 = vpop.f32.mrf.mxu0
  %583 = vmatprep.mubr.bf16.mxu0 %v194
  %584 = vmatmul.mubr.bf16.gmra.mxu0 %v193
  %v585 = vpop.f32.mrf.mxu0
  %v586 = vadd.f32 0.0, %v585
  %v587 = vpop.f32.mrf.mxu0
  %v588 = vpop.f32.mrf.mxu0
  %v589 = vadd.f32 0.0, %v588
  %v590 = vpop.f32.mrf.mxu0
  %591 = vdwg.mxu0
  %592 = vmatprep.subr.bf16.mxu0 0
  %593 = vmatpush1.bf16.msra.mxu0 %v451
  %594 = vmatprep.subr.bf16.mxu0 0
  %595 = vmatpush1.bf16.msra.mxu0 %v450
  %596 = vmatprep.subr.bf16.mxu0 0
  %597 = vmatpush1.bf16.msra.mxu0 %v449
  %598 = vmatprep.subr.bf16.mxu0 0
  %599 = vmatpush1.bf16.msra.mxu0 %v448
  %600 = vmatprep.subr.bf16.mxu0 0
  %601 = vmatpush1.bf16.msra.mxu0 %v447
  %602 = vmatprep.subr.bf16.mxu0 0
  %603 = vmatpush1.bf16.msra.mxu0 %v446
  %604 = vmatprep.subr.bf16.mxu0 0
  %605 = vmatpush1.bf16.msra.mxu0 %v445
  %606 = vmatprep.subr.bf16.mxu0 0
  %607 = vmatpush1.bf16.msra.mxu0 %v444
  %608 = vmatprep.subr.bf16.mxu0 0
  %609 = vmatpush2.bf16.msra.mxu0 %v459
  %610 = vmatprep.subr.bf16.mxu0 0
  %611 = vmatpush2.bf16.msra.mxu0 %v458
  %612 = vmatprep.subr.bf16.mxu0 0
  %613 = vmatpush2.bf16.msra.mxu0 %v457
  %614 = vmatprep.subr.bf16.mxu0 0
  %615 = vmatpush2.bf16.msra.mxu0 %v456
  %616 = vmatprep.subr.bf16.mxu0 0
  %617 = vmatpush2.bf16.msra.mxu0 %v455
  %618 = vmatprep.subr.bf16.mxu0 0
  %619 = vmatpush2.bf16.msra.mxu0 %v454
  %620 = vmatprep.subr.bf16.mxu0 0
  %621 = vmatpush2.bf16.msra.mxu0 %v453
  %622 = vmatprep.subr.bf16.mxu0 0
  %623 = vmatpush2.bf16.msra.mxu0 %v452
  %624 = vmatprep.mubr.bf16.mxu0 %v189
  %625 = vmatmul.mubr.bf16.gmra.mxu0 %v188
  %v626 = vpop.f32.mrf.mxu0
  %v627 = vadd.f32 %v578, %v626
  %v628 = vpop.f32.mrf.mxu0
  %v629 = vpop.f32.mrf.mxu0
  %v630 = vadd.f32 %v581, %v629
  %v631 = vpop.f32.mrf.mxu0
  %632 = vmatprep.mubr.bf16.mxu0 %v196
  %633 = vmatmul.mubr.bf16.gmra.mxu0 %v195
  %v634 = vpop.f32.mrf.mxu0
  %v635 = vadd.f32 %v586, %v634
  %v636 = vpop.f32.mrf.mxu0
  %v637 = vpop.f32.mrf.mxu0
  %v638 = vadd.f32 %v589, %v637
  %v639 = vpop.f32.mrf.mxu0
  %640 = vdwg.mxu0
  %641 = vmatprep.subr.bf16.mxu0 0
  %642 = vmatpush1.bf16.msra.mxu0 %v467
  %643 = vmatprep.subr.bf16.mxu0 0
  %644 = vmatpush1.bf16.msra.mxu0 %v466
  %645 = vmatprep.subr.bf16.mxu0 0
  %646 = vmatpush1.bf16.msra.mxu0 %v465
  %647 = vmatprep.subr.bf16.mxu0 0
  %648 = vmatpush1.bf16.msra.mxu0 %v464
  %649 = vmatprep.subr.bf16.mxu0 0
  %650 = vmatpush1.bf16.msra.mxu0 %v463
  %651 = vmatprep.subr.bf16.mxu0 0
  %652 = vmatpush1.bf16.msra.mxu0 %v462
  %653 = vmatprep.subr.bf16.mxu0 0
  %654 = vmatpush1.bf16.msra.mxu0 %v461
  %655 = vmatprep.subr.bf16.mxu0 0
  %656 = vmatpush1.bf16.msra.mxu0 %v460
  %657 = vmatprep.subr.bf16.mxu0 0
  %658 = vmatpush2.bf16.msra.mxu0 %v475
  %659 = vmatprep.subr.bf16.mxu0 0
  %660 = vmatpush2.bf16.msra.mxu0 %v474
  %661 = vmatprep.subr.bf16.mxu0 0
  %662 = vmatpush2.bf16.msra.mxu0 %v473
  %663 = vmatprep.subr.bf16.mxu0 0
  %664 = vmatpush2.bf16.msra.mxu0 %v472
  %665 = vmatprep.subr.bf16.mxu0 0
  %666 = vmatpush2.bf16.msra.mxu0 %v471
  %667 = vmatprep.subr.bf16.mxu0 0
  %668 = vmatpush2.bf16.msra.mxu0 %v470
  %669 = vmatprep.subr.bf16.mxu0 0
  %670 = vmatpush2.bf16.msra.mxu0 %v469
  %671 = vmatprep.subr.bf16.mxu0 0
  %672 = vmatpush2.bf16.msra.mxu0 %v468
  %673 = vmatprep.mubr.bf16.mxu0 %v191
  %674 = vmatmul.mubr.bf16.gmra.mxu0 %v190
  %v675 = vpop.f32.mrf.mxu0
  %v676 = vadd.f32 %v627, %v675
  %v677 = vpop.f32.mrf.mxu0
  %v678 = vpop.f32.mrf.mxu0
  %v679 = vadd.f32 %v630, %v678
  %v680 = vpop.f32.mrf.mxu0
  %681 = vmatprep.mubr.bf16.mxu0 %v198
  %682 = vmatmul.mubr.bf16.gmra.mxu0 %v197
  %v683 = vpop.f32.mrf.mxu0
  %v684 = vadd.f32 %v635, %v683
  %v685 = vpop.f32.mrf.mxu0
  %v686 = vpop.f32.mrf.mxu0
  %v687 = vadd.f32 %v638, %v686
  %v688 = vpop.f32.mrf.mxu0
  %689 = vdwg.mxu0
  %690 = vmatprep.subr.bf16.mxu0 0
  %691 = vmatpush1.bf16.msra.mxu0 0
  %692 = vmatprep.subr.bf16.mxu0 0
  %693 = vmatpush1.bf16.msra.mxu0 0
  %694 = vmatprep.subr.bf16.mxu0 0
  %695 = vmatpush1.bf16.msra.mxu0 %v481
  %696 = vmatprep.subr.bf16.mxu0 0
  %697 = vmatpush1.bf16.msra.mxu0 %v480
  %698 = vmatprep.subr.bf16.mxu0 0
  %699 = vmatpush1.bf16.msra.mxu0 %v479
  %700 = vmatprep.subr.bf16.mxu0 0
  %701 = vmatpush1.bf16.msra.mxu0 %v478
  %702 = vmatprep.subr.bf16.mxu0 0
  %703 = vmatpush1.bf16.msra.mxu0 %v477
  %704 = vmatprep.subr.bf16.mxu0 0
  %705 = vmatpush1.bf16.msra.mxu0 %v476
  %706 = vmatprep.subr.bf16.mxu0 0
  %707 = vmatpush2.bf16.msra.mxu0 0
  %708 = vmatprep.subr.bf16.mxu0 0
  %709 = vmatpush2.bf16.msra.mxu0 0
  %710 = vmatprep.subr.bf16.mxu0 0
  %711 = vmatpush2.bf16.msra.mxu0 0
  %712 = vmatprep.subr.bf16.mxu0 0
  %713 = vmatpush2.bf16.msra.mxu0 0
  %714 = vmatprep.subr.bf16.mxu0 0
  %715 = vmatpush2.bf16.msra.mxu0 0
  %716 = vmatprep.subr.bf16.mxu0 0
  %717 = vmatpush2.bf16.msra.mxu0 0
  %718 = vmatprep.subr.bf16.mxu0 0
  %719 = vmatpush2.bf16.msra.mxu0 0
  %720 = vmatprep.subr.bf16.mxu0 0
  %721 = vmatpush2.bf16.msra.mxu0 0
  %722 = vmatprep.mubr.bf16.mxu0 0
  %723 = vmatmul.mubr.bf16.gmra.mxu0 %v538
  %v724 = vpop.f32.mrf.mxu0
  %v725 = vadd.f32 %v676, %v724
  %v726 = vpop.f32.mrf.mxu0
  %v727 = vpop.f32.mrf.mxu0
  %v728 = vadd.f32 %v679, %v727
  %v729 = vpop.f32.mrf.mxu0
  %730 = vmatprep.mubr.bf16.mxu0 0
  %731 = vmatmul.mubr.bf16.gmra.mxu0 %v541
  %v732 = vpop.f32.mrf.mxu0
  %v733 = vadd.f32 %v684, %v732
  %v734 = vpop.f32.mrf.mxu0
  %v735 = vpop.f32.mrf.mxu0
  %v736 = vadd.f32 %v687, %v735
  %v737 = vpop.f32.mrf.mxu0
  %738 = vdwg.mxu0
  %v739 = vld [vmem:[%s2] sm:$0xff]
  %v740 = vld [vmem:[%s2 + $0x8] sm:$0xff]
  %v741 = vld [vmem:[%s2 + $0x10] sm:$0xff]
  %v742 = vld [vmem:[%s2 + $0x18] sm:$0xff]
  %744 = vset.pattern.permute.xlu0 0
  %745 = vperm.xlu0 %744, %v739
  %v746 = vpop.permute.xlu0 %745
  %749 = vset.pattern.permute.xlu0 0
  %750 = vperm.xlu0 %749, %v740
  %v751 = vpop.permute.xlu0 %750
  %754 = vset.pattern.permute.xlu0 0
  %755 = vperm.xlu0 %754, %v741
  %v756 = vpop.permute.xlu0 %755
  %759 = vset.pattern.permute.xlu0 0
  %760 = vperm.xlu0 %759, %v742
  %v761 = vpop.permute.xlu0 %760
  %v763 = vmul.f32 %v725, %v746
  %v764 = vmul.f32 %v728, %v751
  %v765 = vmul.f32 %v733, %v756
  %v766 = vmul.f32 %v736, %v761
  %v767 = vld [vmem:[%s3] sm:$0xff]
  %v768 = vld [vmem:[%s3 + $0x8] sm:$0xff]
  %v769 = vld [vmem:[%s3 + $0x10] sm:$0xff]
  %v770 = vld [vmem:[%s3 + $0x18] sm:$0xff]
  %772 = vset.pattern.permute.xlu0 0
  %773 = vperm.xlu0 %772, %v767
  %v774 = vpop.permute.xlu0 %773
  %777 = vset.pattern.permute.xlu0 0
  %778 = vperm.xlu0 %777, %v768
  %v779 = vpop.permute.xlu0 %778
  %782 = vset.pattern.permute.xlu0 0
  %783 = vperm.xlu0 %782, %v769
  %v784 = vpop.permute.xlu0 %783
  %787 = vset.pattern.permute.xlu0 0
  %788 = vperm.xlu0 %787, %v770
  %v789 = vpop.permute.xlu0 %788
  %v791 = vadd.f32 %v763, %v774
  %v792 = vadd.f32 %v764, %v779
  %v793 = vadd.f32 %v765, %v784
  %v794 = vadd.f32 %v766, %v789
  %v795 = vmax.f32 %v791, 0.0
  %v796 = vmax.f32 %v792, 0.0
  %v797 = vmax.f32 %v793, 0.0
  %v798 = vmax.f32 %v794, 0.0
  %799 = vst [vmem:[%s4] sm:$0xff] %v795
  %800 = vst [vmem:[%s4 + $0x8] sm:$0xff] %v796
  %801 = vst [vmem:[%s4 + $0x10] sm:$0xff] %v797
  %802 = vst [vmem:[%s4 + $0x18] sm:$0xff] %v798
  // Predicated region
  $region18: #{cost_reg_net.36} parent=0 // pred_check
    _
  $region19: #{cost_reg_net.36} parent=0 // pred_check_branch
    %804 = sbr.rel (0) target = $region21
  $region20: #{cost_reg_net.36} parent=0 // pred_region
    _
  $region21: #{cost_reg_net.36} parent=0 // pred_fallthru
    _
  // Predicated region
  $region22: #{cost_reg_net.36} parent=0 // pred_check
    _
  $region23: #{cost_reg_net.36} parent=0 // pred_check_branch
    %806 = sbr.rel (0) target = $region25
  $region24: #{cost_reg_net.36} parent=0 // pred_region
    _
  $region25: #{cost_reg_net.36} parent=0 // pred_fallthru
    _

// kernel: cost_reg_net.37
$region0: #{cost_reg_net.37}
  #allocation0 [shape = 'u32[]', space=smem, size = 0x4, offset = 0x4, fixed_abs, tag = 'smem constant byte address 0x4 - core index']
  #allocation1 [shape = 'u32[144,128]{1,0:T(1,128)}', space=vmem, size = 0x12000, scoped, tag = 'internal scratch']
  %s0 = inlined_call_operand.vmem [shape: bf16[64,864], index: 0, kind: input, shape index: {}]
  %s1 = inlined_call_operand.vmem [shape: bf16[864,128], index: 1, kind: input, shape index: {}]
  %s2 = inlined_call_operand.vmem [shape: f32[64,1], index: 2, kind: input, shape index: {}]
  %s3 = inlined_call_operand.vmem [shape: f32[64,1], index: 3, kind: input, shape index: {}]
  %s4 = inlined_call_operand.vmem [shape: f32[64,128], index: 4, kind: output, shape index: {}]
  %s5 = sld [smem:[#allocation0]]
  $region26: #{cost_reg_net.37} parent=0
    _
  %s7 = ssub.s32 1, %s5
  %s8 = scalar_select 0, %s7, %s5
  // Predicated region
  $region2: #{cost_reg_net.37} parent=0 // pred_check
    _
  $region3: #{cost_reg_net.37} parent=0 // pred_check_branch
    %10 = sbr.rel (0) target = $region5
  $region4: #{cost_reg_net.37} parent=0 // pred_region
    _
  $region5: #{cost_reg_net.37} parent=0 // pred_fallthru
    _
  // Predicated region
  $region6: #{cost_reg_net.37} parent=0 // pred_check
    _
  $region7: #{cost_reg_net.37} parent=0 // pred_check_branch
    %12 = sbr.rel (0) target = $region9
  $region8: #{cost_reg_net.37} parent=0 // pred_region
    _
  $region9: #{cost_reg_net.37} parent=0 // pred_fallthru
    _
  // Predicated region
  $region10: #{cost_reg_net.37} parent=0 // pred_check
    _
  $region11: #{cost_reg_net.37} parent=0 // pred_check_branch
    %14 = sbr.rel (0) target = $region13
  $region12: #{cost_reg_net.37} parent=0 // pred_region
    _
  $region13: #{cost_reg_net.37} parent=0 // pred_fallthru
    _
  // Predicated region
  $region14: #{cost_reg_net.37} parent=0 // pred_check
    _
  $region15: #{cost_reg_net.37} parent=0 // pred_check_branch
    %16 = sbr.rel (0) target = $region17
  $region16: #{cost_reg_net.37} parent=0 // pred_region
    _
  $region17: #{cost_reg_net.37} parent=0 // pred_fallthru
    _
  %v18 = vld [vmem:[%s0] sm:$0xff]
  %v19 = vld [vmem:[%s0 + $0x8] sm:$0xff]
  %v20 = vld [vmem:[%s0 + $0x10] sm:$0xff]
  %v21 = vld [vmem:[%s0 + $0x18] sm:$0xf]
  %v22 = vld [vmem:[%s0 + $0x1c] sm:$0xff]
  %v23 = vld [vmem:[%s0 + $0x24] sm:$0xff]
  %v24 = vld [vmem:[%s0 + $0x2c] sm:$0xff]
  %v25 = vld [vmem:[%s0 + $0x34] sm:$0xf]
  %v26 = vld [vmem:[%s0 + $0x38] sm:$0xff]
  %v27 = vld [vmem:[%s0 + $0x40] sm:$0xff]
  %v28 = vld [vmem:[%s0 + $0x48] sm:$0xff]
  %v29 = vld [vmem:[%s0 + $0x50] sm:$0xf]
  %v30 = vld [vmem:[%s0 + $0x54] sm:$0xff]
  %v31 = vld [vmem:[%s0 + $0x5c] sm:$0xff]
  %v32 = vld [vmem:[%s0 + $0x64] sm:$0xff]
  %v33 = vld [vmem:[%s0 + $0x6c] sm:$0xf]
  %v34 = vld [vmem:[%s0 + $0x70] sm:$0xff]
  %v35 = vld [vmem:[%s0 + $0x78] sm:$0xff]
  %v36 = vld [vmem:[%s0 + $0x80] sm:$0xff]
  %v37 = vld [vmem:[%s0 + $0x88] sm:$0xf]
  %v38 = vld [vmem:[%s0 + $0x8c] sm:$0xff]
  %v39 = vld [vmem:[%s0 + $0x94] sm:$0xff]
  %v40 = vld [vmem:[%s0 + $0x9c] sm:$0xff]
  %v41 = vld [vmem:[%s0 + $0xa4] sm:$0xf]
  %v42 = vld [vmem:[%s0 + $0xa8] sm:$0xff]
  %v43 = vld [vmem:[%s0 + $0xb0] sm:$0xff]
  %v44 = vld [vmem:[%s0 + $0xb8] sm:$0xff]
  %v45 = vld [vmem:[%s0 + $0xc0] sm:$0xf]
  %v46 = vld [vmem:[%s0 + $0xc4] sm:$0xff]
  %v47 = vld [vmem:[%s0 + $0xcc] sm:$0xff]
  %v48 = vld [vmem:[%s0 + $0xd4] sm:$0xff]
  %v49 = vld [vmem:[%s0 + $0xdc] sm:$0xf]
  %v50 = vld [vmem:[%s1] sm:$0xf]
  %v51 = vld [vmem:[%s1 + $0x4] sm:$0xf]
  %v52 = vld [vmem:[%s1 + $0x8] sm:$0xf]
  %v53 = vld [vmem:[%s1 + $0xc] sm:$0xf]
  %v54 = vld [vmem:[%s1 + $0x10] sm:$0xf]
  %v55 = vld [vmem:[%s1 + $0x14] sm:$0xf]
  %v56 = vld [vmem:[%s1 + $0x18] sm:$0xf]
  %v57 = vld [vmem:[%s1 + $0x1c] sm:$0xf]
  %v58 = vld [vmem:[%s1 + $0x20] sm:$0xf]
  %v59 = vld [vmem:[%s1 + $0x24] sm:$0xf]
  %v60 = vld [vmem:[%s1 + $0x28] sm:$0xf]
  %v61 = vld [vmem:[%s1 + $0x2c] sm:$0xf]
  %v62 = vld [vmem:[%s1 + $0x30] sm:$0xf]
  %v63 = vld [vmem:[%s1 + $0x34] sm:$0xf]
  %v64 = vld [vmem:[%s1 + $0x38] sm:$0xf]
  %v65 = vld [vmem:[%s1 + $0x3c] sm:$0xf]
  %v66 = vld [vmem:[%s1 + $0x40] sm:$0xf]
  %v67 = vld [vmem:[%s1 + $0x44] sm:$0xf]
  %v68 = vld [vmem:[%s1 + $0x48] sm:$0xf]
  %v69 = vld [vmem:[%s1 + $0x4c] sm:$0xf]
  %v70 = vld [vmem:[%s1 + $0x50] sm:$0xf]
  %v71 = vld [vmem:[%s1 + $0x54] sm:$0xf]
  %v72 = vld [vmem:[%s1 + $0x58] sm:$0xf]
  %v73 = vld [vmem:[%s1 + $0x5c] sm:$0xf]
  %v74 = vld [vmem:[%s1 + $0x60] sm:$0xf]
  %v75 = vld [vmem:[%s1 + $0x64] sm:$0xf]
  %v76 = vld [vmem:[%s1 + $0x68] sm:$0xf]
  %v77 = vld [vmem:[%s1 + $0x6c] sm:$0xf]
  %v78 = vld [vmem:[%s1 + $0x70] sm:$0xf]
  %v79 = vld [vmem:[%s1 + $0x74] sm:$0xf]
  %v80 = vld [vmem:[%s1 + $0x78] sm:$0xf]
  %v81 = vld [vmem:[%s1 + $0x7c] sm:$0xf]
  %v82 = vld [vmem:[%s1 + $0x80] sm:$0xf]
  %v83 = vld [vmem:[%s1 + $0x84] sm:$0xf]
  %v84 = vld [vmem:[%s1 + $0x88] sm:$0xf]
  %v85 = vld [vmem:[%s1 + $0x8c] sm:$0xf]
  %v86 = vld [vmem:[%s1 + $0x90] sm:$0xf]
  %v87 = vld [vmem:[%s1 + $0x94] sm:$0xf]
  %v88 = vld [vmem:[%s1 + $0x98] sm:$0xf]
  %v89 = vld [vmem:[%s1 + $0x9c] sm:$0xf]
  %v90 = vld [vmem:[%s1 + $0xa0] sm:$0xf]
  %v91 = vld [vmem:[%s1 + $0xa4] sm:$0xf]
  %v92 = vld [vmem:[%s1 + $0xa8] sm:$0xf]
  %v93 = vld [vmem:[%s1 + $0xac] sm:$0xf]
  %v94 = vld [vmem:[%s1 + $0xb0] sm:$0xf]
  %v95 = vld [vmem:[%s1 + $0xb4] sm:$0xf]
  %v96 = vld [vmem:[%s1 + $0xb8] sm:$0xf]
  %v97 = vld [vmem:[%s1 + $0xbc] sm:$0xf]
  %v98 = vld [vmem:[%s1 + $0xc0] sm:$0xf]
  %v99 = vld [vmem:[%s1 + $0xc4] sm:$0xf]
  %v100 = vld [vmem:[%s1 + $0xc8] sm:$0xf]
  %v101 = vld [vmem:[%s1 + $0xcc] sm:$0xf]
  %v102 = vld [vmem:[%s1 + $0xd0] sm:$0xf]
  %v103 = vld [vmem:[%s1 + $0xd4] sm:$0xf]
  %v104 = vld [vmem:[%s1 + $0xd8] sm:$0xf]
  %v105 = vld [vmem:[%s1 + $0xdc] sm:$0xf]
  %v106 = vld [vmem:[%s1 + $0xe0] sm:$0xf]
  %v107 = vld [vmem:[%s1 + $0xe4] sm:$0xf]
  %v108 = vld [vmem:[%s1 + $0xe8] sm:$0xf]
  %v109 = vld [vmem:[%s1 + $0xec] sm:$0xf]
  %v110 = vld [vmem:[%s1 + $0xf0] sm:$0xf]
  %v111 = vld [vmem:[%s1 + $0xf4] sm:$0xf]
  %v112 = vld [vmem:[%s1 + $0xf8] sm:$0xf]
  %v113 = vld [vmem:[%s1 + $0xfc] sm:$0xf]
  %v114 = vld [vmem:[%s1 + $0x100] sm:$0xf]
  %v115 = vld [vmem:[%s1 + $0x104] sm:$0xf]
  %v116 = vld [vmem:[%s1 + $0x108] sm:$0xf]
  %v117 = vld [vmem:[%s1 + $0x10c] sm:$0xf]
  %v118 = vld [vmem:[%s1 + $0x110] sm:$0xf]
  %v119 = vld [vmem:[%s1 + $0x114] sm:$0xf]
  %v120 = vld [vmem:[%s1 + $0x118] sm:$0xf]
  %v121 = vld [vmem:[%s1 + $0x11c] sm:$0xf]
  %v122 = vld [vmem:[%s1 + $0x120] sm:$0xf]
  %v123 = vld [vmem:[%s1 + $0x124] sm:$0xf]
  %v124 = vld [vmem:[%s1 + $0x128] sm:$0xf]
  %v125 = vld [vmem:[%s1 + $0x12c] sm:$0xf]
  %v126 = vld [vmem:[%s1 + $0x130] sm:$0xf]
  %v127 = vld [vmem:[%s1 + $0x134] sm:$0xf]
  %v128 = vld [vmem:[%s1 + $0x138] sm:$0xf]
  %v129 = vld [vmem:[%s1 + $0x13c] sm:$0xf]
  %v130 = vld [vmem:[%s1 + $0x140] sm:$0xf]
  %v131 = vld [vmem:[%s1 + $0x144] sm:$0xf]
  %v132 = vld [vmem:[%s1 + $0x148] sm:$0xf]
  %v133 = vld [vmem:[%s1 + $0x14c] sm:$0xf]
  %v134 = vld [vmem:[%s1 + $0x150] sm:$0xf]
  %v135 = vld [vmem:[%s1 + $0x154] sm:$0xf]
  %v136 = vld [vmem:[%s1 + $0x158] sm:$0xf]
  %v137 = vld [vmem:[%s1 + $0x15c] sm:$0xf]
  %v138 = vld [vmem:[%s1 + $0x160] sm:$0xf]
  %v139 = vld [vmem:[%s1 + $0x164] sm:$0xf]
  %v140 = vld [vmem:[%s1 + $0x168] sm:$0xf]
  %v141 = vld [vmem:[%s1 + $0x16c] sm:$0xf]
  %v142 = vld [vmem:[%s1 + $0x170] sm:$0xf]
  %v143 = vld [vmem:[%s1 + $0x174] sm:$0xf]
  %v144 = vld [vmem:[%s1 + $0x178] sm:$0xf]
  %v145 = vld [vmem:[%s1 + $0x17c] sm:$0xf]
  %v146 = vld [vmem:[%s1 + $0x180] sm:$0xf]
  %v147 = vld [vmem:[%s1 + $0x184] sm:$0xf]
  %v148 = vld [vmem:[%s1 + $0x188] sm:$0xf]
  %v149 = vld [vmem:[%s1 + $0x18c] sm:$0xf]
  %v150 = vld [vmem:[%s1 + $0x190] sm:$0xf]
  %v151 = vld [vmem:[%s1 + $0x194] sm:$0xf]
  %v152 = vld [vmem:[%s1 + $0x198] sm:$0xf]
  %v153 = vld [vmem:[%s1 + $0x19c] sm:$0xf]
  %v154 = vld [vmem:[%s1 + $0x1a0] sm:$0xf]
  %v155 = vld [vmem:[%s1 + $0x1a4] sm:$0xf]
  %v156 = vld [vmem:[%s1 + $0x1a8] sm:$0xf]
  %v157 = vld [vmem:[%s1 + $0x1ac] sm:$0xf]
  %v190 = vunpack.c.l.b16 %v18
  %v191 = vunpack.c.h.b16 %v18
  %v192 = vunpack.c.l.b16 %v19
  %v193 = vunpack.c.h.b16 %v19
  %v194 = vunpack.c.l.b16 %v20
  %v195 = vunpack.c.h.b16 %v20
  %v196 = vunpack.c.l.b16 %v21
  %v197 = vunpack.c.l.b16 %v22
  %v198 = vunpack.c.h.b16 %v22
  %v199 = vunpack.c.l.b16 %v23
  %v200 = vunpack.c.h.b16 %v23
  %v201 = vunpack.c.l.b16 %v24
  %v202 = vunpack.c.h.b16 %v24
  %v203 = vunpack.c.l.b16 %v25
  %v204 = vunpack.c.l.b16 %v26
  %v205 = vunpack.c.h.b16 %v26
  %v206 = vunpack.c.l.b16 %v27
  %v207 = vunpack.c.h.b16 %v27
  %v208 = vunpack.c.l.b16 %v28
  %v209 = vunpack.c.h.b16 %v28
  %v210 = vunpack.c.l.b16 %v29
  %v211 = vunpack.c.l.b16 %v30
  %v212 = vunpack.c.h.b16 %v30
  %v213 = vunpack.c.l.b16 %v31
  %v214 = vunpack.c.h.b16 %v31
  %v215 = vunpack.c.l.b16 %v32
  %v216 = vunpack.c.h.b16 %v32
  %v217 = vunpack.c.l.b16 %v33
  %v218 = vunpack.c.l.b16 %v34
  %v219 = vunpack.c.h.b16 %v34
  %v220 = vunpack.c.l.b16 %v35
  %v221 = vunpack.c.h.b16 %v35
  %v222 = vunpack.c.l.b16 %v36
  %v223 = vunpack.c.h.b16 %v36
  %v224 = vunpack.c.l.b16 %v37
  %v225 = vunpack.c.l.b16 %v38
  %v226 = vunpack.c.h.b16 %v38
  %v227 = vunpack.c.l.b16 %v39
  %v228 = vunpack.c.h.b16 %v39
  %v229 = vunpack.c.l.b16 %v40
  %v230 = vunpack.c.h.b16 %v40
  %v231 = vunpack.c.l.b16 %v41
  %v232 = vunpack.c.l.b16 %v42
  %v233 = vunpack.c.h.b16 %v42
  %v234 = vunpack.c.l.b16 %v43
  %v235 = vunpack.c.h.b16 %v43
  %v236 = vunpack.c.l.b16 %v44
  %v237 = vunpack.c.h.b16 %v44
  %v238 = vunpack.c.l.b16 %v45
  %v239 = vunpack.c.l.b16 %v46
  %v240 = vunpack.c.h.b16 %v46
  %v241 = vunpack.c.l.b16 %v47
  %v242 = vunpack.c.h.b16 %v47
  %v243 = vunpack.c.l.b16 %v48
  %v244 = vunpack.c.h.b16 %v48
  %v245 = vunpack.c.l.b16 %v49
  %v246 = vpack.c.b16 %v197, %v190
  %v247 = vpack.c.b16 %v198, %v191
  %v248 = vpack.c.b16 %v199, %v192
  %v249 = vpack.c.b16 %v200, %v193
  %v250 = vpack.c.b16 %v201, %v194
  %v251 = vpack.c.b16 %v202, %v195
  %v252 = vpack.c.b16 %v203, %v196
  %v253 = vpack.c.b16 %v211, %v204
  %v254 = vpack.c.b16 %v212, %v205
  %v255 = vpack.c.b16 %v213, %v206
  %v256 = vpack.c.b16 %v214, %v207
  %v257 = vpack.c.b16 %v215, %v208
  %v258 = vpack.c.b16 %v216, %v209
  %v259 = vpack.c.b16 %v217, %v210
  %v260 = vpack.c.b16 %v225, %v218
  %v261 = vpack.c.b16 %v226, %v219
  %v262 = vpack.c.b16 %v227, %v220
  %v263 = vpack.c.b16 %v228, %v221
  %v264 = vpack.c.b16 %v229, %v222
  %v265 = vpack.c.b16 %v230, %v223
  %v266 = vpack.c.b16 %v231, %v224
  %v267 = vpack.c.b16 %v239, %v232
  %v268 = vpack.c.b16 %v240, %v233
  %v269 = vpack.c.b16 %v241, %v234
  %v270 = vpack.c.b16 %v242, %v235
  %v271 = vpack.c.b16 %v243, %v236
  %v272 = vpack.c.b16 %v244, %v237
  %v273 = vpack.c.b16 %v245, %v238
  %v406 = vunpack.c.l.b16 %v50
  %v407 = vunpack.c.l.b16 %v51
  %v408 = vunpack.c.l.b16 %v52
  %v409 = vunpack.c.l.b16 %v53
  %v410 = vunpack.c.l.b16 %v54
  %v411 = vunpack.c.l.b16 %v55
  %v412 = vunpack.c.l.b16 %v56
  %v413 = vunpack.c.l.b16 %v57
  %v414 = vunpack.c.l.b16 %v58
  %v415 = vunpack.c.l.b16 %v59
  %v416 = vunpack.c.l.b16 %v60
  %v417 = vunpack.c.l.b16 %v61
  %v418 = vunpack.c.l.b16 %v62
  %v419 = vunpack.c.l.b16 %v63
  %v420 = vunpack.c.l.b16 %v64
  %v421 = vunpack.c.l.b16 %v65
  %v422 = vunpack.c.l.b16 %v66
  %v423 = vunpack.c.l.b16 %v67
  %v424 = vunpack.c.l.b16 %v68
  %v425 = vunpack.c.l.b16 %v69
  %v426 = vunpack.c.l.b16 %v70
  %v427 = vunpack.c.l.b16 %v71
  %v428 = vunpack.c.l.b16 %v72
  %v429 = vunpack.c.l.b16 %v73
  %v430 = vunpack.c.l.b16 %v74
  %v431 = vunpack.c.l.b16 %v75
  %v432 = vunpack.c.l.b16 %v76
  %v433 = vunpack.c.l.b16 %v77
  %v434 = vunpack.c.l.b16 %v78
  %v435 = vunpack.c.l.b16 %v79
  %v436 = vunpack.c.l.b16 %v80
  %v437 = vunpack.c.l.b16 %v81
  %v438 = vunpack.c.l.b16 %v82
  %v439 = vunpack.c.l.b16 %v83
  %v440 = vunpack.c.l.b16 %v84
  %v441 = vunpack.c.l.b16 %v85
  %v442 = vunpack.c.l.b16 %v86
  %v443 = vunpack.c.l.b16 %v87
  %v444 = vunpack.c.l.b16 %v88
  %v445 = vunpack.c.l.b16 %v89
  %v446 = vunpack.c.l.b16 %v90
  %v447 = vunpack.c.l.b16 %v91
  %v448 = vunpack.c.l.b16 %v92
  %v449 = vunpack.c.l.b16 %v93
  %v450 = vunpack.c.l.b16 %v94
  %v451 = vunpack.c.l.b16 %v95
  %v452 = vunpack.c.l.b16 %v96
  %v453 = vunpack.c.l.b16 %v97
  %v454 = vunpack.c.l.b16 %v98
  %v455 = vunpack.c.l.b16 %v99
  %v456 = vunpack.c.l.b16 %v100
  %v457 = vunpack.c.l.b16 %v101
  %v458 = vunpack.c.l.b16 %v102
  %v459 = vunpack.c.l.b16 %v103
  %v460 = vunpack.c.l.b16 %v104
  %v461 = vunpack.c.l.b16 %v105
  %v462 = vunpack.c.l.b16 %v106
  %v463 = vunpack.c.l.b16 %v107
  %v464 = vunpack.c.l.b16 %v108
  %v465 = vunpack.c.l.b16 %v109
  %v466 = vunpack.c.l.b16 %v110
  %v467 = vunpack.c.l.b16 %v111
  %v468 = vunpack.c.l.b16 %v112
  %v469 = vunpack.c.l.b16 %v113
  %v470 = vunpack.c.l.b16 %v114
  %v471 = vunpack.c.l.b16 %v115
  %v472 = vunpack.c.l.b16 %v116
  %v473 = vunpack.c.l.b16 %v117
  %v474 = vunpack.c.l.b16 %v118
  %v475 = vunpack.c.l.b16 %v119
  %v476 = vunpack.c.l.b16 %v120
  %v477 = vunpack.c.l.b16 %v121
  %v478 = vunpack.c.l.b16 %v122
  %v479 = vunpack.c.l.b16 %v123
  %v480 = vunpack.c.l.b16 %v124
  %v481 = vunpack.c.l.b16 %v125
  %v482 = vunpack.c.l.b16 %v126
  %v483 = vunpack.c.l.b16 %v127
  %v484 = vunpack.c.l.b16 %v128
  %v485 = vunpack.c.l.b16 %v129
  %v486 = vunpack.c.l.b16 %v130
  %v487 = vunpack.c.l.b16 %v131
  %v488 = vunpack.c.l.b16 %v132
  %v489 = vunpack.c.l.b16 %v133
  %v490 = vunpack.c.l.b16 %v134
  %v491 = vunpack.c.l.b16 %v135
  %v492 = vunpack.c.l.b16 %v136
  %v493 = vunpack.c.l.b16 %v137
  %v494 = vunpack.c.l.b16 %v138
  %v495 = vunpack.c.l.b16 %v139
  %v496 = vunpack.c.l.b16 %v140
  %v497 = vunpack.c.l.b16 %v141
  %v498 = vunpack.c.l.b16 %v142
  %v499 = vunpack.c.l.b16 %v143
  %v500 = vunpack.c.l.b16 %v144
  %v501 = vunpack.c.l.b16 %v145
  %v502 = vunpack.c.l.b16 %v146
  %v503 = vunpack.c.l.b16 %v147
  %v504 = vunpack.c.l.b16 %v148
  %v505 = vunpack.c.l.b16 %v149
  %v506 = vunpack.c.l.b16 %v150
  %v507 = vunpack.c.l.b16 %v151
  %v508 = vunpack.c.l.b16 %v152
  %v509 = vunpack.c.l.b16 %v153
  %v510 = vunpack.c.l.b16 %v154
  %v511 = vunpack.c.l.b16 %v155
  %v512 = vunpack.c.l.b16 %v156
  %v513 = vunpack.c.l.b16 %v157
  %v514 = vpack.c.b16 %v407, %v406
  %v515 = vpack.c.b16 %v409, %v408
  %v516 = vpack.c.b16 %v411, %v410
  %v517 = vpack.c.b16 %v413, %v412
  %v518 = vpack.c.b16 %v415, %v414
  %v519 = vpack.c.b16 %v417, %v416
  %v520 = vpack.c.b16 %v419, %v418
  %v521 = vpack.c.b16 %v421, %v420
  %v522 = vpack.c.b16 %v423, %v422
  %v523 = vpack.c.b16 %v425, %v424
  %v524 = vpack.c.b16 %v427, %v426
  %v525 = vpack.c.b16 %v429, %v428
  %v526 = vpack.c.b16 %v431, %v430
  %v527 = vpack.c.b16 %v433, %v432
  %v528 = vpack.c.b16 %v435, %v434
  %v529 = vpack.c.b16 %v437, %v436
  %v530 = vpack.c.b16 %v439, %v438
  %v531 = vpack.c.b16 %v441, %v440
  %v532 = vpack.c.b16 %v443, %v442
  %v533 = vpack.c.b16 %v445, %v444
  %v534 = vpack.c.b16 %v447, %v446
  %v535 = vpack.c.b16 %v449, %v448
  %v536 = vpack.c.b16 %v451, %v450
  %v537 = vpack.c.b16 %v453, %v452
  %v538 = vpack.c.b16 %v455, %v454
  %v539 = vpack.c.b16 %v457, %v456
  %v540 = vpack.c.b16 %v459, %v458
  %v541 = vpack.c.b16 %v461, %v460
  %v542 = vpack.c.b16 %v463, %v462
  %v543 = vpack.c.b16 %v465, %v464
  %v544 = vpack.c.b16 %v467, %v466
  %v545 = vpack.c.b16 %v469, %v468
  %v546 = vpack.c.b16 %v471, %v470
  %v547 = vpack.c.b16 %v473, %v472
  %v548 = vpack.c.b16 %v475, %v474
  %v549 = vpack.c.b16 %v477, %v476
  %v550 = vpack.c.b16 %v479, %v478
  %v551 = vpack.c.b16 %v481, %v480
  %v552 = vpack.c.b16 %v483, %v482
  %v553 = vpack.c.b16 %v485, %v484
  %v554 = vpack.c.b16 %v487, %v486
  %v555 = vpack.c.b16 %v489, %v488
  %v556 = vpack.c.b16 %v491, %v490
  %v557 = vpack.c.b16 %v493, %v492
  %v558 = vpack.c.b16 %v495, %v494
  %v559 = vpack.c.b16 %v497, %v496
  %v560 = vpack.c.b16 %v499, %v498
  %v561 = vpack.c.b16 %v501, %v500
  %v562 = vpack.c.b16 %v503, %v502
  %v563 = vpack.c.b16 %v505, %v504
  %v564 = vpack.c.b16 %v507, %v506
  %v565 = vpack.c.b16 %v509, %v508
  %v566 = vpack.c.b16 %v511, %v510
  %v567 = vpack.c.b16 %v513, %v512
  %vm622 = vcmask 785408
  %v624 = vsel %vm622, %v252, 0
  %v627 = vsel %vm622, %v259, 0
  %v630 = vsel %vm622, %v266, 0
  %v633 = vsel %vm622, %v273, 0
  %635 = vmatprep.subr.bf16.mxu0 0
  %636 = vmatpush1.bf16.msra.mxu0 %v521
  %637 = vmatprep.subr.bf16.mxu0 0
  %638 = vmatpush1.bf16.msra.mxu0 %v520
  %639 = vmatprep.subr.bf16.mxu0 0
  %640 = vmatpush1.bf16.msra.mxu0 %v519
  %641 = vmatprep.subr.bf16.mxu0 0
  %642 = vmatpush1.bf16.msra.mxu0 %v518
  %643 = vmatprep.subr.bf16.mxu0 0
  %644 = vmatpush1.bf16.msra.mxu0 %v517
  %645 = vmatprep.subr.bf16.mxu0 0
  %646 = vmatpush1.bf16.msra.mxu0 %v516
  %647 = vmatprep.subr.bf16.mxu0 0
  %648 = vmatpush1.bf16.msra.mxu0 %v515
  %649 = vmatprep.subr.bf16.mxu0 0
  %650 = vmatpush1.bf16.msra.mxu0 %v514
  %651 = vmatprep.subr.bf16.mxu0 0
  %652 = vmatpush2.bf16.msra.mxu0 %v529
  %653 = vmatprep.subr.bf16.mxu0 0
  %654 = vmatpush2.bf16.msra.mxu0 %v528
  %655 = vmatprep.subr.bf16.mxu0 0
  %656 = vmatpush2.bf16.msra.mxu0 %v527
  %657 = vmatprep.subr.bf16.mxu0 0
  %658 = vmatpush2.bf16.msra.mxu0 %v526
  %659 = vmatprep.subr.bf16.mxu0 0
  %660 = vmatpush2.bf16.msra.mxu0 %v525
  %661 = vmatprep.subr.bf16.mxu0 0
  %662 = vmatpush2.bf16.msra.mxu0 %v524
  %663 = vmatprep.subr.bf16.mxu0 0
  %664 = vmatpush2.bf16.msra.mxu0 %v523
  %665 = vmatprep.subr.bf16.mxu0 0
  %666 = vmatpush2.bf16.msra.mxu0 %v522
  %667 = vmatprep.mubr.bf16.mxu0 %v247
  %668 = vmatmul.mubr.bf16.gmra.mxu0 %v246
  %v669 = vpop.f32.mrf.mxu0
  %v670 = vadd.f32 0.0, %v669
  %v671 = vpop.f32.mrf.mxu0
  %v672 = vpop.f32.mrf.mxu0
  %v673 = vadd.f32 0.0, %v672
  %v674 = vpop.f32.mrf.mxu0
  %675 = vmatprep.mubr.bf16.mxu0 %v254
  %676 = vmatmul.mubr.bf16.gmra.mxu0 %v253
  %v677 = vpop.f32.mrf.mxu0
  %v678 = vadd.f32 0.0, %v677
  %v679 = vpop.f32.mrf.mxu0
  %v680 = vpop.f32.mrf.mxu0
  %v681 = vadd.f32 0.0, %v680
  %v682 = vpop.f32.mrf.mxu0
  %683 = vmatprep.mubr.bf16.mxu0 %v261
  %684 = vmatmul.mubr.bf16.gmra.mxu0 %v260
  %v685 = vpop.f32.mrf.mxu0
  %v686 = vadd.f32 0.0, %v685
  %v687 = vpop.f32.mrf.mxu0
  %v688 = vpop.f32.mrf.mxu0
  %v689 = vadd.f32 0.0, %v688
  %v690 = vpop.f32.mrf.mxu0
  %691 = vmatprep.mubr.bf16.mxu0 %v268
  %692 = vmatmul.mubr.bf16.gmra.mxu0 %v267
  %v693 = vpop.f32.mrf.mxu0
  %v694 = vadd.f32 0.0, %v693
  %v695 = vpop.f32.mrf.mxu0
  %v696 = vpop.f32.mrf.mxu0
  %v697 = vadd.f32 0.0, %v696
  %v698 = vpop.f32.mrf.mxu0
  %699 = vdwg.mxu0
  %700 = vmatprep.subr.bf16.mxu0 0
  %701 = vmatpush1.bf16.msra.mxu0 %v537
  %702 = vmatprep.subr.bf16.mxu0 0
  %703 = vmatpush1.bf16.msra.mxu0 %v536
  %704 = vmatprep.subr.bf16.mxu0 0
  %705 = vmatpush1.bf16.msra.mxu0 %v535
  %706 = vmatprep.subr.bf16.mxu0 0
  %707 = vmatpush1.bf16.msra.mxu0 %v534
  %708 = vmatprep.subr.bf16.mxu0 0
  %709 = vmatpush1.bf16.msra.mxu0 %v533
  %710 = vmatprep.subr.bf16.mxu0 0
  %711 = vmatpush1.bf16.msra.mxu0 %v532
  %712 = vmatprep.subr.bf16.mxu0 0
  %713 = vmatpush1.bf16.msra.mxu0 %v531
  %714 = vmatprep.subr.bf16.mxu0 0
  %715 = vmatpush1.bf16.msra.mxu0 %v530
  %716 = vmatprep.subr.bf16.mxu0 0
  %717 = vmatpush2.bf16.msra.mxu0 %v545
  %718 = vmatprep.subr.bf16.mxu0 0
  %719 = vmatpush2.bf16.msra.mxu0 %v544
  %720 = vmatprep.subr.bf16.mxu0 0
  %721 = vmatpush2.bf16.msra.mxu0 %v543
  %722 = vmatprep.subr.bf16.mxu0 0
  %723 = vmatpush2.bf16.msra.mxu0 %v542
  %724 = vmatprep.subr.bf16.mxu0 0
  %725 = vmatpush2.bf16.msra.mxu0 %v541
  %726 = vmatprep.subr.bf16.mxu0 0
  %727 = vmatpush2.bf16.msra.mxu0 %v540
  %728 = vmatprep.subr.bf16.mxu0 0
  %729 = vmatpush2.bf16.msra.mxu0 %v539
  %730 = vmatprep.subr.bf16.mxu0 0
  %731 = vmatpush2.bf16.msra.mxu0 %v538
  %732 = vmatprep.mubr.bf16.mxu0 %v249
  %733 = vmatmul.mubr.bf16.gmra.mxu0 %v248
  %v734 = vpop.f32.mrf.mxu0
  %v735 = vadd.f32 %v670, %v734
  %v736 = vpop.f32.mrf.mxu0
  %v737 = vpop.f32.mrf.mxu0
  %v738 = vadd.f32 %v673, %v737
  %v739 = vpop.f32.mrf.mxu0
  %740 = vmatprep.mubr.bf16.mxu0 %v256
  %741 = vmatmul.mubr.bf16.gmra.mxu0 %v255
  %v742 = vpop.f32.mrf.mxu0
  %v743 = vadd.f32 %v678, %v742
  %v744 = vpop.f32.mrf.mxu0
  %v745 = vpop.f32.mrf.mxu0
  %v746 = vadd.f32 %v681, %v745
  %v747 = vpop.f32.mrf.mxu0
  %748 = vmatprep.mubr.bf16.mxu0 %v263
  %749 = vmatmul.mubr.bf16.gmra.mxu0 %v262
  %v750 = vpop.f32.mrf.mxu0
  %v751 = vadd.f32 %v686, %v750
  %v752 = vpop.f32.mrf.mxu0
  %v753 = vpop.f32.mrf.mxu0
  %v754 = vadd.f32 %v689, %v753
  %v755 = vpop.f32.mrf.mxu0
  %756 = vmatprep.mubr.bf16.mxu0 %v270
  %757 = vmatmul.mubr.bf16.gmra.mxu0 %v269
  %v758 = vpop.f32.mrf.mxu0
  %v759 = vadd.f32 %v694, %v758
  %v760 = vpop.f32.mrf.mxu0
  %v761 = vpop.f32.mrf.mxu0
  %v762 = vadd.f32 %v697, %v761
  %v763 = vpop.f32.mrf.mxu0
  %764 = vdwg.mxu0
  %765 = vmatprep.subr.bf16.mxu0 0
  %766 = vmatpush1.bf16.msra.mxu0 %v553
  %767 = vmatprep.subr.bf16.mxu0 0
  %768 = vmatpush1.bf16.msra.mxu0 %v552
  %769 = vmatprep.subr.bf16.mxu0 0
  %770 = vmatpush1.bf16.msra.mxu0 %v551
  %771 = vmatprep.subr.bf16.mxu0 0
  %772 = vmatpush1.bf16.msra.mxu0 %v550
  %773 = vmatprep.subr.bf16.mxu0 0
  %774 = vmatpush1.bf16.msra.mxu0 %v549
  %775 = vmatprep.subr.bf16.mxu0 0
  %776 = vmatpush1.bf16.msra.mxu0 %v548
  %777 = vmatprep.subr.bf16.mxu0 0
  %778 = vmatpush1.bf16.msra.mxu0 %v547
  %779 = vmatprep.subr.bf16.mxu0 0
  %780 = vmatpush1.bf16.msra.mxu0 %v546
  %781 = vmatprep.subr.bf16.mxu0 0
  %782 = vmatpush2.bf16.msra.mxu0 %v561
  %783 = vmatprep.subr.bf16.mxu0 0
  %784 = vmatpush2.bf16.msra.mxu0 %v560
  %785 = vmatprep.subr.bf16.mxu0 0
  %786 = vmatpush2.bf16.msra.mxu0 %v559
  %787 = vmatprep.subr.bf16.mxu0 0
  %788 = vmatpush2.bf16.msra.mxu0 %v558
  %789 = vmatprep.subr.bf16.mxu0 0
  %790 = vmatpush2.bf16.msra.mxu0 %v557
  %791 = vmatprep.subr.bf16.mxu0 0
  %792 = vmatpush2.bf16.msra.mxu0 %v556
  %793 = vmatprep.subr.bf16.mxu0 0
  %794 = vmatpush2.bf16.msra.mxu0 %v555
  %795 = vmatprep.subr.bf16.mxu0 0
  %796 = vmatpush2.bf16.msra.mxu0 %v554
  %797 = vmatprep.mubr.bf16.mxu0 %v251
  %798 = vmatmul.mubr.bf16.gmra.mxu0 %v250
  %v799 = vpop.f32.mrf.mxu0
  %v800 = vadd.f32 %v735, %v799
  %v801 = vpop.f32.mrf.mxu0
  %v802 = vpop.f32.mrf.mxu0
  %v803 = vadd.f32 %v738, %v802
  %v804 = vpop.f32.mrf.mxu0
  %805 = vmatprep.mubr.bf16.mxu0 %v258
  %806 = vmatmul.mubr.bf16.gmra.mxu0 %v257
  %v807 = vpop.f32.mrf.mxu0
  %v808 = vadd.f32 %v743, %v807
  %v809 = vpop.f32.mrf.mxu0
  %v810 = vpop.f32.mrf.mxu0
  %v811 = vadd.f32 %v746, %v810
  %v812 = vpop.f32.mrf.mxu0
  %813 = vmatprep.mubr.bf16.mxu0 %v265
  %814 = vmatmul.mubr.bf16.gmra.mxu0 %v264
  %v815 = vpop.f32.mrf.mxu0
  %v816 = vadd.f32 %v751, %v815
  %v817 = vpop.f32.mrf.mxu0
  %v818 = vpop.f32.mrf.mxu0
  %v819 = vadd.f32 %v754, %v818
  %v820 = vpop.f32.mrf.mxu0
  %821 = vmatprep.mubr.bf16.mxu0 %v272
  %822 = vmatmul.mubr.bf16.gmra.mxu0 %v271
  %v823 = vpop.f32.mrf.mxu0
  %v824 = vadd.f32 %v759, %v823
  %v825 = vpop.f32.mrf.mxu0
  %v826 = vpop.f32.mrf.mxu0
  %v827 = vadd.f32 %v762, %v826
  %v828 = vpop.f32.mrf.mxu0
  %829 = vdwg.mxu0
  %830 = vmatprep.subr.bf16.mxu0 0
  %831 = vmatpush1.bf16.msra.mxu0 0
  %832 = vmatprep.subr.bf16.mxu0 0
  %833 = vmatpush1.bf16.msra.mxu0 0
  %834 = vmatprep.subr.bf16.mxu0 0
  %835 = vmatpush1.bf16.msra.mxu0 %v567
  %836 = vmatprep.subr.bf16.mxu0 0
  %837 = vmatpush1.bf16.msra.mxu0 %v566
  %838 = vmatprep.subr.bf16.mxu0 0
  %839 = vmatpush1.bf16.msra.mxu0 %v565
  %840 = vmatprep.subr.bf16.mxu0 0
  %841 = vmatpush1.bf16.msra.mxu0 %v564
  %842 = vmatprep.subr.bf16.mxu0 0
  %843 = vmatpush1.bf16.msra.mxu0 %v563
  %844 = vmatprep.subr.bf16.mxu0 0
  %845 = vmatpush1.bf16.msra.mxu0 %v562
  %846 = vmatprep.subr.bf16.mxu0 0
  %847 = vmatpush2.bf16.msra.mxu0 0
  %848 = vmatprep.subr.bf16.mxu0 0
  %849 = vmatpush2.bf16.msra.mxu0 0
  %850 = vmatprep.subr.bf16.mxu0 0
  %851 = vmatpush2.bf16.msra.mxu0 0
  %852 = vmatprep.subr.bf16.mxu0 0
  %853 = vmatpush2.bf16.msra.mxu0 0
  %854 = vmatprep.subr.bf16.mxu0 0
  %855 = vmatpush2.bf16.msra.mxu0 0
  %856 = vmatprep.subr.bf16.mxu0 0
  %857 = vmatpush2.bf16.msra.mxu0 0
  %858 = vmatprep.subr.bf16.mxu0 0
  %859 = vmatpush2.bf16.msra.mxu0 0
  %860 = vmatprep.subr.bf16.mxu0 0
  %861 = vmatpush2.bf16.msra.mxu0 0
  %862 = vmatprep.mubr.bf16.mxu0 0
  %863 = vmatmul.mubr.bf16.gmra.mxu0 %v624
  %v864 = vpop.f32.mrf.mxu0
  %v865 = vadd.f32 %v800, %v864
  %v866 = vpop.f32.mrf.mxu0
  %v867 = vpop.f32.mrf.mxu0
  %v868 = vadd.f32 %v803, %v867
  %v869 = vpop.f32.mrf.mxu0
  %870 = vmatprep.mubr.bf16.mxu0 0
  %871 = vmatmul.mubr.bf16.gmra.mxu0 %v627
  %v872 = vpop.f32.mrf.mxu0
  %v873 = vadd.f32 %v808, %v872
  %v874 = vpop.f32.mrf.mxu0
  %v875 = vpop.f32.mrf.mxu0
  %v876 = vadd.f32 %v811, %v875
  %v877 = vpop.f32.mrf.mxu0
  %878 = vmatprep.mubr.bf16.mxu0 0
  %879 = vmatmul.mubr.bf16.gmra.mxu0 %v630
  %v880 = vpop.f32.mrf.mxu0
  %v881 = vadd.f32 %v816, %v880
  %v882 = vpop.f32.mrf.mxu0
  %v883 = vpop.f32.mrf.mxu0
  %v884 = vadd.f32 %v819, %v883
  %v885 = vpop.f32.mrf.mxu0
  %886 = vmatprep.mubr.bf16.mxu0 0
  %887 = vmatmul.mubr.bf16.gmra.mxu0 %v633
  %v888 = vpop.f32.mrf.mxu0
  %v889 = vadd.f32 %v824, %v888
  %v890 = vpop.f32.mrf.mxu0
  %v891 = vpop.f32.mrf.mxu0
  %v892 = vadd.f32 %v827, %v891
  %v893 = vpop.f32.mrf.mxu0
  %894 = vdwg.mxu0
  %v895 = vld [vmem:[%s2] sm:$0xff]
  %v896 = vld [vmem:[%s2 + $0x8] sm:$0xff]
  %v897 = vld [vmem:[%s2 + $0x10] sm:$0xff]
  %v898 = vld [vmem:[%s2 + $0x18] sm:$0xff]
  %v899 = vld [vmem:[%s2 + $0x20] sm:$0xff]
  %v900 = vld [vmem:[%s2 + $0x28] sm:$0xff]
  %v901 = vld [vmem:[%s2 + $0x30] sm:$0xff]
  %v902 = vld [vmem:[%s2 + $0x38] sm:$0xff]
  %904 = vset.pattern.permute.xlu0 0
  %905 = vperm.xlu0 %904, %v895
  %v906 = vpop.permute.xlu0 %905
  %909 = vset.pattern.permute.xlu0 0
  %910 = vperm.xlu0 %909, %v896
  %v911 = vpop.permute.xlu0 %910
  %914 = vset.pattern.permute.xlu0 0
  %915 = vperm.xlu0 %914, %v897
  %v916 = vpop.permute.xlu0 %915
  %919 = vset.pattern.permute.xlu0 0
  %920 = vperm.xlu0 %919, %v898
  %v921 = vpop.permute.xlu0 %920
  %924 = vset.pattern.permute.xlu0 0
  %925 = vperm.xlu0 %924, %v899
  %v926 = vpop.permute.xlu0 %925
  %929 = vset.pattern.permute.xlu0 0
  %930 = vperm.xlu0 %929, %v900
  %v931 = vpop.permute.xlu0 %930
  %934 = vset.pattern.permute.xlu0 0
  %935 = vperm.xlu0 %934, %v901
  %v936 = vpop.permute.xlu0 %935
  %939 = vset.pattern.permute.xlu0 0
  %940 = vperm.xlu0 %939, %v902
  %v941 = vpop.permute.xlu0 %940
  %v943 = vmul.f32 %v865, %v906
  %v944 = vmul.f32 %v868, %v911
  %v945 = vmul.f32 %v873, %v916
  %v946 = vmul.f32 %v876, %v921
  %v947 = vmul.f32 %v881, %v926
  %v948 = vmul.f32 %v884, %v931
  %v949 = vmul.f32 %v889, %v936
  %v950 = vmul.f32 %v892, %v941
  %v951 = vld [vmem:[%s3] sm:$0xff]
  %v952 = vld [vmem:[%s3 + $0x8] sm:$0xff]
  %v953 = vld [vmem:[%s3 + $0x10] sm:$0xff]
  %v954 = vld [vmem:[%s3 + $0x18] sm:$0xff]
  %v955 = vld [vmem:[%s3 + $0x20] sm:$0xff]
  %v956 = vld [vmem:[%s3 + $0x28] sm:$0xff]
  %v957 = vld [vmem:[%s3 + $0x30] sm:$0xff]
  %v958 = vld [vmem:[%s3 + $0x38] sm:$0xff]
  %960 = vset.pattern.permute.xlu0 0
  %961 = vperm.xlu0 %960, %v951
  %v962 = vpop.permute.xlu0 %961
  %965 = vset.pattern.permute.xlu0 0
  %966 = vperm.xlu0 %965, %v952
  %v967 = vpop.permute.xlu0 %966
  %970 = vset.pattern.permute.xlu0 0
  %971 = vperm.xlu0 %970, %v953
  %v972 = vpop.permute.xlu0 %971
  %975 = vset.pattern.permute.xlu0 0
  %976 = vperm.xlu0 %975, %v954
  %v977 = vpop.permute.xlu0 %976
  %980 = vset.pattern.permute.xlu0 0
  %981 = vperm.xlu0 %980, %v955
  %v982 = vpop.permute.xlu0 %981
  %985 = vset.pattern.permute.xlu0 0
  %986 = vperm.xlu0 %985, %v956
  %v987 = vpop.permute.xlu0 %986
  %990 = vset.pattern.permute.xlu0 0
  %991 = vperm.xlu0 %990, %v957
  %v992 = vpop.permute.xlu0 %991
  %995 = vset.pattern.permute.xlu0 0
  %996 = vperm.xlu0 %995, %v958
  %v997 = vpop.permute.xlu0 %996
  %v999 = vadd.f32 %v943, %v962
  %v1000 = vadd.f32 %v944, %v967
  %v1001 = vadd.f32 %v945, %v972
  %v1002 = vadd.f32 %v946, %v977
  %v1003 = vadd.f32 %v947, %v982
  %v1004 = vadd.f32 %v948, %v987
  %v1005 = vadd.f32 %v949, %v992
  %v1006 = vadd.f32 %v950, %v997
  %v1007 = vmax.f32 %v999, 0.0
  %v1008 = vmax.f32 %v1000, 0.0
  %v1009 = vmax.f32 %v1001, 0.0
  %v1010 = vmax.f32 %v1002, 0.0
  %v1011 = vmax.f32 %v1003, 0.0
  %v1012 = vmax.f32 %v1004, 0.0
  %v1013 = vmax.f32 %v1005, 0.0
  %v1014 = vmax.f32 %v1006, 0.0
  %1015 = vst [vmem:[%s4] sm:$0xff] %v1007
  %1016 = vst [vmem:[%s4 + $0x8] sm:$0xff] %v1008
  %1017 = vst [vmem:[%s4 + $0x10] sm:$0xff] %v1009
  %1018 = vst [vmem:[%s4 + $0x18] sm:$0xff] %v1010
  %1019 = vst [vmem:[%s4 + $0x20] sm:$0xff] %v1011
  %1020 = vst [vmem:[%s4 + $0x28] sm:$0xff] %v1012
  %1021 = vst [vmem:[%s4 + $0x30] sm:$0xff] %v1013
  %1022 = vst [vmem:[%s4 + $0x38] sm:$0xff] %v1014
  // Predicated region
  $region18: #{cost_reg_net.37} parent=0 // pred_check
    _
  $region19: #{cost_reg_net.37} parent=0 // pred_check_branch
    %1024 = sbr.rel (0) target = $region21
  $region20: #{cost_reg_net.37} parent=0 // pred_region
    _
  $region21: #{cost_reg_net.37} parent=0 // pred_fallthru
    _
  // Predicated region
  $region22: #{cost_reg_net.37} parent=0 // pred_check
    _
  $region23: #{cost_reg_net.37} parent=0 // pred_check_branch
    %1026 = sbr.rel (0) target = $region25
  $region24: #{cost_reg_net.37} parent=0 // pred_region
    _
  $region25: #{cost_reg_net.37} parent=0 // pred_fallthru
    _

// kernel: cost_reg_net.38
$region0: #{cost_reg_net.38}
  #allocation0 [shape = 'u32[]', space=smem, size = 0x4, offset = 0x4, fixed_abs, tag = 'smem constant byte address 0x4 - core index']
  #allocation1 [shape = 'u32[144,128]{1,0:T(1,128)}', space=vmem, size = 0x12000, scoped, tag = 'internal scratch']
  %s0 = inlined_call_operand.vmem [shape: bf16[64,1728], index: 0, kind: input, shape index: {}]
  %s1 = inlined_call_operand.vmem [shape: bf16[1728,128], index: 1, kind: input, shape index: {}]
  %s2 = inlined_call_operand.vmem [shape: f32[64,1], index: 2, kind: input, shape index: {}]
  %s3 = inlined_call_operand.vmem [shape: f32[64,1], index: 3, kind: input, shape index: {}]
  %s4 = inlined_call_operand.vmem [shape: f32[64,128], index: 4, kind: output, shape index: {}]
  %s5 = sld [smem:[#allocation0]]
  $region26: #{cost_reg_net.38} parent=0
    _
  %s7 = ssub.s32 1, %s5
  %s8 = scalar_select 0, %s7, %s5
  // Predicated region
  $region2: #{cost_reg_net.38} parent=0 // pred_check
    _
  $region3: #{cost_reg_net.38} parent=0 // pred_check_branch
    %10 = sbr.rel (0) target = $region5
  $region4: #{cost_reg_net.38} parent=0 // pred_region
    _
  $region5: #{cost_reg_net.38} parent=0 // pred_fallthru
    _
  // Predicated region
  $region6: #{cost_reg_net.38} parent=0 // pred_check
    _
  $region7: #{cost_reg_net.38} parent=0 // pred_check_branch
    %12 = sbr.rel (0) target = $region9
  $region8: #{cost_reg_net.38} parent=0 // pred_region
    _
  $region9: #{cost_reg_net.38} parent=0 // pred_fallthru
    _
  // Predicated region
  $region10: #{cost_reg_net.38} parent=0 // pred_check
    _
  $region11: #{cost_reg_net.38} parent=0 // pred_check_branch
    %14 = sbr.rel (0) target = $region13
  $region12: #{cost_reg_net.38} parent=0 // pred_region
    _
  $region13: #{cost_reg_net.38} parent=0 // pred_fallthru
    _
  // Predicated region
  $region14: #{cost_reg_net.38} parent=0 // pred_check
    _
  $region15: #{cost_reg_net.38} parent=0 // pred_check_branch
    %16 = sbr.rel (0) target = $region17
  $region16: #{cost_reg_net.38} parent=0 // pred_region
    _
  $region17: #{cost_reg_net.38} parent=0 // pred_fallthru
    _
  %v18 = vld [vmem:[%s0] sm:$0xff]
  %v19 = vld [vmem:[%s0 + $0x8] sm:$0xff]
  %v20 = vld [vmem:[%s0 + $0x10] sm:$0xff]
  %v21 = vld [vmem:[%s0 + $0x18] sm:$0xff]
  %v22 = vld [vmem:[%s0 + $0x20] sm:$0xff]
  %v23 = vld [vmem:[%s0 + $0x28] sm:$0xff]
  %v24 = vld [vmem:[%s0 + $0x30] sm:$0xff]
  %v25 = vld [vmem:[%s0 + $0x38] sm:$0xff]
  %v26 = vld [vmem:[%s0 + $0x40] sm:$0xff]
  %v27 = vld [vmem:[%s0 + $0x48] sm:$0xff]
  %v28 = vld [vmem:[%s0 + $0x50] sm:$0xff]
  %v29 = vld [vmem:[%s0 + $0x58] sm:$0xff]
  %v30 = vld [vmem:[%s0 + $0x60] sm:$0xff]
  %v31 = vld [vmem:[%s0 + $0x68] sm:$0xff]
  %v32 = vld [vmem:[%s0 + $0x70] sm:$0xff]
  %v33 = vld [vmem:[%s0 + $0x78] sm:$0xff]
  %v34 = vld [vmem:[%s0 + $0x80] sm:$0xff]
  %v35 = vld [vmem:[%s0 + $0x88] sm:$0xff]
  %v36 = vld [vmem:[%s0 + $0x90] sm:$0xff]
  %v37 = vld [vmem:[%s0 + $0x98] sm:$0xff]
  %v38 = vld [vmem:[%s0 + $0xa0] sm:$0xff]
  %v39 = vld [vmem:[%s0 + $0xa8] sm:$0xff]
  %v40 = vld [vmem:[%s0 + $0xb0] sm:$0xff]
  %v41 = vld [vmem:[%s0 + $0xb8] sm:$0xff]
  %v42 = vld [vmem:[%s0 + $0xc0] sm:$0xff]
  %v43 = vld [vmem:[%s0 + $0xc8] sm:$0xff]
  %v44 = vld [vmem:[%s0 + $0xd0] sm:$0xff]
  %v45 = vld [vmem:[%s0 + $0xd8] sm:$0xff]
  %v46 = vld [vmem:[%s0 + $0xe0] sm:$0xff]
  %v47 = vld [vmem:[%s0 + $0xe8] sm:$0xff]
  %v48 = vld [vmem:[%s0 + $0xf0] sm:$0xff]
  %v49 = vld [vmem:[%s0 + $0xf8] sm:$0xff]
  %v50 = vld [vmem:[%s0 + $0x100] sm:$0xff]
  %v51 = vld [vmem:[%s0 + $0x108] sm:$0xff]
  %v52 = vld [vmem:[%s0 + $0x110] sm:$0xff]
  %v53 = vld [vmem:[%s0 + $0x118] sm:$0xff]
  %v54 = vld [vmem:[%s0 + $0x120] sm:$0xff]
  %v55 = vld [vmem:[%s0 + $0x128] sm:$0xff]
  %v56 = vld [vmem:[%s0 + $0x130] sm:$0xff]
  %v57 = vld [vmem:[%s0 + $0x138] sm:$0xff]
  %v58 = vld [vmem:[%s0 + $0x140] sm:$0xff]
  %v59 = vld [vmem:[%s0 + $0x148] sm:$0xff]
  %v60 = vld [vmem:[%s0 + $0x150] sm:$0xff]
  %v61 = vld [vmem:[%s0 + $0x158] sm:$0xff]
  %v62 = vld [vmem:[%s0 + $0x160] sm:$0xff]
  %v63 = vld [vmem:[%s0 + $0x168] sm:$0xff]
  %v64 = vld [vmem:[%s0 + $0x170] sm:$0xff]
  %v65 = vld [vmem:[%s0 + $0x178] sm:$0xff]
  %v66 = vld [vmem:[%s0 + $0x180] sm:$0xff]
  %v67 = vld [vmem:[%s0 + $0x188] sm:$0xff]
  %v68 = vld [vmem:[%s0 + $0x190] sm:$0xff]
  %v69 = vld [vmem:[%s0 + $0x198] sm:$0xff]
  %v70 = vld [vmem:[%s0 + $0x1a0] sm:$0xff]
  %v71 = vld [vmem:[%s0 + $0x1a8] sm:$0xff]
  %v72 = vld [vmem:[%s0 + $0x1b0] sm:$0xff]
  %v73 = vld [vmem:[%s0 + $0x1b8] sm:$0xff]
  %v74 = vld [vmem:[%s1] sm:$0xf]
  %v75 = vld [vmem:[%s1 + $0x4] sm:$0xf]
  %v76 = vld [vmem:[%s1 + $0x8] sm:$0xf]
  %v77 = vld [vmem:[%s1 + $0xc] sm:$0xf]
  %v78 = vld [vmem:[%s1 + $0x10] sm:$0xf]
  %v79 = vld [vmem:[%s1 + $0x14] sm:$0xf]
  %v80 = vld [vmem:[%s1 + $0x18] sm:$0xf]
  %v81 = vld [vmem:[%s1 + $0x1c] sm:$0xf]
  %v82 = vld [vmem:[%s1 + $0x20] sm:$0xf]
  %v83 = vld [vmem:[%s1 + $0x24] sm:$0xf]
  %v84 = vld [vmem:[%s1 + $0x28] sm:$0xf]
  %v85 = vld [vmem:[%s1 + $0x2c] sm:$0xf]
  %v86 = vld [vmem:[%s1 + $0x30] sm:$0xf]
  %v87 = vld [vmem:[%s1 + $0x34] sm:$0xf]
  %v88 = vld [vmem:[%s1 + $0x38] sm:$0xf]
  %v89 = vld [vmem:[%s1 + $0x3c] sm:$0xf]
  %v90 = vld [vmem:[%s1 + $0x40] sm:$0xf]
  %v91 = vld [vmem:[%s1 + $0x44] sm:$0xf]
  %v92 = vld [vmem:[%s1 + $0x48] sm:$0xf]
  %v93 = vld [vmem:[%s1 + $0x4c] sm:$0xf]
  %v94 = vld [vmem:[%s1 + $0x50] sm:$0xf]
  %v95 = vld [vmem:[%s1 + $0x54] sm:$0xf]
  %v96 = vld [vmem:[%s1 + $0x58] sm:$0xf]
  %v97 = vld [vmem:[%s1 + $0x5c] sm:$0xf]
  %v98 = vld [vmem:[%s1 + $0x60] sm:$0xf]
  %v99 = vld [vmem:[%s1 + $0x64] sm:$0xf]
  %v100 = vld [vmem:[%s1 + $0x68] sm:$0xf]
  %v101 = vld [vmem:[%s1 + $0x6c] sm:$0xf]
  %v102 = vld [vmem:[%s1 + $0x70] sm:$0xf]
  %v103 = vld [vmem:[%s1 + $0x74] sm:$0xf]
  %v104 = vld [vmem:[%s1 + $0x78] sm:$0xf]
  %v105 = vld [vmem:[%s1 + $0x7c] sm:$0xf]
  %v106 = vld [vmem:[%s1 + $0x80] sm:$0xf]
  %v107 = vld [vmem:[%s1 + $0x84] sm:$0xf]
  %v108 = vld [vmem:[%s1 + $0x88] sm:$0xf]
  %v109 = vld [vmem:[%s1 + $0x8c] sm:$0xf]
  %v110 = vld [vmem:[%s1 + $0x90] sm:$0xf]
  %v111 = vld [vmem:[%s1 + $0x94] sm:$0xf]
  %v112 = vld [vmem:[%s1 + $0x98] sm:$0xf]
  %v113 = vld [vmem:[%s1 + $0x9c] sm:$0xf]
  %v114 = vld [vmem:[%s1 + $0xa0] sm:$0xf]
  %v115 = vld [vmem:[%s1 + $0xa4] sm:$0xf]
  %v116 = vld [vmem:[%s1 + $0xa8] sm:$0xf]
  %v117 = vld [vmem:[%s1 + $0xac] sm:$0xf]
  %v118 = vld [vmem:[%s1 + $0xb0] sm:$0xf]
  %v119 = vld [vmem:[%s1 + $0xb4] sm:$0xf]
  %v120 = vld [vmem:[%s1 + $0xb8] sm:$0xf]
  %v121 = vld [vmem:[%s1 + $0xbc] sm:$0xf]
  %v122 = vld [vmem:[%s1 + $0xc0] sm:$0xf]
  %v123 = vld [vmem:[%s1 + $0xc4] sm:$0xf]
  %v124 = vld [vmem:[%s1 + $0xc8] sm:$0xf]
  %v125 = vld [vmem:[%s1 + $0xcc] sm:$0xf]
  %v126 = vld [vmem:[%s1 + $0xd0] sm:$0xf]
  %v127 = vld [vmem:[%s1 + $0xd4] sm:$0xf]
  %v128 = vld [vmem:[%s1 + $0xd8] sm:$0xf]
  %v129 = vld [vmem:[%s1 + $0xdc] sm:$0xf]
  %v130 = vld [vmem:[%s1 + $0xe0] sm:$0xf]
  %v131 = vld [vmem:[%s1 + $0xe4] sm:$0xf]
  %v132 = vld [vmem:[%s1 + $0xe8] sm:$0xf]
  %v133 = vld [vmem:[%s1 + $0xec] sm:$0xf]
  %v134 = vld [vmem:[%s1 + $0xf0] sm:$0xf]
  %v135 = vld [vmem:[%s1 + $0xf4] sm:$0xf]
  %v136 = vld [vmem:[%s1 + $0xf8] sm:$0xf]
  %v137 = vld [vmem:[%s1 + $0xfc] sm:$0xf]
  %v138 = vld [vmem:[%s1 + $0x100] sm:$0xf]
  %v139 = vld [vmem:[%s1 + $0x104] sm:$0xf]
  %v140 = vld [vmem:[%s1 + $0x108] sm:$0xf]
  %v141 = vld [vmem:[%s1 + $0x10c] sm:$0xf]
  %v142 = vld [vmem:[%s1 + $0x110] sm:$0xf]
  %v143 = vld [vmem:[%s1 + $0x114] sm:$0xf]
  %v144 = vld [vmem:[%s1 + $0x118] sm:$0xf]
  %v145 = vld [vmem:[%s1 + $0x11c] sm:$0xf]
  %v146 = vld [vmem:[%s1 + $0x120] sm:$0xf]
  %v147 = vld [vmem:[%s1 + $0x124] sm:$0xf]
  %v148 = vld [vmem:[%s1 + $0x128] sm:$0xf]
  %v149 = vld [vmem:[%s1 + $0x12c] sm:$0xf]
  %v150 = vld [vmem:[%s1 + $0x130] sm:$0xf]
  %v151 = vld [vmem:[%s1 + $0x134] sm:$0xf]
  %v152 = vld [vmem:[%s1 + $0x138] sm:$0xf]
  %v153 = vld [vmem:[%s1 + $0x13c] sm:$0xf]
  %v154 = vld [vmem:[%s1 + $0x140] sm:$0xf]
  %v155 = vld [vmem:[%s1 + $0x144] sm:$0xf]
  %v156 = vld [vmem:[%s1 + $0x148] sm:$0xf]
  %v157 = vld [vmem:[%s1 + $0x14c] sm:$0xf]
  %v158 = vld [vmem:[%s1 + $0x150] sm:$0xf]
  %v159 = vld [vmem:[%s1 + $0x154] sm:$0xf]
  %v160 = vld [vmem:[%s1 + $0x158] sm:$0xf]
  %v161 = vld [vmem:[%s1 + $0x15c] sm:$0xf]
  %v162 = vld [vmem:[%s1 + $0x160] sm:$0xf]
  %v163 = vld [vmem:[%s1 + $0x164] sm:$0xf]
  %v164 = vld [vmem:[%s1 + $0x168] sm:$0xf]
  %v165 = vld [vmem:[%s1 + $0x16c] sm:$0xf]
  %v166 = vld [vmem:[%s1 + $0x170] sm:$0xf]
  %v167 = vld [vmem:[%s1 + $0x174] sm:$0xf]
  %v168 = vld [vmem:[%s1 + $0x178] sm:$0xf]
  %v169 = vld [vmem:[%s1 + $0x17c] sm:$0xf]
  %v170 = vld [vmem:[%s1 + $0x180] sm:$0xf]
  %v171 = vld [vmem:[%s1 + $0x184] sm:$0xf]
  %v172 = vld [vmem:[%s1 + $0x188] sm:$0xf]
  %v173 = vld [vmem:[%s1 + $0x18c] sm:$0xf]
  %v174 = vld [vmem:[%s1 + $0x190] sm:$0xf]
  %v175 = vld [vmem:[%s1 + $0x194] sm:$0xf]
  %v176 = vld [vmem:[%s1 + $0x198] sm:$0xf]
  %v177 = vld [vmem:[%s1 + $0x19c] sm:$0xf]
  %v178 = vld [vmem:[%s1 + $0x1a0] sm:$0xf]
  %v179 = vld [vmem:[%s1 + $0x1a4] sm:$0xf]
  %v180 = vld [vmem:[%s1 + $0x1a8] sm:$0xf]
  %v181 = vld [vmem:[%s1 + $0x1ac] sm:$0xf]
  %v182 = vld [vmem:[%s1 + $0x1b0] sm:$0xf]
  %v183 = vld [vmem:[%s1 + $0x1b4] sm:$0xf]
  %v184 = vld [vmem:[%s1 + $0x1b8] sm:$0xf]
  %v185 = vld [vmem:[%s1 + $0x1bc] sm:$0xf]
  %v186 = vld [vmem:[%s1 + $0x1c0] sm:$0xf]
  %v187 = vld [vmem:[%s1 + $0x1c4] sm:$0xf]
  %v188 = vld [vmem:[%s1 + $0x1c8] sm:$0xf]
  %v189 = vld [vmem:[%s1 + $0x1cc] sm:$0xf]
  %v190 = vld [vmem:[%s1 + $0x1d0] sm:$0xf]
  %v191 = vld [vmem:[%s1 + $0x1d4] sm:$0xf]
  %v192 = vld [vmem:[%s1 + $0x1d8] sm:$0xf]
  %v193 = vld [vmem:[%s1 + $0x1dc] sm:$0xf]
  %v194 = vld [vmem:[%s1 + $0x1e0] sm:$0xf]
  %v195 = vld [vmem:[%s1 + $0x1e4] sm:$0xf]
  %v196 = vld [vmem:[%s1 + $0x1e8] sm:$0xf]
  %v197 = vld [vmem:[%s1 + $0x1ec] sm:$0xf]
  %v198 = vld [vmem:[%s1 + $0x1f0] sm:$0xf]
  %v199 = vld [vmem:[%s1 + $0x1f4] sm:$0xf]
  %v200 = vld [vmem:[%s1 + $0x1f8] sm:$0xf]
  %v201 = vld [vmem:[%s1 + $0x1fc] sm:$0xf]
  %v202 = vld [vmem:[%s1 + $0x200] sm:$0xf]
  %v203 = vld [vmem:[%s1 + $0x204] sm:$0xf]
  %v204 = vld [vmem:[%s1 + $0x208] sm:$0xf]
  %v205 = vld [vmem:[%s1 + $0x20c] sm:$0xf]
  %v206 = vld [vmem:[%s1 + $0x210] sm:$0xf]
  %v207 = vld [vmem:[%s1 + $0x214] sm:$0xf]
  %v208 = vld [vmem:[%s1 + $0x218] sm:$0xf]
  %v209 = vld [vmem:[%s1 + $0x21c] sm:$0xf]
  %v210 = vld [vmem:[%s1 + $0x220] sm:$0xf]
  %v211 = vld [vmem:[%s1 + $0x224] sm:$0xf]
  %v212 = vld [vmem:[%s1 + $0x228] sm:$0xf]
  %v213 = vld [vmem:[%s1 + $0x22c] sm:$0xf]
  %v214 = vld [vmem:[%s1 + $0x230] sm:$0xf]
  %v215 = vld [vmem:[%s1 + $0x234] sm:$0xf]
  %v216 = vld [vmem:[%s1 + $0x238] sm:$0xf]
  %v217 = vld [vmem:[%s1 + $0x23c] sm:$0xf]
  %v218 = vld [vmem:[%s1 + $0x240] sm:$0xf]
  %v219 = vld [vmem:[%s1 + $0x244] sm:$0xf]
  %v220 = vld [vmem:[%s1 + $0x248] sm:$0xf]
  %v221 = vld [vmem:[%s1 + $0x24c] sm:$0xf]
  %v222 = vld [vmem:[%s1 + $0x250] sm:$0xf]
  %v223 = vld [vmem:[%s1 + $0x254] sm:$0xf]
  %v224 = vld [vmem:[%s1 + $0x258] sm:$0xf]
  %v225 = vld [vmem:[%s1 + $0x25c] sm:$0xf]
  %v226 = vld [vmem:[%s1 + $0x260] sm:$0xf]
  %v227 = vld [vmem:[%s1 + $0x264] sm:$0xf]
  %v228 = vld [vmem:[%s1 + $0x268] sm:$0xf]
  %v229 = vld [vmem:[%s1 + $0x26c] sm:$0xf]
  %v230 = vld [vmem:[%s1 + $0x270] sm:$0xf]
  %v231 = vld [vmem:[%s1 + $0x274] sm:$0xf]
  %v232 = vld [vmem:[%s1 + $0x278] sm:$0xf]
  %v233 = vld [vmem:[%s1 + $0x27c] sm:$0xf]
  %v234 = vld [vmem:[%s1 + $0x280] sm:$0xf]
  %v235 = vld [vmem:[%s1 + $0x284] sm:$0xf]
  %v236 = vld [vmem:[%s1 + $0x288] sm:$0xf]
  %v237 = vld [vmem:[%s1 + $0x28c] sm:$0xf]
  %v238 = vld [vmem:[%s1 + $0x290] sm:$0xf]
  %v239 = vld [vmem:[%s1 + $0x294] sm:$0xf]
  %v240 = vld [vmem:[%s1 + $0x298] sm:$0xf]
  %v241 = vld [vmem:[%s1 + $0x29c] sm:$0xf]
  %v242 = vld [vmem:[%s1 + $0x2a0] sm:$0xf]
  %v243 = vld [vmem:[%s1 + $0x2a4] sm:$0xf]
  %v244 = vld [vmem:[%s1 + $0x2a8] sm:$0xf]
  %v245 = vld [vmem:[%s1 + $0x2ac] sm:$0xf]
  %v246 = vld [vmem:[%s1 + $0x2b0] sm:$0xf]
  %v247 = vld [vmem:[%s1 + $0x2b4] sm:$0xf]
  %v248 = vld [vmem:[%s1 + $0x2b8] sm:$0xf]
  %v249 = vld [vmem:[%s1 + $0x2bc] sm:$0xf]
  %v250 = vld [vmem:[%s1 + $0x2c0] sm:$0xf]
  %v251 = vld [vmem:[%s1 + $0x2c4] sm:$0xf]
  %v252 = vld [vmem:[%s1 + $0x2c8] sm:$0xf]
  %v253 = vld [vmem:[%s1 + $0x2cc] sm:$0xf]
  %v254 = vld [vmem:[%s1 + $0x2d0] sm:$0xf]
  %v255 = vld [vmem:[%s1 + $0x2d4] sm:$0xf]
  %v256 = vld [vmem:[%s1 + $0x2d8] sm:$0xf]
  %v257 = vld [vmem:[%s1 + $0x2dc] sm:$0xf]
  %v258 = vld [vmem:[%s1 + $0x2e0] sm:$0xf]
  %v259 = vld [vmem:[%s1 + $0x2e4] sm:$0xf]
  %v260 = vld [vmem:[%s1 + $0x2e8] sm:$0xf]
  %v261 = vld [vmem:[%s1 + $0x2ec] sm:$0xf]
  %v262 = vld [vmem:[%s1 + $0x2f0] sm:$0xf]
  %v263 = vld [vmem:[%s1 + $0x2f4] sm:$0xf]
  %v264 = vld [vmem:[%s1 + $0x2f8] sm:$0xf]
  %v265 = vld [vmem:[%s1 + $0x2fc] sm:$0xf]
  %v266 = vld [vmem:[%s1 + $0x300] sm:$0xf]
  %v267 = vld [vmem:[%s1 + $0x304] sm:$0xf]
  %v268 = vld [vmem:[%s1 + $0x308] sm:$0xf]
  %v269 = vld [vmem:[%s1 + $0x30c] sm:$0xf]
  %v270 = vld [vmem:[%s1 + $0x310] sm:$0xf]
  %v271 = vld [vmem:[%s1 + $0x314] sm:$0xf]
  %v272 = vld [vmem:[%s1 + $0x318] sm:$0xf]
  %v273 = vld [vmem:[%s1 + $0x31c] sm:$0xf]
  %v274 = vld [vmem:[%s1 + $0x320] sm:$0xf]
  %v275 = vld [vmem:[%s1 + $0x324] sm:$0xf]
  %v276 = vld [vmem:[%s1 + $0x328] sm:$0xf]
  %v277 = vld [vmem:[%s1 + $0x32c] sm:$0xf]
  %v278 = vld [vmem:[%s1 + $0x330] sm:$0xf]
  %v279 = vld [vmem:[%s1 + $0x334] sm:$0xf]
  %v280 = vld [vmem:[%s1 + $0x338] sm:$0xf]
  %v281 = vld [vmem:[%s1 + $0x33c] sm:$0xf]
  %v282 = vld [vmem:[%s1 + $0x340] sm:$0xf]
  %v283 = vld [vmem:[%s1 + $0x344] sm:$0xf]
  %v284 = vld [vmem:[%s1 + $0x348] sm:$0xf]
  %v285 = vld [vmem:[%s1 + $0x34c] sm:$0xf]
  %v286 = vld [vmem:[%s1 + $0x350] sm:$0xf]
  %v287 = vld [vmem:[%s1 + $0x354] sm:$0xf]
  %v288 = vld [vmem:[%s1 + $0x358] sm:$0xf]
  %v289 = vld [vmem:[%s1 + $0x35c] sm:$0xf]
  %v346 = vunpack.c.l.b16 %v18
  %v347 = vunpack.c.h.b16 %v18
  %v348 = vunpack.c.l.b16 %v19
  %v349 = vunpack.c.h.b16 %v19
  %v350 = vunpack.c.l.b16 %v20
  %v351 = vunpack.c.h.b16 %v20
  %v352 = vunpack.c.l.b16 %v21
  %v353 = vunpack.c.h.b16 %v21
  %v354 = vunpack.c.l.b16 %v22
  %v355 = vunpack.c.h.b16 %v22
  %v356 = vunpack.c.l.b16 %v23
  %v357 = vunpack.c.h.b16 %v23
  %v358 = vunpack.c.l.b16 %v24
  %v359 = vunpack.c.h.b16 %v24
  %v360 = vunpack.c.l.b16 %v25
  %v361 = vunpack.c.h.b16 %v25
  %v362 = vunpack.c.l.b16 %v26
  %v363 = vunpack.c.h.b16 %v26
  %v364 = vunpack.c.l.b16 %v27
  %v365 = vunpack.c.h.b16 %v27
  %v366 = vunpack.c.l.b16 %v28
  %v367 = vunpack.c.h.b16 %v28
  %v368 = vunpack.c.l.b16 %v29
  %v369 = vunpack.c.h.b16 %v29
  %v370 = vunpack.c.l.b16 %v30
  %v371 = vunpack.c.h.b16 %v30
  %v372 = vunpack.c.l.b16 %v31
  %v373 = vunpack.c.h.b16 %v31
  %v374 = vunpack.c.l.b16 %v32
  %v375 = vunpack.c.h.b16 %v32
  %v376 = vunpack.c.l.b16 %v33
  %v377 = vunpack.c.h.b16 %v33
  %v378 = vunpack.c.l.b16 %v34
  %v379 = vunpack.c.h.b16 %v34
  %v380 = vunpack.c.l.b16 %v35
  %v381 = vunpack.c.h.b16 %v35
  %v382 = vunpack.c.l.b16 %v36
  %v383 = vunpack.c.h.b16 %v36
  %v384 = vunpack.c.l.b16 %v37
  %v385 = vunpack.c.h.b16 %v37
  %v386 = vunpack.c.l.b16 %v38
  %v387 = vunpack.c.h.b16 %v38
  %v388 = vunpack.c.l.b16 %v39
  %v389 = vunpack.c.h.b16 %v39
  %v390 = vunpack.c.l.b16 %v40
  %v391 = vunpack.c.h.b16 %v40
  %v392 = vunpack.c.l.b16 %v41
  %v393 = vunpack.c.h.b16 %v41
  %v394 = vunpack.c.l.b16 %v42
  %v395 = vunpack.c.h.b16 %v42
  %v396 = vunpack.c.l.b16 %v43
  %v397 = vunpack.c.h.b16 %v43
  %v398 = vunpack.c.l.b16 %v44
  %v399 = vunpack.c.h.b16 %v44
  %v400 = vunpack.c.l.b16 %v45
  %v401 = vunpack.c.h.b16 %v45
  %v402 = vunpack.c.l.b16 %v46
  %v403 = vunpack.c.h.b16 %v46
  %v404 = vunpack.c.l.b16 %v47
  %v405 = vunpack.c.h.b16 %v47
  %v406 = vunpack.c.l.b16 %v48
  %v407 = vunpack.c.h.b16 %v48
  %v408 = vunpack.c.l.b16 %v49
  %v409 = vunpack.c.h.b16 %v49
  %v410 = vunpack.c.l.b16 %v50
  %v411 = vunpack.c.h.b16 %v50
  %v412 = vunpack.c.l.b16 %v51
  %v413 = vunpack.c.h.b16 %v51
  %v414 = vunpack.c.l.b16 %v52
  %v415 = vunpack.c.h.b16 %v52
  %v416 = vunpack.c.l.b16 %v53
  %v417 = vunpack.c.h.b16 %v53
  %v418 = vunpack.c.l.b16 %v54
  %v419 = vunpack.c.h.b16 %v54
  %v420 = vunpack.c.l.b16 %v55
  %v421 = vunpack.c.h.b16 %v55
  %v422 = vunpack.c.l.b16 %v56
  %v423 = vunpack.c.h.b16 %v56
  %v424 = vunpack.c.l.b16 %v57
  %v425 = vunpack.c.h.b16 %v57
  %v426 = vunpack.c.l.b16 %v58
  %v427 = vunpack.c.h.b16 %v58
  %v428 = vunpack.c.l.b16 %v59
  %v429 = vunpack.c.h.b16 %v59
  %v430 = vunpack.c.l.b16 %v60
  %v431 = vunpack.c.h.b16 %v60
  %v432 = vunpack.c.l.b16 %v61
  %v433 = vunpack.c.h.b16 %v61
  %v434 = vunpack.c.l.b16 %v62
  %v435 = vunpack.c.h.b16 %v62
  %v436 = vunpack.c.l.b16 %v63
  %v437 = vunpack.c.h.b16 %v63
  %v438 = vunpack.c.l.b16 %v64
  %v439 = vunpack.c.h.b16 %v64
  %v440 = vunpack.c.l.b16 %v65
  %v441 = vunpack.c.h.b16 %v65
  %v442 = vunpack.c.l.b16 %v66
  %v443 = vunpack.c.h.b16 %v66
  %v444 = vunpack.c.l.b16 %v67
  %v445 = vunpack.c.h.b16 %v67
  %v446 = vunpack.c.l.b16 %v68
  %v447 = vunpack.c.h.b16 %v68
  %v448 = vunpack.c.l.b16 %v69
  %v449 = vunpack.c.h.b16 %v69
  %v450 = vunpack.c.l.b16 %v70
  %v451 = vunpack.c.h.b16 %v70
  %v452 = vunpack.c.l.b16 %v71
  %v453 = vunpack.c.h.b16 %v71
  %v454 = vunpack.c.l.b16 %v72
  %v455 = vunpack.c.h.b16 %v72
  %v456 = vunpack.c.l.b16 %v73
  %v457 = vunpack.c.h.b16 %v73
  %v458 = vpack.c.b16 %v360, %v346
  %v459 = vpack.c.b16 %v361, %v347
  %v460 = vpack.c.b16 %v362, %v348
  %v461 = vpack.c.b16 %v363, %v349
  %v462 = vpack.c.b16 %v364, %v350
  %v463 = vpack.c.b16 %v365, %v351
  %v464 = vpack.c.b16 %v366, %v352
  %v465 = vpack.c.b16 %v367, %v353
  %v466 = vpack.c.b16 %v368, %v354
  %v467 = vpack.c.b16 %v369, %v355
  %v468 = vpack.c.b16 %v370, %v356
  %v469 = vpack.c.b16 %v371, %v357
  %v470 = vpack.c.b16 %v372, %v358
  %v471 = vpack.c.b16 %v373, %v359
  %v472 = vpack.c.b16 %v388, %v374
  %v473 = vpack.c.b16 %v389, %v375
  %v474 = vpack.c.b16 %v390, %v376
  %v475 = vpack.c.b16 %v391, %v377
  %v476 = vpack.c.b16 %v392, %v378
  %v477 = vpack.c.b16 %v393, %v379
  %v478 = vpack.c.b16 %v394, %v380
  %v479 = vpack.c.b16 %v395, %v381
  %v480 = vpack.c.b16 %v396, %v382
  %v481 = vpack.c.b16 %v397, %v383
  %v482 = vpack.c.b16 %v398, %v384
  %v483 = vpack.c.b16 %v399, %v385
  %v484 = vpack.c.b16 %v400, %v386
  %v485 = vpack.c.b16 %v401, %v387
  %v486 = vpack.c.b16 %v416, %v402
  %v487 = vpack.c.b16 %v417, %v403
  %v488 = vpack.c.b16 %v418, %v404
  %v489 = vpack.c.b16 %v419, %v405
  %v490 = vpack.c.b16 %v420, %v406
  %v491 = vpack.c.b16 %v421, %v407
  %v492 = vpack.c.b16 %v422, %v408
  %v493 = vpack.c.b16 %v423, %v409
  %v494 = vpack.c.b16 %v424, %v410
  %v495 = vpack.c.b16 %v425, %v411
  %v496 = vpack.c.b16 %v426, %v412
  %v497 = vpack.c.b16 %v427, %v413
  %v498 = vpack.c.b16 %v428, %v414
  %v499 = vpack.c.b16 %v429, %v415
  %v500 = vpack.c.b16 %v444, %v430
  %v501 = vpack.c.b16 %v445, %v431
  %v502 = vpack.c.b16 %v446, %v432
  %v503 = vpack.c.b16 %v447, %v433
  %v504 = vpack.c.b16 %v448, %v434
  %v505 = vpack.c.b16 %v449, %v435
  %v506 = vpack.c.b16 %v450, %v436
  %v507 = vpack.c.b16 %v451, %v437
  %v508 = vpack.c.b16 %v452, %v438
  %v509 = vpack.c.b16 %v453, %v439
  %v510 = vpack.c.b16 %v454, %v440
  %v511 = vpack.c.b16 %v455, %v441
  %v512 = vpack.c.b16 %v456, %v442
  %v513 = vpack.c.b16 %v457, %v443
  %v782 = vunpack.c.l.b16 %v74
  %v783 = vunpack.c.l.b16 %v75
  %v784 = vunpack.c.l.b16 %v76
  %v785 = vunpack.c.l.b16 %v77
  %v786 = vunpack.c.l.b16 %v78
  %v787 = vunpack.c.l.b16 %v79
  %v788 = vunpack.c.l.b16 %v80
  %v789 = vunpack.c.l.b16 %v81
  %v790 = vunpack.c.l.b16 %v82
  %v791 = vunpack.c.l.b16 %v83
  %v792 = vunpack.c.l.b16 %v84
  %v793 = vunpack.c.l.b16 %v85
  %v794 = vunpack.c.l.b16 %v86
  %v795 = vunpack.c.l.b16 %v87
  %v796 = vunpack.c.l.b16 %v88
  %v797 = vunpack.c.l.b16 %v89
  %v798 = vunpack.c.l.b16 %v90
  %v799 = vunpack.c.l.b16 %v91
  %v800 = vunpack.c.l.b16 %v92
  %v801 = vunpack.c.l.b16 %v93
  %v802 = vunpack.c.l.b16 %v94
  %v803 = vunpack.c.l.b16 %v95
  %v804 = vunpack.c.l.b16 %v96
  %v805 = vunpack.c.l.b16 %v97
  %v806 = vunpack.c.l.b16 %v98
  %v807 = vunpack.c.l.b16 %v99
  %v808 = vunpack.c.l.b16 %v100
  %v809 = vunpack.c.l.b16 %v101
  %v810 = vunpack.c.l.b16 %v102
  %v811 = vunpack.c.l.b16 %v103
  %v812 = vunpack.c.l.b16 %v104
  %v813 = vunpack.c.l.b16 %v105
  %v814 = vunpack.c.l.b16 %v106
  %v815 = vunpack.c.l.b16 %v107
  %v816 = vunpack.c.l.b16 %v108
  %v817 = vunpack.c.l.b16 %v109
  %v818 = vunpack.c.l.b16 %v110
  %v819 = vunpack.c.l.b16 %v111
  %v820 = vunpack.c.l.b16 %v112
  %v821 = vunpack.c.l.b16 %v113
  %v822 = vunpack.c.l.b16 %v114
  %v823 = vunpack.c.l.b16 %v115
  %v824 = vunpack.c.l.b16 %v116
  %v825 = vunpack.c.l.b16 %v117
  %v826 = vunpack.c.l.b16 %v118
  %v827 = vunpack.c.l.b16 %v119
  %v828 = vunpack.c.l.b16 %v120
  %v829 = vunpack.c.l.b16 %v121
  %v830 = vunpack.c.l.b16 %v122
  %v831 = vunpack.c.l.b16 %v123
  %v832 = vunpack.c.l.b16 %v124
  %v833 = vunpack.c.l.b16 %v125
  %v834 = vunpack.c.l.b16 %v126
  %v835 = vunpack.c.l.b16 %v127
  %v836 = vunpack.c.l.b16 %v128
  %v837 = vunpack.c.l.b16 %v129
  %v838 = vunpack.c.l.b16 %v130
  %v839 = vunpack.c.l.b16 %v131
  %v840 = vunpack.c.l.b16 %v132
  %v841 = vunpack.c.l.b16 %v133
  %v842 = vunpack.c.l.b16 %v134
  %v843 = vunpack.c.l.b16 %v135
  %v844 = vunpack.c.l.b16 %v136
  %v845 = vunpack.c.l.b16 %v137
  %v846 = vunpack.c.l.b16 %v138
  %v847 = vunpack.c.l.b16 %v139
  %v848 = vunpack.c.l.b16 %v140
  %v849 = vunpack.c.l.b16 %v141
  %v850 = vunpack.c.l.b16 %v142
  %v851 = vunpack.c.l.b16 %v143
  %v852 = vunpack.c.l.b16 %v144
  %v853 = vunpack.c.l.b16 %v145
  %v854 = vunpack.c.l.b16 %v146
  %v855 = vunpack.c.l.b16 %v147
  %v856 = vunpack.c.l.b16 %v148
  %v857 = vunpack.c.l.b16 %v149
  %v858 = vunpack.c.l.b16 %v150
  %v859 = vunpack.c.l.b16 %v151
  %v860 = vunpack.c.l.b16 %v152
  %v861 = vunpack.c.l.b16 %v153
  %v862 = vunpack.c.l.b16 %v154
  %v863 = vunpack.c.l.b16 %v155
  %v864 = vunpack.c.l.b16 %v156
  %v865 = vunpack.c.l.b16 %v157
  %v866 = vunpack.c.l.b16 %v158
  %v867 = vunpack.c.l.b16 %v159
  %v868 = vunpack.c.l.b16 %v160
  %v869 = vunpack.c.l.b16 %v161
  %v870 = vunpack.c.l.b16 %v162
  %v871 = vunpack.c.l.b16 %v163
  %v872 = vunpack.c.l.b16 %v164
  %v873 = vunpack.c.l.b16 %v165
  %v874 = vunpack.c.l.b16 %v166
  %v875 = vunpack.c.l.b16 %v167
  %v876 = vunpack.c.l.b16 %v168
  %v877 = vunpack.c.l.b16 %v169
  %v878 = vunpack.c.l.b16 %v170
  %v879 = vunpack.c.l.b16 %v171
  %v880 = vunpack.c.l.b16 %v172
  %v881 = vunpack.c.l.b16 %v173
  %v882 = vunpack.c.l.b16 %v174
  %v883 = vunpack.c.l.b16 %v175
  %v884 = vunpack.c.l.b16 %v176
  %v885 = vunpack.c.l.b16 %v177
  %v886 = vunpack.c.l.b16 %v178
  %v887 = vunpack.c.l.b16 %v179
  %v888 = vunpack.c.l.b16 %v180
  %v889 = vunpack.c.l.b16 %v181
  %v890 = vunpack.c.l.b16 %v182
  %v891 = vunpack.c.l.b16 %v183
  %v892 = vunpack.c.l.b16 %v184
  %v893 = vunpack.c.l.b16 %v185
  %v894 = vunpack.c.l.b16 %v186
  %v895 = vunpack.c.l.b16 %v187
  %v896 = vunpack.c.l.b16 %v188
  %v897 = vunpack.c.l.b16 %v189
  %v898 = vunpack.c.l.b16 %v190
  %v899 = vunpack.c.l.b16 %v191
  %v900 = vunpack.c.l.b16 %v192
  %v901 = vunpack.c.l.b16 %v193
  %v902 = vunpack.c.l.b16 %v194
  %v903 = vunpack.c.l.b16 %v195
  %v904 = vunpack.c.l.b16 %v196
  %v905 = vunpack.c.l.b16 %v197
  %v906 = vunpack.c.l.b16 %v198
  %v907 = vunpack.c.l.b16 %v199
  %v908 = vunpack.c.l.b16 %v200
  %v909 = vunpack.c.l.b16 %v201
  %v910 = vunpack.c.l.b16 %v202
  %v911 = vunpack.c.l.b16 %v203
  %v912 = vunpack.c.l.b16 %v204
  %v913 = vunpack.c.l.b16 %v205
  %v914 = vunpack.c.l.b16 %v206
  %v915 = vunpack.c.l.b16 %v207
  %v916 = vunpack.c.l.b16 %v208
  %v917 = vunpack.c.l.b16 %v209
  %v918 = vunpack.c.l.b16 %v210
  %v919 = vunpack.c.l.b16 %v211
  %v920 = vunpack.c.l.b16 %v212
  %v921 = vunpack.c.l.b16 %v213
  %v922 = vunpack.c.l.b16 %v214
  %v923 = vunpack.c.l.b16 %v215
  %v924 = vunpack.c.l.b16 %v216
  %v925 = vunpack.c.l.b16 %v217
  %v926 = vunpack.c.l.b16 %v218
  %v927 = vunpack.c.l.b16 %v219
  %v928 = vunpack.c.l.b16 %v220
  %v929 = vunpack.c.l.b16 %v221
  %v930 = vunpack.c.l.b16 %v222
  %v931 = vunpack.c.l.b16 %v223
  %v932 = vunpack.c.l.b16 %v224
  %v933 = vunpack.c.l.b16 %v225
  %v934 = vunpack.c.l.b16 %v226
  %v935 = vunpack.c.l.b16 %v227
  %v936 = vunpack.c.l.b16 %v228
  %v937 = vunpack.c.l.b16 %v229
  %v938 = vunpack.c.l.b16 %v230
  %v939 = vunpack.c.l.b16 %v231
  %v940 = vunpack.c.l.b16 %v232
  %v941 = vunpack.c.l.b16 %v233
  %v942 = vunpack.c.l.b16 %v234
  %v943 = vunpack.c.l.b16 %v235
  %v944 = vunpack.c.l.b16 %v236
  %v945 = vunpack.c.l.b16 %v237
  %v946 = vunpack.c.l.b16 %v238
  %v947 = vunpack.c.l.b16 %v239
  %v948 = vunpack.c.l.b16 %v240
  %v949 = vunpack.c.l.b16 %v241
  %v950 = vunpack.c.l.b16 %v242
  %v951 = vunpack.c.l.b16 %v243
  %v952 = vunpack.c.l.b16 %v244
  %v953 = vunpack.c.l.b16 %v245
  %v954 = vunpack.c.l.b16 %v246
  %v955 = vunpack.c.l.b16 %v247
  %v956 = vunpack.c.l.b16 %v248
  %v957 = vunpack.c.l.b16 %v249
  %v958 = vunpack.c.l.b16 %v250
  %v959 = vunpack.c.l.b16 %v251
  %v960 = vunpack.c.l.b16 %v252
  %v961 = vunpack.c.l.b16 %v253
  %v962 = vunpack.c.l.b16 %v254
  %v963 = vunpack.c.l.b16 %v255
  %v964 = vunpack.c.l.b16 %v256
  %v965 = vunpack.c.l.b16 %v257
  %v966 = vunpack.c.l.b16 %v258
  %v967 = vunpack.c.l.b16 %v259
  %v968 = vunpack.c.l.b16 %v260
  %v969 = vunpack.c.l.b16 %v261
  %v970 = vunpack.c.l.b16 %v262
  %v971 = vunpack.c.l.b16 %v263
  %v972 = vunpack.c.l.b16 %v264
  %v973 = vunpack.c.l.b16 %v265
  %v974 = vunpack.c.l.b16 %v266
  %v975 = vunpack.c.l.b16 %v267
  %v976 = vunpack.c.l.b16 %v268
  %v977 = vunpack.c.l.b16 %v269
  %v978 = vunpack.c.l.b16 %v270
  %v979 = vunpack.c.l.b16 %v271
  %v980 = vunpack.c.l.b16 %v272
  %v981 = vunpack.c.l.b16 %v273
  %v982 = vunpack.c.l.b16 %v274
  %v983 = vunpack.c.l.b16 %v275
  %v984 = vunpack.c.l.b16 %v276
  %v985 = vunpack.c.l.b16 %v277
  %v986 = vunpack.c.l.b16 %v278
  %v987 = vunpack.c.l.b16 %v279
  %v988 = vunpack.c.l.b16 %v280
  %v989 = vunpack.c.l.b16 %v281
  %v990 = vunpack.c.l.b16 %v282
  %v991 = vunpack.c.l.b16 %v283
  %v992 = vunpack.c.l.b16 %v284
  %v993 = vunpack.c.l.b16 %v285
  %v994 = vunpack.c.l.b16 %v286
  %v995 = vunpack.c.l.b16 %v287
  %v996 = vunpack.c.l.b16 %v288
  %v997 = vunpack.c.l.b16 %v289
  %v998 = vpack.c.b16 %v783, %v782
  %v999 = vpack.c.b16 %v785, %v784
  %v1000 = vpack.c.b16 %v787, %v786
  %v1001 = vpack.c.b16 %v789, %v788
  %v1002 = vpack.c.b16 %v791, %v790
  %v1003 = vpack.c.b16 %v793, %v792
  %v1004 = vpack.c.b16 %v795, %v794
  %v1005 = vpack.c.b16 %v797, %v796
  %v1006 = vpack.c.b16 %v799, %v798
  %v1007 = vpack.c.b16 %v801, %v800
  %v1008 = vpack.c.b16 %v803, %v802
  %v1009 = vpack.c.b16 %v805, %v804
  %v1010 = vpack.c.b16 %v807, %v806
  %v1011 = vpack.c.b16 %v809, %v808
  %v1012 = vpack.c.b16 %v811, %v810
  %v1013 = vpack.c.b16 %v813, %v812
  %v1014 = vpack.c.b16 %v815, %v814
  %v1015 = vpack.c.b16 %v817, %v816
  %v1016 = vpack.c.b16 %v819, %v818
  %v1017 = vpack.c.b16 %v821, %v820
  %v1018 = vpack.c.b16 %v823, %v822
  %v1019 = vpack.c.b16 %v825, %v824
  %v1020 = vpack.c.b16 %v827, %v826
  %v1021 = vpack.c.b16 %v829, %v828
  %v1022 = vpack.c.b16 %v831, %v830
  %v1023 = vpack.c.b16 %v833, %v832
  %v1024 = vpack.c.b16 %v835, %v834
  %v1025 = vpack.c.b16 %v837, %v836
  %v1026 = vpack.c.b16 %v839, %v838
  %v1027 = vpack.c.b16 %v841, %v840
  %v1028 = vpack.c.b16 %v843, %v842
  %v1029 = vpack.c.b16 %v845, %v844
  %v1030 = vpack.c.b16 %v847, %v846
  %v1031 = vpack.c.b16 %v849, %v848
  %v1032 = vpack.c.b16 %v851, %v850
  %v1033 = vpack.c.b16 %v853, %v852
  %v1034 = vpack.c.b16 %v855, %v854
  %v1035 = vpack.c.b16 %v857, %v856
  %v1036 = vpack.c.b16 %v859, %v858
  %v1037 = vpack.c.b16 %v861, %v860
  %v1038 = vpack.c.b16 %v863, %v862
  %v1039 = vpack.c.b16 %v865, %v864
  %v1040 = vpack.c.b16 %v867, %v866
  %v1041 = vpack.c.b16 %v869, %v868
  %v1042 = vpack.c.b16 %v871, %v870
  %v1043 = vpack.c.b16 %v873, %v872
  %v1044 = vpack.c.b16 %v875, %v874
  %v1045 = vpack.c.b16 %v877, %v876
  %v1046 = vpack.c.b16 %v879, %v878
  %v1047 = vpack.c.b16 %v881, %v880
  %v1048 = vpack.c.b16 %v883, %v882
  %v1049 = vpack.c.b16 %v885, %v884
  %v1050 = vpack.c.b16 %v887, %v886
  %v1051 = vpack.c.b16 %v889, %v888
  %v1052 = vpack.c.b16 %v891, %v890
  %v1053 = vpack.c.b16 %v893, %v892
  %v1054 = vpack.c.b16 %v895, %v894
  %v1055 = vpack.c.b16 %v897, %v896
  %v1056 = vpack.c.b16 %v899, %v898
  %v1057 = vpack.c.b16 %v901, %v900
  %v1058 = vpack.c.b16 %v903, %v902
  %v1059 = vpack.c.b16 %v905, %v904
  %v1060 = vpack.c.b16 %v907, %v906
  %v1061 = vpack.c.b16 %v909, %v908
  %v1062 = vpack.c.b16 %v911, %v910
  %v1063 = vpack.c.b16 %v913, %v912
  %v1064 = vpack.c.b16 %v915, %v914
  %v1065 = vpack.c.b16 %v917, %v916
  %v1066 = vpack.c.b16 %v919, %v918
  %v1067 = vpack.c.b16 %v921, %v920
  %v1068 = vpack.c.b16 %v923, %v922
  %v1069 = vpack.c.b16 %v925, %v924
  %v1070 = vpack.c.b16 %v927, %v926
  %v1071 = vpack.c.b16 %v929, %v928
  %v1072 = vpack.c.b16 %v931, %v930
  %v1073 = vpack.c.b16 %v933, %v932
  %v1074 = vpack.c.b16 %v935, %v934
  %v1075 = vpack.c.b16 %v937, %v936
  %v1076 = vpack.c.b16 %v939, %v938
  %v1077 = vpack.c.b16 %v941, %v940
  %v1078 = vpack.c.b16 %v943, %v942
  %v1079 = vpack.c.b16 %v945, %v944
  %v1080 = vpack.c.b16 %v947, %v946
  %v1081 = vpack.c.b16 %v949, %v948
  %v1082 = vpack.c.b16 %v951, %v950
  %v1083 = vpack.c.b16 %v953, %v952
  %v1084 = vpack.c.b16 %v955, %v954
  %v1085 = vpack.c.b16 %v957, %v956
  %v1086 = vpack.c.b16 %v959, %v958
  %v1087 = vpack.c.b16 %v961, %v960
  %v1088 = vpack.c.b16 %v963, %v962
  %v1089 = vpack.c.b16 %v965, %v964
  %v1090 = vpack.c.b16 %v967, %v966
  %v1091 = vpack.c.b16 %v969, %v968
  %v1092 = vpack.c.b16 %v971, %v970
  %v1093 = vpack.c.b16 %v973, %v972
  %v1094 = vpack.c.b16 %v975, %v974
  %v1095 = vpack.c.b16 %v977, %v976
  %v1096 = vpack.c.b16 %v979, %v978
  %v1097 = vpack.c.b16 %v981, %v980
  %v1098 = vpack.c.b16 %v983, %v982
  %v1099 = vpack.c.b16 %v985, %v984
  %v1100 = vpack.c.b16 %v987, %v986
  %v1101 = vpack.c.b16 %v989, %v988
  %v1102 = vpack.c.b16 %v991, %v990
  %v1103 = vpack.c.b16 %v993, %v992
  %v1104 = vpack.c.b16 %v995, %v994
  %v1105 = vpack.c.b16 %v997, %v996
  %vm1214 = vcmask 523264
  %v1216 = vsel %vm1214, %v471, 0
  %v1219 = vsel %vm1214, %v485, 0
  %v1222 = vsel %vm1214, %v499, 0
  %v1225 = vsel %vm1214, %v513, 0
  %1227 = vmatprep.subr.bf16.mxu0 0
  %1228 = vmatpush1.bf16.msra.mxu0 %v1005
  %1229 = vmatprep.subr.bf16.mxu0 0
  %1230 = vmatpush1.bf16.msra.mxu0 %v1004
  %1231 = vmatprep.subr.bf16.mxu0 0
  %1232 = vmatpush1.bf16.msra.mxu0 %v1003
  %1233 = vmatprep.subr.bf16.mxu0 0
  %1234 = vmatpush1.bf16.msra.mxu0 %v1002
  %1235 = vmatprep.subr.bf16.mxu0 0
  %1236 = vmatpush1.bf16.msra.mxu0 %v1001
  %1237 = vmatprep.subr.bf16.mxu0 0
  %1238 = vmatpush1.bf16.msra.mxu0 %v1000
  %1239 = vmatprep.subr.bf16.mxu0 0
  %1240 = vmatpush1.bf16.msra.mxu0 %v999
  %1241 = vmatprep.subr.bf16.mxu0 0
  %1242 = vmatpush1.bf16.msra.mxu0 %v998
  %1243 = vmatprep.subr.bf16.mxu0 0
  %1244 = vmatpush2.bf16.msra.mxu0 %v1013
  %1245 = vmatprep.subr.bf16.mxu0 0
  %1246 = vmatpush2.bf16.msra.mxu0 %v1012
  %1247 = vmatprep.subr.bf16.mxu0 0
  %1248 = vmatpush2.bf16.msra.mxu0 %v1011
  %1249 = vmatprep.subr.bf16.mxu0 0
  %1250 = vmatpush2.bf16.msra.mxu0 %v1010
  %1251 = vmatprep.subr.bf16.mxu0 0
  %1252 = vmatpush2.bf16.msra.mxu0 %v1009
  %1253 = vmatprep.subr.bf16.mxu0 0
  %1254 = vmatpush2.bf16.msra.mxu0 %v1008
  %1255 = vmatprep.subr.bf16.mxu0 0
  %1256 = vmatpush2.bf16.msra.mxu0 %v1007
  %1257 = vmatprep.subr.bf16.mxu0 0
  %1258 = vmatpush2.bf16.msra.mxu0 %v1006
  %1259 = vmatprep.mubr.bf16.mxu0 %v459
  %1260 = vmatmul.mubr.bf16.gmra.mxu0 %v458
  %v1261 = vpop.f32.mrf.mxu0
  %v1262 = vadd.f32 0.0, %v1261
  %v1263 = vpop.f32.mrf.mxu0
  %v1264 = vpop.f32.mrf.mxu0
  %v1265 = vadd.f32 0.0, %v1264
  %v1266 = vpop.f32.mrf.mxu0
  %1267 = vmatprep.mubr.bf16.mxu0 %v473
  %1268 = vmatmul.mubr.bf16.gmra.mxu0 %v472
  %v1269 = vpop.f32.mrf.mxu0
  %v1270 = vadd.f32 0.0, %v1269
  %v1271 = vpop.f32.mrf.mxu0
  %v1272 = vpop.f32.mrf.mxu0
  %v1273 = vadd.f32 0.0, %v1272
  %v1274 = vpop.f32.mrf.mxu0
  %1275 = vmatprep.mubr.bf16.mxu0 %v487
  %1276 = vmatmul.mubr.bf16.gmra.mxu0 %v486
  %v1277 = vpop.f32.mrf.mxu0
  %v1278 = vadd.f32 0.0, %v1277
  %v1279 = vpop.f32.mrf.mxu0
  %v1280 = vpop.f32.mrf.mxu0
  %v1281 = vadd.f32 0.0, %v1280
  %v1282 = vpop.f32.mrf.mxu0
  %1283 = vmatprep.mubr.bf16.mxu0 %v501
  %1284 = vmatmul.mubr.bf16.gmra.mxu0 %v500
  %v1285 = vpop.f32.mrf.mxu0
  %v1286 = vadd.f32 0.0, %v1285
  %v1287 = vpop.f32.mrf.mxu0
  %v1288 = vpop.f32.mrf.mxu0
  %v1289 = vadd.f32 0.0, %v1288
  %v1290 = vpop.f32.mrf.mxu0
  %1291 = vdwg.mxu0
  %1292 = vmatprep.subr.bf16.mxu0 0
  %1293 = vmatpush1.bf16.msra.mxu0 %v1021
  %1294 = vmatprep.subr.bf16.mxu0 0
  %1295 = vmatpush1.bf16.msra.mxu0 %v1020
  %1296 = vmatprep.subr.bf16.mxu0 0
  %1297 = vmatpush1.bf16.msra.mxu0 %v1019
  %1298 = vmatprep.subr.bf16.mxu0 0
  %1299 = vmatpush1.bf16.msra.mxu0 %v1018
  %1300 = vmatprep.subr.bf16.mxu0 0
  %1301 = vmatpush1.bf16.msra.mxu0 %v1017
  %1302 = vmatprep.subr.bf16.mxu0 0
  %1303 = vmatpush1.bf16.msra.mxu0 %v1016
  %1304 = vmatprep.subr.bf16.mxu0 0
  %1305 = vmatpush1.bf16.msra.mxu0 %v1015
  %1306 = vmatprep.subr.bf16.mxu0 0
  %1307 = vmatpush1.bf16.msra.mxu0 %v1014
  %1308 = vmatprep.subr.bf16.mxu0 0
  %1309 = vmatpush2.bf16.msra.mxu0 %v1029
  %1310 = vmatprep.subr.bf16.mxu0 0
  %1311 = vmatpush2.bf16.msra.mxu0 %v1028
  %1312 = vmatprep.subr.bf16.mxu0 0
  %1313 = vmatpush2.bf16.msra.mxu0 %v1027
  %1314 = vmatprep.subr.bf16.mxu0 0
  %1315 = vmatpush2.bf16.msra.mxu0 %v1026
  %1316 = vmatprep.subr.bf16.mxu0 0
  %1317 = vmatpush2.bf16.msra.mxu0 %v1025
  %1318 = vmatprep.subr.bf16.mxu0 0
  %1319 = vmatpush2.bf16.msra.mxu0 %v1024
  %1320 = vmatprep.subr.bf16.mxu0 0
  %1321 = vmatpush2.bf16.msra.mxu0 %v1023
  %1322 = vmatprep.subr.bf16.mxu0 0
  %1323 = vmatpush2.bf16.msra.mxu0 %v1022
  %1324 = vmatprep.mubr.bf16.mxu0 %v461
  %1325 = vmatmul.mubr.bf16.gmra.mxu0 %v460
  %v1326 = vpop.f32.mrf.mxu0
  %v1327 = vadd.f32 %v1262, %v1326
  %v1328 = vpop.f32.mrf.mxu0
  %v1329 = vpop.f32.mrf.mxu0
  %v1330 = vadd.f32 %v1265, %v1329
  %v1331 = vpop.f32.mrf.mxu0
  %1332 = vmatprep.mubr.bf16.mxu0 %v475
  %1333 = vmatmul.mubr.bf16.gmra.mxu0 %v474
  %v1334 = vpop.f32.mrf.mxu0
  %v1335 = vadd.f32 %v1270, %v1334
  %v1336 = vpop.f32.mrf.mxu0
  %v1337 = vpop.f32.mrf.mxu0
  %v1338 = vadd.f32 %v1273, %v1337
  %v1339 = vpop.f32.mrf.mxu0
  %1340 = vmatprep.mubr.bf16.mxu0 %v489
  %1341 = vmatmul.mubr.bf16.gmra.mxu0 %v488
  %v1342 = vpop.f32.mrf.mxu0
  %v1343 = vadd.f32 %v1278, %v1342
  %v1344 = vpop.f32.mrf.mxu0
  %v1345 = vpop.f32.mrf.mxu0
  %v1346 = vadd.f32 %v1281, %v1345
  %v1347 = vpop.f32.mrf.mxu0
  %1348 = vmatprep.mubr.bf16.mxu0 %v503
  %1349 = vmatmul.mubr.bf16.gmra.mxu0 %v502
  %v1350 = vpop.f32.mrf.mxu0
  %v1351 = vadd.f32 %v1286, %v1350
  %v1352 = vpop.f32.mrf.mxu0
  %v1353 = vpop.f32.mrf.mxu0
  %v1354 = vadd.f32 %v1289, %v1353
  %v1355 = vpop.f32.mrf.mxu0
  %1356 = vdwg.mxu0
  %1357 = vmatprep.subr.bf16.mxu0 0
  %1358 = vmatpush1.bf16.msra.mxu0 %v1037
  %1359 = vmatprep.subr.bf16.mxu0 0
  %1360 = vmatpush1.bf16.msra.mxu0 %v1036
  %1361 = vmatprep.subr.bf16.mxu0 0
  %1362 = vmatpush1.bf16.msra.mxu0 %v1035
  %1363 = vmatprep.subr.bf16.mxu0 0
  %1364 = vmatpush1.bf16.msra.mxu0 %v1034
  %1365 = vmatprep.subr.bf16.mxu0 0
  %1366 = vmatpush1.bf16.msra.mxu0 %v1033
  %1367 = vmatprep.subr.bf16.mxu0 0
  %1368 = vmatpush1.bf16.msra.mxu0 %v1032
  %1369 = vmatprep.subr.bf16.mxu0 0
  %1370 = vmatpush1.bf16.msra.mxu0 %v1031
  %1371 = vmatprep.subr.bf16.mxu0 0
  %1372 = vmatpush1.bf16.msra.mxu0 %v1030
  %1373 = vmatprep.subr.bf16.mxu0 0
  %1374 = vmatpush2.bf16.msra.mxu0 %v1045
  %1375 = vmatprep.subr.bf16.mxu0 0
  %1376 = vmatpush2.bf16.msra.mxu0 %v1044
  %1377 = vmatprep.subr.bf16.mxu0 0
  %1378 = vmatpush2.bf16.msra.mxu0 %v1043
  %1379 = vmatprep.subr.bf16.mxu0 0
  %1380 = vmatpush2.bf16.msra.mxu0 %v1042
  %1381 = vmatprep.subr.bf16.mxu0 0
  %1382 = vmatpush2.bf16.msra.mxu0 %v1041
  %1383 = vmatprep.subr.bf16.mxu0 0
  %1384 = vmatpush2.bf16.msra.mxu0 %v1040
  %1385 = vmatprep.subr.bf16.mxu0 0
  %1386 = vmatpush2.bf16.msra.mxu0 %v1039
  %1387 = vmatprep.subr.bf16.mxu0 0
  %1388 = vmatpush2.bf16.msra.mxu0 %v1038
  %1389 = vmatprep.mubr.bf16.mxu0 %v463
  %1390 = vmatmul.mubr.bf16.gmra.mxu0 %v462
  %v1391 = vpop.f32.mrf.mxu0
  %v1392 = vadd.f32 %v1327, %v1391
  %v1393 = vpop.f32.mrf.mxu0
  %v1394 = vpop.f32.mrf.mxu0
  %v1395 = vadd.f32 %v1330, %v1394
  %v1396 = vpop.f32.mrf.mxu0
  %1397 = vmatprep.mubr.bf16.mxu0 %v477
  %1398 = vmatmul.mubr.bf16.gmra.mxu0 %v476
  %v1399 = vpop.f32.mrf.mxu0
  %v1400 = vadd.f32 %v1335, %v1399
  %v1401 = vpop.f32.mrf.mxu0
  %v1402 = vpop.f32.mrf.mxu0
  %v1403 = vadd.f32 %v1338, %v1402
  %v1404 = vpop.f32.mrf.mxu0
  %1405 = vmatprep.mubr.bf16.mxu0 %v491
  %1406 = vmatmul.mubr.bf16.gmra.mxu0 %v490
  %v1407 = vpop.f32.mrf.mxu0
  %v1408 = vadd.f32 %v1343, %v1407
  %v1409 = vpop.f32.mrf.mxu0
  %v1410 = vpop.f32.mrf.mxu0
  %v1411 = vadd.f32 %v1346, %v1410
  %v1412 = vpop.f32.mrf.mxu0
  %1413 = vmatprep.mubr.bf16.mxu0 %v505
  %1414 = vmatmul.mubr.bf16.gmra.mxu0 %v504
  %v1415 = vpop.f32.mrf.mxu0
  %v1416 = vadd.f32 %v1351, %v1415
  %v1417 = vpop.f32.mrf.mxu0
  %v1418 = vpop.f32.mrf.mxu0
  %v1419 = vadd.f32 %v1354, %v1418
  %v1420 = vpop.f32.mrf.mxu0
  %1421 = vdwg.mxu0
  %1422 = vmatprep.subr.bf16.mxu0 0
  %1423 = vmatpush1.bf16.msra.mxu0 %v1053
  %1424 = vmatprep.subr.bf16.mxu0 0
  %1425 = vmatpush1.bf16.msra.mxu0 %v1052
  %1426 = vmatprep.subr.bf16.mxu0 0
  %1427 = vmatpush1.bf16.msra.mxu0 %v1051
  %1428 = vmatprep.subr.bf16.mxu0 0
  %1429 = vmatpush1.bf16.msra.mxu0 %v1050
  %1430 = vmatprep.subr.bf16.mxu0 0
  %1431 = vmatpush1.bf16.msra.mxu0 %v1049
  %1432 = vmatprep.subr.bf16.mxu0 0
  %1433 = vmatpush1.bf16.msra.mxu0 %v1048
  %1434 = vmatprep.subr.bf16.mxu0 0
  %1435 = vmatpush1.bf16.msra.mxu0 %v1047
  %1436 = vmatprep.subr.bf16.mxu0 0
  %1437 = vmatpush1.bf16.msra.mxu0 %v1046
  %1438 = vmatprep.subr.bf16.mxu0 0
  %1439 = vmatpush2.bf16.msra.mxu0 %v1061
  %1440 = vmatprep.subr.bf16.mxu0 0
  %1441 = vmatpush2.bf16.msra.mxu0 %v1060
  %1442 = vmatprep.subr.bf16.mxu0 0
  %1443 = vmatpush2.bf16.msra.mxu0 %v1059
  %1444 = vmatprep.subr.bf16.mxu0 0
  %1445 = vmatpush2.bf16.msra.mxu0 %v1058
  %1446 = vmatprep.subr.bf16.mxu0 0
  %1447 = vmatpush2.bf16.msra.mxu0 %v1057
  %1448 = vmatprep.subr.bf16.mxu0 0
  %1449 = vmatpush2.bf16.msra.mxu0 %v1056
  %1450 = vmatprep.subr.bf16.mxu0 0
  %1451 = vmatpush2.bf16.msra.mxu0 %v1055
  %1452 = vmatprep.subr.bf16.mxu0 0
  %1453 = vmatpush2.bf16.msra.mxu0 %v1054
  %1454 = vmatprep.mubr.bf16.mxu0 %v465
  %1455 = vmatmul.mubr.bf16.gmra.mxu0 %v464
  %v1456 = vpop.f32.mrf.mxu0
  %v1457 = vadd.f32 %v1392, %v1456
  %v1458 = vpop.f32.mrf.mxu0
  %v1459 = vpop.f32.mrf.mxu0
  %v1460 = vadd.f32 %v1395, %v1459
  %v1461 = vpop.f32.mrf.mxu0
  %1462 = vmatprep.mubr.bf16.mxu0 %v479
  %1463 = vmatmul.mubr.bf16.gmra.mxu0 %v478
  %v1464 = vpop.f32.mrf.mxu0
  %v1465 = vadd.f32 %v1400, %v1464
  %v1466 = vpop.f32.mrf.mxu0
  %v1467 = vpop.f32.mrf.mxu0
  %v1468 = vadd.f32 %v1403, %v1467
  %v1469 = vpop.f32.mrf.mxu0
  %1470 = vmatprep.mubr.bf16.mxu0 %v493
  %1471 = vmatmul.mubr.bf16.gmra.mxu0 %v492
  %v1472 = vpop.f32.mrf.mxu0
  %v1473 = vadd.f32 %v1408, %v1472
  %v1474 = vpop.f32.mrf.mxu0
  %v1475 = vpop.f32.mrf.mxu0
  %v1476 = vadd.f32 %v1411, %v1475
  %v1477 = vpop.f32.mrf.mxu0
  %1478 = vmatprep.mubr.bf16.mxu0 %v507
  %1479 = vmatmul.mubr.bf16.gmra.mxu0 %v506
  %v1480 = vpop.f32.mrf.mxu0
  %v1481 = vadd.f32 %v1416, %v1480
  %v1482 = vpop.f32.mrf.mxu0
  %v1483 = vpop.f32.mrf.mxu0
  %v1484 = vadd.f32 %v1419, %v1483
  %v1485 = vpop.f32.mrf.mxu0
  %1486 = vdwg.mxu0
  %1487 = vmatprep.subr.bf16.mxu0 0
  %1488 = vmatpush1.bf16.msra.mxu0 %v1069
  %1489 = vmatprep.subr.bf16.mxu0 0
  %1490 = vmatpush1.bf16.msra.mxu0 %v1068
  %1491 = vmatprep.subr.bf16.mxu0 0
  %1492 = vmatpush1.bf16.msra.mxu0 %v1067
  %1493 = vmatprep.subr.bf16.mxu0 0
  %1494 = vmatpush1.bf16.msra.mxu0 %v1066
  %1495 = vmatprep.subr.bf16.mxu0 0
  %1496 = vmatpush1.bf16.msra.mxu0 %v1065
  %1497 = vmatprep.subr.bf16.mxu0 0
  %1498 = vmatpush1.bf16.msra.mxu0 %v1064
  %1499 = vmatprep.subr.bf16.mxu0 0
  %1500 = vmatpush1.bf16.msra.mxu0 %v1063
  %1501 = vmatprep.subr.bf16.mxu0 0
  %1502 = vmatpush1.bf16.msra.mxu0 %v1062
  %1503 = vmatprep.subr.bf16.mxu0 0
  %1504 = vmatpush2.bf16.msra.mxu0 %v1077
  %1505 = vmatprep.subr.bf16.mxu0 0
  %1506 = vmatpush2.bf16.msra.mxu0 %v1076
  %1507 = vmatprep.subr.bf16.mxu0 0
  %1508 = vmatpush2.bf16.msra.mxu0 %v1075
  %1509 = vmatprep.subr.bf16.mxu0 0
  %1510 = vmatpush2.bf16.msra.mxu0 %v1074
  %1511 = vmatprep.subr.bf16.mxu0 0
  %1512 = vmatpush2.bf16.msra.mxu0 %v1073
  %1513 = vmatprep.subr.bf16.mxu0 0
  %1514 = vmatpush2.bf16.msra.mxu0 %v1072
  %1515 = vmatprep.subr.bf16.mxu0 0
  %1516 = vmatpush2.bf16.msra.mxu0 %v1071
  %1517 = vmatprep.subr.bf16.mxu0 0
  %1518 = vmatpush2.bf16.msra.mxu0 %v1070
  %1519 = vmatprep.mubr.bf16.mxu0 %v467
  %1520 = vmatmul.mubr.bf16.gmra.mxu0 %v466
  %v1521 = vpop.f32.mrf.mxu0
  %v1522 = vadd.f32 %v1457, %v1521
  %v1523 = vpop.f32.mrf.mxu0
  %v1524 = vpop.f32.mrf.mxu0
  %v1525 = vadd.f32 %v1460, %v1524
  %v1526 = vpop.f32.mrf.mxu0
  %1527 = vmatprep.mubr.bf16.mxu0 %v481
  %1528 = vmatmul.mubr.bf16.gmra.mxu0 %v480
  %v1529 = vpop.f32.mrf.mxu0
  %v1530 = vadd.f32 %v1465, %v1529
  %v1531 = vpop.f32.mrf.mxu0
  %v1532 = vpop.f32.mrf.mxu0
  %v1533 = vadd.f32 %v1468, %v1532
  %v1534 = vpop.f32.mrf.mxu0
  %1535 = vmatprep.mubr.bf16.mxu0 %v495
  %1536 = vmatmul.mubr.bf16.gmra.mxu0 %v494
  %v1537 = vpop.f32.mrf.mxu0
  %v1538 = vadd.f32 %v1473, %v1537
  %v1539 = vpop.f32.mrf.mxu0
  %v1540 = vpop.f32.mrf.mxu0
  %v1541 = vadd.f32 %v1476, %v1540
  %v1542 = vpop.f32.mrf.mxu0
  %1543 = vmatprep.mubr.bf16.mxu0 %v509
  %1544 = vmatmul.mubr.bf16.gmra.mxu0 %v508
  %v1545 = vpop.f32.mrf.mxu0
  %v1546 = vadd.f32 %v1481, %v1545
  %v1547 = vpop.f32.mrf.mxu0
  %v1548 = vpop.f32.mrf.mxu0
  %v1549 = vadd.f32 %v1484, %v1548
  %v1550 = vpop.f32.mrf.mxu0
  %1551 = vdwg.mxu0
  %1552 = vmatprep.subr.bf16.mxu0 0
  %1553 = vmatpush1.bf16.msra.mxu0 %v1085
  %1554 = vmatprep.subr.bf16.mxu0 0
  %1555 = vmatpush1.bf16.msra.mxu0 %v1084
  %1556 = vmatprep.subr.bf16.mxu0 0
  %1557 = vmatpush1.bf16.msra.mxu0 %v1083
  %1558 = vmatprep.subr.bf16.mxu0 0
  %1559 = vmatpush1.bf16.msra.mxu0 %v1082
  %1560 = vmatprep.subr.bf16.mxu0 0
  %1561 = vmatpush1.bf16.msra.mxu0 %v1081
  %1562 = vmatprep.subr.bf16.mxu0 0
  %1563 = vmatpush1.bf16.msra.mxu0 %v1080
  %1564 = vmatprep.subr.bf16.mxu0 0
  %1565 = vmatpush1.bf16.msra.mxu0 %v1079
  %1566 = vmatprep.subr.bf16.mxu0 0
  %1567 = vmatpush1.bf16.msra.mxu0 %v1078
  %1568 = vmatprep.subr.bf16.mxu0 0
  %1569 = vmatpush2.bf16.msra.mxu0 %v1093
  %1570 = vmatprep.subr.bf16.mxu0 0
  %1571 = vmatpush2.bf16.msra.mxu0 %v1092
  %1572 = vmatprep.subr.bf16.mxu0 0
  %1573 = vmatpush2.bf16.msra.mxu0 %v1091
  %1574 = vmatprep.subr.bf16.mxu0 0
  %1575 = vmatpush2.bf16.msra.mxu0 %v1090
  %1576 = vmatprep.subr.bf16.mxu0 0
  %1577 = vmatpush2.bf16.msra.mxu0 %v1089
  %1578 = vmatprep.subr.bf16.mxu0 0
  %1579 = vmatpush2.bf16.msra.mxu0 %v1088
  %1580 = vmatprep.subr.bf16.mxu0 0
  %1581 = vmatpush2.bf16.msra.mxu0 %v1087
  %1582 = vmatprep.subr.bf16.mxu0 0
  %1583 = vmatpush2.bf16.msra.mxu0 %v1086
  %1584 = vmatprep.mubr.bf16.mxu0 %v469
  %1585 = vmatmul.mubr.bf16.gmra.mxu0 %v468
  %v1586 = vpop.f32.mrf.mxu0
  %v1587 = vadd.f32 %v1522, %v1586
  %v1588 = vpop.f32.mrf.mxu0
  %v1589 = vpop.f32.mrf.mxu0
  %v1590 = vadd.f32 %v1525, %v1589
  %v1591 = vpop.f32.mrf.mxu0
  %1592 = vmatprep.mubr.bf16.mxu0 %v483
  %1593 = vmatmul.mubr.bf16.gmra.mxu0 %v482
  %v1594 = vpop.f32.mrf.mxu0
  %v1595 = vadd.f32 %v1530, %v1594
  %v1596 = vpop.f32.mrf.mxu0
  %v1597 = vpop.f32.mrf.mxu0
  %v1598 = vadd.f32 %v1533, %v1597
  %v1599 = vpop.f32.mrf.mxu0
  %1600 = vmatprep.mubr.bf16.mxu0 %v497
  %1601 = vmatmul.mubr.bf16.gmra.mxu0 %v496
  %v1602 = vpop.f32.mrf.mxu0
  %v1603 = vadd.f32 %v1538, %v1602
  %v1604 = vpop.f32.mrf.mxu0
  %v1605 = vpop.f32.mrf.mxu0
  %v1606 = vadd.f32 %v1541, %v1605
  %v1607 = vpop.f32.mrf.mxu0
  %1608 = vmatprep.mubr.bf16.mxu0 %v511
  %1609 = vmatmul.mubr.bf16.gmra.mxu0 %v510
  %v1610 = vpop.f32.mrf.mxu0
  %v1611 = vadd.f32 %v1546, %v1610
  %v1612 = vpop.f32.mrf.mxu0
  %v1613 = vpop.f32.mrf.mxu0
  %v1614 = vadd.f32 %v1549, %v1613
  %v1615 = vpop.f32.mrf.mxu0
  %1616 = vdwg.mxu0
  %1617 = vmatprep.subr.bf16.mxu0 0
  %1618 = vmatpush1.bf16.msra.mxu0 %v1101
  %1619 = vmatprep.subr.bf16.mxu0 0
  %1620 = vmatpush1.bf16.msra.mxu0 %v1100
  %1621 = vmatprep.subr.bf16.mxu0 0
  %1622 = vmatpush1.bf16.msra.mxu0 %v1099
  %1623 = vmatprep.subr.bf16.mxu0 0
  %1624 = vmatpush1.bf16.msra.mxu0 %v1098
  %1625 = vmatprep.subr.bf16.mxu0 0
  %1626 = vmatpush1.bf16.msra.mxu0 %v1097
  %1627 = vmatprep.subr.bf16.mxu0 0
  %1628 = vmatpush1.bf16.msra.mxu0 %v1096
  %1629 = vmatprep.subr.bf16.mxu0 0
  %1630 = vmatpush1.bf16.msra.mxu0 %v1095
  %1631 = vmatprep.subr.bf16.mxu0 0
  %1632 = vmatpush1.bf16.msra.mxu0 %v1094
  %1633 = vmatprep.subr.bf16.mxu0 0
  %1634 = vmatpush2.bf16.msra.mxu0 0
  %1635 = vmatprep.subr.bf16.mxu0 0
  %1636 = vmatpush2.bf16.msra.mxu0 0
  %1637 = vmatprep.subr.bf16.mxu0 0
  %1638 = vmatpush2.bf16.msra.mxu0 0
  %1639 = vmatprep.subr.bf16.mxu0 0
  %1640 = vmatpush2.bf16.msra.mxu0 0
  %1641 = vmatprep.subr.bf16.mxu0 0
  %1642 = vmatpush2.bf16.msra.mxu0 %v1105
  %1643 = vmatprep.subr.bf16.mxu0 0
  %1644 = vmatpush2.bf16.msra.mxu0 %v1104
  %1645 = vmatprep.subr.bf16.mxu0 0
  %1646 = vmatpush2.bf16.msra.mxu0 %v1103
  %1647 = vmatprep.subr.bf16.mxu0 0
  %1648 = vmatpush2.bf16.msra.mxu0 %v1102
  %1649 = vmatprep.mubr.bf16.mxu0 %v1216
  %1650 = vmatmul.mubr.bf16.gmra.mxu0 %v470
  %v1651 = vpop.f32.mrf.mxu0
  %v1652 = vadd.f32 %v1587, %v1651
  %v1653 = vpop.f32.mrf.mxu0
  %v1654 = vpop.f32.mrf.mxu0
  %v1655 = vadd.f32 %v1590, %v1654
  %v1656 = vpop.f32.mrf.mxu0
  %1657 = vmatprep.mubr.bf16.mxu0 %v1219
  %1658 = vmatmul.mubr.bf16.gmra.mxu0 %v484
  %v1659 = vpop.f32.mrf.mxu0
  %v1660 = vadd.f32 %v1595, %v1659
  %v1661 = vpop.f32.mrf.mxu0
  %v1662 = vpop.f32.mrf.mxu0
  %v1663 = vadd.f32 %v1598, %v1662
  %v1664 = vpop.f32.mrf.mxu0
  %1665 = vmatprep.mubr.bf16.mxu0 %v1222
  %1666 = vmatmul.mubr.bf16.gmra.mxu0 %v498
  %v1667 = vpop.f32.mrf.mxu0
  %v1668 = vadd.f32 %v1603, %v1667
  %v1669 = vpop.f32.mrf.mxu0
  %v1670 = vpop.f32.mrf.mxu0
  %v1671 = vadd.f32 %v1606, %v1670
  %v1672 = vpop.f32.mrf.mxu0
  %1673 = vmatprep.mubr.bf16.mxu0 %v1225
  %1674 = vmatmul.mubr.bf16.gmra.mxu0 %v512
  %v1675 = vpop.f32.mrf.mxu0
  %v1676 = vadd.f32 %v1611, %v1675
  %v1677 = vpop.f32.mrf.mxu0
  %v1678 = vpop.f32.mrf.mxu0
  %v1679 = vadd.f32 %v1614, %v1678
  %v1680 = vpop.f32.mrf.mxu0
  %1681 = vdwg.mxu0
  %v1682 = vld [vmem:[%s2] sm:$0xff]
  %v1683 = vld [vmem:[%s2 + $0x8] sm:$0xff]
  %v1684 = vld [vmem:[%s2 + $0x10] sm:$0xff]
  %v1685 = vld [vmem:[%s2 + $0x18] sm:$0xff]
  %v1686 = vld [vmem:[%s2 + $0x20] sm:$0xff]
  %v1687 = vld [vmem:[%s2 + $0x28] sm:$0xff]
  %v1688 = vld [vmem:[%s2 + $0x30] sm:$0xff]
  %v1689 = vld [vmem:[%s2 + $0x38] sm:$0xff]
  %1691 = vset.pattern.permute.xlu0 0
  %1692 = vperm.xlu0 %1691, %v1682
  %v1693 = vpop.permute.xlu0 %1692
  %1696 = vset.pattern.permute.xlu0 0
  %1697 = vperm.xlu0 %1696, %v1683
  %v1698 = vpop.permute.xlu0 %1697
  %1701 = vset.pattern.permute.xlu0 0
  %1702 = vperm.xlu0 %1701, %v1684
  %v1703 = vpop.permute.xlu0 %1702
  %1706 = vset.pattern.permute.xlu0 0
  %1707 = vperm.xlu0 %1706, %v1685
  %v1708 = vpop.permute.xlu0 %1707
  %1711 = vset.pattern.permute.xlu0 0
  %1712 = vperm.xlu0 %1711, %v1686
  %v1713 = vpop.permute.xlu0 %1712
  %1716 = vset.pattern.permute.xlu0 0
  %1717 = vperm.xlu0 %1716, %v1687
  %v1718 = vpop.permute.xlu0 %1717
  %1721 = vset.pattern.permute.xlu0 0
  %1722 = vperm.xlu0 %1721, %v1688
  %v1723 = vpop.permute.xlu0 %1722
  %1726 = vset.pattern.permute.xlu0 0
  %1727 = vperm.xlu0 %1726, %v1689
  %v1728 = vpop.permute.xlu0 %1727
  %v1730 = vmul.f32 %v1652, %v1693
  %v1731 = vmul.f32 %v1655, %v1698
  %v1732 = vmul.f32 %v1660, %v1703
  %v1733 = vmul.f32 %v1663, %v1708
  %v1734 = vmul.f32 %v1668, %v1713
  %v1735 = vmul.f32 %v1671, %v1718
  %v1736 = vmul.f32 %v1676, %v1723
  %v1737 = vmul.f32 %v1679, %v1728
  %v1738 = vld [vmem:[%s3] sm:$0xff]
  %v1739 = vld [vmem:[%s3 + $0x8] sm:$0xff]
  %v1740 = vld [vmem:[%s3 + $0x10] sm:$0xff]
  %v1741 = vld [vmem:[%s3 + $0x18] sm:$0xff]
  %v1742 = vld [vmem:[%s3 + $0x20] sm:$0xff]
  %v1743 = vld [vmem:[%s3 + $0x28] sm:$0xff]
  %v1744 = vld [vmem:[%s3 + $0x30] sm:$0xff]
  %v1745 = vld [vmem:[%s3 + $0x38] sm:$0xff]
  %1747 = vset.pattern.permute.xlu0 0
  %1748 = vperm.xlu0 %1747, %v1738
  %v1749 = vpop.permute.xlu0 %1748
  %1752 = vset.pattern.permute.xlu0 0
  %1753 = vperm.xlu0 %1752, %v1739
  %v1754 = vpop.permute.xlu0 %1753
  %1757 = vset.pattern.permute.xlu0 0
  %1758 = vperm.xlu0 %1757, %v1740
  %v1759 = vpop.permute.xlu0 %1758
  %1762 = vset.pattern.permute.xlu0 0
  %1763 = vperm.xlu0 %1762, %v1741
  %v1764 = vpop.permute.xlu0 %1763
  %1767 = vset.pattern.permute.xlu0 0
  %1768 = vperm.xlu0 %1767, %v1742
  %v1769 = vpop.permute.xlu0 %1768
  %1772 = vset.pattern.permute.xlu0 0
  %1773 = vperm.xlu0 %1772, %v1743
  %v1774 = vpop.permute.xlu0 %1773
  %1777 = vset.pattern.permute.xlu0 0
  %1778 = vperm.xlu0 %1777, %v1744
  %v1779 = vpop.permute.xlu0 %1778
  %1782 = vset.pattern.permute.xlu0 0
  %1783 = vperm.xlu0 %1782, %v1745
  %v1784 = vpop.permute.xlu0 %1783
  %v1786 = vadd.f32 %v1730, %v1749
  %v1787 = vadd.f32 %v1731, %v1754
  %v1788 = vadd.f32 %v1732, %v1759
  %v1789 = vadd.f32 %v1733, %v1764
  %v1790 = vadd.f32 %v1734, %v1769
  %v1791 = vadd.f32 %v1735, %v1774
  %v1792 = vadd.f32 %v1736, %v1779
  %v1793 = vadd.f32 %v1737, %v1784
  %v1794 = vmax.f32 %v1786, 0.0
  %v1795 = vmax.f32 %v1787, 0.0
  %v1796 = vmax.f32 %v1788, 0.0
  %v1797 = vmax.f32 %v1789, 0.0
  %v1798 = vmax.f32 %v1790, 0.0
  %v1799 = vmax.f32 %v1791, 0.0
  %v1800 = vmax.f32 %v1792, 0.0
  %v1801 = vmax.f32 %v1793, 0.0
  %1802 = vst [vmem:[%s4] sm:$0xff] %v1794
  %1803 = vst [vmem:[%s4 + $0x8] sm:$0xff] %v1795
  %1804 = vst [vmem:[%s4 + $0x10] sm:$0xff] %v1796
  %1805 = vst [vmem:[%s4 + $0x18] sm:$0xff] %v1797
  %1806 = vst [vmem:[%s4 + $0x20] sm:$0xff] %v1798
  %1807 = vst [vmem:[%s4 + $0x28] sm:$0xff] %v1799
  %1808 = vst [vmem:[%s4 + $0x30] sm:$0xff] %v1800
  %1809 = vst [vmem:[%s4 + $0x38] sm:$0xff] %v1801
  // Predicated region
  $region18: #{cost_reg_net.38} parent=0 // pred_check
    _
  $region19: #{cost_reg_net.38} parent=0 // pred_check_branch
    %1811 = sbr.rel (0) target = $region21
  $region20: #{cost_reg_net.38} parent=0 // pred_region
    _
  $region21: #{cost_reg_net.38} parent=0 // pred_fallthru
    _
  // Predicated region
  $region22: #{cost_reg_net.38} parent=0 // pred_check
    _
  $region23: #{cost_reg_net.38} parent=0 // pred_check_branch
    %1813 = sbr.rel (0) target = $region25
  $region24: #{cost_reg_net.38} parent=0 // pred_region
    _
  $region25: #{cost_reg_net.38} parent=0 // pred_fallthru
    _

// kernel: cost_reg_net.39
$region0: #{cost_reg_net.39}
  #allocation0 [shape = 'u32[]', space=smem, size = 0x4, offset = 0x4, fixed_abs, tag = 'smem constant byte address 0x4 - core index']
  #allocation1 [shape = 'u32[144,128]{1,0:T(1,128)}', space=vmem, size = 0x12000, scoped, tag = 'internal scratch']
  %s0 = inlined_call_operand.vmem [shape: bf16[32,64], index: 0, kind: input, shape index: {}]
  %s1 = inlined_call_operand.vmem [shape: bf16[64,128], index: 1, kind: input, shape index: {}]
  %s2 = inlined_call_operand.vmem [shape: f32[32,1], index: 2, kind: input, shape index: {}]
  %s3 = inlined_call_operand.vmem [shape: f32[32,1], index: 3, kind: input, shape index: {}]
  %s4 = inlined_call_operand.vmem [shape: f32[32,128], index: 4, kind: output, shape index: {}]
  %s5 = sld [smem:[#allocation0]]
  $region26: #{cost_reg_net.39} parent=0
    _
  %s7 = ssub.s32 1, %s5
  %s8 = scalar_select 0, %s7, %s5
  // Predicated region
  $region2: #{cost_reg_net.39} parent=0 // pred_check
    _
  $region3: #{cost_reg_net.39} parent=0 // pred_check_branch
    %10 = sbr.rel (0) target = $region5
  $region4: #{cost_reg_net.39} parent=0 // pred_region
    _
  $region5: #{cost_reg_net.39} parent=0 // pred_fallthru
    _
  // Predicated region
  $region6: #{cost_reg_net.39} parent=0 // pred_check
    _
  $region7: #{cost_reg_net.39} parent=0 // pred_check_branch
    %12 = sbr.rel (0) target = $region9
  $region8: #{cost_reg_net.39} parent=0 // pred_region
    _
  $region9: #{cost_reg_net.39} parent=0 // pred_fallthru
    _
  // Predicated region
  $region10: #{cost_reg_net.39} parent=0 // pred_check
    _
  $region11: #{cost_reg_net.39} parent=0 // pred_check_branch
    %14 = sbr.rel (0) target = $region13
  $region12: #{cost_reg_net.39} parent=0 // pred_region
    _
  $region13: #{cost_reg_net.39} parent=0 // pred_fallthru
    _
  // Predicated region
  $region14: #{cost_reg_net.39} parent=0 // pred_check
    _
  $region15: #{cost_reg_net.39} parent=0 // pred_check_branch
    %16 = sbr.rel (0) target = $region17
  $region16: #{cost_reg_net.39} parent=0 // pred_region
    _
  $region17: #{cost_reg_net.39} parent=0 // pred_fallthru
    _
  %v18 = vld [vmem:[%s0] sm:$0xf]
  %v19 = vld [vmem:[%s0 + $0x4] sm:$0xf]
  %v20 = vld [vmem:[%s0 + $0x8] sm:$0xf]
  %v21 = vld [vmem:[%s0 + $0xc] sm:$0xf]
  %v22 = vld [vmem:[%s1] sm:$0xf]
  %v23 = vld [vmem:[%s1 + $0x4] sm:$0xf]
  %v24 = vld [vmem:[%s1 + $0x8] sm:$0xf]
  %v25 = vld [vmem:[%s1 + $0xc] sm:$0xf]
  %v26 = vld [vmem:[%s1 + $0x10] sm:$0xf]
  %v27 = vld [vmem:[%s1 + $0x14] sm:$0xf]
  %v28 = vld [vmem:[%s1 + $0x18] sm:$0xf]
  %v29 = vld [vmem:[%s1 + $0x1c] sm:$0xf]
  %v34 = vunpack.c.l.b16 %v18
  %v35 = vunpack.c.l.b16 %v19
  %v36 = vunpack.c.l.b16 %v20
  %v37 = vunpack.c.l.b16 %v21
  %v38 = vpack.c.b16 %v35, %v34
  %v39 = vpack.c.b16 %v37, %v36
  %v48 = vunpack.c.l.b16 %v22
  %v49 = vunpack.c.l.b16 %v23
  %v50 = vunpack.c.l.b16 %v24
  %v51 = vunpack.c.l.b16 %v25
  %v52 = vunpack.c.l.b16 %v26
  %v53 = vunpack.c.l.b16 %v27
  %v54 = vunpack.c.l.b16 %v28
  %v55 = vunpack.c.l.b16 %v29
  %v56 = vpack.c.b16 %v49, %v48
  %v57 = vpack.c.b16 %v51, %v50
  %v58 = vpack.c.b16 %v53, %v52
  %v59 = vpack.c.b16 %v55, %v54
  %vm64 = vcmask 523264
  %v66 = vsel %vm64, %v38, 0
  %v69 = vsel %vm64, %v39, 0
  %71 = vmatprep.subr.bf16.mxu0 0
  %72 = vmatpush1.bf16.msra.mxu0 0
  %73 = vmatprep.subr.bf16.mxu0 0
  %74 = vmatpush1.bf16.msra.mxu0 0
  %75 = vmatprep.subr.bf16.mxu0 0
  %76 = vmatpush1.bf16.msra.mxu0 0
  %77 = vmatprep.subr.bf16.mxu0 0
  %78 = vmatpush1.bf16.msra.mxu0 0
  %79 = vmatprep.subr.bf16.mxu0 0
  %80 = vmatpush1.bf16.msra.mxu0 %v59
  %81 = vmatprep.subr.bf16.mxu0 0
  %82 = vmatpush1.bf16.msra.mxu0 %v58
  %83 = vmatprep.subr.bf16.mxu0 0
  %84 = vmatpush1.bf16.msra.mxu0 %v57
  %85 = vmatprep.subr.bf16.mxu0 0
  %86 = vmatpush1.bf16.msra.mxu0 %v56
  %87 = vmatprep.subr.bf16.mxu0 0
  %88 = vmatpush2.bf16.msra.mxu0 0
  %89 = vmatprep.subr.bf16.mxu0 0
  %90 = vmatpush2.bf16.msra.mxu0 0
  %91 = vmatprep.subr.bf16.mxu0 0
  %92 = vmatpush2.bf16.msra.mxu0 0
  %93 = vmatprep.subr.bf16.mxu0 0
  %94 = vmatpush2.bf16.msra.mxu0 0
  %95 = vmatprep.subr.bf16.mxu0 0
  %96 = vmatpush2.bf16.msra.mxu0 0
  %97 = vmatprep.subr.bf16.mxu0 0
  %98 = vmatpush2.bf16.msra.mxu0 0
  %99 = vmatprep.subr.bf16.mxu0 0
  %100 = vmatpush2.bf16.msra.mxu0 0
  %101 = vmatprep.subr.bf16.mxu0 0
  %102 = vmatpush2.bf16.msra.mxu0 0
  %103 = vmatprep.mubr.bf16.mxu0 0
  %104 = vmatmul.mubr.bf16.gmra.mxu0 %v66
  %v105 = vpop.f32.mrf.mxu0
  %v106 = vadd.f32 0.0, %v105
  %v107 = vpop.f32.mrf.mxu0
  %v108 = vpop.f32.mrf.mxu0
  %v109 = vadd.f32 0.0, %v108
  %v110 = vpop.f32.mrf.mxu0
  %111 = vmatprep.mubr.bf16.mxu0 0
  %112 = vmatmul.mubr.bf16.gmra.mxu0 %v69
  %v113 = vpop.f32.mrf.mxu0
  %v114 = vadd.f32 0.0, %v113
  %v115 = vpop.f32.mrf.mxu0
  %v116 = vpop.f32.mrf.mxu0
  %v117 = vadd.f32 0.0, %v116
  %v118 = vpop.f32.mrf.mxu0
  %119 = vdwg.mxu0
  %v120 = vld [vmem:[%s2] sm:$0xff]
  %v121 = vld [vmem:[%s2 + $0x8] sm:$0xff]
  %v122 = vld [vmem:[%s2 + $0x10] sm:$0xff]
  %v123 = vld [vmem:[%s2 + $0x18] sm:$0xff]
  %125 = vset.pattern.permute.xlu0 0
  %126 = vperm.xlu0 %125, %v120
  %v127 = vpop.permute.xlu0 %126
  %130 = vset.pattern.permute.xlu0 0
  %131 = vperm.xlu0 %130, %v121
  %v132 = vpop.permute.xlu0 %131
  %135 = vset.pattern.permute.xlu0 0
  %136 = vperm.xlu0 %135, %v122
  %v137 = vpop.permute.xlu0 %136
  %140 = vset.pattern.permute.xlu0 0
  %141 = vperm.xlu0 %140, %v123
  %v142 = vpop.permute.xlu0 %141
  %v144 = vmul.f32 %v106, %v127
  %v145 = vmul.f32 %v109, %v132
  %v146 = vmul.f32 %v114, %v137
  %v147 = vmul.f32 %v117, %v142
  %v148 = vld [vmem:[%s3] sm:$0xff]
  %v149 = vld [vmem:[%s3 + $0x8] sm:$0xff]
  %v150 = vld [vmem:[%s3 + $0x10] sm:$0xff]
  %v151 = vld [vmem:[%s3 + $0x18] sm:$0xff]
  %153 = vset.pattern.permute.xlu0 0
  %154 = vperm.xlu0 %153, %v148
  %v155 = vpop.permute.xlu0 %154
  %158 = vset.pattern.permute.xlu0 0
  %159 = vperm.xlu0 %158, %v149
  %v160 = vpop.permute.xlu0 %159
  %163 = vset.pattern.permute.xlu0 0
  %164 = vperm.xlu0 %163, %v150
  %v165 = vpop.permute.xlu0 %164
  %168 = vset.pattern.permute.xlu0 0
  %169 = vperm.xlu0 %168, %v151
  %v170 = vpop.permute.xlu0 %169
  %v172 = vadd.f32 %v144, %v155
  %v173 = vadd.f32 %v145, %v160
  %v174 = vadd.f32 %v146, %v165
  %v175 = vadd.f32 %v147, %v170
  %176 = vst [vmem:[%s4] sm:$0xff] %v172
  %177 = vst [vmem:[%s4 + $0x8] sm:$0xff] %v173
  %178 = vst [vmem:[%s4 + $0x10] sm:$0xff] %v174
  %179 = vst [vmem:[%s4 + $0x18] sm:$0xff] %v175
  // Predicated region
  $region18: #{cost_reg_net.39} parent=0 // pred_check
    _
  $region19: #{cost_reg_net.39} parent=0 // pred_check_branch
    %181 = sbr.rel (0) target = $region21
  $region20: #{cost_reg_net.39} parent=0 // pred_region
    _
  $region21: #{cost_reg_net.39} parent=0 // pred_fallthru
    _
  // Predicated region
  $region22: #{cost_reg_net.39} parent=0 // pred_check
    _
  $region23: #{cost_reg_net.39} parent=0 // pred_check_branch
    %183 = sbr.rel (0) target = $region25
  $region24: #{cost_reg_net.39} parent=0 // pred_region
    _
  $region25: #{cost_reg_net.39} parent=0 // pred_fallthru
    _

// kernel: cost_reg_net.40
$region0: #{cost_reg_net.40}
  #allocation0 [shape = 'u32[]', space=smem, size = 0x4, offset = 0x4, fixed_abs, tag = 'smem constant byte address 0x4 - core index']
  #allocation1 [shape = 'u32[144,128]{1,0:T(1,128)}', space=vmem, size = 0x12000, scoped, tag = 'internal scratch']
  %s0 = inlined_call_operand.vmem [shape: bf16[32,128], index: 0, kind: input, shape index: {}]
  %s1 = inlined_call_operand.vmem [shape: bf16[128,128], index: 1, kind: input, shape index: {}]
  %s2 = inlined_call_operand.vmem [shape: f32[32,1], index: 2, kind: input, shape index: {}]
  %s3 = inlined_call_operand.vmem [shape: f32[32,1], index: 3, kind: input, shape index: {}]
  %s4 = inlined_call_operand.vmem [shape: f32[32,128], index: 4, kind: output, shape index: {}]
  %s5 = sld [smem:[#allocation0]]
  $region26: #{cost_reg_net.40} parent=0
    _
  %s7 = ssub.s32 1, %s5
  %s8 = scalar_select 0, %s7, %s5
  // Predicated region
  $region2: #{cost_reg_net.40} parent=0 // pred_check
    _
  $region3: #{cost_reg_net.40} parent=0 // pred_check_branch
    %10 = sbr.rel (0) target = $region5
  $region4: #{cost_reg_net.40} parent=0 // pred_region
    _
  $region5: #{cost_reg_net.40} parent=0 // pred_fallthru
    _
  // Predicated region
  $region6: #{cost_reg_net.40} parent=0 // pred_check
    _
  $region7: #{cost_reg_net.40} parent=0 // pred_check_branch
    %12 = sbr.rel (0) target = $region9
  $region8: #{cost_reg_net.40} parent=0 // pred_region
    _
  $region9: #{cost_reg_net.40} parent=0 // pred_fallthru
    _
  // Predicated region
  $region10: #{cost_reg_net.40} parent=0 // pred_check
    _
  $region11: #{cost_reg_net.40} parent=0 // pred_check_branch
    %14 = sbr.rel (0) target = $region13
  $region12: #{cost_reg_net.40} parent=0 // pred_region
    _
  $region13: #{cost_reg_net.40} parent=0 // pred_fallthru
    _
  // Predicated region
  $region14: #{cost_reg_net.40} parent=0 // pred_check
    _
  $region15: #{cost_reg_net.40} parent=0 // pred_check_branch
    %16 = sbr.rel (0) target = $region17
  $region16: #{cost_reg_net.40} parent=0 // pred_region
    _
  $region17: #{cost_reg_net.40} parent=0 // pred_fallthru
    _
  %v18 = vld [vmem:[%s0] sm:$0xf]
  %v19 = vld [vmem:[%s0 + $0x4] sm:$0xf]
  %v20 = vld [vmem:[%s0 + $0x8] sm:$0xf]
  %v21 = vld [vmem:[%s0 + $0xc] sm:$0xf]
  %v22 = vld [vmem:[%s1] sm:$0xf]
  %v23 = vld [vmem:[%s1 + $0x4] sm:$0xf]
  %v24 = vld [vmem:[%s1 + $0x8] sm:$0xf]
  %v25 = vld [vmem:[%s1 + $0xc] sm:$0xf]
  %v26 = vld [vmem:[%s1 + $0x10] sm:$0xf]
  %v27 = vld [vmem:[%s1 + $0x14] sm:$0xf]
  %v28 = vld [vmem:[%s1 + $0x18] sm:$0xf]
  %v29 = vld [vmem:[%s1 + $0x1c] sm:$0xf]
  %v30 = vld [vmem:[%s1 + $0x20] sm:$0xf]
  %v31 = vld [vmem:[%s1 + $0x24] sm:$0xf]
  %v32 = vld [vmem:[%s1 + $0x28] sm:$0xf]
  %v33 = vld [vmem:[%s1 + $0x2c] sm:$0xf]
  %v34 = vld [vmem:[%s1 + $0x30] sm:$0xf]
  %v35 = vld [vmem:[%s1 + $0x34] sm:$0xf]
  %v36 = vld [vmem:[%s1 + $0x38] sm:$0xf]
  %v37 = vld [vmem:[%s1 + $0x3c] sm:$0xf]
  %v42 = vunpack.c.l.b16 %v18
  %v43 = vunpack.c.l.b16 %v19
  %v44 = vunpack.c.l.b16 %v20
  %v45 = vunpack.c.l.b16 %v21
  %v46 = vpack.c.b16 %v43, %v42
  %v47 = vpack.c.b16 %v45, %v44
  %v66 = vunpack.c.l.b16 %v22
  %v67 = vunpack.c.l.b16 %v23
  %v68 = vunpack.c.l.b16 %v24
  %v69 = vunpack.c.l.b16 %v25
  %v70 = vunpack.c.l.b16 %v26
  %v71 = vunpack.c.l.b16 %v27
  %v72 = vunpack.c.l.b16 %v28
  %v73 = vunpack.c.l.b16 %v29
  %v74 = vunpack.c.l.b16 %v30
  %v75 = vunpack.c.l.b16 %v31
  %v76 = vunpack.c.l.b16 %v32
  %v77 = vunpack.c.l.b16 %v33
  %v78 = vunpack.c.l.b16 %v34
  %v79 = vunpack.c.l.b16 %v35
  %v80 = vunpack.c.l.b16 %v36
  %v81 = vunpack.c.l.b16 %v37
  %v82 = vpack.c.b16 %v67, %v66
  %v83 = vpack.c.b16 %v69, %v68
  %v84 = vpack.c.b16 %v71, %v70
  %v85 = vpack.c.b16 %v73, %v72
  %v86 = vpack.c.b16 %v75, %v74
  %v87 = vpack.c.b16 %v77, %v76
  %v88 = vpack.c.b16 %v79, %v78
  %v89 = vpack.c.b16 %v81, %v80
  %98 = vmatprep.subr.bf16.mxu0 0
  %99 = vmatpush1.bf16.msra.mxu0 %v89
  %100 = vmatprep.subr.bf16.mxu0 0
  %101 = vmatpush1.bf16.msra.mxu0 %v88
  %102 = vmatprep.subr.bf16.mxu0 0
  %103 = vmatpush1.bf16.msra.mxu0 %v87
  %104 = vmatprep.subr.bf16.mxu0 0
  %105 = vmatpush1.bf16.msra.mxu0 %v86
  %106 = vmatprep.subr.bf16.mxu0 0
  %107 = vmatpush1.bf16.msra.mxu0 %v85
  %108 = vmatprep.subr.bf16.mxu0 0
  %109 = vmatpush1.bf16.msra.mxu0 %v84
  %110 = vmatprep.subr.bf16.mxu0 0
  %111 = vmatpush1.bf16.msra.mxu0 %v83
  %112 = vmatprep.subr.bf16.mxu0 0
  %113 = vmatpush1.bf16.msra.mxu0 %v82
  %114 = vmatprep.subr.bf16.mxu0 0
  %115 = vmatpush2.bf16.msra.mxu0 0
  %116 = vmatprep.subr.bf16.mxu0 0
  %117 = vmatpush2.bf16.msra.mxu0 0
  %118 = vmatprep.subr.bf16.mxu0 0
  %119 = vmatpush2.bf16.msra.mxu0 0
  %120 = vmatprep.subr.bf16.mxu0 0
  %121 = vmatpush2.bf16.msra.mxu0 0
  %122 = vmatprep.subr.bf16.mxu0 0
  %123 = vmatpush2.bf16.msra.mxu0 0
  %124 = vmatprep.subr.bf16.mxu0 0
  %125 = vmatpush2.bf16.msra.mxu0 0
  %126 = vmatprep.subr.bf16.mxu0 0
  %127 = vmatpush2.bf16.msra.mxu0 0
  %128 = vmatprep.subr.bf16.mxu0 0
  %129 = vmatpush2.bf16.msra.mxu0 0
  %130 = vmatprep.mubr.bf16.mxu0 0
  %131 = vmatmul.mubr.bf16.gmra.mxu0 %v46
  %v132 = vpop.f32.mrf.mxu0
  %v133 = vadd.f32 0.0, %v132
  %v134 = vpop.f32.mrf.mxu0
  %v135 = vpop.f32.mrf.mxu0
  %v136 = vadd.f32 0.0, %v135
  %v137 = vpop.f32.mrf.mxu0
  %138 = vmatprep.mubr.bf16.mxu0 0
  %139 = vmatmul.mubr.bf16.gmra.mxu0 %v47
  %v140 = vpop.f32.mrf.mxu0
  %v141 = vadd.f32 0.0, %v140
  %v142 = vpop.f32.mrf.mxu0
  %v143 = vpop.f32.mrf.mxu0
  %v144 = vadd.f32 0.0, %v143
  %v145 = vpop.f32.mrf.mxu0
  %146 = vdwg.mxu0
  %v147 = vld [vmem:[%s2] sm:$0xff]
  %v148 = vld [vmem:[%s2 + $0x8] sm:$0xff]
  %v149 = vld [vmem:[%s2 + $0x10] sm:$0xff]
  %v150 = vld [vmem:[%s2 + $0x18] sm:$0xff]
  %152 = vset.pattern.permute.xlu0 0
  %153 = vperm.xlu0 %152, %v147
  %v154 = vpop.permute.xlu0 %153
  %157 = vset.pattern.permute.xlu0 0
  %158 = vperm.xlu0 %157, %v148
  %v159 = vpop.permute.xlu0 %158
  %162 = vset.pattern.permute.xlu0 0
  %163 = vperm.xlu0 %162, %v149
  %v164 = vpop.permute.xlu0 %163
  %167 = vset.pattern.permute.xlu0 0
  %168 = vperm.xlu0 %167, %v150
  %v169 = vpop.permute.xlu0 %168
  %v171 = vmul.f32 %v133, %v154
  %v172 = vmul.f32 %v136, %v159
  %v173 = vmul.f32 %v141, %v164
  %v174 = vmul.f32 %v144, %v169
  %v175 = vld [vmem:[%s3] sm:$0xff]
  %v176 = vld [vmem:[%s3 + $0x8] sm:$0xff]
  %v177 = vld [vmem:[%s3 + $0x10] sm:$0xff]
  %v178 = vld [vmem:[%s3 + $0x18] sm:$0xff]
  %180 = vset.pattern.permute.xlu0 0
  %181 = vperm.xlu0 %180, %v175
  %v182 = vpop.permute.xlu0 %181
  %185 = vset.pattern.permute.xlu0 0
  %186 = vperm.xlu0 %185, %v176
  %v187 = vpop.permute.xlu0 %186
  %190 = vset.pattern.permute.xlu0 0
  %191 = vperm.xlu0 %190, %v177
  %v192 = vpop.permute.xlu0 %191
  %195 = vset.pattern.permute.xlu0 0
  %196 = vperm.xlu0 %195, %v178
  %v197 = vpop.permute.xlu0 %196
  %v199 = vadd.f32 %v171, %v182
  %v200 = vadd.f32 %v172, %v187
  %v201 = vadd.f32 %v173, %v192
  %v202 = vadd.f32 %v174, %v197
  %203 = vst [vmem:[%s4] sm:$0xff] %v199
  %204 = vst [vmem:[%s4 + $0x8] sm:$0xff] %v200
  %205 = vst [vmem:[%s4 + $0x10] sm:$0xff] %v201
  %206 = vst [vmem:[%s4 + $0x18] sm:$0xff] %v202
  // Predicated region
  $region18: #{cost_reg_net.40} parent=0 // pred_check
    _
  $region19: #{cost_reg_net.40} parent=0 // pred_check_branch
    %208 = sbr.rel (0) target = $region21
  $region20: #{cost_reg_net.40} parent=0 // pred_region
    _
  $region21: #{cost_reg_net.40} parent=0 // pred_fallthru
    _
  // Predicated region
  $region22: #{cost_reg_net.40} parent=0 // pred_check
    _
  $region23: #{cost_reg_net.40} parent=0 // pred_check_branch
    %210 = sbr.rel (0) target = $region25
  $region24: #{cost_reg_net.40} parent=0 // pred_region
    _
  $region25: #{cost_reg_net.40} parent=0 // pred_fallthru
    _

// kernel: cost_reg_net.42
$region0: #{cost_reg_net.42}
  #allocation0 [shape = 'u32[]', space=smem, size = 0x4, offset = 0x4, fixed_abs, tag = 'smem constant byte address 0x4 - core index']
  #allocation1 [shape = 'u32[144,128]{1,0:T(1,128)}', space=vmem, size = 0x12000, scoped, tag = 'internal scratch']
  %s0 = inlined_call_operand.vmem [shape: bf16[32,256], index: 0, kind: input, shape index: {}]
  %s1 = inlined_call_operand.vmem [shape: bf16[256,128], index: 1, kind: input, shape index: {}]
  %s2 = inlined_call_operand.vmem [shape: f32[32,1], index: 2, kind: input, shape index: {}]
  %s3 = inlined_call_operand.vmem [shape: f32[32,1], index: 3, kind: input, shape index: {}]
  %s4 = inlined_call_operand.vmem [shape: f32[32,128], index: 4, kind: output, shape index: {}]
  %s5 = sld [smem:[#allocation0]]
  $region26: #{cost_reg_net.42} parent=0
    _
  %s7 = ssub.s32 1, %s5
  %s8 = scalar_select 0, %s7, %s5
  // Predicated region
  $region2: #{cost_reg_net.42} parent=0 // pred_check
    _
  $region3: #{cost_reg_net.42} parent=0 // pred_check_branch
    %10 = sbr.rel (0) target = $region5
  $region4: #{cost_reg_net.42} parent=0 // pred_region
    _
  $region5: #{cost_reg_net.42} parent=0 // pred_fallthru
    _
  // Predicated region
  $region6: #{cost_reg_net.42} parent=0 // pred_check
    _
  $region7: #{cost_reg_net.42} parent=0 // pred_check_branch
    %12 = sbr.rel (0) target = $region9
  $region8: #{cost_reg_net.42} parent=0 // pred_region
    _
  $region9: #{cost_reg_net.42} parent=0 // pred_fallthru
    _
  // Predicated region
  $region10: #{cost_reg_net.42} parent=0 // pred_check
    _
  $region11: #{cost_reg_net.42} parent=0 // pred_check_branch
    %14 = sbr.rel (0) target = $region13
  $region12: #{cost_reg_net.42} parent=0 // pred_region
    _
  $region13: #{cost_reg_net.42} parent=0 // pred_fallthru
    _
  // Predicated region
  $region14: #{cost_reg_net.42} parent=0 // pred_check
    _
  $region15: #{cost_reg_net.42} parent=0 // pred_check_branch
    %16 = sbr.rel (0) target = $region17
  $region16: #{cost_reg_net.42} parent=0 // pred_region
    _
  $region17: #{cost_reg_net.42} parent=0 // pred_fallthru
    _
  %v18 = vld [vmem:[%s0] sm:$0xff]
  %v19 = vld [vmem:[%s0 + $0x8] sm:$0xff]
  %v20 = vld [vmem:[%s0 + $0x10] sm:$0xff]
  %v21 = vld [vmem:[%s0 + $0x18] sm:$0xff]
  %v22 = vld [vmem:[%s1] sm:$0xf]
  %v23 = vld [vmem:[%s1 + $0x4] sm:$0xf]
  %v24 = vld [vmem:[%s1 + $0x8] sm:$0xf]
  %v25 = vld [vmem:[%s1 + $0xc] sm:$0xf]
  %v26 = vld [vmem:[%s1 + $0x10] sm:$0xf]
  %v27 = vld [vmem:[%s1 + $0x14] sm:$0xf]
  %v28 = vld [vmem:[%s1 + $0x18] sm:$0xf]
  %v29 = vld [vmem:[%s1 + $0x1c] sm:$0xf]
  %v30 = vld [vmem:[%s1 + $0x20] sm:$0xf]
  %v31 = vld [vmem:[%s1 + $0x24] sm:$0xf]
  %v32 = vld [vmem:[%s1 + $0x28] sm:$0xf]
  %v33 = vld [vmem:[%s1 + $0x2c] sm:$0xf]
  %v34 = vld [vmem:[%s1 + $0x30] sm:$0xf]
  %v35 = vld [vmem:[%s1 + $0x34] sm:$0xf]
  %v36 = vld [vmem:[%s1 + $0x38] sm:$0xf]
  %v37 = vld [vmem:[%s1 + $0x3c] sm:$0xf]
  %v38 = vld [vmem:[%s1 + $0x40] sm:$0xf]
  %v39 = vld [vmem:[%s1 + $0x44] sm:$0xf]
  %v40 = vld [vmem:[%s1 + $0x48] sm:$0xf]
  %v41 = vld [vmem:[%s1 + $0x4c] sm:$0xf]
  %v42 = vld [vmem:[%s1 + $0x50] sm:$0xf]
  %v43 = vld [vmem:[%s1 + $0x54] sm:$0xf]
  %v44 = vld [vmem:[%s1 + $0x58] sm:$0xf]
  %v45 = vld [vmem:[%s1 + $0x5c] sm:$0xf]
  %v46 = vld [vmem:[%s1 + $0x60] sm:$0xf]
  %v47 = vld [vmem:[%s1 + $0x64] sm:$0xf]
  %v48 = vld [vmem:[%s1 + $0x68] sm:$0xf]
  %v49 = vld [vmem:[%s1 + $0x6c] sm:$0xf]
  %v50 = vld [vmem:[%s1 + $0x70] sm:$0xf]
  %v51 = vld [vmem:[%s1 + $0x74] sm:$0xf]
  %v52 = vld [vmem:[%s1 + $0x78] sm:$0xf]
  %v53 = vld [vmem:[%s1 + $0x7c] sm:$0xf]
  %v58 = vunpack.c.l.b16 %v18
  %v59 = vunpack.c.h.b16 %v18
  %v60 = vunpack.c.l.b16 %v19
  %v61 = vunpack.c.h.b16 %v19
  %v62 = vunpack.c.l.b16 %v20
  %v63 = vunpack.c.h.b16 %v20
  %v64 = vunpack.c.l.b16 %v21
  %v65 = vunpack.c.h.b16 %v21
  %v66 = vpack.c.b16 %v60, %v58
  %v67 = vpack.c.b16 %v61, %v59
  %v68 = vpack.c.b16 %v64, %v62
  %v69 = vpack.c.b16 %v65, %v63
  %v106 = vunpack.c.l.b16 %v22
  %v107 = vunpack.c.l.b16 %v23
  %v108 = vunpack.c.l.b16 %v24
  %v109 = vunpack.c.l.b16 %v25
  %v110 = vunpack.c.l.b16 %v26
  %v111 = vunpack.c.l.b16 %v27
  %v112 = vunpack.c.l.b16 %v28
  %v113 = vunpack.c.l.b16 %v29
  %v114 = vunpack.c.l.b16 %v30
  %v115 = vunpack.c.l.b16 %v31
  %v116 = vunpack.c.l.b16 %v32
  %v117 = vunpack.c.l.b16 %v33
  %v118 = vunpack.c.l.b16 %v34
  %v119 = vunpack.c.l.b16 %v35
  %v120 = vunpack.c.l.b16 %v36
  %v121 = vunpack.c.l.b16 %v37
  %v122 = vunpack.c.l.b16 %v38
  %v123 = vunpack.c.l.b16 %v39
  %v124 = vunpack.c.l.b16 %v40
  %v125 = vunpack.c.l.b16 %v41
  %v126 = vunpack.c.l.b16 %v42
  %v127 = vunpack.c.l.b16 %v43
  %v128 = vunpack.c.l.b16 %v44
  %v129 = vunpack.c.l.b16 %v45
  %v130 = vunpack.c.l.b16 %v46
  %v131 = vunpack.c.l.b16 %v47
  %v132 = vunpack.c.l.b16 %v48
  %v133 = vunpack.c.l.b16 %v49
  %v134 = vunpack.c.l.b16 %v50
  %v135 = vunpack.c.l.b16 %v51
  %v136 = vunpack.c.l.b16 %v52
  %v137 = vunpack.c.l.b16 %v53
  %v138 = vpack.c.b16 %v107, %v106
  %v139 = vpack.c.b16 %v109, %v108
  %v140 = vpack.c.b16 %v111, %v110
  %v141 = vpack.c.b16 %v113, %v112
  %v142 = vpack.c.b16 %v115, %v114
  %v143 = vpack.c.b16 %v117, %v116
  %v144 = vpack.c.b16 %v119, %v118
  %v145 = vpack.c.b16 %v121, %v120
  %v146 = vpack.c.b16 %v123, %v122
  %v147 = vpack.c.b16 %v125, %v124
  %v148 = vpack.c.b16 %v127, %v126
  %v149 = vpack.c.b16 %v129, %v128
  %v150 = vpack.c.b16 %v131, %v130
  %v151 = vpack.c.b16 %v133, %v132
  %v152 = vpack.c.b16 %v135, %v134
  %v153 = vpack.c.b16 %v137, %v136
  %170 = vmatprep.subr.bf16.mxu0 0
  %171 = vmatpush1.bf16.msra.mxu0 %v145
  %172 = vmatprep.subr.bf16.mxu0 0
  %173 = vmatpush1.bf16.msra.mxu0 %v144
  %174 = vmatprep.subr.bf16.mxu0 0
  %175 = vmatpush1.bf16.msra.mxu0 %v143
  %176 = vmatprep.subr.bf16.mxu0 0
  %177 = vmatpush1.bf16.msra.mxu0 %v142
  %178 = vmatprep.subr.bf16.mxu0 0
  %179 = vmatpush1.bf16.msra.mxu0 %v141
  %180 = vmatprep.subr.bf16.mxu0 0
  %181 = vmatpush1.bf16.msra.mxu0 %v140
  %182 = vmatprep.subr.bf16.mxu0 0
  %183 = vmatpush1.bf16.msra.mxu0 %v139
  %184 = vmatprep.subr.bf16.mxu0 0
  %185 = vmatpush1.bf16.msra.mxu0 %v138
  %186 = vmatprep.subr.bf16.mxu0 0
  %187 = vmatpush2.bf16.msra.mxu0 %v153
  %188 = vmatprep.subr.bf16.mxu0 0
  %189 = vmatpush2.bf16.msra.mxu0 %v152
  %190 = vmatprep.subr.bf16.mxu0 0
  %191 = vmatpush2.bf16.msra.mxu0 %v151
  %192 = vmatprep.subr.bf16.mxu0 0
  %193 = vmatpush2.bf16.msra.mxu0 %v150
  %194 = vmatprep.subr.bf16.mxu0 0
  %195 = vmatpush2.bf16.msra.mxu0 %v149
  %196 = vmatprep.subr.bf16.mxu0 0
  %197 = vmatpush2.bf16.msra.mxu0 %v148
  %198 = vmatprep.subr.bf16.mxu0 0
  %199 = vmatpush2.bf16.msra.mxu0 %v147
  %200 = vmatprep.subr.bf16.mxu0 0
  %201 = vmatpush2.bf16.msra.mxu0 %v146
  %202 = vmatprep.mubr.bf16.mxu0 %v67
  %203 = vmatmul.mubr.bf16.gmra.mxu0 %v66
  %v204 = vpop.f32.mrf.mxu0
  %v205 = vadd.f32 0.0, %v204
  %v206 = vpop.f32.mrf.mxu0
  %v207 = vpop.f32.mrf.mxu0
  %v208 = vadd.f32 0.0, %v207
  %v209 = vpop.f32.mrf.mxu0
  %210 = vmatprep.mubr.bf16.mxu0 %v69
  %211 = vmatmul.mubr.bf16.gmra.mxu0 %v68
  %v212 = vpop.f32.mrf.mxu0
  %v213 = vadd.f32 0.0, %v212
  %v214 = vpop.f32.mrf.mxu0
  %v215 = vpop.f32.mrf.mxu0
  %v216 = vadd.f32 0.0, %v215
  %v217 = vpop.f32.mrf.mxu0
  %218 = vdwg.mxu0
  %v219 = vld [vmem:[%s2] sm:$0xff]
  %v220 = vld [vmem:[%s2 + $0x8] sm:$0xff]
  %v221 = vld [vmem:[%s2 + $0x10] sm:$0xff]
  %v222 = vld [vmem:[%s2 + $0x18] sm:$0xff]
  %224 = vset.pattern.permute.xlu0 0
  %225 = vperm.xlu0 %224, %v219
  %v226 = vpop.permute.xlu0 %225
  %229 = vset.pattern.permute.xlu0 0
  %230 = vperm.xlu0 %229, %v220
  %v231 = vpop.permute.xlu0 %230
  %234 = vset.pattern.permute.xlu0 0
  %235 = vperm.xlu0 %234, %v221
  %v236 = vpop.permute.xlu0 %235
  %239 = vset.pattern.permute.xlu0 0
  %240 = vperm.xlu0 %239, %v222
  %v241 = vpop.permute.xlu0 %240
  %v243 = vmul.f32 %v205, %v226
  %v244 = vmul.f32 %v208, %v231
  %v245 = vmul.f32 %v213, %v236
  %v246 = vmul.f32 %v216, %v241
  %v247 = vld [vmem:[%s3] sm:$0xff]
  %v248 = vld [vmem:[%s3 + $0x8] sm:$0xff]
  %v249 = vld [vmem:[%s3 + $0x10] sm:$0xff]
  %v250 = vld [vmem:[%s3 + $0x18] sm:$0xff]
  %252 = vset.pattern.permute.xlu0 0
  %253 = vperm.xlu0 %252, %v247
  %v254 = vpop.permute.xlu0 %253
  %257 = vset.pattern.permute.xlu0 0
  %258 = vperm.xlu0 %257, %v248
  %v259 = vpop.permute.xlu0 %258
  %262 = vset.pattern.permute.xlu0 0
  %263 = vperm.xlu0 %262, %v249
  %v264 = vpop.permute.xlu0 %263
  %267 = vset.pattern.permute.xlu0 0
  %268 = vperm.xlu0 %267, %v250
  %v269 = vpop.permute.xlu0 %268
  %v271 = vadd.f32 %v243, %v254
  %v272 = vadd.f32 %v244, %v259
  %v273 = vadd.f32 %v245, %v264
  %v274 = vadd.f32 %v246, %v269
  %275 = vst [vmem:[%s4] sm:$0xff] %v271
  %276 = vst [vmem:[%s4 + $0x8] sm:$0xff] %v272
  %277 = vst [vmem:[%s4 + $0x10] sm:$0xff] %v273
  %278 = vst [vmem:[%s4 + $0x18] sm:$0xff] %v274
  // Predicated region
  $region18: #{cost_reg_net.42} parent=0 // pred_check
    _
  $region19: #{cost_reg_net.42} parent=0 // pred_check_branch
    %280 = sbr.rel (0) target = $region21
  $region20: #{cost_reg_net.42} parent=0 // pred_region
    _
  $region21: #{cost_reg_net.42} parent=0 // pred_fallthru
    _
  // Predicated region
  $region22: #{cost_reg_net.42} parent=0 // pred_check
    _
  $region23: #{cost_reg_net.42} parent=0 // pred_check_branch
    %282 = sbr.rel (0) target = $region25
  $region24: #{cost_reg_net.42} parent=0 // pred_region
    _
  $region25: #{cost_reg_net.42} parent=0 // pred_fallthru
    _

// kernel: cost_reg_net.46
$region0: #{cost_reg_net.46}
  #allocation0 [shape = 'u32[]', space=smem, size = 0x4, offset = 0x4, fixed_abs, tag = 'smem constant byte address 0x4 - core index']
  #allocation1 [shape = 'u32[144,128]{1,0:T(1,128)}', space=vmem, size = 0x12000, scoped, tag = 'internal scratch']
  %s0 = inlined_call_operand.vmem [shape: bf16[32,512], index: 0, kind: input, shape index: {}]
  %s1 = inlined_call_operand.vmem [shape: bf16[512,128], index: 1, kind: input, shape index: {}]
  %s2 = inlined_call_operand.vmem [shape: f32[32,1], index: 2, kind: input, shape index: {}]
  %s3 = inlined_call_operand.vmem [shape: f32[32,1], index: 3, kind: input, shape index: {}]
  %s4 = inlined_call_operand.vmem [shape: f32[32,128], index: 4, kind: output, shape index: {}]
  %s5 = sld [smem:[#allocation0]]
  $region26: #{cost_reg_net.46} parent=0
    _
  %s7 = ssub.s32 1, %s5
  %s8 = scalar_select 0, %s7, %s5
  // Predicated region
  $region2: #{cost_reg_net.46} parent=0 // pred_check
    _
  $region3: #{cost_reg_net.46} parent=0 // pred_check_branch
    %10 = sbr.rel (0) target = $region5
  $region4: #{cost_reg_net.46} parent=0 // pred_region
    _
  $region5: #{cost_reg_net.46} parent=0 // pred_fallthru
    _
  // Predicated region
  $region6: #{cost_reg_net.46} parent=0 // pred_check
    _
  $region7: #{cost_reg_net.46} parent=0 // pred_check_branch
    %12 = sbr.rel (0) target = $region9
  $region8: #{cost_reg_net.46} parent=0 // pred_region
    _
  $region9: #{cost_reg_net.46} parent=0 // pred_fallthru
    _
  // Predicated region
  $region10: #{cost_reg_net.46} parent=0 // pred_check
    _
  $region11: #{cost_reg_net.46} parent=0 // pred_check_branch
    %14 = sbr.rel (0) target = $region13
  $region12: #{cost_reg_net.46} parent=0 // pred_region
    _
  $region13: #{cost_reg_net.46} parent=0 // pred_fallthru
    _
  // Predicated region
  $region14: #{cost_reg_net.46} parent=0 // pred_check
    _
  $region15: #{cost_reg_net.46} parent=0 // pred_check_branch
    %16 = sbr.rel (0) target = $region17
  $region16: #{cost_reg_net.46} parent=0 // pred_region
    _
  $region17: #{cost_reg_net.46} parent=0 // pred_fallthru
    _
  %v18 = vld [vmem:[%s0] sm:$0xff]
  %v19 = vld [vmem:[%s0 + $0x8] sm:$0xff]
  %v20 = vld [vmem:[%s0 + $0x10] sm:$0xff]
  %v21 = vld [vmem:[%s0 + $0x18] sm:$0xff]
  %v22 = vld [vmem:[%s0 + $0x20] sm:$0xff]
  %v23 = vld [vmem:[%s0 + $0x28] sm:$0xff]
  %v24 = vld [vmem:[%s0 + $0x30] sm:$0xff]
  %v25 = vld [vmem:[%s0 + $0x38] sm:$0xff]
  %v26 = vld [vmem:[%s1] sm:$0xf]
  %v27 = vld [vmem:[%s1 + $0x4] sm:$0xf]
  %v28 = vld [vmem:[%s1 + $0x8] sm:$0xf]
  %v29 = vld [vmem:[%s1 + $0xc] sm:$0xf]
  %v30 = vld [vmem:[%s1 + $0x10] sm:$0xf]
  %v31 = vld [vmem:[%s1 + $0x14] sm:$0xf]
  %v32 = vld [vmem:[%s1 + $0x18] sm:$0xf]
  %v33 = vld [vmem:[%s1 + $0x1c] sm:$0xf]
  %v34 = vld [vmem:[%s1 + $0x20] sm:$0xf]
  %v35 = vld [vmem:[%s1 + $0x24] sm:$0xf]
  %v36 = vld [vmem:[%s1 + $0x28] sm:$0xf]
  %v37 = vld [vmem:[%s1 + $0x2c] sm:$0xf]
  %v38 = vld [vmem:[%s1 + $0x30] sm:$0xf]
  %v39 = vld [vmem:[%s1 + $0x34] sm:$0xf]
  %v40 = vld [vmem:[%s1 + $0x38] sm:$0xf]
  %v41 = vld [vmem:[%s1 + $0x3c] sm:$0xf]
  %v42 = vld [vmem:[%s1 + $0x40] sm:$0xf]
  %v43 = vld [vmem:[%s1 + $0x44] sm:$0xf]
  %v44 = vld [vmem:[%s1 + $0x48] sm:$0xf]
  %v45 = vld [vmem:[%s1 + $0x4c] sm:$0xf]
  %v46 = vld [vmem:[%s1 + $0x50] sm:$0xf]
  %v47 = vld [vmem:[%s1 + $0x54] sm:$0xf]
  %v48 = vld [vmem:[%s1 + $0x58] sm:$0xf]
  %v49 = vld [vmem:[%s1 + $0x5c] sm:$0xf]
  %v50 = vld [vmem:[%s1 + $0x60] sm:$0xf]
  %v51 = vld [vmem:[%s1 + $0x64] sm:$0xf]
  %v52 = vld [vmem:[%s1 + $0x68] sm:$0xf]
  %v53 = vld [vmem:[%s1 + $0x6c] sm:$0xf]
  %v54 = vld [vmem:[%s1 + $0x70] sm:$0xf]
  %v55 = vld [vmem:[%s1 + $0x74] sm:$0xf]
  %v56 = vld [vmem:[%s1 + $0x78] sm:$0xf]
  %v57 = vld [vmem:[%s1 + $0x7c] sm:$0xf]
  %v58 = vld [vmem:[%s1 + $0x80] sm:$0xf]
  %v59 = vld [vmem:[%s1 + $0x84] sm:$0xf]
  %v60 = vld [vmem:[%s1 + $0x88] sm:$0xf]
  %v61 = vld [vmem:[%s1 + $0x8c] sm:$0xf]
  %v62 = vld [vmem:[%s1 + $0x90] sm:$0xf]
  %v63 = vld [vmem:[%s1 + $0x94] sm:$0xf]
  %v64 = vld [vmem:[%s1 + $0x98] sm:$0xf]
  %v65 = vld [vmem:[%s1 + $0x9c] sm:$0xf]
  %v66 = vld [vmem:[%s1 + $0xa0] sm:$0xf]
  %v67 = vld [vmem:[%s1 + $0xa4] sm:$0xf]
  %v68 = vld [vmem:[%s1 + $0xa8] sm:$0xf]
  %v69 = vld [vmem:[%s1 + $0xac] sm:$0xf]
  %v70 = vld [vmem:[%s1 + $0xb0] sm:$0xf]
  %v71 = vld [vmem:[%s1 + $0xb4] sm:$0xf]
  %v72 = vld [vmem:[%s1 + $0xb8] sm:$0xf]
  %v73 = vld [vmem:[%s1 + $0xbc] sm:$0xf]
  %v74 = vld [vmem:[%s1 + $0xc0] sm:$0xf]
  %v75 = vld [vmem:[%s1 + $0xc4] sm:$0xf]
  %v76 = vld [vmem:[%s1 + $0xc8] sm:$0xf]
  %v77 = vld [vmem:[%s1 + $0xcc] sm:$0xf]
  %v78 = vld [vmem:[%s1 + $0xd0] sm:$0xf]
  %v79 = vld [vmem:[%s1 + $0xd4] sm:$0xf]
  %v80 = vld [vmem:[%s1 + $0xd8] sm:$0xf]
  %v81 = vld [vmem:[%s1 + $0xdc] sm:$0xf]
  %v82 = vld [vmem:[%s1 + $0xe0] sm:$0xf]
  %v83 = vld [vmem:[%s1 + $0xe4] sm:$0xf]
  %v84 = vld [vmem:[%s1 + $0xe8] sm:$0xf]
  %v85 = vld [vmem:[%s1 + $0xec] sm:$0xf]
  %v86 = vld [vmem:[%s1 + $0xf0] sm:$0xf]
  %v87 = vld [vmem:[%s1 + $0xf4] sm:$0xf]
  %v88 = vld [vmem:[%s1 + $0xf8] sm:$0xf]
  %v89 = vld [vmem:[%s1 + $0xfc] sm:$0xf]
  %v98 = vunpack.c.l.b16 %v18
  %v99 = vunpack.c.h.b16 %v18
  %v100 = vunpack.c.l.b16 %v19
  %v101 = vunpack.c.h.b16 %v19
  %v102 = vunpack.c.l.b16 %v20
  %v103 = vunpack.c.h.b16 %v20
  %v104 = vunpack.c.l.b16 %v21
  %v105 = vunpack.c.h.b16 %v21
  %v106 = vunpack.c.l.b16 %v22
  %v107 = vunpack.c.h.b16 %v22
  %v108 = vunpack.c.l.b16 %v23
  %v109 = vunpack.c.h.b16 %v23
  %v110 = vunpack.c.l.b16 %v24
  %v111 = vunpack.c.h.b16 %v24
  %v112 = vunpack.c.l.b16 %v25
  %v113 = vunpack.c.h.b16 %v25
  %v114 = vpack.c.b16 %v102, %v98
  %v115 = vpack.c.b16 %v103, %v99
  %v116 = vpack.c.b16 %v104, %v100
  %v117 = vpack.c.b16 %v105, %v101
  %v118 = vpack.c.b16 %v110, %v106
  %v119 = vpack.c.b16 %v111, %v107
  %v120 = vpack.c.b16 %v112, %v108
  %v121 = vpack.c.b16 %v113, %v109
  %v194 = vunpack.c.l.b16 %v26
  %v195 = vunpack.c.l.b16 %v27
  %v196 = vunpack.c.l.b16 %v28
  %v197 = vunpack.c.l.b16 %v29
  %v198 = vunpack.c.l.b16 %v30
  %v199 = vunpack.c.l.b16 %v31
  %v200 = vunpack.c.l.b16 %v32
  %v201 = vunpack.c.l.b16 %v33
  %v202 = vunpack.c.l.b16 %v34
  %v203 = vunpack.c.l.b16 %v35
  %v204 = vunpack.c.l.b16 %v36
  %v205 = vunpack.c.l.b16 %v37
  %v206 = vunpack.c.l.b16 %v38
  %v207 = vunpack.c.l.b16 %v39
  %v208 = vunpack.c.l.b16 %v40
  %v209 = vunpack.c.l.b16 %v41
  %v210 = vunpack.c.l.b16 %v42
  %v211 = vunpack.c.l.b16 %v43
  %v212 = vunpack.c.l.b16 %v44
  %v213 = vunpack.c.l.b16 %v45
  %v214 = vunpack.c.l.b16 %v46
  %v215 = vunpack.c.l.b16 %v47
  %v216 = vunpack.c.l.b16 %v48
  %v217 = vunpack.c.l.b16 %v49
  %v218 = vunpack.c.l.b16 %v50
  %v219 = vunpack.c.l.b16 %v51
  %v220 = vunpack.c.l.b16 %v52
  %v221 = vunpack.c.l.b16 %v53
  %v222 = vunpack.c.l.b16 %v54
  %v223 = vunpack.c.l.b16 %v55
  %v224 = vunpack.c.l.b16 %v56
  %v225 = vunpack.c.l.b16 %v57
  %v226 = vunpack.c.l.b16 %v58
  %v227 = vunpack.c.l.b16 %v59
  %v228 = vunpack.c.l.b16 %v60
  %v229 = vunpack.c.l.b16 %v61
  %v230 = vunpack.c.l.b16 %v62
  %v231 = vunpack.c.l.b16 %v63
  %v232 = vunpack.c.l.b16 %v64
  %v233 = vunpack.c.l.b16 %v65
  %v234 = vunpack.c.l.b16 %v66
  %v235 = vunpack.c.l.b16 %v67
  %v236 = vunpack.c.l.b16 %v68
  %v237 = vunpack.c.l.b16 %v69
  %v238 = vunpack.c.l.b16 %v70
  %v239 = vunpack.c.l.b16 %v71
  %v240 = vunpack.c.l.b16 %v72
  %v241 = vunpack.c.l.b16 %v73
  %v242 = vunpack.c.l.b16 %v74
  %v243 = vunpack.c.l.b16 %v75
  %v244 = vunpack.c.l.b16 %v76
  %v245 = vunpack.c.l.b16 %v77
  %v246 = vunpack.c.l.b16 %v78
  %v247 = vunpack.c.l.b16 %v79
  %v248 = vunpack.c.l.b16 %v80
  %v249 = vunpack.c.l.b16 %v81
  %v250 = vunpack.c.l.b16 %v82
  %v251 = vunpack.c.l.b16 %v83
  %v252 = vunpack.c.l.b16 %v84
  %v253 = vunpack.c.l.b16 %v85
  %v254 = vunpack.c.l.b16 %v86
  %v255 = vunpack.c.l.b16 %v87
  %v256 = vunpack.c.l.b16 %v88
  %v257 = vunpack.c.l.b16 %v89
  %v258 = vpack.c.b16 %v195, %v194
  %v259 = vpack.c.b16 %v197, %v196
  %v260 = vpack.c.b16 %v199, %v198
  %v261 = vpack.c.b16 %v201, %v200
  %v262 = vpack.c.b16 %v203, %v202
  %v263 = vpack.c.b16 %v205, %v204
  %v264 = vpack.c.b16 %v207, %v206
  %v265 = vpack.c.b16 %v209, %v208
  %v266 = vpack.c.b16 %v211, %v210
  %v267 = vpack.c.b16 %v213, %v212
  %v268 = vpack.c.b16 %v215, %v214
  %v269 = vpack.c.b16 %v217, %v216
  %v270 = vpack.c.b16 %v219, %v218
  %v271 = vpack.c.b16 %v221, %v220
  %v272 = vpack.c.b16 %v223, %v222
  %v273 = vpack.c.b16 %v225, %v224
  %v274 = vpack.c.b16 %v227, %v226
  %v275 = vpack.c.b16 %v229, %v228
  %v276 = vpack.c.b16 %v231, %v230
  %v277 = vpack.c.b16 %v233, %v232
  %v278 = vpack.c.b16 %v235, %v234
  %v279 = vpack.c.b16 %v237, %v236
  %v280 = vpack.c.b16 %v239, %v238
  %v281 = vpack.c.b16 %v241, %v240
  %v282 = vpack.c.b16 %v243, %v242
  %v283 = vpack.c.b16 %v245, %v244
  %v284 = vpack.c.b16 %v247, %v246
  %v285 = vpack.c.b16 %v249, %v248
  %v286 = vpack.c.b16 %v251, %v250
  %v287 = vpack.c.b16 %v253, %v252
  %v288 = vpack.c.b16 %v255, %v254
  %v289 = vpack.c.b16 %v257, %v256
  %322 = vmatprep.subr.bf16.mxu0 0
  %323 = vmatpush1.bf16.msra.mxu0 %v265
  %324 = vmatprep.subr.bf16.mxu0 0
  %325 = vmatpush1.bf16.msra.mxu0 %v264
  %326 = vmatprep.subr.bf16.mxu0 0
  %327 = vmatpush1.bf16.msra.mxu0 %v263
  %328 = vmatprep.subr.bf16.mxu0 0
  %329 = vmatpush1.bf16.msra.mxu0 %v262
  %330 = vmatprep.subr.bf16.mxu0 0
  %331 = vmatpush1.bf16.msra.mxu0 %v261
  %332 = vmatprep.subr.bf16.mxu0 0
  %333 = vmatpush1.bf16.msra.mxu0 %v260
  %334 = vmatprep.subr.bf16.mxu0 0
  %335 = vmatpush1.bf16.msra.mxu0 %v259
  %336 = vmatprep.subr.bf16.mxu0 0
  %337 = vmatpush1.bf16.msra.mxu0 %v258
  %338 = vmatprep.subr.bf16.mxu0 0
  %339 = vmatpush2.bf16.msra.mxu0 %v273
  %340 = vmatprep.subr.bf16.mxu0 0
  %341 = vmatpush2.bf16.msra.mxu0 %v272
  %342 = vmatprep.subr.bf16.mxu0 0
  %343 = vmatpush2.bf16.msra.mxu0 %v271
  %344 = vmatprep.subr.bf16.mxu0 0
  %345 = vmatpush2.bf16.msra.mxu0 %v270
  %346 = vmatprep.subr.bf16.mxu0 0
  %347 = vmatpush2.bf16.msra.mxu0 %v269
  %348 = vmatprep.subr.bf16.mxu0 0
  %349 = vmatpush2.bf16.msra.mxu0 %v268
  %350 = vmatprep.subr.bf16.mxu0 0
  %351 = vmatpush2.bf16.msra.mxu0 %v267
  %352 = vmatprep.subr.bf16.mxu0 0
  %353 = vmatpush2.bf16.msra.mxu0 %v266
  %354 = vmatprep.mubr.bf16.mxu0 %v115
  %355 = vmatmul.mubr.bf16.gmra.mxu0 %v114
  %v356 = vpop.f32.mrf.mxu0
  %v357 = vadd.f32 0.0, %v356
  %v358 = vpop.f32.mrf.mxu0
  %v359 = vpop.f32.mrf.mxu0
  %v360 = vadd.f32 0.0, %v359
  %v361 = vpop.f32.mrf.mxu0
  %362 = vmatprep.mubr.bf16.mxu0 %v119
  %363 = vmatmul.mubr.bf16.gmra.mxu0 %v118
  %v364 = vpop.f32.mrf.mxu0
  %v365 = vadd.f32 0.0, %v364
  %v366 = vpop.f32.mrf.mxu0
  %v367 = vpop.f32.mrf.mxu0
  %v368 = vadd.f32 0.0, %v367
  %v369 = vpop.f32.mrf.mxu0
  %370 = vdwg.mxu0
  %371 = vmatprep.subr.bf16.mxu0 0
  %372 = vmatpush1.bf16.msra.mxu0 %v281
  %373 = vmatprep.subr.bf16.mxu0 0
  %374 = vmatpush1.bf16.msra.mxu0 %v280
  %375 = vmatprep.subr.bf16.mxu0 0
  %376 = vmatpush1.bf16.msra.mxu0 %v279
  %377 = vmatprep.subr.bf16.mxu0 0
  %378 = vmatpush1.bf16.msra.mxu0 %v278
  %379 = vmatprep.subr.bf16.mxu0 0
  %380 = vmatpush1.bf16.msra.mxu0 %v277
  %381 = vmatprep.subr.bf16.mxu0 0
  %382 = vmatpush1.bf16.msra.mxu0 %v276
  %383 = vmatprep.subr.bf16.mxu0 0
  %384 = vmatpush1.bf16.msra.mxu0 %v275
  %385 = vmatprep.subr.bf16.mxu0 0
  %386 = vmatpush1.bf16.msra.mxu0 %v274
  %387 = vmatprep.subr.bf16.mxu0 0
  %388 = vmatpush2.bf16.msra.mxu0 %v289
  %389 = vmatprep.subr.bf16.mxu0 0
  %390 = vmatpush2.bf16.msra.mxu0 %v288
  %391 = vmatprep.subr.bf16.mxu0 0
  %392 = vmatpush2.bf16.msra.mxu0 %v287
  %393 = vmatprep.subr.bf16.mxu0 0
  %394 = vmatpush2.bf16.msra.mxu0 %v286
  %395 = vmatprep.subr.bf16.mxu0 0
  %396 = vmatpush2.bf16.msra.mxu0 %v285
  %397 = vmatprep.subr.bf16.mxu0 0
  %398 = vmatpush2.bf16.msra.mxu0 %v284
  %399 = vmatprep.subr.bf16.mxu0 0
  %400 = vmatpush2.bf16.msra.mxu0 %v283
  %401 = vmatprep.subr.bf16.mxu0 0
  %402 = vmatpush2.bf16.msra.mxu0 %v282
  %403 = vmatprep.mubr.bf16.mxu0 %v117
  %404 = vmatmul.mubr.bf16.gmra.mxu0 %v116
  %v405 = vpop.f32.mrf.mxu0
  %v406 = vadd.f32 %v357, %v405
  %v407 = vpop.f32.mrf.mxu0
  %v408 = vpop.f32.mrf.mxu0
  %v409 = vadd.f32 %v360, %v408
  %v410 = vpop.f32.mrf.mxu0
  %411 = vmatprep.mubr.bf16.mxu0 %v121
  %412 = vmatmul.mubr.bf16.gmra.mxu0 %v120
  %v413 = vpop.f32.mrf.mxu0
  %v414 = vadd.f32 %v365, %v413
  %v415 = vpop.f32.mrf.mxu0
  %v416 = vpop.f32.mrf.mxu0
  %v417 = vadd.f32 %v368, %v416
  %v418 = vpop.f32.mrf.mxu0
  %419 = vdwg.mxu0
  %v420 = vld [vmem:[%s2] sm:$0xff]
  %v421 = vld [vmem:[%s2 + $0x8] sm:$0xff]
  %v422 = vld [vmem:[%s2 + $0x10] sm:$0xff]
  %v423 = vld [vmem:[%s2 + $0x18] sm:$0xff]
  %425 = vset.pattern.permute.xlu0 0
  %426 = vperm.xlu0 %425, %v420
  %v427 = vpop.permute.xlu0 %426
  %430 = vset.pattern.permute.xlu0 0
  %431 = vperm.xlu0 %430, %v421
  %v432 = vpop.permute.xlu0 %431
  %435 = vset.pattern.permute.xlu0 0
  %436 = vperm.xlu0 %435, %v422
  %v437 = vpop.permute.xlu0 %436
  %440 = vset.pattern.permute.xlu0 0
  %441 = vperm.xlu0 %440, %v423
  %v442 = vpop.permute.xlu0 %441
  %v444 = vmul.f32 %v406, %v427
  %v445 = vmul.f32 %v409, %v432
  %v446 = vmul.f32 %v414, %v437
  %v447 = vmul.f32 %v417, %v442
  %v448 = vld [vmem:[%s3] sm:$0xff]
  %v449 = vld [vmem:[%s3 + $0x8] sm:$0xff]
  %v450 = vld [vmem:[%s3 + $0x10] sm:$0xff]
  %v451 = vld [vmem:[%s3 + $0x18] sm:$0xff]
  %453 = vset.pattern.permute.xlu0 0
  %454 = vperm.xlu0 %453, %v448
  %v455 = vpop.permute.xlu0 %454
  %458 = vset.pattern.permute.xlu0 0
  %459 = vperm.xlu0 %458, %v449
  %v460 = vpop.permute.xlu0 %459
  %463 = vset.pattern.permute.xlu0 0
  %464 = vperm.xlu0 %463, %v450
  %v465 = vpop.permute.xlu0 %464
  %468 = vset.pattern.permute.xlu0 0
  %469 = vperm.xlu0 %468, %v451
  %v470 = vpop.permute.xlu0 %469
  %v472 = vadd.f32 %v444, %v455
  %v473 = vadd.f32 %v445, %v460
  %v474 = vadd.f32 %v446, %v465
  %v475 = vadd.f32 %v447, %v470
  %476 = vst [vmem:[%s4] sm:$0xff] %v472
  %477 = vst [vmem:[%s4 + $0x8] sm:$0xff] %v473
  %478 = vst [vmem:[%s4 + $0x10] sm:$0xff] %v474
  %479 = vst [vmem:[%s4 + $0x18] sm:$0xff] %v475
  // Predicated region
  $region18: #{cost_reg_net.46} parent=0 // pred_check
    _
  $region19: #{cost_reg_net.46} parent=0 // pred_check_branch
    %481 = sbr.rel (0) target = $region21
  $region20: #{cost_reg_net.46} parent=0 // pred_region
    _
  $region21: #{cost_reg_net.46} parent=0 // pred_fallthru
    _
  // Predicated region
  $region22: #{cost_reg_net.46} parent=0 // pred_check
    _
  $region23: #{cost_reg_net.46} parent=0 // pred_check_branch
    %483 = sbr.rel (0) target = $region25
  $region24: #{cost_reg_net.46} parent=0 // pred_region
    _
  $region25: #{cost_reg_net.46} parent=0 // pred_fallthru
    _

// kernel: cost_reg_net.54
$region0: #{cost_reg_net.54}
  #allocation0 [shape = 'u32[]', space=smem, size = 0x4, offset = 0x4, fixed_abs, tag = 'smem constant byte address 0x4 - core index']
  #allocation1 [shape = 'u32[144,128]{1,0:T(1,128)}', space=vmem, size = 0x12000, scoped, tag = 'internal scratch']
  %s0 = inlined_call_operand.vmem [shape: bf16[16,256], index: 0, kind: input, shape index: {}]
  %s1 = inlined_call_operand.vmem [shape: bf16[256,128], index: 1, kind: input, shape index: {}]
  %s2 = inlined_call_operand.vmem [shape: f32[16,1], index: 2, kind: input, shape index: {}]
  %s3 = inlined_call_operand.vmem [shape: f32[16,1], index: 3, kind: input, shape index: {}]
  %s4 = inlined_call_operand.vmem [shape: f32[16,128], index: 4, kind: output, shape index: {}]
  %s5 = sld [smem:[#allocation0]]
  $region26: #{cost_reg_net.54} parent=0
    _
  %s7 = ssub.s32 1, %s5
  %s8 = scalar_select 0, %s7, %s5
  // Predicated region
  $region2: #{cost_reg_net.54} parent=0 // pred_check
    _
  $region3: #{cost_reg_net.54} parent=0 // pred_check_branch
    %10 = sbr.rel (0) target = $region5
  $region4: #{cost_reg_net.54} parent=0 // pred_region
    _
  $region5: #{cost_reg_net.54} parent=0 // pred_fallthru
    _
  // Predicated region
  $region6: #{cost_reg_net.54} parent=0 // pred_check
    _
  $region7: #{cost_reg_net.54} parent=0 // pred_check_branch
    %12 = sbr.rel (0) target = $region9
  $region8: #{cost_reg_net.54} parent=0 // pred_region
    _
  $region9: #{cost_reg_net.54} parent=0 // pred_fallthru
    _
  // Predicated region
  $region10: #{cost_reg_net.54} parent=0 // pred_check
    _
  $region11: #{cost_reg_net.54} parent=0 // pred_check_branch
    %14 = sbr.rel (0) target = $region13
  $region12: #{cost_reg_net.54} parent=0 // pred_region
    _
  $region13: #{cost_reg_net.54} parent=0 // pred_fallthru
    _
  // Predicated region
  $region14: #{cost_reg_net.54} parent=0 // pred_check
    _
  $region15: #{cost_reg_net.54} parent=0 // pred_check_branch
    %16 = sbr.rel (0) target = $region17
  $region16: #{cost_reg_net.54} parent=0 // pred_region
    _
  $region17: #{cost_reg_net.54} parent=0 // pred_fallthru
    _
  %v18 = vld [vmem:[%s0] sm:$0xff]
  %v19 = vld [vmem:[%s0 + $0x8] sm:$0xff]
  %v20 = vld [vmem:[%s1] sm:$0xf]
  %v21 = vld [vmem:[%s1 + $0x4] sm:$0xf]
  %v22 = vld [vmem:[%s1 + $0x8] sm:$0xf]
  %v23 = vld [vmem:[%s1 + $0xc] sm:$0xf]
  %v24 = vld [vmem:[%s1 + $0x10] sm:$0xf]
  %v25 = vld [vmem:[%s1 + $0x14] sm:$0xf]
  %v26 = vld [vmem:[%s1 + $0x18] sm:$0xf]
  %v27 = vld [vmem:[%s1 + $0x1c] sm:$0xf]
  %v28 = vld [vmem:[%s1 + $0x20] sm:$0xf]
  %v29 = vld [vmem:[%s1 + $0x24] sm:$0xf]
  %v30 = vld [vmem:[%s1 + $0x28] sm:$0xf]
  %v31 = vld [vmem:[%s1 + $0x2c] sm:$0xf]
  %v32 = vld [vmem:[%s1 + $0x30] sm:$0xf]
  %v33 = vld [vmem:[%s1 + $0x34] sm:$0xf]
  %v34 = vld [vmem:[%s1 + $0x38] sm:$0xf]
  %v35 = vld [vmem:[%s1 + $0x3c] sm:$0xf]
  %v36 = vld [vmem:[%s1 + $0x40] sm:$0xf]
  %v37 = vld [vmem:[%s1 + $0x44] sm:$0xf]
  %v38 = vld [vmem:[%s1 + $0x48] sm:$0xf]
  %v39 = vld [vmem:[%s1 + $0x4c] sm:$0xf]
  %v40 = vld [vmem:[%s1 + $0x50] sm:$0xf]
  %v41 = vld [vmem:[%s1 + $0x54] sm:$0xf]
  %v42 = vld [vmem:[%s1 + $0x58] sm:$0xf]
  %v43 = vld [vmem:[%s1 + $0x5c] sm:$0xf]
  %v44 = vld [vmem:[%s1 + $0x60] sm:$0xf]
  %v45 = vld [vmem:[%s1 + $0x64] sm:$0xf]
  %v46 = vld [vmem:[%s1 + $0x68] sm:$0xf]
  %v47 = vld [vmem:[%s1 + $0x6c] sm:$0xf]
  %v48 = vld [vmem:[%s1 + $0x70] sm:$0xf]
  %v49 = vld [vmem:[%s1 + $0x74] sm:$0xf]
  %v50 = vld [vmem:[%s1 + $0x78] sm:$0xf]
  %v51 = vld [vmem:[%s1 + $0x7c] sm:$0xf]
  %v54 = vunpack.c.l.b16 %v18
  %v55 = vunpack.c.h.b16 %v18
  %v56 = vunpack.c.l.b16 %v19
  %v57 = vunpack.c.h.b16 %v19
  %v58 = vpack.c.b16 %v56, %v54
  %v59 = vpack.c.b16 %v57, %v55
  %v94 = vunpack.c.l.b16 %v20
  %v95 = vunpack.c.l.b16 %v21
  %v96 = vunpack.c.l.b16 %v22
  %v97 = vunpack.c.l.b16 %v23
  %v98 = vunpack.c.l.b16 %v24
  %v99 = vunpack.c.l.b16 %v25
  %v100 = vunpack.c.l.b16 %v26
  %v101 = vunpack.c.l.b16 %v27
  %v102 = vunpack.c.l.b16 %v28
  %v103 = vunpack.c.l.b16 %v29
  %v104 = vunpack.c.l.b16 %v30
  %v105 = vunpack.c.l.b16 %v31
  %v106 = vunpack.c.l.b16 %v32
  %v107 = vunpack.c.l.b16 %v33
  %v108 = vunpack.c.l.b16 %v34
  %v109 = vunpack.c.l.b16 %v35
  %v110 = vunpack.c.l.b16 %v36
  %v111 = vunpack.c.l.b16 %v37
  %v112 = vunpack.c.l.b16 %v38
  %v113 = vunpack.c.l.b16 %v39
  %v114 = vunpack.c.l.b16 %v40
  %v115 = vunpack.c.l.b16 %v41
  %v116 = vunpack.c.l.b16 %v42
  %v117 = vunpack.c.l.b16 %v43
  %v118 = vunpack.c.l.b16 %v44
  %v119 = vunpack.c.l.b16 %v45
  %v120 = vunpack.c.l.b16 %v46
  %v121 = vunpack.c.l.b16 %v47
  %v122 = vunpack.c.l.b16 %v48
  %v123 = vunpack.c.l.b16 %v49
  %v124 = vunpack.c.l.b16 %v50
  %v125 = vunpack.c.l.b16 %v51
  %v126 = vpack.c.b16 %v95, %v94
  %v127 = vpack.c.b16 %v97, %v96
  %v128 = vpack.c.b16 %v99, %v98
  %v129 = vpack.c.b16 %v101, %v100
  %v130 = vpack.c.b16 %v103, %v102
  %v131 = vpack.c.b16 %v105, %v104
  %v132 = vpack.c.b16 %v107, %v106
  %v133 = vpack.c.b16 %v109, %v108
  %v134 = vpack.c.b16 %v111, %v110
  %v135 = vpack.c.b16 %v113, %v112
  %v136 = vpack.c.b16 %v115, %v114
  %v137 = vpack.c.b16 %v117, %v116
  %v138 = vpack.c.b16 %v119, %v118
  %v139 = vpack.c.b16 %v121, %v120
  %v140 = vpack.c.b16 %v123, %v122
  %v141 = vpack.c.b16 %v125, %v124
  %158 = vmatprep.subr.bf16.mxu0 0
  %159 = vmatpush1.bf16.msra.mxu0 %v133
  %160 = vmatprep.subr.bf16.mxu0 0
  %161 = vmatpush1.bf16.msra.mxu0 %v132
  %162 = vmatprep.subr.bf16.mxu0 0
  %163 = vmatpush1.bf16.msra.mxu0 %v131
  %164 = vmatprep.subr.bf16.mxu0 0
  %165 = vmatpush1.bf16.msra.mxu0 %v130
  %166 = vmatprep.subr.bf16.mxu0 0
  %167 = vmatpush1.bf16.msra.mxu0 %v129
  %168 = vmatprep.subr.bf16.mxu0 0
  %169 = vmatpush1.bf16.msra.mxu0 %v128
  %170 = vmatprep.subr.bf16.mxu0 0
  %171 = vmatpush1.bf16.msra.mxu0 %v127
  %172 = vmatprep.subr.bf16.mxu0 0
  %173 = vmatpush1.bf16.msra.mxu0 %v126
  %174 = vmatprep.subr.bf16.mxu0 0
  %175 = vmatpush2.bf16.msra.mxu0 %v141
  %176 = vmatprep.subr.bf16.mxu0 0
  %177 = vmatpush2.bf16.msra.mxu0 %v140
  %178 = vmatprep.subr.bf16.mxu0 0
  %179 = vmatpush2.bf16.msra.mxu0 %v139
  %180 = vmatprep.subr.bf16.mxu0 0
  %181 = vmatpush2.bf16.msra.mxu0 %v138
  %182 = vmatprep.subr.bf16.mxu0 0
  %183 = vmatpush2.bf16.msra.mxu0 %v137
  %184 = vmatprep.subr.bf16.mxu0 0
  %185 = vmatpush2.bf16.msra.mxu0 %v136
  %186 = vmatprep.subr.bf16.mxu0 0
  %187 = vmatpush2.bf16.msra.mxu0 %v135
  %188 = vmatprep.subr.bf16.mxu0 0
  %189 = vmatpush2.bf16.msra.mxu0 %v134
  %190 = vmatprep.mubr.bf16.mxu0 %v59
  %191 = vmatmul.mubr.bf16.gmra.mxu0 %v58
  %v192 = vpop.f32.mrf.mxu0
  %v193 = vadd.f32 0.0, %v192
  %v194 = vpop.f32.mrf.mxu0
  %v195 = vpop.f32.mrf.mxu0
  %v196 = vadd.f32 0.0, %v195
  %v197 = vpop.f32.mrf.mxu0
  %198 = vdwg.mxu0
  %v199 = vld [vmem:[%s2] sm:$0xff]
  %v200 = vld [vmem:[%s2 + $0x8] sm:$0xff]
  %202 = vset.pattern.permute.xlu0 0
  %203 = vperm.xlu0 %202, %v199
  %v204 = vpop.permute.xlu0 %203
  %207 = vset.pattern.permute.xlu0 0
  %208 = vperm.xlu0 %207, %v200
  %v209 = vpop.permute.xlu0 %208
  %v211 = vmul.f32 %v193, %v204
  %v212 = vmul.f32 %v196, %v209
  %v213 = vld [vmem:[%s3] sm:$0xff]
  %v214 = vld [vmem:[%s3 + $0x8] sm:$0xff]
  %216 = vset.pattern.permute.xlu0 0
  %217 = vperm.xlu0 %216, %v213
  %v218 = vpop.permute.xlu0 %217
  %221 = vset.pattern.permute.xlu0 0
  %222 = vperm.xlu0 %221, %v214
  %v223 = vpop.permute.xlu0 %222
  %v225 = vadd.f32 %v211, %v218
  %v226 = vadd.f32 %v212, %v223
  %227 = vst [vmem:[%s4] sm:$0xff] %v225
  %228 = vst [vmem:[%s4 + $0x8] sm:$0xff] %v226
  // Predicated region
  $region18: #{cost_reg_net.54} parent=0 // pred_check
    _
  $region19: #{cost_reg_net.54} parent=0 // pred_check_branch
    %230 = sbr.rel (0) target = $region21
  $region20: #{cost_reg_net.54} parent=0 // pred_region
    _
  $region21: #{cost_reg_net.54} parent=0 // pred_fallthru
    _
  // Predicated region
  $region22: #{cost_reg_net.54} parent=0 // pred_check
    _
  $region23: #{cost_reg_net.54} parent=0 // pred_check_branch
    %232 = sbr.rel (0) target = $region25
  $region24: #{cost_reg_net.54} parent=0 // pred_region
    _
  $region25: #{cost_reg_net.54} parent=0 // pred_fallthru
    _

// kernel: cost_reg_net.50
$region0: #{cost_reg_net.50}
  #allocation0 [shape = 'u32[]', space=smem, size = 0x4, offset = 0x4, fixed_abs, tag = 'smem constant byte address 0x4 - core index']
  #allocation1 [shape = 'u32[144,128]{1,0:T(1,128)}', space=vmem, size = 0x12000, scoped, tag = 'internal scratch']
  %s0 = inlined_call_operand.vmem [shape: bf16[16,128], index: 0, kind: input, shape index: {}]
  %s1 = inlined_call_operand.vmem [shape: bf16[128,128], index: 1, kind: input, shape index: {}]
  %s2 = inlined_call_operand.vmem [shape: f32[16,1], index: 2, kind: input, shape index: {}]
  %s3 = inlined_call_operand.vmem [shape: f32[16,1], index: 3, kind: input, shape index: {}]
  %s4 = inlined_call_operand.vmem [shape: f32[16,128], index: 4, kind: output, shape index: {}]
  %s5 = sld [smem:[#allocation0]]
  $region26: #{cost_reg_net.50} parent=0
    _
  %s7 = ssub.s32 1, %s5
  %s8 = scalar_select 0, %s7, %s5
  // Predicated region
  $region2: #{cost_reg_net.50} parent=0 // pred_check
    _
  $region3: #{cost_reg_net.50} parent=0 // pred_check_branch
    %10 = sbr.rel (0) target = $region5
  $region4: #{cost_reg_net.50} parent=0 // pred_region
    _
  $region5: #{cost_reg_net.50} parent=0 // pred_fallthru
    _
  // Predicated region
  $region6: #{cost_reg_net.50} parent=0 // pred_check
    _
  $region7: #{cost_reg_net.50} parent=0 // pred_check_branch
    %12 = sbr.rel (0) target = $region9
  $region8: #{cost_reg_net.50} parent=0 // pred_region
    _
  $region9: #{cost_reg_net.50} parent=0 // pred_fallthru
    _
  // Predicated region
  $region10: #{cost_reg_net.50} parent=0 // pred_check
    _
  $region11: #{cost_reg_net.50} parent=0 // pred_check_branch
    %14 = sbr.rel (0) target = $region13
  $region12: #{cost_reg_net.50} parent=0 // pred_region
    _
  $region13: #{cost_reg_net.50} parent=0 // pred_fallthru
    _
  // Predicated region
  $region14: #{cost_reg_net.50} parent=0 // pred_check
    _
  $region15: #{cost_reg_net.50} parent=0 // pred_check_branch
    %16 = sbr.rel (0) target = $region17
  $region16: #{cost_reg_net.50} parent=0 // pred_region
    _
  $region17: #{cost_reg_net.50} parent=0 // pred_fallthru
    _
  %v18 = vld [vmem:[%s0] sm:$0xf]
  %v19 = vld [vmem:[%s0 + $0x4] sm:$0xf]
  %v20 = vld [vmem:[%s1] sm:$0xf]
  %v21 = vld [vmem:[%s1 + $0x4] sm:$0xf]
  %v22 = vld [vmem:[%s1 + $0x8] sm:$0xf]
  %v23 = vld [vmem:[%s1 + $0xc] sm:$0xf]
  %v24 = vld [vmem:[%s1 + $0x10] sm:$0xf]
  %v25 = vld [vmem:[%s1 + $0x14] sm:$0xf]
  %v26 = vld [vmem:[%s1 + $0x18] sm:$0xf]
  %v27 = vld [vmem:[%s1 + $0x1c] sm:$0xf]
  %v28 = vld [vmem:[%s1 + $0x20] sm:$0xf]
  %v29 = vld [vmem:[%s1 + $0x24] sm:$0xf]
  %v30 = vld [vmem:[%s1 + $0x28] sm:$0xf]
  %v31 = vld [vmem:[%s1 + $0x2c] sm:$0xf]
  %v32 = vld [vmem:[%s1 + $0x30] sm:$0xf]
  %v33 = vld [vmem:[%s1 + $0x34] sm:$0xf]
  %v34 = vld [vmem:[%s1 + $0x38] sm:$0xf]
  %v35 = vld [vmem:[%s1 + $0x3c] sm:$0xf]
  %v38 = vunpack.c.l.b16 %v18
  %v39 = vunpack.c.l.b16 %v19
  %v40 = vpack.c.b16 %v39, %v38
  %v58 = vunpack.c.l.b16 %v20
  %v59 = vunpack.c.l.b16 %v21
  %v60 = vunpack.c.l.b16 %v22
  %v61 = vunpack.c.l.b16 %v23
  %v62 = vunpack.c.l.b16 %v24
  %v63 = vunpack.c.l.b16 %v25
  %v64 = vunpack.c.l.b16 %v26
  %v65 = vunpack.c.l.b16 %v27
  %v66 = vunpack.c.l.b16 %v28
  %v67 = vunpack.c.l.b16 %v29
  %v68 = vunpack.c.l.b16 %v30
  %v69 = vunpack.c.l.b16 %v31
  %v70 = vunpack.c.l.b16 %v32
  %v71 = vunpack.c.l.b16 %v33
  %v72 = vunpack.c.l.b16 %v34
  %v73 = vunpack.c.l.b16 %v35
  %v74 = vpack.c.b16 %v59, %v58
  %v75 = vpack.c.b16 %v61, %v60
  %v76 = vpack.c.b16 %v63, %v62
  %v77 = vpack.c.b16 %v65, %v64
  %v78 = vpack.c.b16 %v67, %v66
  %v79 = vpack.c.b16 %v69, %v68
  %v80 = vpack.c.b16 %v71, %v70
  %v81 = vpack.c.b16 %v73, %v72
  %90 = vmatprep.subr.bf16.mxu0 0
  %91 = vmatpush1.bf16.msra.mxu0 %v81
  %92 = vmatprep.subr.bf16.mxu0 0
  %93 = vmatpush1.bf16.msra.mxu0 %v80
  %94 = vmatprep.subr.bf16.mxu0 0
  %95 = vmatpush1.bf16.msra.mxu0 %v79
  %96 = vmatprep.subr.bf16.mxu0 0
  %97 = vmatpush1.bf16.msra.mxu0 %v78
  %98 = vmatprep.subr.bf16.mxu0 0
  %99 = vmatpush1.bf16.msra.mxu0 %v77
  %100 = vmatprep.subr.bf16.mxu0 0
  %101 = vmatpush1.bf16.msra.mxu0 %v76
  %102 = vmatprep.subr.bf16.mxu0 0
  %103 = vmatpush1.bf16.msra.mxu0 %v75
  %104 = vmatprep.subr.bf16.mxu0 0
  %105 = vmatpush1.bf16.msra.mxu0 %v74
  %106 = vmatprep.subr.bf16.mxu0 0
  %107 = vmatpush2.bf16.msra.mxu0 0
  %108 = vmatprep.subr.bf16.mxu0 0
  %109 = vmatpush2.bf16.msra.mxu0 0
  %110 = vmatprep.subr.bf16.mxu0 0
  %111 = vmatpush2.bf16.msra.mxu0 0
  %112 = vmatprep.subr.bf16.mxu0 0
  %113 = vmatpush2.bf16.msra.mxu0 0
  %114 = vmatprep.subr.bf16.mxu0 0
  %115 = vmatpush2.bf16.msra.mxu0 0
  %116 = vmatprep.subr.bf16.mxu0 0
  %117 = vmatpush2.bf16.msra.mxu0 0
  %118 = vmatprep.subr.bf16.mxu0 0
  %119 = vmatpush2.bf16.msra.mxu0 0
  %120 = vmatprep.subr.bf16.mxu0 0
  %121 = vmatpush2.bf16.msra.mxu0 0
  %122 = vmatprep.mubr.bf16.mxu0 0
  %123 = vmatmul.mubr.bf16.gmra.mxu0 %v40
  %v124 = vpop.f32.mrf.mxu0
  %v125 = vadd.f32 0.0, %v124
  %v126 = vpop.f32.mrf.mxu0
  %v127 = vpop.f32.mrf.mxu0
  %v128 = vadd.f32 0.0, %v127
  %v129 = vpop.f32.mrf.mxu0
  %130 = vdwg.mxu0
  %v131 = vld [vmem:[%s2] sm:$0xff]
  %v132 = vld [vmem:[%s2 + $0x8] sm:$0xff]
  %134 = vset.pattern.permute.xlu0 0
  %135 = vperm.xlu0 %134, %v131
  %v136 = vpop.permute.xlu0 %135
  %139 = vset.pattern.permute.xlu0 0
  %140 = vperm.xlu0 %139, %v132
  %v141 = vpop.permute.xlu0 %140
  %v143 = vmul.f32 %v125, %v136
  %v144 = vmul.f32 %v128, %v141
  %v145 = vld [vmem:[%s3] sm:$0xff]
  %v146 = vld [vmem:[%s3 + $0x8] sm:$0xff]
  %148 = vset.pattern.permute.xlu0 0
  %149 = vperm.xlu0 %148, %v145
  %v150 = vpop.permute.xlu0 %149
  %153 = vset.pattern.permute.xlu0 0
  %154 = vperm.xlu0 %153, %v146
  %v155 = vpop.permute.xlu0 %154
  %v157 = vadd.f32 %v143, %v150
  %v158 = vadd.f32 %v144, %v155
  %159 = vst [vmem:[%s4] sm:$0xff] %v157
  %160 = vst [vmem:[%s4 + $0x8] sm:$0xff] %v158
  // Predicated region
  $region18: #{cost_reg_net.50} parent=0 // pred_check
    _
  $region19: #{cost_reg_net.50} parent=0 // pred_check_branch
    %162 = sbr.rel (0) target = $region21
  $region20: #{cost_reg_net.50} parent=0 // pred_region
    _
  $region21: #{cost_reg_net.50} parent=0 // pred_fallthru
    _
  // Predicated region
  $region22: #{cost_reg_net.50} parent=0 // pred_check
    _
  $region23: #{cost_reg_net.50} parent=0 // pred_check_branch
    %164 = sbr.rel (0) target = $region25
  $region24: #{cost_reg_net.50} parent=0 // pred_region
    _
  $region25: #{cost_reg_net.50} parent=0 // pred_fallthru
    _

// kernel: cost_reg_net.48
$region0: #{cost_reg_net.48}
  #allocation0 [shape = 'u32[]', space=smem, size = 0x4, offset = 0x4, fixed_abs, tag = 'smem constant byte address 0x4 - core index']
  #allocation1 [shape = 'u32[144,128]{1,0:T(1,128)}', space=vmem, size = 0x12000, scoped, tag = 'internal scratch']
  %s0 = inlined_call_operand.vmem [shape: bf16[16,64], index: 0, kind: input, shape index: {}]
  %s1 = inlined_call_operand.vmem [shape: bf16[64,128], index: 1, kind: input, shape index: {}]
  %s2 = inlined_call_operand.vmem [shape: f32[16,1], index: 2, kind: input, shape index: {}]
  %s3 = inlined_call_operand.vmem [shape: f32[16,1], index: 3, kind: input, shape index: {}]
  %s4 = inlined_call_operand.vmem [shape: f32[16,128], index: 4, kind: output, shape index: {}]
  %s5 = sld [smem:[#allocation0]]
  $region26: #{cost_reg_net.48} parent=0
    _
  %s7 = ssub.s32 1, %s5
  %s8 = scalar_select 0, %s7, %s5
  // Predicated region
  $region2: #{cost_reg_net.48} parent=0 // pred_check
    _
  $region3: #{cost_reg_net.48} parent=0 // pred_check_branch
    %10 = sbr.rel (0) target = $region5
  $region4: #{cost_reg_net.48} parent=0 // pred_region
    _
  $region5: #{cost_reg_net.48} parent=0 // pred_fallthru
    _
  // Predicated region
  $region6: #{cost_reg_net.48} parent=0 // pred_check
    _
  $region7: #{cost_reg_net.48} parent=0 // pred_check_branch
    %12 = sbr.rel (0) target = $region9
  $region8: #{cost_reg_net.48} parent=0 // pred_region
    _
  $region9: #{cost_reg_net.48} parent=0 // pred_fallthru
    _
  // Predicated region
  $region10: #{cost_reg_net.48} parent=0 // pred_check
    _
  $region11: #{cost_reg_net.48} parent=0 // pred_check_branch
    %14 = sbr.rel (0) target = $region13
  $region12: #{cost_reg_net.48} parent=0 // pred_region
    _
  $region13: #{cost_reg_net.48} parent=0 // pred_fallthru
    _
  // Predicated region
  $region14: #{cost_reg_net.48} parent=0 // pred_check
    _
  $region15: #{cost_reg_net.48} parent=0 // pred_check_branch
    %16 = sbr.rel (0) target = $region17
  $region16: #{cost_reg_net.48} parent=0 // pred_region
    _
  $region17: #{cost_reg_net.48} parent=0 // pred_fallthru
    _
  %v18 = vld [vmem:[%s0] sm:$0xf]
  %v19 = vld [vmem:[%s0 + $0x4] sm:$0xf]
  %v20 = vld [vmem:[%s1] sm:$0xf]
  %v21 = vld [vmem:[%s1 + $0x4] sm:$0xf]
  %v22 = vld [vmem:[%s1 + $0x8] sm:$0xf]
  %v23 = vld [vmem:[%s1 + $0xc] sm:$0xf]
  %v24 = vld [vmem:[%s1 + $0x10] sm:$0xf]
  %v25 = vld [vmem:[%s1 + $0x14] sm:$0xf]
  %v26 = vld [vmem:[%s1 + $0x18] sm:$0xf]
  %v27 = vld [vmem:[%s1 + $0x1c] sm:$0xf]
  %v30 = vunpack.c.l.b16 %v18
  %v31 = vunpack.c.l.b16 %v19
  %v32 = vpack.c.b16 %v31, %v30
  %v41 = vunpack.c.l.b16 %v20
  %v42 = vunpack.c.l.b16 %v21
  %v43 = vunpack.c.l.b16 %v22
  %v44 = vunpack.c.l.b16 %v23
  %v45 = vunpack.c.l.b16 %v24
  %v46 = vunpack.c.l.b16 %v25
  %v47 = vunpack.c.l.b16 %v26
  %v48 = vunpack.c.l.b16 %v27
  %v49 = vpack.c.b16 %v42, %v41
  %v50 = vpack.c.b16 %v44, %v43
  %v51 = vpack.c.b16 %v46, %v45
  %v52 = vpack.c.b16 %v48, %v47
  %vm57 = vcmask 523264
  %v59 = vsel %vm57, %v32, 0
  %61 = vmatprep.subr.bf16.mxu0 0
  %62 = vmatpush1.bf16.msra.mxu0 0
  %63 = vmatprep.subr.bf16.mxu0 0
  %64 = vmatpush1.bf16.msra.mxu0 0
  %65 = vmatprep.subr.bf16.mxu0 0
  %66 = vmatpush1.bf16.msra.mxu0 0
  %67 = vmatprep.subr.bf16.mxu0 0
  %68 = vmatpush1.bf16.msra.mxu0 0
  %69 = vmatprep.subr.bf16.mxu0 0
  %70 = vmatpush1.bf16.msra.mxu0 %v52
  %71 = vmatprep.subr.bf16.mxu0 0
  %72 = vmatpush1.bf16.msra.mxu0 %v51
  %73 = vmatprep.subr.bf16.mxu0 0
  %74 = vmatpush1.bf16.msra.mxu0 %v50
  %75 = vmatprep.subr.bf16.mxu0 0
  %76 = vmatpush1.bf16.msra.mxu0 %v49
  %77 = vmatprep.subr.bf16.mxu0 0
  %78 = vmatpush2.bf16.msra.mxu0 0
  %79 = vmatprep.subr.bf16.mxu0 0
  %80 = vmatpush2.bf16.msra.mxu0 0
  %81 = vmatprep.subr.bf16.mxu0 0
  %82 = vmatpush2.bf16.msra.mxu0 0
  %83 = vmatprep.subr.bf16.mxu0 0
  %84 = vmatpush2.bf16.msra.mxu0 0
  %85 = vmatprep.subr.bf16.mxu0 0
  %86 = vmatpush2.bf16.msra.mxu0 0
  %87 = vmatprep.subr.bf16.mxu0 0
  %88 = vmatpush2.bf16.msra.mxu0 0
  %89 = vmatprep.subr.bf16.mxu0 0
  %90 = vmatpush2.bf16.msra.mxu0 0
  %91 = vmatprep.subr.bf16.mxu0 0
  %92 = vmatpush2.bf16.msra.mxu0 0
  %93 = vmatprep.mubr.bf16.mxu0 0
  %94 = vmatmul.mubr.bf16.gmra.mxu0 %v59
  %v95 = vpop.f32.mrf.mxu0
  %v96 = vadd.f32 0.0, %v95
  %v97 = vpop.f32.mrf.mxu0
  %v98 = vpop.f32.mrf.mxu0
  %v99 = vadd.f32 0.0, %v98
  %v100 = vpop.f32.mrf.mxu0
  %101 = vdwg.mxu0
  %v102 = vld [vmem:[%s2] sm:$0xff]
  %v103 = vld [vmem:[%s2 + $0x8] sm:$0xff]
  %105 = vset.pattern.permute.xlu0 0
  %106 = vperm.xlu0 %105, %v102
  %v107 = vpop.permute.xlu0 %106
  %110 = vset.pattern.permute.xlu0 0
  %111 = vperm.xlu0 %110, %v103
  %v112 = vpop.permute.xlu0 %111
  %v114 = vmul.f32 %v96, %v107
  %v115 = vmul.f32 %v99, %v112
  %v116 = vld [vmem:[%s3] sm:$0xff]
  %v117 = vld [vmem:[%s3 + $0x8] sm:$0xff]
  %119 = vset.pattern.permute.xlu0 0
  %120 = vperm.xlu0 %119, %v116
  %v121 = vpop.permute.xlu0 %120
  %124 = vset.pattern.permute.xlu0 0
  %125 = vperm.xlu0 %124, %v117
  %v126 = vpop.permute.xlu0 %125
  %v128 = vadd.f32 %v114, %v121
  %v129 = vadd.f32 %v115, %v126
  %130 = vst [vmem:[%s4] sm:$0xff] %v128
  %131 = vst [vmem:[%s4 + $0x8] sm:$0xff] %v129
  // Predicated region
  $region18: #{cost_reg_net.48} parent=0 // pred_check
    _
  $region19: #{cost_reg_net.48} parent=0 // pred_check_branch
    %133 = sbr.rel (0) target = $region21
  $region20: #{cost_reg_net.48} parent=0 // pred_region
    _
  $region21: #{cost_reg_net.48} parent=0 // pred_fallthru
    _
  // Predicated region
  $region22: #{cost_reg_net.48} parent=0 // pred_check
    _
  $region23: #{cost_reg_net.48} parent=0 // pred_check_branch
    %135 = sbr.rel (0) target = $region25
  $region24: #{cost_reg_net.48} parent=0 // pred_region
    _
  $region25: #{cost_reg_net.48} parent=0 // pred_fallthru
    _

// kernel: cost_reg_net.47
$region0: #{cost_reg_net.47}
  #allocation0 [shape = 'u32[]', space=smem, size = 0x4, offset = 0x4, fixed_abs, tag = 'smem constant byte address 0x4 - core index']
  #allocation1 [shape = 'u32[144,128]{1,0:T(1,128)}', space=vmem, size = 0x12000, scoped, tag = 'internal scratch']
  %s0 = inlined_call_operand.vmem [shape: bf16[16,32], index: 0, kind: input, shape index: {}]
  %s1 = inlined_call_operand.vmem [shape: bf16[32,128], index: 1, kind: input, shape index: {}]
  %s2 = inlined_call_operand.vmem [shape: f32[16,1], index: 2, kind: input, shape index: {}]
  %s3 = inlined_call_operand.vmem [shape: f32[16,1], index: 3, kind: input, shape index: {}]
  %s4 = inlined_call_operand.vmem [shape: f32[16,128], index: 4, kind: output, shape index: {}]
  %s5 = sld [smem:[#allocation0]]
  $region26: #{cost_reg_net.47} parent=0
    _
  %s7 = ssub.s32 1, %s5
  %s8 = scalar_select 0, %s7, %s5
  // Predicated region
  $region2: #{cost_reg_net.47} parent=0 // pred_check
    _
  $region3: #{cost_reg_net.47} parent=0 // pred_check_branch
    %10 = sbr.rel (0) target = $region5
  $region4: #{cost_reg_net.47} parent=0 // pred_region
    _
  $region5: #{cost_reg_net.47} parent=0 // pred_fallthru
    _
  // Predicated region
  $region6: #{cost_reg_net.47} parent=0 // pred_check
    _
  $region7: #{cost_reg_net.47} parent=0 // pred_check_branch
    %12 = sbr.rel (0) target = $region9
  $region8: #{cost_reg_net.47} parent=0 // pred_region
    _
  $region9: #{cost_reg_net.47} parent=0 // pred_fallthru
    _
  // Predicated region
  $region10: #{cost_reg_net.47} parent=0 // pred_check
    _
  $region11: #{cost_reg_net.47} parent=0 // pred_check_branch
    %14 = sbr.rel (0) target = $region13
  $region12: #{cost_reg_net.47} parent=0 // pred_region
    _
  $region13: #{cost_reg_net.47} parent=0 // pred_fallthru
    _
  // Predicated region
  $region14: #{cost_reg_net.47} parent=0 // pred_check
    _
  $region15: #{cost_reg_net.47} parent=0 // pred_check_branch
    %16 = sbr.rel (0) target = $region17
  $region16: #{cost_reg_net.47} parent=0 // pred_region
    _
  $region17: #{cost_reg_net.47} parent=0 // pred_fallthru
    _
  %v18 = vld [vmem:[%s0] sm:$0xf]
  %v19 = vld [vmem:[%s0 + $0x4] sm:$0xf]
  %v20 = vld [vmem:[%s1] sm:$0xf]
  %v21 = vld [vmem:[%s1 + $0x4] sm:$0xf]
  %v22 = vld [vmem:[%s1 + $0x8] sm:$0xf]
  %v23 = vld [vmem:[%s1 + $0xc] sm:$0xf]
  %v26 = vunpack.c.l.b16 %v18
  %v27 = vunpack.c.l.b16 %v19
  %v28 = vpack.c.b16 %v27, %v26
  %v33 = vunpack.c.l.b16 %v20
  %v34 = vunpack.c.l.b16 %v21
  %v35 = vunpack.c.l.b16 %v22
  %v36 = vunpack.c.l.b16 %v23
  %v37 = vpack.c.b16 %v34, %v33
  %v38 = vpack.c.b16 %v36, %v35
  %vm41 = vcmask 261120
  %v43 = vsel %vm41, %v28, 0
  %45 = vmatprep.subr.bf16.mxu0 0
  %46 = vmatpush1.bf16.msra.mxu0 0
  %47 = vmatprep.subr.bf16.mxu0 0
  %48 = vmatpush1.bf16.msra.mxu0 0
  %49 = vmatprep.subr.bf16.mxu0 0
  %50 = vmatpush1.bf16.msra.mxu0 0
  %51 = vmatprep.subr.bf16.mxu0 0
  %52 = vmatpush1.bf16.msra.mxu0 0
  %53 = vmatprep.subr.bf16.mxu0 0
  %54 = vmatpush1.bf16.msra.mxu0 0
  %55 = vmatprep.subr.bf16.mxu0 0
  %56 = vmatpush1.bf16.msra.mxu0 0
  %57 = vmatprep.subr.bf16.mxu0 0
  %58 = vmatpush1.bf16.msra.mxu0 %v38
  %59 = vmatprep.subr.bf16.mxu0 0
  %60 = vmatpush1.bf16.msra.mxu0 %v37
  %61 = vmatprep.subr.bf16.mxu0 0
  %62 = vmatpush2.bf16.msra.mxu0 0
  %63 = vmatprep.subr.bf16.mxu0 0
  %64 = vmatpush2.bf16.msra.mxu0 0
  %65 = vmatprep.subr.bf16.mxu0 0
  %66 = vmatpush2.bf16.msra.mxu0 0
  %67 = vmatprep.subr.bf16.mxu0 0
  %68 = vmatpush2.bf16.msra.mxu0 0
  %69 = vmatprep.subr.bf16.mxu0 0
  %70 = vmatpush2.bf16.msra.mxu0 0
  %71 = vmatprep.subr.bf16.mxu0 0
  %72 = vmatpush2.bf16.msra.mxu0 0
  %73 = vmatprep.subr.bf16.mxu0 0
  %74 = vmatpush2.bf16.msra.mxu0 0
  %75 = vmatprep.subr.bf16.mxu0 0
  %76 = vmatpush2.bf16.msra.mxu0 0
  %77 = vmatprep.mubr.bf16.mxu0 0
  %78 = vmatmul.mubr.bf16.gmra.mxu0 %v43
  %v79 = vpop.f32.mrf.mxu0
  %v80 = vadd.f32 0.0, %v79
  %v81 = vpop.f32.mrf.mxu0
  %v82 = vpop.f32.mrf.mxu0
  %v83 = vadd.f32 0.0, %v82
  %v84 = vpop.f32.mrf.mxu0
  %85 = vdwg.mxu0
  %v86 = vld [vmem:[%s2] sm:$0xff]
  %v87 = vld [vmem:[%s2 + $0x8] sm:$0xff]
  %89 = vset.pattern.permute.xlu0 0
  %90 = vperm.xlu0 %89, %v86
  %v91 = vpop.permute.xlu0 %90
  %94 = vset.pattern.permute.xlu0 0
  %95 = vperm.xlu0 %94, %v87
  %v96 = vpop.permute.xlu0 %95
  %v98 = vmul.f32 %v80, %v91
  %v99 = vmul.f32 %v83, %v96
  %v100 = vld [vmem:[%s3] sm:$0xff]
  %v101 = vld [vmem:[%s3 + $0x8] sm:$0xff]
  %103 = vset.pattern.permute.xlu0 0
  %104 = vperm.xlu0 %103, %v100
  %v105 = vpop.permute.xlu0 %104
  %108 = vset.pattern.permute.xlu0 0
  %109 = vperm.xlu0 %108, %v101
  %v110 = vpop.permute.xlu0 %109
  %v112 = vadd.f32 %v98, %v105
  %v113 = vadd.f32 %v99, %v110
  %114 = vst [vmem:[%s4] sm:$0xff] %v112
  %115 = vst [vmem:[%s4 + $0x8] sm:$0xff] %v113
  // Predicated region
  $region18: #{cost_reg_net.47} parent=0 // pred_check
    _
  $region19: #{cost_reg_net.47} parent=0 // pred_check_branch
    %117 = sbr.rel (0) target = $region21
  $region20: #{cost_reg_net.47} parent=0 // pred_region
    _
  $region21: #{cost_reg_net.47} parent=0 // pred_fallthru
    _
  // Predicated region
  $region22: #{cost_reg_net.47} parent=0 // pred_check
    _
  $region23: #{cost_reg_net.47} parent=0 // pred_check_branch
    %119 = sbr.rel (0) target = $region25
  $region24: #{cost_reg_net.47} parent=0 // pred_region
    _
  $region25: #{cost_reg_net.47} parent=0 // pred_fallthru
    _

// kernel: cost_reg_net.62
$region0: #{cost_reg_net.62}
  #allocation0 [shape = 'u32[]', space=smem, size = 0x4, offset = 0x4, fixed_abs, tag = 'smem constant byte address 0x4 - core index']
  #allocation1 [shape = 'u32[144,128]{1,0:T(1,128)}', space=vmem, size = 0x12000, scoped, tag = 'internal scratch']
  %s0 = inlined_call_operand.vmem [shape: bf16[8,128], index: 0, kind: input, shape index: {}]
  %s1 = inlined_call_operand.vmem [shape: bf16[128,128], index: 1, kind: input, shape index: {}]
  %s2 = inlined_call_operand.vmem [shape: f32[8,1], index: 2, kind: input, shape index: {}]
  %s3 = inlined_call_operand.vmem [shape: f32[8,1], index: 3, kind: input, shape index: {}]
  %s4 = inlined_call_operand.vmem [shape: f32[8,128], index: 4, kind: output, shape index: {}]
  %s5 = sld [smem:[#allocation0]]
  $region26: #{cost_reg_net.62} parent=0
    _
  %s7 = ssub.s32 1, %s5
  %s8 = scalar_select 0, %s7, %s5
  // Predicated region
  $region2: #{cost_reg_net.62} parent=0 // pred_check
    _
  $region3: #{cost_reg_net.62} parent=0 // pred_check_branch
    %10 = sbr.rel (0) target = $region5
  $region4: #{cost_reg_net.62} parent=0 // pred_region
    _
  $region5: #{cost_reg_net.62} parent=0 // pred_fallthru
    _
  // Predicated region
  $region6: #{cost_reg_net.62} parent=0 // pred_check
    _
  $region7: #{cost_reg_net.62} parent=0 // pred_check_branch
    %12 = sbr.rel (0) target = $region9
  $region8: #{cost_reg_net.62} parent=0 // pred_region
    _
  $region9: #{cost_reg_net.62} parent=0 // pred_fallthru
    _
  // Predicated region
  $region10: #{cost_reg_net.62} parent=0 // pred_check
    _
  $region11: #{cost_reg_net.62} parent=0 // pred_check_branch
    %14 = sbr.rel (0) target = $region13
  $region12: #{cost_reg_net.62} parent=0 // pred_region
    _
  $region13: #{cost_reg_net.62} parent=0 // pred_fallthru
    _
  // Predicated region
  $region14: #{cost_reg_net.62} parent=0 // pred_check
    _
  $region15: #{cost_reg_net.62} parent=0 // pred_check_branch
    %16 = sbr.rel (0) target = $region17
  $region16: #{cost_reg_net.62} parent=0 // pred_region
    _
  $region17: #{cost_reg_net.62} parent=0 // pred_fallthru
    _
  %v18 = vld [vmem:[%s0] sm:$0xf]
  %v19 = vld [vmem:[%s1] sm:$0xf]
  %v20 = vld [vmem:[%s1 + $0x4] sm:$0xf]
  %v21 = vld [vmem:[%s1 + $0x8] sm:$0xf]
  %v22 = vld [vmem:[%s1 + $0xc] sm:$0xf]
  %v23 = vld [vmem:[%s1 + $0x10] sm:$0xf]
  %v24 = vld [vmem:[%s1 + $0x14] sm:$0xf]
  %v25 = vld [vmem:[%s1 + $0x18] sm:$0xf]
  %v26 = vld [vmem:[%s1 + $0x1c] sm:$0xf]
  %v27 = vld [vmem:[%s1 + $0x20] sm:$0xf]
  %v28 = vld [vmem:[%s1 + $0x24] sm:$0xf]
  %v29 = vld [vmem:[%s1 + $0x28] sm:$0xf]
  %v30 = vld [vmem:[%s1 + $0x2c] sm:$0xf]
  %v31 = vld [vmem:[%s1 + $0x30] sm:$0xf]
  %v32 = vld [vmem:[%s1 + $0x34] sm:$0xf]
  %v33 = vld [vmem:[%s1 + $0x38] sm:$0xf]
  %v34 = vld [vmem:[%s1 + $0x3c] sm:$0xf]
  %v51 = vunpack.c.l.b16 %v19
  %v52 = vunpack.c.l.b16 %v20
  %v53 = vunpack.c.l.b16 %v21
  %v54 = vunpack.c.l.b16 %v22
  %v55 = vunpack.c.l.b16 %v23
  %v56 = vunpack.c.l.b16 %v24
  %v57 = vunpack.c.l.b16 %v25
  %v58 = vunpack.c.l.b16 %v26
  %v59 = vunpack.c.l.b16 %v27
  %v60 = vunpack.c.l.b16 %v28
  %v61 = vunpack.c.l.b16 %v29
  %v62 = vunpack.c.l.b16 %v30
  %v63 = vunpack.c.l.b16 %v31
  %v64 = vunpack.c.l.b16 %v32
  %v65 = vunpack.c.l.b16 %v33
  %v66 = vunpack.c.l.b16 %v34
  %v67 = vpack.c.b16 %v52, %v51
  %v68 = vpack.c.b16 %v54, %v53
  %v69 = vpack.c.b16 %v56, %v55
  %v70 = vpack.c.b16 %v58, %v57
  %v71 = vpack.c.b16 %v60, %v59
  %v72 = vpack.c.b16 %v62, %v61
  %v73 = vpack.c.b16 %v64, %v63
  %v74 = vpack.c.b16 %v66, %v65
  %83 = vmatprep.subr.bf16.mxu0 0
  %84 = vmatpush1.bf16.msra.mxu0 %v74
  %85 = vmatprep.subr.bf16.mxu0 0
  %86 = vmatpush1.bf16.msra.mxu0 %v73
  %87 = vmatprep.subr.bf16.mxu0 0
  %88 = vmatpush1.bf16.msra.mxu0 %v72
  %89 = vmatprep.subr.bf16.mxu0 0
  %90 = vmatpush1.bf16.msra.mxu0 %v71
  %91 = vmatprep.subr.bf16.mxu0 0
  %92 = vmatpush1.bf16.msra.mxu0 %v70
  %93 = vmatprep.subr.bf16.mxu0 0
  %94 = vmatpush1.bf16.msra.mxu0 %v69
  %95 = vmatprep.subr.bf16.mxu0 0
  %96 = vmatpush1.bf16.msra.mxu0 %v68
  %97 = vmatprep.subr.bf16.mxu0 0
  %98 = vmatpush1.bf16.msra.mxu0 %v67
  %99 = vmatprep.subr.bf16.mxu0 0
  %100 = vmatpush2.bf16.msra.mxu0 0
  %101 = vmatprep.subr.bf16.mxu0 0
  %102 = vmatpush2.bf16.msra.mxu0 0
  %103 = vmatprep.subr.bf16.mxu0 0
  %104 = vmatpush2.bf16.msra.mxu0 0
  %105 = vmatprep.subr.bf16.mxu0 0
  %106 = vmatpush2.bf16.msra.mxu0 0
  %107 = vmatprep.subr.bf16.mxu0 0
  %108 = vmatpush2.bf16.msra.mxu0 0
  %109 = vmatprep.subr.bf16.mxu0 0
  %110 = vmatpush2.bf16.msra.mxu0 0
  %111 = vmatprep.subr.bf16.mxu0 0
  %112 = vmatpush2.bf16.msra.mxu0 0
  %113 = vmatprep.subr.bf16.mxu0 0
  %114 = vmatpush2.bf16.msra.mxu0 0
  %115 = vmatprep.mubr.bf16.mxu0 0
  %116 = vmatmul.mubr.bf16.gmra.mxu0 %v18
  %v117 = vpop.f32.mrf.mxu0
  %v118 = vadd.f32 0.0, %v117
  %v119 = vpop.f32.mrf.mxu0
  %v120 = vpop.f32.mrf.mxu0
  %v121 = vpop.f32.mrf.mxu0
  %122 = vdwg.mxu0
  %v123 = vld [vmem:[%s2] sm:$0xff]
  %125 = vset.pattern.permute.xlu0 0
  %126 = vperm.xlu0 %125, %v123
  %v127 = vpop.permute.xlu0 %126
  %v129 = vmul.f32 %v118, %v127
  %v130 = vld [vmem:[%s3] sm:$0xff]
  %132 = vset.pattern.permute.xlu0 0
  %133 = vperm.xlu0 %132, %v130
  %v134 = vpop.permute.xlu0 %133
  %v136 = vadd.f32 %v129, %v134
  %137 = vst [vmem:[%s4] sm:$0xff] %v136
  // Predicated region
  $region18: #{cost_reg_net.62} parent=0 // pred_check
    _
  $region19: #{cost_reg_net.62} parent=0 // pred_check_branch
    %139 = sbr.rel (0) target = $region21
  $region20: #{cost_reg_net.62} parent=0 // pred_region
    _
  $region21: #{cost_reg_net.62} parent=0 // pred_fallthru
    _
  // Predicated region
  $region22: #{cost_reg_net.62} parent=0 // pred_check
    _
  $region23: #{cost_reg_net.62} parent=0 // pred_check_branch
    %141 = sbr.rel (0) target = $region25
  $region24: #{cost_reg_net.62} parent=0 // pred_region
    _
  $region25: #{cost_reg_net.62} parent=0 // pred_fallthru
    _

// kernel: cost_reg_net.58
$region0: #{cost_reg_net.58}
  #allocation0 [shape = 'u32[]', space=smem, size = 0x4, offset = 0x4, fixed_abs, tag = 'smem constant byte address 0x4 - core index']
  #allocation1 [shape = 'u32[144,128]{1,0:T(1,128)}', space=vmem, size = 0x12000, scoped, tag = 'internal scratch']
  %s0 = inlined_call_operand.vmem [shape: bf16[8,64], index: 0, kind: input, shape index: {}]
  %s1 = inlined_call_operand.vmem [shape: bf16[64,128], index: 1, kind: input, shape index: {}]
  %s2 = inlined_call_operand.vmem [shape: f32[8,1], index: 2, kind: input, shape index: {}]
  %s3 = inlined_call_operand.vmem [shape: f32[8,1], index: 3, kind: input, shape index: {}]
  %s4 = inlined_call_operand.vmem [shape: f32[8,128], index: 4, kind: output, shape index: {}]
  %s5 = sld [smem:[#allocation0]]
  $region26: #{cost_reg_net.58} parent=0
    _
  %s7 = ssub.s32 1, %s5
  %s8 = scalar_select 0, %s7, %s5
  // Predicated region
  $region2: #{cost_reg_net.58} parent=0 // pred_check
    _
  $region3: #{cost_reg_net.58} parent=0 // pred_check_branch
    %10 = sbr.rel (0) target = $region5
  $region4: #{cost_reg_net.58} parent=0 // pred_region
    _
  $region5: #{cost_reg_net.58} parent=0 // pred_fallthru
    _
  // Predicated region
  $region6: #{cost_reg_net.58} parent=0 // pred_check
    _
  $region7: #{cost_reg_net.58} parent=0 // pred_check_branch
    %12 = sbr.rel (0) target = $region9
  $region8: #{cost_reg_net.58} parent=0 // pred_region
    _
  $region9: #{cost_reg_net.58} parent=0 // pred_fallthru
    _
  // Predicated region
  $region10: #{cost_reg_net.58} parent=0 // pred_check
    _
  $region11: #{cost_reg_net.58} parent=0 // pred_check_branch
    %14 = sbr.rel (0) target = $region13
  $region12: #{cost_reg_net.58} parent=0 // pred_region
    _
  $region13: #{cost_reg_net.58} parent=0 // pred_fallthru
    _
  // Predicated region
  $region14: #{cost_reg_net.58} parent=0 // pred_check
    _
  $region15: #{cost_reg_net.58} parent=0 // pred_check_branch
    %16 = sbr.rel (0) target = $region17
  $region16: #{cost_reg_net.58} parent=0 // pred_region
    _
  $region17: #{cost_reg_net.58} parent=0 // pred_fallthru
    _
  %v18 = vld [vmem:[%s0] sm:$0xf]
  %v19 = vld [vmem:[%s1] sm:$0xf]
  %v20 = vld [vmem:[%s1 + $0x4] sm:$0xf]
  %v21 = vld [vmem:[%s1 + $0x8] sm:$0xf]
  %v22 = vld [vmem:[%s1 + $0xc] sm:$0xf]
  %v23 = vld [vmem:[%s1 + $0x10] sm:$0xf]
  %v24 = vld [vmem:[%s1 + $0x14] sm:$0xf]
  %v25 = vld [vmem:[%s1 + $0x18] sm:$0xf]
  %v26 = vld [vmem:[%s1 + $0x1c] sm:$0xf]
  %v35 = vunpack.c.l.b16 %v19
  %v36 = vunpack.c.l.b16 %v20
  %v37 = vunpack.c.l.b16 %v21
  %v38 = vunpack.c.l.b16 %v22
  %v39 = vunpack.c.l.b16 %v23
  %v40 = vunpack.c.l.b16 %v24
  %v41 = vunpack.c.l.b16 %v25
  %v42 = vunpack.c.l.b16 %v26
  %v43 = vpack.c.b16 %v36, %v35
  %v44 = vpack.c.b16 %v38, %v37
  %v45 = vpack.c.b16 %v40, %v39
  %v46 = vpack.c.b16 %v42, %v41
  %vm51 = vcmask 523264
  %v53 = vsel %vm51, %v18, 0
  %55 = vmatprep.subr.bf16.mxu0 0
  %56 = vmatpush1.bf16.msra.mxu0 0
  %57 = vmatprep.subr.bf16.mxu0 0
  %58 = vmatpush1.bf16.msra.mxu0 0
  %59 = vmatprep.subr.bf16.mxu0 0
  %60 = vmatpush1.bf16.msra.mxu0 0
  %61 = vmatprep.subr.bf16.mxu0 0
  %62 = vmatpush1.bf16.msra.mxu0 0
  %63 = vmatprep.subr.bf16.mxu0 0
  %64 = vmatpush1.bf16.msra.mxu0 %v46
  %65 = vmatprep.subr.bf16.mxu0 0
  %66 = vmatpush1.bf16.msra.mxu0 %v45
  %67 = vmatprep.subr.bf16.mxu0 0
  %68 = vmatpush1.bf16.msra.mxu0 %v44
  %69 = vmatprep.subr.bf16.mxu0 0
  %70 = vmatpush1.bf16.msra.mxu0 %v43
  %71 = vmatprep.subr.bf16.mxu0 0
  %72 = vmatpush2.bf16.msra.mxu0 0
  %73 = vmatprep.subr.bf16.mxu0 0
  %74 = vmatpush2.bf16.msra.mxu0 0
  %75 = vmatprep.subr.bf16.mxu0 0
  %76 = vmatpush2.bf16.msra.mxu0 0
  %77 = vmatprep.subr.bf16.mxu0 0
  %78 = vmatpush2.bf16.msra.mxu0 0
  %79 = vmatprep.subr.bf16.mxu0 0
  %80 = vmatpush2.bf16.msra.mxu0 0
  %81 = vmatprep.subr.bf16.mxu0 0
  %82 = vmatpush2.bf16.msra.mxu0 0
  %83 = vmatprep.subr.bf16.mxu0 0
  %84 = vmatpush2.bf16.msra.mxu0 0
  %85 = vmatprep.subr.bf16.mxu0 0
  %86 = vmatpush2.bf16.msra.mxu0 0
  %87 = vmatprep.mubr.bf16.mxu0 0
  %88 = vmatmul.mubr.bf16.gmra.mxu0 %v53
  %v89 = vpop.f32.mrf.mxu0
  %v90 = vadd.f32 0.0, %v89
  %v91 = vpop.f32.mrf.mxu0
  %v92 = vpop.f32.mrf.mxu0
  %v93 = vpop.f32.mrf.mxu0
  %94 = vdwg.mxu0
  %v95 = vld [vmem:[%s2] sm:$0xff]
  %97 = vset.pattern.permute.xlu0 0
  %98 = vperm.xlu0 %97, %v95
  %v99 = vpop.permute.xlu0 %98
  %v101 = vmul.f32 %v90, %v99
  %v102 = vld [vmem:[%s3] sm:$0xff]
  %104 = vset.pattern.permute.xlu0 0
  %105 = vperm.xlu0 %104, %v102
  %v106 = vpop.permute.xlu0 %105
  %v108 = vadd.f32 %v101, %v106
  %109 = vst [vmem:[%s4] sm:$0xff] %v108
  // Predicated region
  $region18: #{cost_reg_net.58} parent=0 // pred_check
    _
  $region19: #{cost_reg_net.58} parent=0 // pred_check_branch
    %111 = sbr.rel (0) target = $region21
  $region20: #{cost_reg_net.58} parent=0 // pred_region
    _
  $region21: #{cost_reg_net.58} parent=0 // pred_fallthru
    _
  // Predicated region
  $region22: #{cost_reg_net.58} parent=0 // pred_check
    _
  $region23: #{cost_reg_net.58} parent=0 // pred_check_branch
    %113 = sbr.rel (0) target = $region25
  $region24: #{cost_reg_net.58} parent=0 // pred_region
    _
  $region25: #{cost_reg_net.58} parent=0 // pred_fallthru
    _

// kernel: cost_reg_net.56
$region0: #{cost_reg_net.56}
  #allocation0 [shape = 'u32[]', space=smem, size = 0x4, offset = 0x4, fixed_abs, tag = 'smem constant byte address 0x4 - core index']
  #allocation1 [shape = 'u32[144,128]{1,0:T(1,128)}', space=vmem, size = 0x12000, scoped, tag = 'internal scratch']
  %s0 = inlined_call_operand.vmem [shape: bf16[8,32], index: 0, kind: input, shape index: {}]
  %s1 = inlined_call_operand.vmem [shape: bf16[32,128], index: 1, kind: input, shape index: {}]
  %s2 = inlined_call_operand.vmem [shape: f32[8,1], index: 2, kind: input, shape index: {}]
  %s3 = inlined_call_operand.vmem [shape: f32[8,1], index: 3, kind: input, shape index: {}]
  %s4 = inlined_call_operand.vmem [shape: f32[8,128], index: 4, kind: output, shape index: {}]
  %s5 = sld [smem:[#allocation0]]
  $region26: #{cost_reg_net.56} parent=0
    _
  %s7 = ssub.s32 1, %s5
  %s8 = scalar_select 0, %s7, %s5
  // Predicated region
  $region2: #{cost_reg_net.56} parent=0 // pred_check
    _
  $region3: #{cost_reg_net.56} parent=0 // pred_check_branch
    %10 = sbr.rel (0) target = $region5
  $region4: #{cost_reg_net.56} parent=0 // pred_region
    _
  $region5: #{cost_reg_net.56} parent=0 // pred_fallthru
    _
  // Predicated region
  $region6: #{cost_reg_net.56} parent=0 // pred_check
    _
  $region7: #{cost_reg_net.56} parent=0 // pred_check_branch
    %12 = sbr.rel (0) target = $region9
  $region8: #{cost_reg_net.56} parent=0 // pred_region
    _
  $region9: #{cost_reg_net.56} parent=0 // pred_fallthru
    _
  // Predicated region
  $region10: #{cost_reg_net.56} parent=0 // pred_check
    _
  $region11: #{cost_reg_net.56} parent=0 // pred_check_branch
    %14 = sbr.rel (0) target = $region13
  $region12: #{cost_reg_net.56} parent=0 // pred_region
    _
  $region13: #{cost_reg_net.56} parent=0 // pred_fallthru
    _
  // Predicated region
  $region14: #{cost_reg_net.56} parent=0 // pred_check
    _
  $region15: #{cost_reg_net.56} parent=0 // pred_check_branch
    %16 = sbr.rel (0) target = $region17
  $region16: #{cost_reg_net.56} parent=0 // pred_region
    _
  $region17: #{cost_reg_net.56} parent=0 // pred_fallthru
    _
  %v18 = vld [vmem:[%s0] sm:$0xf]
  %v19 = vld [vmem:[%s1] sm:$0xf]
  %v20 = vld [vmem:[%s1 + $0x4] sm:$0xf]
  %v21 = vld [vmem:[%s1 + $0x8] sm:$0xf]
  %v22 = vld [vmem:[%s1 + $0xc] sm:$0xf]
  %v27 = vunpack.c.l.b16 %v19
  %v28 = vunpack.c.l.b16 %v20
  %v29 = vunpack.c.l.b16 %v21
  %v30 = vunpack.c.l.b16 %v22
  %v31 = vpack.c.b16 %v28, %v27
  %v32 = vpack.c.b16 %v30, %v29
  %vm35 = vcmask 261120
  %v37 = vsel %vm35, %v18, 0
  %39 = vmatprep.subr.bf16.mxu0 0
  %40 = vmatpush1.bf16.msra.mxu0 0
  %41 = vmatprep.subr.bf16.mxu0 0
  %42 = vmatpush1.bf16.msra.mxu0 0
  %43 = vmatprep.subr.bf16.mxu0 0
  %44 = vmatpush1.bf16.msra.mxu0 0
  %45 = vmatprep.subr.bf16.mxu0 0
  %46 = vmatpush1.bf16.msra.mxu0 0
  %47 = vmatprep.subr.bf16.mxu0 0
  %48 = vmatpush1.bf16.msra.mxu0 0
  %49 = vmatprep.subr.bf16.mxu0 0
  %50 = vmatpush1.bf16.msra.mxu0 0
  %51 = vmatprep.subr.bf16.mxu0 0
  %52 = vmatpush1.bf16.msra.mxu0 %v32
  %53 = vmatprep.subr.bf16.mxu0 0
  %54 = vmatpush1.bf16.msra.mxu0 %v31
  %55 = vmatprep.subr.bf16.mxu0 0
  %56 = vmatpush2.bf16.msra.mxu0 0
  %57 = vmatprep.subr.bf16.mxu0 0
  %58 = vmatpush2.bf16.msra.mxu0 0
  %59 = vmatprep.subr.bf16.mxu0 0
  %60 = vmatpush2.bf16.msra.mxu0 0
  %61 = vmatprep.subr.bf16.mxu0 0
  %62 = vmatpush2.bf16.msra.mxu0 0
  %63 = vmatprep.subr.bf16.mxu0 0
  %64 = vmatpush2.bf16.msra.mxu0 0
  %65 = vmatprep.subr.bf16.mxu0 0
  %66 = vmatpush2.bf16.msra.mxu0 0
  %67 = vmatprep.subr.bf16.mxu0 0
  %68 = vmatpush2.bf16.msra.mxu0 0
  %69 = vmatprep.subr.bf16.mxu0 0
  %70 = vmatpush2.bf16.msra.mxu0 0
  %71 = vmatprep.mubr.bf16.mxu0 0
  %72 = vmatmul.mubr.bf16.gmra.mxu0 %v37
  %v73 = vpop.f32.mrf.mxu0
  %v74 = vadd.f32 0.0, %v73
  %v75 = vpop.f32.mrf.mxu0
  %v76 = vpop.f32.mrf.mxu0
  %v77 = vpop.f32.mrf.mxu0
  %78 = vdwg.mxu0
  %v79 = vld [vmem:[%s2] sm:$0xff]
  %81 = vset.pattern.permute.xlu0 0
  %82 = vperm.xlu0 %81, %v79
  %v83 = vpop.permute.xlu0 %82
  %v85 = vmul.f32 %v74, %v83
  %v86 = vld [vmem:[%s3] sm:$0xff]
  %88 = vset.pattern.permute.xlu0 0
  %89 = vperm.xlu0 %88, %v86
  %v90 = vpop.permute.xlu0 %89
  %v92 = vadd.f32 %v85, %v90
  %93 = vst [vmem:[%s4] sm:$0xff] %v92
  // Predicated region
  $region18: #{cost_reg_net.56} parent=0 // pred_check
    _
  $region19: #{cost_reg_net.56} parent=0 // pred_check_branch
    %95 = sbr.rel (0) target = $region21
  $region20: #{cost_reg_net.56} parent=0 // pred_region
    _
  $region21: #{cost_reg_net.56} parent=0 // pred_fallthru
    _
  // Predicated region
  $region22: #{cost_reg_net.56} parent=0 // pred_check
    _
  $region23: #{cost_reg_net.56} parent=0 // pred_check_branch
    %97 = sbr.rel (0) target = $region25
  $region24: #{cost_reg_net.56} parent=0 // pred_region
    _
  $region25: #{cost_reg_net.56} parent=0 // pred_fallthru
    _

// kernel: cost_reg_net.55
$region0: #{cost_reg_net.55}
  #allocation0 [shape = 'u32[]', space=smem, size = 0x4, offset = 0x4, fixed_abs, tag = 'smem constant byte address 0x4 - core index']
  #allocation1 [shape = 'u32[144,128]{1,0:T(1,128)}', space=vmem, size = 0x12000, scoped, tag = 'internal scratch']
  %s0 = inlined_call_operand.vmem [shape: bf16[8,16], index: 0, kind: input, shape index: {}]
  %s1 = inlined_call_operand.vmem [shape: bf16[16,128], index: 1, kind: input, shape index: {}]
  %s2 = inlined_call_operand.vmem [shape: f32[8,1], index: 2, kind: input, shape index: {}]
  %s3 = inlined_call_operand.vmem [shape: f32[8,1], index: 3, kind: input, shape index: {}]
  %s4 = inlined_call_operand.vmem [shape: f32[8,128], index: 4, kind: output, shape index: {}]
  %s5 = sld [smem:[#allocation0]]
  $region26: #{cost_reg_net.55} parent=0
    _
  %s7 = ssub.s32 1, %s5
  %s8 = scalar_select 0, %s7, %s5
  // Predicated region
  $region2: #{cost_reg_net.55} parent=0 // pred_check
    _
  $region3: #{cost_reg_net.55} parent=0 // pred_check_branch
    %10 = sbr.rel (0) target = $region5
  $region4: #{cost_reg_net.55} parent=0 // pred_region
    _
  $region5: #{cost_reg_net.55} parent=0 // pred_fallthru
    _
  // Predicated region
  $region6: #{cost_reg_net.55} parent=0 // pred_check
    _
  $region7: #{cost_reg_net.55} parent=0 // pred_check_branch
    %12 = sbr.rel (0) target = $region9
  $region8: #{cost_reg_net.55} parent=0 // pred_region
    _
  $region9: #{cost_reg_net.55} parent=0 // pred_fallthru
    _
  // Predicated region
  $region10: #{cost_reg_net.55} parent=0 // pred_check
    _
  $region11: #{cost_reg_net.55} parent=0 // pred_check_branch
    %14 = sbr.rel (0) target = $region13
  $region12: #{cost_reg_net.55} parent=0 // pred_region
    _
  $region13: #{cost_reg_net.55} parent=0 // pred_fallthru
    _
  // Predicated region
  $region14: #{cost_reg_net.55} parent=0 // pred_check
    _
  $region15: #{cost_reg_net.55} parent=0 // pred_check_branch
    %16 = sbr.rel (0) target = $region17
  $region16: #{cost_reg_net.55} parent=0 // pred_region
    _
  $region17: #{cost_reg_net.55} parent=0 // pred_fallthru
    _
  %v18 = vld [vmem:[%s0] sm:$0xf]
  %v19 = vld [vmem:[%s1] sm:$0xf]
  %v20 = vld [vmem:[%s1 + $0x4] sm:$0xf]
  %v23 = vunpack.c.l.b16 %v19
  %v24 = vunpack.c.l.b16 %v20
  %v25 = vpack.c.b16 %v24, %v23
  %vm27 = vcmask 130048
  %v29 = vsel %vm27, %v18, 0
  %31 = vmatprep.subr.bf16.mxu0 0
  %32 = vmatpush1.bf16.msra.mxu0 0
  %33 = vmatprep.subr.bf16.mxu0 0
  %34 = vmatpush1.bf16.msra.mxu0 0
  %35 = vmatprep.subr.bf16.mxu0 0
  %36 = vmatpush1.bf16.msra.mxu0 0
  %37 = vmatprep.subr.bf16.mxu0 0
  %38 = vmatpush1.bf16.msra.mxu0 0
  %39 = vmatprep.subr.bf16.mxu0 0
  %40 = vmatpush1.bf16.msra.mxu0 0
  %41 = vmatprep.subr.bf16.mxu0 0
  %42 = vmatpush1.bf16.msra.mxu0 0
  %43 = vmatprep.subr.bf16.mxu0 0
  %44 = vmatpush1.bf16.msra.mxu0 0
  %45 = vmatprep.subr.bf16.mxu0 0
  %46 = vmatpush1.bf16.msra.mxu0 %v25
  %47 = vmatprep.subr.bf16.mxu0 0
  %48 = vmatpush2.bf16.msra.mxu0 0
  %49 = vmatprep.subr.bf16.mxu0 0
  %50 = vmatpush2.bf16.msra.mxu0 0
  %51 = vmatprep.subr.bf16.mxu0 0
  %52 = vmatpush2.bf16.msra.mxu0 0
  %53 = vmatprep.subr.bf16.mxu0 0
  %54 = vmatpush2.bf16.msra.mxu0 0
  %55 = vmatprep.subr.bf16.mxu0 0
  %56 = vmatpush2.bf16.msra.mxu0 0
  %57 = vmatprep.subr.bf16.mxu0 0
  %58 = vmatpush2.bf16.msra.mxu0 0
  %59 = vmatprep.subr.bf16.mxu0 0
  %60 = vmatpush2.bf16.msra.mxu0 0
  %61 = vmatprep.subr.bf16.mxu0 0
  %62 = vmatpush2.bf16.msra.mxu0 0
  %63 = vmatprep.mubr.bf16.mxu0 0
  %64 = vmatmul.mubr.bf16.gmra.mxu0 %v29
  %v65 = vpop.f32.mrf.mxu0
  %v66 = vadd.f32 0.0, %v65
  %v67 = vpop.f32.mrf.mxu0
  %v68 = vpop.f32.mrf.mxu0
  %v69 = vpop.f32.mrf.mxu0
  %70 = vdwg.mxu0
  %v71 = vld [vmem:[%s2] sm:$0xff]
  %73 = vset.pattern.permute.xlu0 0
  %74 = vperm.xlu0 %73, %v71
  %v75 = vpop.permute.xlu0 %74
  %v77 = vmul.f32 %v66, %v75
  %v78 = vld [vmem:[%s3] sm:$0xff]
  %80 = vset.pattern.permute.xlu0 0
  %81 = vperm.xlu0 %80, %v78
  %v82 = vpop.permute.xlu0 %81
  %v84 = vadd.f32 %v77, %v82
  %85 = vst [vmem:[%s4] sm:$0xff] %v84
  // Predicated region
  $region18: #{cost_reg_net.55} parent=0 // pred_check
    _
  $region19: #{cost_reg_net.55} parent=0 // pred_check_branch
    %87 = sbr.rel (0) target = $region21
  $region20: #{cost_reg_net.55} parent=0 // pred_region
    _
  $region21: #{cost_reg_net.55} parent=0 // pred_fallthru
    _
  // Predicated region
  $region22: #{cost_reg_net.55} parent=0 // pred_check
    _
  $region23: #{cost_reg_net.55} parent=0 // pred_check_branch
    %89 = sbr.rel (0) target = $region25
  $region24: #{cost_reg_net.55} parent=0 // pred_region
    _
  $region25: #{cost_reg_net.55} parent=0 // pred_fallthru
    _

// kernel: cost_reg_net.63
$region0: #{cost_reg_net.63}
  #allocation0 [shape = 'u32[]', space=smem, size = 0x4, offset = 0x4, fixed_abs, tag = 'smem constant byte address 0x4 - core index']
  #allocation1 [shape = 'u32[144,128]{1,0:T(1,128)}', space=vmem, size = 0x12000, scoped, tag = 'internal scratch']
  %s0 = inlined_call_operand.vmem [shape: bf16[9,216], index: 0, kind: input, shape index: {}]
  %s1 = inlined_call_operand.vmem [shape: bf16[216,1024], index: 1, kind: input, shape index: {}]
  %s2 = inlined_call_operand.vmem [shape: f32[9,1], index: 2, kind: input, shape index: {}]
  %s3 = inlined_call_operand.vmem [shape: f32[9,1], index: 3, kind: input, shape index: {}]
  %s4 = inlined_call_operand.vmem [shape: f32[9,1024], index: 4, kind: output, shape index: {}]
  %s5 = sld [smem:[#allocation0]]
  $region91: #{cost_reg_net.63} parent=0
    _
  %s7 = ssub.s32 1, %s5
  %s8 = scalar_select 0, %s7, %s5
  $region1: #{cost_reg_net.63} parent=0
    #allocation2 [shape = 'u8[442368]{0}', space=vmem, size = 0x6c000, scoped, tag = 'input window, operand 1']
    #allocation3 [shape = 'u8[65536]{0}', space=vmem, size = 0x10000, scoped, tag = 'output window, operand 0']
    loop: start=0, step=1, limit=4
    $region2: #{cost_reg_net.63} parent=1 // loop_pre_header
      _
    $region3: #{cost_reg_net.63} parent=1 // loop_header
      %s10 = sphi 0, %s14
      %p11 = scmp.ge.s32.totalorder %s10, 4
      %s18 = sphi 0, %s18
      %s20 = sphi 0, %s18
      %s21 = sphi 0, %s20
      %s35 = sphi 0, %s21
      %s41 = sphi 0, %s43
      %s44 = sphi 0, %s41
      %s45 = sphi 0, %s44
      %s61 = sphi 0, %s45
      %s65 = sphi 0, %s65
      %s67 = sphi 0, %s65
      %s68 = sphi 0, %s67
      %s82 = sphi 0, %s68
      %s86 = sphi 0, %s86
      %s88 = sphi 0, %s86
      %s89 = sphi 0, %s88
      %s103 = sphi 0, %s89
      %s109 = sphi 0, %s111
      %s112 = sphi 0, %s109
      %s113 = sphi 0, %s112
      %s129 = sphi 0, %s113
    $region4: #{cost_reg_net.63} parent=1 // loop_header_branch
      %13 = sbr.rel (%p11) target = $region8
    $region5: #{cost_reg_net.63} parent=1 // loop_body
      %s15 = ssub.s32 %s10, 1
      %s16 = ssub.s32 %s10, 2
      %s17 = sadd.s32 %s10, 1
      %s19 = sadd.s32 %s18, 1
      %p22 = scmp.eq.s32.totalorder %s10, 1
      %p23 = scmp.ne.s32.totalorder %s18, %s20
      %p24 = scmp.eq.s32.totalorder %s10, 0
      %p25 = por %p23, %p24
      %p26 = scmp.ne.s32.totalorder %s18, %s20
      %p27 = scmp.eq.s32.totalorder %s15, 1
      %p28 = por %p26, %p27
      %p29 = scmp.ne.s32.totalorder %s20, %s21
      %p30 = scmp.eq.s32.totalorder %s15, 0
      %p31 = por %p29, %p30
      %p32 = scmp.ne.s32.totalorder %s20, %s21
      %p33 = scmp.eq.s32.totalorder %s16, 1
      %p34 = por %p32, %p33
      %p36 = scmp.ne.s32.totalorder %s21, %s35
      %p37 = scmp.eq.s32.totalorder %s16, 0
      %p38 = por %p36, %p37
      %s39 = ssub.s32 %s10, %s17
      %p40 = scmp.eq.s32.totalorder %s39, 0
      %s42 = sadd.s32 %s41, 1
      %s43 = scalar_select %p40, %s41, %s42
      %p46 = pneg %p40
      %p47 = scmp.eq.s32.totalorder %s10, 1
      %p48 = por %p46, %p47
      %p49 = scmp.ne.s32.totalorder %s41, %s44
      %p50 = scmp.eq.s32.totalorder %s10, 0
      %p51 = por %p49, %p50
      %p52 = scmp.ne.s32.totalorder %s41, %s44
      %p53 = scmp.eq.s32.totalorder %s15, 1
      %p54 = por %p52, %p53
      %p55 = scmp.ne.s32.totalorder %s44, %s45
      %p56 = scmp.eq.s32.totalorder %s15, 0
      %p57 = por %p55, %p56
      %p58 = scmp.ne.s32.totalorder %s44, %s45
      %p59 = scmp.eq.s32.totalorder %s16, 1
      %p60 = por %p58, %p59
      %p62 = scmp.ne.s32.totalorder %s45, %s61
      %p63 = scmp.eq.s32.totalorder %s16, 0
      %p64 = por %p62, %p63
      %s66 = sadd.s32 %s65, 1
      %p69 = scmp.eq.s32.totalorder %s10, 1
      %p70 = scmp.ne.s32.totalorder %s65, %s67
      %p71 = scmp.eq.s32.totalorder %s10, 0
      %p72 = por %p70, %p71
      %p73 = scmp.ne.s32.totalorder %s65, %s67
      %p74 = scmp.eq.s32.totalorder %s15, 1
      %p75 = por %p73, %p74
      %p76 = scmp.ne.s32.totalorder %s67, %s68
      %p77 = scmp.eq.s32.totalorder %s15, 0
      %p78 = por %p76, %p77
      %p79 = scmp.ne.s32.totalorder %s67, %s68
      %p80 = scmp.eq.s32.totalorder %s16, 1
      %p81 = por %p79, %p80
      %p83 = scmp.ne.s32.totalorder %s68, %s82
      %p84 = scmp.eq.s32.totalorder %s16, 0
      %p85 = por %p83, %p84
      %s87 = sadd.s32 %s86, 1
      %p90 = scmp.eq.s32.totalorder %s10, 1
      %p91 = scmp.ne.s32.totalorder %s86, %s88
      %p92 = scmp.eq.s32.totalorder %s10, 0
      %p93 = por %p91, %p92
      %p94 = scmp.ne.s32.totalorder %s86, %s88
      %p95 = scmp.eq.s32.totalorder %s15, 1
      %p96 = por %p94, %p95
      %p97 = scmp.ne.s32.totalorder %s88, %s89
      %p98 = scmp.eq.s32.totalorder %s15, 0
      %p99 = por %p97, %p98
      %p100 = scmp.ne.s32.totalorder %s88, %s89
      %p101 = scmp.eq.s32.totalorder %s16, 1
      %p102 = por %p100, %p101
      %p104 = scmp.ne.s32.totalorder %s89, %s103
      %p105 = scmp.eq.s32.totalorder %s16, 0
      %p106 = por %p104, %p105
      %s107 = ssub.s32 %s10, %s17
      %p108 = scmp.eq.s32.totalorder %s107, 0
      %s110 = sadd.s32 %s109, 1
      %s111 = scalar_select %p108, %s109, %s110
      %p114 = pneg %p108
      %p115 = scmp.eq.s32.totalorder %s10, 1
      %p116 = por %p114, %p115
      %p117 = scmp.ne.s32.totalorder %s109, %s112
      %p118 = scmp.eq.s32.totalorder %s10, 0
      %p119 = por %p117, %p118
      %p120 = scmp.ne.s32.totalorder %s109, %s112
      %p121 = scmp.eq.s32.totalorder %s15, 1
      %p122 = por %p120, %p121
      %p123 = scmp.ne.s32.totalorder %s112, %s113
      %p124 = scmp.eq.s32.totalorder %s15, 0
      %p125 = por %p123, %p124
      %p126 = scmp.ne.s32.totalorder %s112, %s113
      %p127 = scmp.eq.s32.totalorder %s16, 1
      %p128 = por %p126, %p127
      %p130 = scmp.ne.s32.totalorder %s113, %s129
      %p131 = scmp.eq.s32.totalorder %s16, 0
      %p132 = por %p130, %p131
      %p133 = scmp.le.s32.totalorder 1, %s10
      %p134 = scmp.lt.s32.totalorder %s10, 3
      %p135 = pnand %p133, %p134
      %p136 = pneg %p135
      // Predicated region
      $region9: #{cost_reg_net.63} parent=5 // pred_check
        _
      $region10: #{cost_reg_net.63} parent=5 // pred_check_branch
        %138 = sbr.rel (%p135) target = $region12
      $region11: #{cost_reg_net.63} parent=5 // pred_region
        %s139 = ssub.s32 %s10, 1
        // Predicated region
        $region13: #{cost_reg_net.63} parent=11 // pred_check
          %p140 = pneg %p31
        $region14: #{cost_reg_net.63} parent=11 // pred_check_branch
          %142 = sbr.rel (%p140) target = $region16
        $region15: #{cost_reg_net.63} parent=11 // pred_region
          _
        $region16: #{cost_reg_net.63} parent=11 // pred_fallthru
          _
        // Predicated region
        $region17: #{cost_reg_net.63} parent=11 // pred_check
          %p143 = pneg %p78
        $region18: #{cost_reg_net.63} parent=11 // pred_check_branch
          %145 = sbr.rel (%p143) target = $region20
        $region19: #{cost_reg_net.63} parent=11 // pred_region
          _
        $region20: #{cost_reg_net.63} parent=11 // pred_fallthru
          _
        // Predicated region
        $region21: #{cost_reg_net.63} parent=11 // pred_check
          %p146 = pneg %p99
        $region22: #{cost_reg_net.63} parent=11 // pred_check_branch
          %148 = sbr.rel (%p146) target = $region24
        $region23: #{cost_reg_net.63} parent=11 // pred_region
          _
        $region24: #{cost_reg_net.63} parent=11 // pred_fallthru
          _
      $region12: #{cost_reg_net.63} parent=5 // pred_fallthru
        _
      %p149 = scmp.lt.s32.totalorder %s10, 2
      // Predicated region
      $region25: #{cost_reg_net.63} parent=5 // pred_check
        %p150 = pneg %p149
      $region26: #{cost_reg_net.63} parent=5 // pred_check_branch
        %152 = sbr.rel (%p150) target = $region28
      $region27: #{cost_reg_net.63} parent=5 // pred_region
        // Predicated region
        $region29: #{cost_reg_net.63} parent=27 // pred_check
          %p153 = pneg %p51
        $region30: #{cost_reg_net.63} parent=27 // pred_check_branch
          %155 = sbr.rel (%p153) target = $region32
        $region31: #{cost_reg_net.63} parent=27 // pred_region
          %s156 = sand.u32 %s41, 1
          %s157 = sand.u32 %s41, 1
          %s158 = smul.addr %s157, 432
          %s159 = scalar_lea.vmem [#allocation2], %s158
          %s160 = smul.u32 4, %s10
          %s161 = smul.addr %s160, 4
          %s162 = scalar_lea.vmem %s1, %s161
          // Predicated region
          $region33: #{cost_reg_net.63} parent=31 // pred_check
            _
          $region34: #{cost_reg_net.63} parent=31 // pred_check_branch
            %164 = sbr.rel (0) target = $region36
          $region35: #{cost_reg_net.63} parent=31 // pred_region
            // Predicated region
            $region37: #{cost_reg_net.63} parent=35 // pred_check
              _
            $region38: #{cost_reg_net.63} parent=35 // pred_check_branch
              %166 = sbr.rel (0) target = $region40
            $region39: #{cost_reg_net.63} parent=35 // pred_region
              loop: start=0, step=1, limit=1
              $region41: #{cost_reg_net.63} parent=39 // loop_pre_header
                _
              $region42: #{cost_reg_net.63} parent=39 // loop_header
                %s168 = sphi 0, %s172
                %p169 = scmp.ge.s32.totalorder %s168, 1
                %s173 = sphi %s162, %s162
                %s174 = sphi %s159, %s159
              $region43: #{cost_reg_net.63} parent=39 // loop_header_branch
                %171 = sbr.rel (%p169) target = $region47
              $region44: #{cost_reg_net.63} parent=39 // loop_body
                %v175 = vld [vmem:[%s173] sm:$0xff]
                %176 = vst [vmem:[%s174] sm:$0xff] %v175
                %v177 = vld [vmem:[%s173 + $0x8] sm:$0xff]
                %178 = vst [vmem:[%s174 + $0x8] sm:$0xff] %v177
                %v179 = vld [vmem:[%s173 + $0x20] sm:$0xff]
                %180 = vst [vmem:[%s174 + $0x10] sm:$0xff] %v179
                %v181 = vld [vmem:[%s173 + $0x28] sm:$0xff]
                %182 = vst [vmem:[%s174 + $0x18] sm:$0xff] %v181
                %v183 = vld [vmem:[%s173 + $0x40] sm:$0xff]
                %184 = vst [vmem:[%s174 + $0x20] sm:$0xff] %v183
                %v185 = vld [vmem:[%s173 + $0x48] sm:$0xff]
                %186 = vst [vmem:[%s174 + $0x28] sm:$0xff] %v185
                %v187 = vld [vmem:[%s173 + $0x60] sm:$0xff]
                %188 = vst [vmem:[%s174 + $0x30] sm:$0xff] %v187
                %v189 = vld [vmem:[%s173 + $0x68] sm:$0xff]
                %190 = vst [vmem:[%s174 + $0x38] sm:$0xff] %v189
                %v191 = vld [vmem:[%s173 + $0x80] sm:$0xff]
                %192 = vst [vmem:[%s174 + $0x40] sm:$0xff] %v191
                %v193 = vld [vmem:[%s173 + $0x88] sm:$0xff]
                %194 = vst [vmem:[%s174 + $0x48] sm:$0xff] %v193
                %v195 = vld [vmem:[%s173 + $0xa0] sm:$0xff]
                %196 = vst [vmem:[%s174 + $0x50] sm:$0xff] %v195
                %v197 = vld [vmem:[%s173 + $0xa8] sm:$0xff]
                %198 = vst [vmem:[%s174 + $0x58] sm:$0xff] %v197
                %v199 = vld [vmem:[%s173 + $0xc0] sm:$0xff]
                %200 = vst [vmem:[%s174 + $0x60] sm:$0xff] %v199
                %v201 = vld [vmem:[%s173 + $0xc8] sm:$0xff]
                %202 = vst [vmem:[%s174 + $0x68] sm:$0xff] %v201
                %v203 = vld [vmem:[%s173 + $0xe0] sm:$0xff]
                %204 = vst [vmem:[%s174 + $0x70] sm:$0xff] %v203
                %v205 = vld [vmem:[%s173 + $0xe8] sm:$0xff]
                %206 = vst [vmem:[%s174 + $0x78] sm:$0xff] %v205
                %v207 = vld [vmem:[%s173 + $0x100] sm:$0xff]
                %208 = vst [vmem:[%s174 + $0x80] sm:$0xff] %v207
                %v209 = vld [vmem:[%s173 + $0x108] sm:$0xff]
                %210 = vst [vmem:[%s174 + $0x88] sm:$0xff] %v209
                %v211 = vld [vmem:[%s173 + $0x120] sm:$0xff]
                %212 = vst [vmem:[%s174 + $0x90] sm:$0xff] %v211
                %v213 = vld [vmem:[%s173 + $0x128] sm:$0xff]
                %214 = vst [vmem:[%s174 + $0x98] sm:$0xff] %v213
                %v215 = vld [vmem:[%s173 + $0x140] sm:$0xff]
                %216 = vst [vmem:[%s174 + $0xa0] sm:$0xff] %v215
                %v217 = vld [vmem:[%s173 + $0x148] sm:$0xff]
                %218 = vst [vmem:[%s174 + $0xa8] sm:$0xff] %v217
                %v219 = vld [vmem:[%s173 + $0x160] sm:$0xff]
                %220 = vst [vmem:[%s174 + $0xb0] sm:$0xff] %v219
                %v221 = vld [vmem:[%s173 + $0x168] sm:$0xff]
                %222 = vst [vmem:[%s174 + $0xb8] sm:$0xff] %v221
                %v223 = vld [vmem:[%s173 + $0x180] sm:$0xff]
                %224 = vst [vmem:[%s174 + $0xc0] sm:$0xff] %v223
                %v225 = vld [vmem:[%s173 + $0x188] sm:$0xff]
                %226 = vst [vmem:[%s174 + $0xc8] sm:$0xff] %v225
                %v227 = vld [vmem:[%s173 + $0x1a0] sm:$0xff]
                %228 = vst [vmem:[%s174 + $0xd0] sm:$0xff] %v227
                %v229 = vld [vmem:[%s173 + $0x1a8] sm:$0xff]
                %230 = vst [vmem:[%s174 + $0xd8] sm:$0xff] %v229
                %v231 = vld [vmem:[%s173 + $0x1c0] sm:$0xff]
                %232 = vst [vmem:[%s174 + $0xe0] sm:$0xff] %v231
                %v233 = vld [vmem:[%s173 + $0x1c8] sm:$0xff]
                %234 = vst [vmem:[%s174 + $0xe8] sm:$0xff] %v233
                %v235 = vld [vmem:[%s173 + $0x1e0] sm:$0xff]
                %236 = vst [vmem:[%s174 + $0xf0] sm:$0xff] %v235
                %v237 = vld [vmem:[%s173 + $0x1e8] sm:$0xff]
                %238 = vst [vmem:[%s174 + $0xf8] sm:$0xff] %v237
                %v239 = vld [vmem:[%s173 + $0x200] sm:$0xff]
                %240 = vst [vmem:[%s174 + $0x100] sm:$0xff] %v239
                %v241 = vld [vmem:[%s173 + $0x208] sm:$0xff]
                %242 = vst [vmem:[%s174 + $0x108] sm:$0xff] %v241
                %v243 = vld [vmem:[%s173 + $0x220] sm:$0xff]
                %244 = vst [vmem:[%s174 + $0x110] sm:$0xff] %v243
                %v245 = vld [vmem:[%s173 + $0x228] sm:$0xff]
                %246 = vst [vmem:[%s174 + $0x118] sm:$0xff] %v245
                %v247 = vld [vmem:[%s173 + $0x240] sm:$0xff]
                %248 = vst [vmem:[%s174 + $0x120] sm:$0xff] %v247
                %v249 = vld [vmem:[%s173 + $0x248] sm:$0xff]
                %250 = vst [vmem:[%s174 + $0x128] sm:$0xff] %v249
                %v251 = vld [vmem:[%s173 + $0x260] sm:$0xff]
                %252 = vst [vmem:[%s174 + $0x130] sm:$0xff] %v251
                %v253 = vld [vmem:[%s173 + $0x268] sm:$0xff]
                %254 = vst [vmem:[%s174 + $0x138] sm:$0xff] %v253
                %v255 = vld [vmem:[%s173 + $0x280] sm:$0xff]
                %256 = vst [vmem:[%s174 + $0x140] sm:$0xff] %v255
                %v257 = vld [vmem:[%s173 + $0x288] sm:$0xff]
                %258 = vst [vmem:[%s174 + $0x148] sm:$0xff] %v257
                %v259 = vld [vmem:[%s173 + $0x2a0] sm:$0xff]
                %260 = vst [vmem:[%s174 + $0x150] sm:$0xff] %v259
                %v261 = vld [vmem:[%s173 + $0x2a8] sm:$0xff]
                %262 = vst [vmem:[%s174 + $0x158] sm:$0xff] %v261
                %v263 = vld [vmem:[%s173 + $0x2c0] sm:$0xff]
                %264 = vst [vmem:[%s174 + $0x160] sm:$0xff] %v263
                %v265 = vld [vmem:[%s173 + $0x2c8] sm:$0xff]
                %266 = vst [vmem:[%s174 + $0x168] sm:$0xff] %v265
                %v267 = vld [vmem:[%s173 + $0x2e0] sm:$0xff]
                %268 = vst [vmem:[%s174 + $0x170] sm:$0xff] %v267
                %v269 = vld [vmem:[%s173 + $0x2e8] sm:$0xff]
                %270 = vst [vmem:[%s174 + $0x178] sm:$0xff] %v269
                %v271 = vld [vmem:[%s173 + $0x300] sm:$0xff]
                %272 = vst [vmem:[%s174 + $0x180] sm:$0xff] %v271
                %v273 = vld [vmem:[%s173 + $0x308] sm:$0xff]
                %274 = vst [vmem:[%s174 + $0x188] sm:$0xff] %v273
                %v275 = vld [vmem:[%s173 + $0x320] sm:$0xff]
                %276 = vst [vmem:[%s174 + $0x190] sm:$0xff] %v275
                %v277 = vld [vmem:[%s173 + $0x328] sm:$0xff]
                %278 = vst [vmem:[%s174 + $0x198] sm:$0xff] %v277
                %v279 = vld [vmem:[%s173 + $0x340] sm:$0xff]
                %280 = vst [vmem:[%s174 + $0x1a0] sm:$0xff] %v279
                %v281 = vld [vmem:[%s173 + $0x348] sm:$0xff]
                %282 = vst [vmem:[%s174 + $0x1a8] sm:$0xff] %v281
              $region45: #{cost_reg_net.63} parent=39 // loop_footer
                %s172 = sadd.s32 1, %s168
              $region46: #{cost_reg_net.63} parent=39 // loop_footer_branch
                %167 = sbr.rel target = $region42
              $region47: #{cost_reg_net.63} parent=39 // loop_exit
                _
            $region40: #{cost_reg_net.63} parent=35 // pred_fallthru
              _
            // Predicated region
            $region48: #{cost_reg_net.63} parent=35 // pred_check
              _
            $region49: #{cost_reg_net.63} parent=35 // pred_check_branch
              %284 = sbr.rel target = $region51
            $region50: #{cost_reg_net.63} parent=35 // pred_region
              _
            $region51: #{cost_reg_net.63} parent=35 // pred_fallthru
              _
          $region36: #{cost_reg_net.63} parent=31 // pred_fallthru
            _
          %285 = vnop
        $region32: #{cost_reg_net.63} parent=27 // pred_fallthru
          _
      $region28: #{cost_reg_net.63} parent=5 // pred_fallthru
        _
      %p286 = scmp.le.s32.totalorder 1, %s10
      %p287 = scmp.lt.s32.totalorder %s10, 3
      %p288 = pnand %p286, %p287
      %p289 = pneg %p288
      // Predicated region
      $region52: #{cost_reg_net.63} parent=5 // pred_check
        _
      $region53: #{cost_reg_net.63} parent=5 // pred_check_branch
        %291 = sbr.rel (%p288) target = $region55
      $region54: #{cost_reg_net.63} parent=5 // pred_region
        %s292 = ssub.s32 %s10, 1
        %s293 = sand.u32 %s44, 1
        %s294 = sand.u32 %s44, 1
        %s295 = smul.addr %s294, 432
        %s296 = scalar_lea.vmem [#allocation2], %s295
        // Predicated region
        $region56: #{cost_reg_net.63} parent=54 // pred_check
          %p297 = pneg %p57
        $region57: #{cost_reg_net.63} parent=54 // pred_check_branch
          %299 = sbr.rel (%p297) target = $region59
        $region58: #{cost_reg_net.63} parent=54 // pred_region
          _
        $region59: #{cost_reg_net.63} parent=54 // pred_fallthru
          _
        %p300 = pneg %p31
        %p301 = pneg %p28
        %s302 = sand.u32 %s44, 1
        %s303 = sand.u32 %s44, 1
        %s304 = smul.addr %s303, 432
        %s305 = scalar_lea.vmem [#allocation2], %s304
        %p306 = pneg %p57
        %p307 = pneg %p54
        %p308 = pneg %p78
        %p309 = pneg %p75
        %p310 = pneg %p99
        %p311 = pneg %p96
        %p312 = pneg %p125
        %p313 = pneg %p122
        %s314 = sand.u32 %s112, 1
        %s315 = sand.u32 %s112, 1
        %s316 = smul.addr %s315, 64
        %s317 = scalar_lea.vmem [#allocation3], %s316
        %s318 = smul.u32 4, %s15
        %s319 = smul.u32 4, %s15
        %v321 = vld [vmem:[%s0] sm:$0xff]
        %v322 = vld [vmem:[%s0 + $0x8] sm:$0x11]
        %v323 = vld [vmem:[%s296] sm:$0xff]
        %v324 = vld [vmem:[%s296 + $0x8] sm:$0xff]
        %v325 = vld [vmem:[%s296 + $0x10] sm:$0xff]
        %v326 = vld [vmem:[%s296 + $0x18] sm:$0xff]
        %v327 = vld [vmem:[%s296 + $0x20] sm:$0xff]
        %v328 = vld [vmem:[%s296 + $0x28] sm:$0xff]
        %v329 = vld [vmem:[%s296 + $0x30] sm:$0xff]
        %v330 = vld [vmem:[%s296 + $0x38] sm:$0xff]
        %v331 = vld [vmem:[%s296 + $0x40] sm:$0xff]
        %v332 = vld [vmem:[%s296 + $0x48] sm:$0xff]
        %v333 = vld [vmem:[%s296 + $0x50] sm:$0xff]
        %v334 = vld [vmem:[%s296 + $0x58] sm:$0xff]
        %v335 = vld [vmem:[%s296 + $0x60] sm:$0xff]
        %v336 = vld [vmem:[%s296 + $0x68] sm:$0xff]
        %v337 = vld [vmem:[%s296 + $0x70] sm:$0xff]
        %v338 = vld [vmem:[%s296 + $0x78] sm:$0xff]
        %v339 = vld [vmem:[%s296 + $0x80] sm:$0xff]
        %v340 = vld [vmem:[%s296 + $0x88] sm:$0xff]
        %v341 = vld [vmem:[%s296 + $0x90] sm:$0xff]
        %v342 = vld [vmem:[%s296 + $0x98] sm:$0xff]
        %v343 = vld [vmem:[%s296 + $0xa0] sm:$0xff]
        %v344 = vld [vmem:[%s296 + $0xa8] sm:$0xff]
        %v345 = vld [vmem:[%s296 + $0xb0] sm:$0xff]
        %v346 = vld [vmem:[%s296 + $0xb8] sm:$0xff]
        %v347 = vld [vmem:[%s296 + $0xc0] sm:$0xff]
        %v348 = vld [vmem:[%s296 + $0xc8] sm:$0xff]
        %v349 = vld [vmem:[%s296 + $0xd0] sm:$0xff]
        %v350 = vld [vmem:[%s296 + $0xd8] sm:$0xff]
        %v351 = vld [vmem:[%s296 + $0xe0] sm:$0xff]
        %v352 = vld [vmem:[%s296 + $0xe8] sm:$0xff]
        %v353 = vld [vmem:[%s296 + $0xf0] sm:$0xff]
        %v354 = vld [vmem:[%s296 + $0xf8] sm:$0xff]
        %v355 = vld [vmem:[%s296 + $0x100] sm:$0xff]
        %v356 = vld [vmem:[%s296 + $0x108] sm:$0xff]
        %v357 = vld [vmem:[%s296 + $0x110] sm:$0xff]
        %v358 = vld [vmem:[%s296 + $0x118] sm:$0xff]
        %v359 = vld [vmem:[%s296 + $0x120] sm:$0xff]
        %v360 = vld [vmem:[%s296 + $0x128] sm:$0xff]
        %v361 = vld [vmem:[%s296 + $0x130] sm:$0xff]
        %v362 = vld [vmem:[%s296 + $0x138] sm:$0xff]
        %v363 = vld [vmem:[%s296 + $0x140] sm:$0xff]
        %v364 = vld [vmem:[%s296 + $0x148] sm:$0xff]
        %v365 = vld [vmem:[%s296 + $0x150] sm:$0xff]
        %v366 = vld [vmem:[%s296 + $0x158] sm:$0xff]
        %v367 = vld [vmem:[%s296 + $0x160] sm:$0xff]
        %v368 = vld [vmem:[%s296 + $0x168] sm:$0xff]
        %v369 = vld [vmem:[%s296 + $0x170] sm:$0xff]
        %v370 = vld [vmem:[%s296 + $0x178] sm:$0xff]
        %v371 = vld [vmem:[%s296 + $0x180] sm:$0xff]
        %v372 = vld [vmem:[%s296 + $0x188] sm:$0xff]
        %v373 = vld [vmem:[%s296 + $0x190] sm:$0xff]
        %v374 = vld [vmem:[%s296 + $0x198] sm:$0xff]
        %v375 = vld [vmem:[%s296 + $0x1a0] sm:$0xff]
        %v376 = vld [vmem:[%s296 + $0x1a8] sm:$0xff]
        %v379 = vunpack.c.l.b16 %v321
        %v380 = vunpack.c.h.b16 %v321
        %v381 = vunpack.c.l.b16 %v322
        %v382 = vunpack.c.h.b16 %v322
        %v383 = vpack.c.b16 %v381, %v379
        %v384 = vpack.c.b16 %v382, %v380
        %v440 = vunpack.c.l.b16 %v323
        %v441 = vunpack.c.h.b16 %v323
        %v442 = vunpack.c.l.b16 %v324
        %v443 = vunpack.c.h.b16 %v324
        %v444 = vunpack.c.l.b16 %v325
        %v445 = vunpack.c.h.b16 %v325
        %v446 = vunpack.c.l.b16 %v326
        %v447 = vunpack.c.h.b16 %v326
        %v448 = vunpack.c.l.b16 %v327
        %v449 = vunpack.c.h.b16 %v327
        %v450 = vunpack.c.l.b16 %v328
        %v451 = vunpack.c.h.b16 %v328
        %v452 = vunpack.c.l.b16 %v329
        %v453 = vunpack.c.h.b16 %v329
        %v454 = vunpack.c.l.b16 %v330
        %v455 = vunpack.c.h.b16 %v330
        %v456 = vunpack.c.l.b16 %v331
        %v457 = vunpack.c.h.b16 %v331
        %v458 = vunpack.c.l.b16 %v332
        %v459 = vunpack.c.h.b16 %v332
        %v460 = vunpack.c.l.b16 %v333
        %v461 = vunpack.c.h.b16 %v333
        %v462 = vunpack.c.l.b16 %v334
        %v463 = vunpack.c.h.b16 %v334
        %v464 = vunpack.c.l.b16 %v335
        %v465 = vunpack.c.h.b16 %v335
        %v466 = vunpack.c.l.b16 %v336
        %v467 = vunpack.c.h.b16 %v336
        %v468 = vunpack.c.l.b16 %v337
        %v469 = vunpack.c.h.b16 %v337
        %v470 = vunpack.c.l.b16 %v338
        %v471 = vunpack.c.h.b16 %v338
        %v472 = vunpack.c.l.b16 %v339
        %v473 = vunpack.c.h.b16 %v339
        %v474 = vunpack.c.l.b16 %v340
        %v475 = vunpack.c.h.b16 %v340
        %v476 = vunpack.c.l.b16 %v341
        %v477 = vunpack.c.h.b16 %v341
        %v478 = vunpack.c.l.b16 %v342
        %v479 = vunpack.c.h.b16 %v342
        %v480 = vunpack.c.l.b16 %v343
        %v481 = vunpack.c.h.b16 %v343
        %v482 = vunpack.c.l.b16 %v344
        %v483 = vunpack.c.h.b16 %v344
        %v484 = vunpack.c.l.b16 %v345
        %v485 = vunpack.c.h.b16 %v345
        %v486 = vunpack.c.l.b16 %v346
        %v487 = vunpack.c.h.b16 %v346
        %v488 = vunpack.c.l.b16 %v347
        %v489 = vunpack.c.h.b16 %v347
        %v490 = vunpack.c.l.b16 %v348
        %v491 = vunpack.c.h.b16 %v348
        %v492 = vunpack.c.l.b16 %v349
        %v493 = vunpack.c.h.b16 %v349
        %v494 = vunpack.c.l.b16 %v350
        %v495 = vunpack.c.h.b16 %v350
        %v496 = vunpack.c.l.b16 %v351
        %v497 = vunpack.c.h.b16 %v351
        %v498 = vunpack.c.l.b16 %v352
        %v499 = vunpack.c.h.b16 %v352
        %v500 = vunpack.c.l.b16 %v353
        %v501 = vunpack.c.h.b16 %v353
        %v502 = vunpack.c.l.b16 %v354
        %v503 = vunpack.c.h.b16 %v354
        %v504 = vunpack.c.l.b16 %v355
        %v505 = vunpack.c.h.b16 %v355
        %v506 = vunpack.c.l.b16 %v356
        %v507 = vunpack.c.h.b16 %v356
        %v508 = vunpack.c.l.b16 %v357
        %v509 = vunpack.c.h.b16 %v357
        %v510 = vunpack.c.l.b16 %v358
        %v511 = vunpack.c.h.b16 %v358
        %v512 = vunpack.c.l.b16 %v359
        %v513 = vunpack.c.h.b16 %v359
        %v514 = vunpack.c.l.b16 %v360
        %v515 = vunpack.c.h.b16 %v360
        %v516 = vunpack.c.l.b16 %v361
        %v517 = vunpack.c.h.b16 %v361
        %v518 = vunpack.c.l.b16 %v362
        %v519 = vunpack.c.h.b16 %v362
        %v520 = vunpack.c.l.b16 %v363
        %v521 = vunpack.c.h.b16 %v363
        %v522 = vunpack.c.l.b16 %v364
        %v523 = vunpack.c.h.b16 %v364
        %v524 = vunpack.c.l.b16 %v365
        %v525 = vunpack.c.h.b16 %v365
        %v526 = vunpack.c.l.b16 %v366
        %v527 = vunpack.c.h.b16 %v366
        %v528 = vunpack.c.l.b16 %v367
        %v529 = vunpack.c.h.b16 %v367
        %v530 = vunpack.c.l.b16 %v368
        %v531 = vunpack.c.h.b16 %v368
        %v532 = vunpack.c.l.b16 %v369
        %v533 = vunpack.c.h.b16 %v369
        %v534 = vunpack.c.l.b16 %v370
        %v535 = vunpack.c.h.b16 %v370
        %v536 = vunpack.c.l.b16 %v371
        %v537 = vunpack.c.h.b16 %v371
        %v538 = vunpack.c.l.b16 %v372
        %v539 = vunpack.c.h.b16 %v372
        %v540 = vunpack.c.l.b16 %v373
        %v541 = vunpack.c.h.b16 %v373
        %v542 = vunpack.c.l.b16 %v374
        %v543 = vunpack.c.h.b16 %v374
        %v544 = vunpack.c.l.b16 %v375
        %v545 = vunpack.c.h.b16 %v375
        %v546 = vunpack.c.l.b16 %v376
        %v547 = vunpack.c.h.b16 %v376
        %v548 = vpack.c.b16 %v444, %v440
        %v549 = vpack.c.b16 %v445, %v441
        %v550 = vpack.c.b16 %v446, %v442
        %v551 = vpack.c.b16 %v447, %v443
        %v552 = vpack.c.b16 %v452, %v448
        %v553 = vpack.c.b16 %v453, %v449
        %v554 = vpack.c.b16 %v454, %v450
        %v555 = vpack.c.b16 %v455, %v451
        %v556 = vpack.c.b16 %v460, %v456
        %v557 = vpack.c.b16 %v461, %v457
        %v558 = vpack.c.b16 %v462, %v458
        %v559 = vpack.c.b16 %v463, %v459
        %v560 = vpack.c.b16 %v468, %v464
        %v561 = vpack.c.b16 %v469, %v465
        %v562 = vpack.c.b16 %v470, %v466
        %v563 = vpack.c.b16 %v471, %v467
        %v564 = vpack.c.b16 %v476, %v472
        %v565 = vpack.c.b16 %v477, %v473
        %v566 = vpack.c.b16 %v478, %v474
        %v567 = vpack.c.b16 %v479, %v475
        %v568 = vpack.c.b16 %v484, %v480
        %v569 = vpack.c.b16 %v485, %v481
        %v570 = vpack.c.b16 %v486, %v482
        %v571 = vpack.c.b16 %v487, %v483
        %v572 = vpack.c.b16 %v492, %v488
        %v573 = vpack.c.b16 %v493, %v489
        %v574 = vpack.c.b16 %v494, %v490
        %v575 = vpack.c.b16 %v495, %v491
        %v576 = vpack.c.b16 %v500, %v496
        %v577 = vpack.c.b16 %v501, %v497
        %v578 = vpack.c.b16 %v502, %v498
        %v579 = vpack.c.b16 %v503, %v499
        %v580 = vpack.c.b16 %v508, %v504
        %v581 = vpack.c.b16 %v509, %v505
        %v582 = vpack.c.b16 %v510, %v506
        %v583 = vpack.c.b16 %v511, %v507
        %v584 = vpack.c.b16 %v516, %v512
        %v585 = vpack.c.b16 %v517, %v513
        %v586 = vpack.c.b16 %v518, %v514
        %v587 = vpack.c.b16 %v519, %v515
        %v588 = vpack.c.b16 %v524, %v520
        %v589 = vpack.c.b16 %v525, %v521
        %v590 = vpack.c.b16 %v526, %v522
        %v591 = vpack.c.b16 %v527, %v523
        %v592 = vpack.c.b16 %v532, %v528
        %v593 = vpack.c.b16 %v533, %v529
        %v594 = vpack.c.b16 %v534, %v530
        %v595 = vpack.c.b16 %v535, %v531
        %v596 = vpack.c.b16 %v540, %v536
        %v597 = vpack.c.b16 %v541, %v537
        %v598 = vpack.c.b16 %v542, %v538
        %v599 = vpack.c.b16 %v543, %v539
        %v600 = vpack.c.b16 %v544, %v544
        %v601 = vpack.c.b16 %v545, %v545
        %v602 = vpack.c.b16 %v546, %v546
        %v603 = vpack.c.b16 %v547, %v547
        %vm656 = vcmask 719872
        %v658 = vsel %vm656, %v384, 0
        %vm660 = vcmask 1043456
        %v662 = vsel %vm660, %v600, 0
        %v665 = vsel %vm660, %v601, 0
        %v668 = vsel %vm660, %v602, 0
        %v671 = vsel %vm660, %v603, 0
        %673 = vmatprep.subr.bf16.mxu0 %v577
        %674 = vmatpush1.bf16.msra.mxu0 %v576
        %675 = vmatprep.subr.bf16.mxu0 %v573
        %676 = vmatpush1.bf16.msra.mxu0 %v572
        %677 = vmatprep.subr.bf16.mxu0 %v569
        %678 = vmatpush1.bf16.msra.mxu0 %v568
        %679 = vmatprep.subr.bf16.mxu0 %v565
        %680 = vmatpush1.bf16.msra.mxu0 %v564
        %681 = vmatprep.subr.bf16.mxu0 %v561
        %682 = vmatpush1.bf16.msra.mxu0 %v560
        %683 = vmatprep.subr.bf16.mxu0 %v557
        %684 = vmatpush1.bf16.msra.mxu0 %v556
        %685 = vmatprep.subr.bf16.mxu0 %v553
        %686 = vmatpush1.bf16.msra.mxu0 %v552
        %687 = vmatprep.subr.bf16.mxu0 %v549
        %688 = vmatpush1.bf16.msra.mxu0 %v548
        %689 = vmatprep.subr.bf16.mxu0 0
        %690 = vmatpush2.bf16.msra.mxu0 0
        %691 = vmatprep.subr.bf16.mxu0 0
        %692 = vmatpush2.bf16.msra.mxu0 0
        %693 = vmatprep.subr.bf16.mxu0 %v665
        %694 = vmatpush2.bf16.msra.mxu0 %v662
        %695 = vmatprep.subr.bf16.mxu0 %v597
        %696 = vmatpush2.bf16.msra.mxu0 %v596
        %697 = vmatprep.subr.bf16.mxu0 %v593
        %698 = vmatpush2.bf16.msra.mxu0 %v592
        %699 = vmatprep.subr.bf16.mxu0 %v589
        %700 = vmatpush2.bf16.msra.mxu0 %v588
        %701 = vmatprep.subr.bf16.mxu0 %v585
        %702 = vmatpush2.bf16.msra.mxu0 %v584
        %703 = vmatprep.subr.bf16.mxu0 %v581
        %704 = vmatpush2.bf16.msra.mxu0 %v580
        %705 = vmatprep.mubr.bf16.mxu0 %v658
        %706 = vmatmul.mubr.bf16.gmra.mxu0 %v383
        %v707 = vpop.f32.mrf.mxu0
        %v708 = vadd.f32 0.0, %v707
        %v709 = vpop.f32.mrf.mxu0
        %v710 = vadd.f32 0.0, %v709
        %v711 = vpop.f32.mrf.mxu0
        %v712 = vadd.f32 0.0, %v711
        %v713 = vpop.f32.mrf.mxu0
        %v714 = vadd.f32 0.0, %v713
        %715 = vdwg.mxu0
        %716 = vmatprep.subr.bf16.mxu0 %v579
        %717 = vmatpush1.bf16.msra.mxu0 %v578
        %718 = vmatprep.subr.bf16.mxu0 %v575
        %719 = vmatpush1.bf16.msra.mxu0 %v574
        %720 = vmatprep.subr.bf16.mxu0 %v571
        %721 = vmatpush1.bf16.msra.mxu0 %v570
        %722 = vmatprep.subr.bf16.mxu0 %v567
        %723 = vmatpush1.bf16.msra.mxu0 %v566
        %724 = vmatprep.subr.bf16.mxu0 %v563
        %725 = vmatpush1.bf16.msra.mxu0 %v562
        %726 = vmatprep.subr.bf16.mxu0 %v559
        %727 = vmatpush1.bf16.msra.mxu0 %v558
        %728 = vmatprep.subr.bf16.mxu0 %v555
        %729 = vmatpush1.bf16.msra.mxu0 %v554
        %730 = vmatprep.subr.bf16.mxu0 %v551
        %731 = vmatpush1.bf16.msra.mxu0 %v550
        %732 = vmatprep.subr.bf16.mxu0 0
        %733 = vmatpush2.bf16.msra.mxu0 0
        %734 = vmatprep.subr.bf16.mxu0 0
        %735 = vmatpush2.bf16.msra.mxu0 0
        %736 = vmatprep.subr.bf16.mxu0 %v671
        %737 = vmatpush2.bf16.msra.mxu0 %v668
        %738 = vmatprep.subr.bf16.mxu0 %v599
        %739 = vmatpush2.bf16.msra.mxu0 %v598
        %740 = vmatprep.subr.bf16.mxu0 %v595
        %741 = vmatpush2.bf16.msra.mxu0 %v594
        %742 = vmatprep.subr.bf16.mxu0 %v591
        %743 = vmatpush2.bf16.msra.mxu0 %v590
        %744 = vmatprep.subr.bf16.mxu0 %v587
        %745 = vmatpush2.bf16.msra.mxu0 %v586
        %746 = vmatprep.subr.bf16.mxu0 %v583
        %747 = vmatpush2.bf16.msra.mxu0 %v582
        %748 = vmatprep.mubr.bf16.mxu0 %v658
        %749 = vmatmul.mubr.bf16.gmra.mxu0 %v383
        %v750 = vpop.f32.mrf.mxu0
        %v751 = vadd.f32 0.0, %v750
        %v752 = vpop.f32.mrf.mxu0
        %v753 = vadd.f32 0.0, %v752
        %v754 = vpop.f32.mrf.mxu0
        %v755 = vadd.f32 0.0, %v754
        %v756 = vpop.f32.mrf.mxu0
        %v757 = vadd.f32 0.0, %v756
        %758 = vdwg.mxu0
        %v759 = vld [vmem:[%s2] sm:$0xff]
        %v760 = vld [vmem:[%s2 + $0x8] sm:$0x1]
        %762 = vset.pattern.permute.xlu0 0
        %763 = vperm.xlu0 %762, %v759
        %v764 = vpop.permute.xlu0 %763
        %767 = vset.pattern.permute.xlu0 0
        %768 = vperm.xlu0 %767, %v760
        %v769 = vpop.permute.xlu0 %768
        %v771 = vmul.f32 %v708, %v764
        %v772 = vmul.f32 %v710, %v764
        %v773 = vmul.f32 %v751, %v764
        %v774 = vmul.f32 %v753, %v764
        %v775 = vmul.f32 %v712, %v769
        %v776 = vmul.f32 %v714, %v769
        %v777 = vmul.f32 %v755, %v769
        %v778 = vmul.f32 %v757, %v769
        %v779 = vld [vmem:[%s3] sm:$0xff]
        %v780 = vld [vmem:[%s3 + $0x8] sm:$0x1]
        %782 = vset.pattern.permute.xlu0 0
        %783 = vperm.xlu0 %782, %v779
        %v784 = vpop.permute.xlu0 %783
        %787 = vset.pattern.permute.xlu0 0
        %788 = vperm.xlu0 %787, %v780
        %v789 = vpop.permute.xlu0 %788
        %v791 = vadd.f32 %v771, %v784
        %v792 = vadd.f32 %v772, %v784
        %v793 = vadd.f32 %v773, %v784
        %v794 = vadd.f32 %v774, %v784
        %v795 = vadd.f32 %v775, %v789
        %v796 = vadd.f32 %v776, %v789
        %v797 = vadd.f32 %v777, %v789
        %v798 = vadd.f32 %v778, %v789
        %799 = vst [vmem:[%s317] sm:$0xff] %v791
        %800 = vst [vmem:[%s317 + $0x8] sm:$0xff] %v792
        %801 = vst [vmem:[%s317 + $0x10] sm:$0xff] %v793
        %802 = vst [vmem:[%s317 + $0x18] sm:$0xff] %v794
        %803 = vst [vmem:[%s317 + $0x20] sm:$0x1] %v795
        %804 = vst [vmem:[%s317 + $0x28] sm:$0x1] %v796
        %805 = vst [vmem:[%s317 + $0x30] sm:$0x1] %v797
        %806 = vst [vmem:[%s317 + $0x38] sm:$0x1] %v798
        %s807 = sand.u32 %s112, 1
        %s808 = sand.u32 %s112, 1
        %s809 = smul.addr %s808, 64
        %s810 = scalar_lea.vmem [#allocation3], %s809
        // Predicated region
        $region60: #{cost_reg_net.63} parent=54 // pred_check
          %p811 = pneg %p122
        $region61: #{cost_reg_net.63} parent=54 // pred_check_branch
          %813 = sbr.rel (%p811) target = $region63
        $region62: #{cost_reg_net.63} parent=54 // pred_region
          %s814 = smul.u32 4, %s15
          %s815 = smul.addr %s814, 8
          %s816 = scalar_lea.vmem %s4, %s815
          // Predicated region
          $region64: #{cost_reg_net.63} parent=62 // pred_check
            _
          $region65: #{cost_reg_net.63} parent=62 // pred_check_branch
            %818 = sbr.rel (0) target = $region67
          $region66: #{cost_reg_net.63} parent=62 // pred_region
            // Predicated region
            $region68: #{cost_reg_net.63} parent=66 // pred_check
              _
            $region69: #{cost_reg_net.63} parent=66 // pred_check_branch
              %820 = sbr.rel (0) target = $region71
            $region70: #{cost_reg_net.63} parent=66 // pred_region
              loop: start=0, step=1, limit=1
              $region72: #{cost_reg_net.63} parent=70 // loop_pre_header
                _
              $region73: #{cost_reg_net.63} parent=70 // loop_header
                %s822 = sphi 0, %s826
                %p823 = scmp.ge.s32.totalorder %s822, 1
                %s827 = sphi %s810, %s810
                %s828 = sphi %s816, %s816
              $region74: #{cost_reg_net.63} parent=70 // loop_header_branch
                %825 = sbr.rel (%p823) target = $region78
              $region75: #{cost_reg_net.63} parent=70 // loop_body
                %v829 = vld [vmem:[%s827] sm:$0xff]
                %830 = vst [vmem:[%s828] sm:$0xff] %v829
                %v831 = vld [vmem:[%s827 + $0x8] sm:$0xff]
                %832 = vst [vmem:[%s828 + $0x8] sm:$0xff] %v831
                %v833 = vld [vmem:[%s827 + $0x10] sm:$0xff]
                %834 = vst [vmem:[%s828 + $0x10] sm:$0xff] %v833
                %v835 = vld [vmem:[%s827 + $0x18] sm:$0xff]
                %836 = vst [vmem:[%s828 + $0x18] sm:$0xff] %v835
                %v837 = vld [vmem:[%s827 + $0x20] sm:$0xff]
                %838 = vst [vmem:[%s828 + $0x40] sm:$0xff] %v837
                %v839 = vld [vmem:[%s827 + $0x28] sm:$0xff]
                %840 = vst [vmem:[%s828 + $0x48] sm:$0xff] %v839
                %v841 = vld [vmem:[%s827 + $0x30] sm:$0xff]
                %842 = vst [vmem:[%s828 + $0x50] sm:$0xff] %v841
                %v843 = vld [vmem:[%s827 + $0x38] sm:$0xff]
                %844 = vst [vmem:[%s828 + $0x58] sm:$0xff] %v843
              $region76: #{cost_reg_net.63} parent=70 // loop_footer
                %s826 = sadd.s32 1, %s822
              $region77: #{cost_reg_net.63} parent=70 // loop_footer_branch
                %821 = sbr.rel target = $region73
              $region78: #{cost_reg_net.63} parent=70 // loop_exit
                _
            $region71: #{cost_reg_net.63} parent=66 // pred_fallthru
              _
            // Predicated region
            $region79: #{cost_reg_net.63} parent=66 // pred_check
              _
            $region80: #{cost_reg_net.63} parent=66 // pred_check_branch
              %846 = sbr.rel target = $region82
            $region81: #{cost_reg_net.63} parent=66 // pred_region
              _
            $region82: #{cost_reg_net.63} parent=66 // pred_fallthru
              _
          $region67: #{cost_reg_net.63} parent=62 // pred_fallthru
            _
          %847 = vnop
        $region63: #{cost_reg_net.63} parent=54 // pred_fallthru
          _
      $region55: #{cost_reg_net.63} parent=5 // pred_fallthru
        _
      %p848 = scmp.le.s32.totalorder 2, %s10
      // Predicated region
      $region83: #{cost_reg_net.63} parent=5 // pred_check
        %p849 = pneg %p848
      $region84: #{cost_reg_net.63} parent=5 // pred_check_branch
        %851 = sbr.rel (%p849) target = $region86
      $region85: #{cost_reg_net.63} parent=5 // pred_region
        %s852 = ssub.s32 %s10, 2
        // Predicated region
        $region87: #{cost_reg_net.63} parent=85 // pred_check
          %p853 = pneg %p128
        $region88: #{cost_reg_net.63} parent=85 // pred_check_branch
          %855 = sbr.rel (%p853) target = $region90
        $region89: #{cost_reg_net.63} parent=85 // pred_region
          %s856 = sand.u32 %s113, 1
          %s857 = sand.u32 %s113, 1
          %s858 = smul.addr %s857, 64
          %s859 = scalar_lea.vmem [#allocation3], %s858
        $region90: #{cost_reg_net.63} parent=85 // pred_fallthru
          _
      $region86: #{cost_reg_net.63} parent=5 // pred_fallthru
        _
    $region6: #{cost_reg_net.63} parent=1 // loop_footer
      %s14 = sadd.s32 1, %s10
    $region7: #{cost_reg_net.63} parent=1 // loop_footer_branch
      %9 = sbr.rel target = $region3
    $region8: #{cost_reg_net.63} parent=1 // loop_exit
      _

// kernel: squeeze.1
$region0: #{squeeze.1}
  %s0 = inlined_call_operand.vmem [shape: f32[1024], index: 0, kind: input, shape index: {}]
  %s1 = inlined_call_operand.hbm [shape: f32[2,8,8,8], index: 1, kind: output, shape index: {}]
  $region1: #{squeeze.1} parent=0
    #allocation0 [shape = 'u8[65536]{0}', space=vmem, size = 0x10000, scoped, tag = 'operand span for operand 1']
    #allocation1 [shape = 's32[1]{0}', space=sflag, size = 0x4, scoped, tag = 'scoped memory for squeeze.1']
    %2 = vsyncpa [#allocation1], 0
    %v3 = vld [vmem:[%s0] sm:$0xff]
    %vm4 = vcmask 64512
    %5 = vst.msk [vmem:[#allocation0] ss:$16 sm:$0x3] %vm4, %v3
    %6 = vst.msk [vmem:[#allocation0] ss:$16 sm:$0xc] %vm4, %v3
    %7 = vst.msk [vmem:[#allocation0] ss:$16 sm:$0x30] %vm4, %v3
    %8 = vst.msk [vmem:[#allocation0] ss:$16 sm:$0xc0] %vm4, %v3
    %v9 = vld [vmem:[%s0] sm:$0xff]
    %10 = vrot.lane.b32.xlu0 %v9, 120
    %v11 = vpop.permute.xlu0 %10
    %vm12 = vcmask 64512
    %s13 = scalar_lea.vmem [#allocation0], 1
    %14 = vst.msk [vmem:[%s13] ss:$16 sm:$0x3] %vm12, %v11
    %s15 = scalar_lea.vmem [#allocation0], 1
    %16 = vst.msk [vmem:[%s15] ss:$16 sm:$0xc] %vm12, %v11
    %s17 = scalar_lea.vmem [#allocation0], 1
    %18 = vst.msk [vmem:[%s17] ss:$16 sm:$0x30] %vm12, %v11
    %s19 = scalar_lea.vmem [#allocation0], 1
    %20 = vst.msk [vmem:[%s19] ss:$16 sm:$0xc0] %vm12, %v11
    %v21 = vld [vmem:[%s0] sm:$0xff]
    %22 = vrot.lane.b32.xlu0 %v21, 112
    %v23 = vpop.permute.xlu0 %22
    %vm24 = vcmask 64512
    %s25 = scalar_lea.vmem [#allocation0], 2
    %26 = vst.msk [vmem:[%s25] ss:$16 sm:$0x3] %vm24, %v23
    %s27 = scalar_lea.vmem [#allocation0], 2
    %28 = vst.msk [vmem:[%s27] ss:$16 sm:$0xc] %vm24, %v23
    %s29 = scalar_lea.vmem [#allocation0], 2
    %30 = vst.msk [vmem:[%s29] ss:$16 sm:$0x30] %vm24, %v23
    %s31 = scalar_lea.vmem [#allocation0], 2
    %32 = vst.msk [vmem:[%s31] ss:$16 sm:$0xc0] %vm24, %v23
    %v33 = vld [vmem:[%s0] sm:$0xff]
    %34 = vrot.lane.b32.xlu0 %v33, 104
    %v35 = vpop.permute.xlu0 %34
    %vm36 = vcmask 64512
    %s37 = scalar_lea.vmem [#allocation0], 3
    %38 = vst.msk [vmem:[%s37] ss:$16 sm:$0x3] %vm36, %v35
    %s39 = scalar_lea.vmem [#allocation0], 3
    %40 = vst.msk [vmem:[%s39] ss:$16 sm:$0xc] %vm36, %v35
    %s41 = scalar_lea.vmem [#allocation0], 3
    %42 = vst.msk [vmem:[%s41] ss:$16 sm:$0x30] %vm36, %v35
    %s43 = scalar_lea.vmem [#allocation0], 3
    %44 = vst.msk [vmem:[%s43] ss:$16 sm:$0xc0] %vm36, %v35
    %v45 = vld [vmem:[%s0] sm:$0xff]
    %46 = vrot.lane.b32.xlu0 %v45, 96
    %v47 = vpop.permute.xlu0 %46
    %vm48 = vcmask 64512
    %s49 = scalar_lea.vmem [#allocation0], 4
    %50 = vst.msk [vmem:[%s49] ss:$16 sm:$0x3] %vm48, %v47
    %s51 = scalar_lea.vmem [#allocation0], 4
    %52 = vst.msk [vmem:[%s51] ss:$16 sm:$0xc] %vm48, %v47
    %s53 = scalar_lea.vmem [#allocation0], 4
    %54 = vst.msk [vmem:[%s53] ss:$16 sm:$0x30] %vm48, %v47
    %s55 = scalar_lea.vmem [#allocation0], 4
    %56 = vst.msk [vmem:[%s55] ss:$16 sm:$0xc0] %vm48, %v47
    %v57 = vld [vmem:[%s0] sm:$0xff]
    %58 = vrot.lane.b32.xlu0 %v57, 88
    %v59 = vpop.permute.xlu0 %58
    %vm60 = vcmask 64512
    %s61 = scalar_lea.vmem [#allocation0], 5
    %62 = vst.msk [vmem:[%s61] ss:$16 sm:$0x3] %vm60, %v59
    %s63 = scalar_lea.vmem [#allocation0], 5
    %64 = vst.msk [vmem:[%s63] ss:$16 sm:$0xc] %vm60, %v59
    %s65 = scalar_lea.vmem [#allocation0], 5
    %66 = vst.msk [vmem:[%s65] ss:$16 sm:$0x30] %vm60, %v59
    %s67 = scalar_lea.vmem [#allocation0], 5
    %68 = vst.msk [vmem:[%s67] ss:$16 sm:$0xc0] %vm60, %v59
    %v69 = vld [vmem:[%s0] sm:$0xff]
    %70 = vrot.lane.b32.xlu0 %v69, 80
    %v71 = vpop.permute.xlu0 %70
    %vm72 = vcmask 64512
    %s73 = scalar_lea.vmem [#allocation0], 6
    %74 = vst.msk [vmem:[%s73] ss:$16 sm:$0x3] %vm72, %v71
    %s75 = scalar_lea.vmem [#allocation0], 6
    %76 = vst.msk [vmem:[%s75] ss:$16 sm:$0xc] %vm72, %v71
    %s77 = scalar_lea.vmem [#allocation0], 6
    %78 = vst.msk [vmem:[%s77] ss:$16 sm:$0x30] %vm72, %v71
    %s79 = scalar_lea.vmem [#allocation0], 6
    %80 = vst.msk [vmem:[%s79] ss:$16 sm:$0xc0] %vm72, %v71
    %v81 = vld [vmem:[%s0] sm:$0xff]
    %82 = vrot.lane.b32.xlu0 %v81, 72
    %v83 = vpop.permute.xlu0 %82
    %vm84 = vcmask 64512
    %s85 = scalar_lea.vmem [#allocation0], 7
    %86 = vst.msk [vmem:[%s85] ss:$16 sm:$0x3] %vm84, %v83
    %s87 = scalar_lea.vmem [#allocation0], 7
    %88 = vst.msk [vmem:[%s87] ss:$16 sm:$0xc] %vm84, %v83
    %s89 = scalar_lea.vmem [#allocation0], 7
    %90 = vst.msk [vmem:[%s89] ss:$16 sm:$0x30] %vm84, %v83
    %s91 = scalar_lea.vmem [#allocation0], 7
    %92 = vst.msk [vmem:[%s91] ss:$16 sm:$0xc0] %vm84, %v83
    %v93 = vld [vmem:[%s0] sm:$0xff]
    %94 = vrot.lane.b32.xlu0 %v93, 64
    %v95 = vpop.permute.xlu0 %94
    %vm96 = vcmask 64512
    %s97 = scalar_lea.vmem [#allocation0], 8
    %98 = vst.msk [vmem:[%s97] ss:$16 sm:$0x3] %vm96, %v95
    %s99 = scalar_lea.vmem [#allocation0], 8
    %100 = vst.msk [vmem:[%s99] ss:$16 sm:$0xc] %vm96, %v95
    %s101 = scalar_lea.vmem [#allocation0], 8
    %102 = vst.msk [vmem:[%s101] ss:$16 sm:$0x30] %vm96, %v95
    %s103 = scalar_lea.vmem [#allocation0], 8
    %104 = vst.msk [vmem:[%s103] ss:$16 sm:$0xc0] %vm96, %v95
    %v105 = vld [vmem:[%s0] sm:$0xff]
    %106 = vrot.lane.b32.xlu0 %v105, 56
    %v107 = vpop.permute.xlu0 %106
    %vm108 = vcmask 64512
    %s109 = scalar_lea.vmem [#allocation0], 9
    %110 = vst.msk [vmem:[%s109] ss:$16 sm:$0x3] %vm108, %v107
    %s111 = scalar_lea.vmem [#allocation0], 9
    %112 = vst.msk [vmem:[%s111] ss:$16 sm:$0xc] %vm108, %v107
    %s113 = scalar_lea.vmem [#allocation0], 9
    %114 = vst.msk [vmem:[%s113] ss:$16 sm:$0x30] %vm108, %v107
    %s115 = scalar_lea.vmem [#allocation0], 9
    %116 = vst.msk [vmem:[%s115] ss:$16 sm:$0xc0] %vm108, %v107
    %v117 = vld [vmem:[%s0] sm:$0xff]
    %118 = vrot.lane.b32.xlu0 %v117, 48
    %v119 = vpop.permute.xlu0 %118
    %vm120 = vcmask 64512
    %s121 = scalar_lea.vmem [#allocation0], 10
    %122 = vst.msk [vmem:[%s121] ss:$16 sm:$0x3] %vm120, %v119
    %s123 = scalar_lea.vmem [#allocation0], 10
    %124 = vst.msk [vmem:[%s123] ss:$16 sm:$0xc] %vm120, %v119
    %s125 = scalar_lea.vmem [#allocation0], 10
    %126 = vst.msk [vmem:[%s125] ss:$16 sm:$0x30] %vm120, %v119
    %s127 = scalar_lea.vmem [#allocation0], 10
    %128 = vst.msk [vmem:[%s127] ss:$16 sm:$0xc0] %vm120, %v119
    %v129 = vld [vmem:[%s0] sm:$0xff]
    %130 = vrot.lane.b32.xlu0 %v129, 40
    %v131 = vpop.permute.xlu0 %130
    %vm132 = vcmask 64512
    %s133 = scalar_lea.vmem [#allocation0], 11
    %134 = vst.msk [vmem:[%s133] ss:$16 sm:$0x3] %vm132, %v131
    %s135 = scalar_lea.vmem [#allocation0], 11
    %136 = vst.msk [vmem:[%s135] ss:$16 sm:$0xc] %vm132, %v131
    %s137 = scalar_lea.vmem [#allocation0], 11
    %138 = vst.msk [vmem:[%s137] ss:$16 sm:$0x30] %vm132, %v131
    %s139 = scalar_lea.vmem [#allocation0], 11
    %140 = vst.msk [vmem:[%s139] ss:$16 sm:$0xc0] %vm132, %v131
    %v141 = vld [vmem:[%s0] sm:$0xff]
    %142 = vrot.lane.b32.xlu0 %v141, 32
    %v143 = vpop.permute.xlu0 %142
    %vm144 = vcmask 64512
    %s145 = scalar_lea.vmem [#allocation0], 12
    %146 = vst.msk [vmem:[%s145] ss:$16 sm:$0x3] %vm144, %v143
    %s147 = scalar_lea.vmem [#allocation0], 12
    %148 = vst.msk [vmem:[%s147] ss:$16 sm:$0xc] %vm144, %v143
    %s149 = scalar_lea.vmem [#allocation0], 12
    %150 = vst.msk [vmem:[%s149] ss:$16 sm:$0x30] %vm144, %v143
    %s151 = scalar_lea.vmem [#allocation0], 12
    %152 = vst.msk [vmem:[%s151] ss:$16 sm:$0xc0] %vm144, %v143
    %v153 = vld [vmem:[%s0] sm:$0xff]
    %154 = vrot.lane.b32.xlu0 %v153, 24
    %v155 = vpop.permute.xlu0 %154
    %vm156 = vcmask 64512
    %s157 = scalar_lea.vmem [#allocation0], 13
    %158 = vst.msk [vmem:[%s157] ss:$16 sm:$0x3] %vm156, %v155
    %s159 = scalar_lea.vmem [#allocation0], 13
    %160 = vst.msk [vmem:[%s159] ss:$16 sm:$0xc] %vm156, %v155
    %s161 = scalar_lea.vmem [#allocation0], 13
    %162 = vst.msk [vmem:[%s161] ss:$16 sm:$0x30] %vm156, %v155
    %s163 = scalar_lea.vmem [#allocation0], 13
    %164 = vst.msk [vmem:[%s163] ss:$16 sm:$0xc0] %vm156, %v155
    %v165 = vld [vmem:[%s0] sm:$0xff]
    %166 = vrot.lane.b32.xlu0 %v165, 16
    %v167 = vpop.permute.xlu0 %166
    %vm168 = vcmask 64512
    %s169 = scalar_lea.vmem [#allocation0], 14
    %170 = vst.msk [vmem:[%s169] ss:$16 sm:$0x3] %vm168, %v167
    %s171 = scalar_lea.vmem [#allocation0], 14
    %172 = vst.msk [vmem:[%s171] ss:$16 sm:$0xc] %vm168, %v167
    %s173 = scalar_lea.vmem [#allocation0], 14
    %174 = vst.msk [vmem:[%s173] ss:$16 sm:$0x30] %vm168, %v167
    %s175 = scalar_lea.vmem [#allocation0], 14
    %176 = vst.msk [vmem:[%s175] ss:$16 sm:$0xc0] %vm168, %v167
    %v177 = vld [vmem:[%s0] sm:$0xff]
    %178 = vrot.lane.b32.xlu0 %v177, 8
    %v179 = vpop.permute.xlu0 %178
    %vm180 = vcmask 64512
    %s181 = scalar_lea.vmem [#allocation0], 15
    %182 = vst.msk [vmem:[%s181] ss:$16 sm:$0x3] %vm180, %v179
    %s183 = scalar_lea.vmem [#allocation0], 15
    %184 = vst.msk [vmem:[%s183] ss:$16 sm:$0xc] %vm180, %v179
    %s185 = scalar_lea.vmem [#allocation0], 15
    %186 = vst.msk [vmem:[%s185] ss:$16 sm:$0x30] %vm180, %v179
    %s187 = scalar_lea.vmem [#allocation0], 15
    %188 = vst.msk [vmem:[%s187] ss:$16 sm:$0xc0] %vm180, %v179
    %s190 = ssub.s32 2048, 2048
    %191 = vsyncadd [#allocation1], %s190
    %s193 = sshll.u32 [#allocation0], 4
    %s194 = int_to_ptr.vmem [resolvable:$true] %s193
    %196 = dma.vmem_to_hbm [thread:$0]  %s194, 2048, %s1, [#allocation1]
    %197 = dma.done [#allocation1], 2048
    %198 = vsyncpa [#allocation1], 1

</llo_original>
